<compile_context>
chip_gen: v7x
topology: tpu7x:2x2x1
jax: 0.10.0
libtpu: 0.0.40
codegen_flags: <defaults>
</compile_context>

<pallas_src>
import math

import jax
import jax.numpy as jnp
from jax.experimental import pallas as pl
from jax.experimental.pallas import tpu as pltpu

EPS = 1e-6
KS = 7
PAD = 3
_INV_SQRT2 = 1.0 / math.sqrt(2.0)


def _gelu_exact(x):
    # PyTorch nn.GELU() default (approximate='none'): 0.5*x*(1+erf(x/sqrt(2)))
    return 0.5 * x * (1.0 + jax.lax.erf(x * _INV_SQRT2))


def convnext_block_kernel(x_ref, dww_ref, dwb_ref, rmsw_ref,
                          w1_ref, b1_ref, w2_ref, b2_ref,
                          out_ref, xpad_ref):
    # Block shapes:
    #   x_ref    : (1, H, W, C)        full image, resident across the H axis
    #   dww_ref  : (56, C)  depthwise 7x7 weights flattened (ky*7+kx, C), rows
    #                       49..55 are zero padding (sublane alignment)
    #   dwb_ref  : (1, C)    depthwise bias
    #   rmsw_ref : (1, C)    RMSNorm weight
    #   w1_ref   : (C, 4C) bf16,  b1_ref : (1, 4C) f32
    #   w2_ref   : (4C, C) bf16,  b2_ref : (1, C)  f32
    #   out_ref  : (1, tile_h, W, C)
    #   xpad_ref : (H+6, W+6, C) f32 VMEM scratch (zero-padded image)
    _, H, W, C = x_ref.shape
    _, tile_h, _, _ = out_ref.shape
    ht = pl.program_id(1)

    # --- build the zero-padded image in VMEM once per batch element ---
    @pl.when(ht == 0)
    def _():
        xpad_ref[...] = jnp.zeros_like(xpad_ref)
        xpad_ref[PAD:PAD + H, PAD:PAD + W, :] = x_ref[0].astype(jnp.float32)

    row0 = pl.multiple_of(ht * tile_h, tile_h)

    # --- depthwise 7x7 conv, padding=3, groups=dim ---
    # Hoist the weight load; split the 49-term MAC chain over 4 accumulators.
    dww = dww_ref[...]                                     # (56, C)
    accs = [jnp.zeros((tile_h, W, C), jnp.float32) for _ in range(4)]
    t = 0
    for i in range(KS):
        rows = xpad_ref[pl.ds(row0 + i, tile_h), :, :]     # (tile_h, W+6, C)
        for j in range(KS):
            w_ij = dww[i * KS + j].reshape(1, 1, C)
            accs[t % 4] = accs[t % 4] + rows[:, j:j + W, :] * w_ij
            t += 1
    acc = ((accs[0] + accs[1]) + (accs[2] + accs[3])) + dwb_ref[...].reshape(1, 1, C)

    # --- RMSNorm over the channel dim (eps=1e-6, elementwise affine) ---
    ms = jnp.mean(acc * acc, axis=-1, keepdims=True)
    y = acc * jax.lax.rsqrt(ms + EPS) * rmsw_ref[...].reshape(1, 1, C)

    # --- 1x1 conv (C -> 4C) + exact GELU + 1x1 conv (4C -> C) ---
    # bf16 operands, f32 accumulation on the MXU; per-row-tile so the (rows,4C)
    # intermediate stays small.
    y2 = y.reshape(tile_h * W, C).astype(jnp.bfloat16)
    h = jnp.dot(y2, w1_ref[...], preferred_element_type=jnp.float32)
    h = _gelu_exact(h + b1_ref[...])
    o = jnp.dot(h.astype(jnp.bfloat16), w2_ref[...],
                preferred_element_type=jnp.float32)
    o = o + b2_ref[...]

    # --- residual, read from the centre of the padded scratch ---
    x_tile = xpad_ref[pl.ds(row0 + PAD, tile_h), PAD:PAD + W, :]
    out_ref[0] = (x_tile + o.reshape(tile_h, W, C)).astype(out_ref.dtype)


def _pick_tile_h(H, W, target_rows=256):
    tile_h = max(1, min(H, target_rows // max(1, W)))
    while H % tile_h:
        tile_h -= 1
    return tile_h


def convnext_block_nhwc(x_nhwc, params):
    """x_nhwc: (N, H, W, C) float32.  Returns (N, H, W, C)."""
    dw_w, dw_b, rms_w, w1, b1, w2, b2 = params
    N, H, W, C = x_nhwc.shape
    C4 = 4 * C

    tile_h = _pick_tile_h(H, W)
    n_ht = H // tile_h

    # Pack weights: flatten depthwise kernel to (49, C), pad rows to 56 for
    # sublane alignment; cast the 1x1-conv weights to bf16 for the MXU.
    dww = jnp.pad(dw_w.reshape(KS * KS, C), ((0, 56 - KS * KS), (0, 0)))
    dwb = dw_b.reshape(1, C)
    rmsw = rms_w.reshape(1, C)
    w1b = w1.astype(jnp.bfloat16)
    w2b = w2.astype(jnp.bfloat16)
    b1r = b1.reshape(1, C4)
    b2r = b2.reshape(1, C)

    # TODO(synk): for C < 128 (e.g. C=32) the lane dim is under-utilized; a
    # lane-dense (fold W into lanes) layout for the depthwise phase is a
    # further optimization not applied here.
    return pl.pallas_call(
        convnext_block_kernel,
        out_shape=jax.ShapeDtypeStruct((N, H, W, C), x_nhwc.dtype),
        grid=(N, n_ht),
        in_specs=[
            # Full image; block index constant across the H-tile axis so it is
            # DMA'd once per image and stays resident.
            pl.BlockSpec((1, H, W, C), lambda n, h: (n, 0, 0, 0)),
            pl.BlockSpec((56, C), lambda n, h: (0, 0)),
            pl.BlockSpec((1, C), lambda n, h: (0, 0)),
            pl.BlockSpec((1, C), lambda n, h: (0, 0)),
            pl.BlockSpec((C, C4), lambda n, h: (0, 0)),
            pl.BlockSpec((1, C4), lambda n, h: (0, 0)),
            pl.BlockSpec((C4, C), lambda n, h: (0, 0)),
            pl.BlockSpec((1, C), lambda n, h: (0, 0)),
        ],
        out_specs=pl.BlockSpec((1, tile_h, W, C), lambda n, h: (n, h, 0, 0)),
        scratch_shapes=[pltpu.VMEM((H + 2 * PAD, W + 2 * PAD, C), jnp.float32)],
        compiler_params=pltpu.CompilerParams(
            dimension_semantics=("parallel", "arbitrary"),
            vmem_limit_bytes=32 * 1024 * 1024),
    )(x_nhwc, dww, dwb, rmsw, w1b, b1r, w2b, b2r)


def convnext_block_nchw(x_nchw, params):
    """PyTorch-convention NCHW entry point."""
    x_nhwc = jnp.transpose(x_nchw, (0, 2, 3, 1))
    out = convnext_block_nhwc(x_nhwc, params)
    return jnp.transpose(out, (0, 3, 1, 2))


def ref_forward_nhwc(x, params):
    """Pure-JAX reference (same math, incl. bf16 MXU matmuls) for verification."""
    dw_w, dw_b, rms_w, w1, b1, w2, b2 = params
    N, H, W, C = x.shape
    xpad = jnp.pad(x, ((0, 0), (PAD, PAD), (PAD, PAD), (0, 0)))
    acc = jnp.zeros_like(x)
    for i in range(KS):
        for j in range(KS):
            acc = acc + xpad[:, i:i + H, j:j + W, :] * dw_w[i, j][None, None, None, :]
    acc = acc + dw_b
    ms = jnp.mean(acc * acc, axis=-1, keepdims=True)
    y = acc * jax.lax.rsqrt(ms + EPS) * rms_w
    h = jnp.einsum("nhwc,cd->nhwd", y.astype(jnp.bfloat16),
                   w1.astype(jnp.bfloat16),
                   preferred_element_type=jnp.float32) + b1
    h = _gelu_exact(h)
    o = jnp.einsum("nhwd,dc->nhwc", h.astype(jnp.bfloat16),
                   w2.astype(jnp.bfloat16),
                   preferred_element_type=jnp.float32) + b2
    return x + o


def init_params(key, dim):
    k = jax.random.split(key, 7)
    c4 = 4 * dim
    dw_w = jax.random.normal(k[0], (KS, KS, dim), jnp.float32) * 0.05
    dw_b = jax.random.normal(k[1], (dim,), jnp.float32) * 0.05
    rms_w = 1.0 + 0.1 * jax.random.normal(k[2], (dim,), jnp.float32)
    w1 = jax.random.normal(k[3], (dim, c4), jnp.float32) * (1.0 / math.sqrt(dim))
    b1 = jax.random.normal(k[4], (c4,), jnp.float32) * 0.05
    w2 = jax.random.normal(k[5], (c4, dim), jnp.float32) * (1.0 / math.sqrt(c4))
    b2 = jax.random.normal(k[6], (dim,), jnp.float32) * 0.05
    return (dw_w, dw_b, rms_w, w1, b1, w2, b2)


if __name__ == "__main__":
    key = jax.random.PRNGKey(0)
    kx, kp = jax.random.split(key)

    # Matches the PyTorch spec input: x = torch.rand((2, 32, 32, 32))  (NCHW)
    N, DIM, H, W = 2, 32, 32, 32
    x_nchw = jax.random.uniform(kx, (N, DIM, H, W), jnp.float32)
    params = init_params(kp, DIM)

    out = jax.block_until_ready(convnext_block_nchw(x_nchw, params))

    # correctness check against pure-JAX reference (same bf16 matmul precision)
    x_nhwc = jnp.transpose(x_nchw, (0, 2, 3, 1))
    ref = jnp.transpose(ref_forward_nhwc(x_nhwc, params), (0, 3, 1, 2))
    assert out.shape == x_nchw.shape and out.dtype == x_nchw.dtype
    max_err = float(jnp.max(jnp.abs(out - ref)))
    assert jnp.allclose(out, ref, rtol=2e-2, atol=2e-2), \
        f"mismatch vs reference, max_err={max_err}"

    print("KERNEL_OK")
</pallas_src>

<mosaic_0001>
module attributes {stable_mosaic.version = 11 : i64} {
  func.func @convnext_block_kernel(%arg0: i32, %arg1: i32, %arg2: memref<1x32x32x32xf32, #tpu.memory_space<vmem>>, %arg3: memref<56x32xf32, #tpu.memory_space<vmem>>, %arg4: memref<1x32xf32, #tpu.memory_space<vmem>>, %arg5: memref<1x32xf32, #tpu.memory_space<vmem>>, %arg6: memref<32x128xbf16, #tpu.memory_space<vmem>>, %arg7: memref<1x128xf32, #tpu.memory_space<vmem>>, %arg8: memref<128x32xbf16, #tpu.memory_space<vmem>>, %arg9: memref<1x32xf32, #tpu.memory_space<vmem>>, %arg10: memref<1x8x32x32xf32, #tpu.memory_space<vmem>>, %arg11: memref<38x38x32xf32, #tpu.memory_space<vmem>>) attributes {dimension_semantics = [#tpu.dimension_semantics<parallel>, #tpu.dimension_semantics<arbitrary>], iteration_bounds = array<i64: 2, 4>, scalar_prefetch = 0 : i64, scratch_operands = 1 : i64, tpu.core_type = #tpu.core_type<tc>, window_params = [{transform_indices = @transform_0, window_bounds = array<i64: 1, 32, 32, 32>}, {pipeline_mode = #tpu.pipeline_mode<synchronous>, transform_indices = @transform_1, window_bounds = array<i64: 56, 32>}, {pipeline_mode = #tpu.pipeline_mode<synchronous>, transform_indices = @transform_2, window_bounds = array<i64: 1, 32>}, {pipeline_mode = #tpu.pipeline_mode<synchronous>, transform_indices = @transform_3, window_bounds = array<i64: 1, 32>}, {pipeline_mode = #tpu.pipeline_mode<synchronous>, transform_indices = @transform_4, window_bounds = array<i64: 32, 128>}, {pipeline_mode = #tpu.pipeline_mode<synchronous>, transform_indices = @transform_5, window_bounds = array<i64: 1, 128>}, {pipeline_mode = #tpu.pipeline_mode<synchronous>, transform_indices = @transform_6, window_bounds = array<i64: 128, 32>}, {pipeline_mode = #tpu.pipeline_mode<synchronous>, transform_indices = @transform_7, window_bounds = array<i64: 1, 32>}, {transform_indices = @transform_8, window_bounds = array<i64: 1, 8, 32, 32>}]} {
    %c0_i32 = arith.constant 0 : i32
    %0 = arith.cmpi eq, %arg1, %c0_i32 : i32
    %1 = arith.extui %0 : i1 to i32
    %c0_i32_0 = arith.constant 0 : i32
    %2 = arith.cmpi ne, %1, %c0_i32_0 : i32
    scf.if %2 {
      %cst_46 = arith.constant 0.000000e+00 : f32
      %424 = vector.broadcast %cst_46 : f32 to vector<38x38x32xf32>
      %c0_47 = arith.constant 0 : index
      %c0_48 = arith.constant 0 : index
      %c0_49 = arith.constant 0 : index
      %425 = vector.load %arg11[%c0_47, %c0_48, %c0_49] : memref<38x38x32xf32, #tpu.memory_space<vmem>>, vector<38x38x32xf32>
      tpu.vector_store %arg11[%c0_47, %c0_48, %c0_49], %424 {strides = array<i32>} : memref<38x38x32xf32, #tpu.memory_space<vmem>>, vector<38x38x32xf32>,
      %c0_50 = arith.constant 0 : index
      %c0_51 = arith.constant 0 : index
      %c0_52 = arith.constant 0 : index
      %c0_53 = arith.constant 0 : index
      %426 = vector.load %arg2[%c0_50, %c0_51, %c0_52, %c0_53] : memref<1x32x32x32xf32, #tpu.memory_space<vmem>>, vector<1x32x32x32xf32>
      %427 = vector.shape_cast %426 : vector<1x32x32x32xf32> to vector<32x32x32xf32>
      %c3_54 = arith.constant 3 : index
      %c3_55 = arith.constant 3 : index
      %c0_56 = arith.constant 0 : index
      %428 = vector.load %arg11[%c3_54, %c3_55, %c0_56] : memref<38x38x32xf32, #tpu.memory_space<vmem>>, vector<32x32x32xf32>
      tpu.vector_store %arg11[%c3_54, %c3_55, %c0_56], %427 {strides = array<i32>} : memref<38x38x32xf32, #tpu.memory_space<vmem>>, vector<32x32x32xf32>,
    } else {
    }
    %c8_i32 = arith.constant 8 : i32
    %3 = arith.muli %arg1, %c8_i32 : i32
    %4 = tpu.assume_multiple %3, 8 : i32
    %c0 = arith.constant 0 : index
    %c0_1 = arith.constant 0 : index
    %5 = vector.load %arg3[%c0, %c0_1] : memref<56x32xf32, #tpu.memory_space<vmem>>, vector<56x32xf32>
    %cst = arith.constant 0.000000e+00 : f32
    %6 = vector.broadcast %cst : f32 to vector<8x32x32xf32>
    %cst_2 = arith.constant 0.000000e+00 : f32
    %7 = vector.broadcast %cst_2 : f32 to vector<8x32x32xf32>
    %cst_3 = arith.constant 0.000000e+00 : f32
    %8 = vector.broadcast %cst_3 : f32 to vector<8x32x32xf32>
    %cst_4 = arith.constant 0.000000e+00 : f32
    %9 = vector.broadcast %cst_4 : f32 to vector<8x32x32xf32>
    %c0_i32_5 = arith.constant 0 : i32
    %10 = arith.addi %4, %c0_i32_5 : i32
    %11 = arith.index_cast %10 : i32 to index
    %c0_6 = arith.constant 0 : index
    %c0_7 = arith.constant 0 : index
    %12 = vector.load %arg11[%11, %c0_6, %c0_7] : memref<38x38x32xf32, #tpu.memory_space<vmem>>, vector<8x38x32xf32>
    %13 = vector.extract_strided_slice %5 {offsets = [0, 0], sizes = [1, 32], strides = [1, 1]} : vector<56x32xf32> to vector<1x32xf32>
    %14 = vector.shape_cast %13 : vector<1x32xf32> to vector<32xf32>
    %15 = vector.shape_cast %14 : vector<32xf32> to vector<1x1x32xf32>
    %16 = vector.extract_strided_slice %12 {offsets = [0, 0, 0], sizes = [8, 32, 32], strides = [1, 1, 1]} : vector<8x38x32xf32> to vector<8x32x32xf32>
    %17 = vector.broadcast %15 : vector<1x1x32xf32> to vector<8x32x32xf32>
    %18 = arith.mulf %16, %17 : vector<8x32x32xf32>
    %19 = arith.addf %6, %18 : vector<8x32x32xf32>
    %20 = vector.extract_strided_slice %5 {offsets = [1, 0], sizes = [1, 32], strides = [1, 1]} : vector<56x32xf32> to vector<1x32xf32>
    %21 = vector.shape_cast %20 : vector<1x32xf32> to vector<32xf32>
    %22 = vector.shape_cast %21 : vector<32xf32> to vector<1x1x32xf32>
    %23 = vector.extract_strided_slice %12 {offsets = [0, 1, 0], sizes = [8, 32, 32], strides = [1, 1, 1]} : vector<8x38x32xf32> to vector<8x32x32xf32>
    %24 = vector.broadcast %22 : vector<1x1x32xf32> to vector<8x32x32xf32>
    %25 = arith.mulf %23, %24 : vector<8x32x32xf32>
    %26 = arith.addf %7, %25 : vector<8x32x32xf32>
    %27 = vector.extract_strided_slice %5 {offsets = [2, 0], sizes = [1, 32], strides = [1, 1]} : vector<56x32xf32> to vector<1x32xf32>
    %28 = vector.shape_cast %27 : vector<1x32xf32> to vector<32xf32>
    %29 = vector.shape_cast %28 : vector<32xf32> to vector<1x1x32xf32>
    %30 = vector.extract_strided_slice %12 {offsets = [0, 2, 0], sizes = [8, 32, 32], strides = [1, 1, 1]} : vector<8x38x32xf32> to vector<8x32x32xf32>
    %31 = vector.broadcast %29 : vector<1x1x32xf32> to vector<8x32x32xf32>
    %32 = arith.mulf %30, %31 : vector<8x32x32xf32>
    %33 = arith.addf %8, %32 : vector<8x32x32xf32>
    %34 = vector.extract_strided_slice %5 {offsets = [3, 0], sizes = [1, 32], strides = [1, 1]} : vector<56x32xf32> to vector<1x32xf32>
    %35 = vector.shape_cast %34 : vector<1x32xf32> to vector<32xf32>
    %36 = vector.shape_cast %35 : vector<32xf32> to vector<1x1x32xf32>
    %37 = vector.extract_strided_slice %12 {offsets = [0, 3, 0], sizes = [8, 32, 32], strides = [1, 1, 1]} : vector<8x38x32xf32> to vector<8x32x32xf32>
    %38 = vector.broadcast %36 : vector<1x1x32xf32> to vector<8x32x32xf32>
    %39 = arith.mulf %37, %38 : vector<8x32x32xf32>
    %40 = arith.addf %9, %39 : vector<8x32x32xf32>
    %41 = vector.extract_strided_slice %5 {offsets = [4, 0], sizes = [1, 32], strides = [1, 1]} : vector<56x32xf32> to vector<1x32xf32>
    %42 = vector.shape_cast %41 : vector<1x32xf32> to vector<32xf32>
    %43 = vector.shape_cast %42 : vector<32xf32> to vector<1x1x32xf32>
    %44 = vector.extract_strided_slice %12 {offsets = [0, 4, 0], sizes = [8, 32, 32], strides = [1, 1, 1]} : vector<8x38x32xf32> to vector<8x32x32xf32>
    %45 = vector.broadcast %43 : vector<1x1x32xf32> to vector<8x32x32xf32>
    %46 = arith.mulf %44, %45 : vector<8x32x32xf32>
    %47 = arith.addf %19, %46 : vector<8x32x32xf32>
    %48 = vector.extract_strided_slice %5 {offsets = [5, 0], sizes = [1, 32], strides = [1, 1]} : vector<56x32xf32> to vector<1x32xf32>
    %49 = vector.shape_cast %48 : vector<1x32xf32> to vector<32xf32>
    %50 = vector.shape_cast %49 : vector<32xf32> to vector<1x1x32xf32>
    %51 = vector.extract_strided_slice %12 {offsets = [0, 5, 0], sizes = [8, 32, 32], strides = [1, 1, 1]} : vector<8x38x32xf32> to vector<8x32x32xf32>
    %52 = vector.broadcast %50 : vector<1x1x32xf32> to vector<8x32x32xf32>
    %53 = arith.mulf %51, %52 : vector<8x32x32xf32>
    %54 = arith.addf %26, %53 : vector<8x32x32xf32>
    %55 = vector.extract_strided_slice %5 {offsets = [6, 0], sizes = [1, 32], strides = [1, 1]} : vector<56x32xf32> to vector<1x32xf32>
    %56 = vector.shape_cast %55 : vector<1x32xf32> to vector<32xf32>
    %57 = vector.shape_cast %56 : vector<32xf32> to vector<1x1x32xf32>
    %58 = vector.extract_strided_slice %12 {offsets = [0, 6, 0], sizes = [8, 32, 32], strides = [1, 1, 1]} : vector<8x38x32xf32> to vector<8x32x32xf32>
    %59 = vector.broadcast %57 : vector<1x1x32xf32> to vector<8x32x32xf32>
    %60 = arith.mulf %58, %59 : vector<8x32x32xf32>
    %61 = arith.addf %33, %60 : vector<8x32x32xf32>
    %c1_i32 = arith.constant 1 : i32
    %62 = arith.addi %4, %c1_i32 : i32
    %63 = arith.index_cast %62 : i32 to index
    %c0_8 = arith.constant 0 : index
    %c0_9 = arith.constant 0 : index
    %64 = vector.load %arg11[%63, %c0_8, %c0_9] : memref<38x38x32xf32, #tpu.memory_space<vmem>>, vector<8x38x32xf32>
    %65 = vector.extract_strided_slice %5 {offsets = [7, 0], sizes = [1, 32], strides = [1, 1]} : vector<56x32xf32> to vector<1x32xf32>
    %66 = vector.shape_cast %65 : vector<1x32xf32> to vector<32xf32>
    %67 = vector.shape_cast %66 : vector<32xf32> to vector<1x1x32xf32>
    %68 = vector.extract_strided_slice %64 {offsets = [0, 0, 0], sizes = [8, 32, 32], strides = [1, 1, 1]} : vector<8x38x32xf32> to vector<8x32x32xf32>
    %69 = vector.broadcast %67 : vector<1x1x32xf32> to vector<8x32x32xf32>
    %70 = arith.mulf %68, %69 : vector<8x32x32xf32>
    %71 = arith.addf %40, %70 : vector<8x32x32xf32>
    %72 = vector.extract_strided_slice %5 {offsets = [8, 0], sizes = [1, 32], strides = [1, 1]} : vector<56x32xf32> to vector<1x32xf32>
    %73 = vector.shape_cast %72 : vector<1x32xf32> to vector<32xf32>
    %74 = vector.shape_cast %73 : vector<32xf32> to vector<1x1x32xf32>
    %75 = vector.extract_strided_slice %64 {offsets = [0, 1, 0], sizes = [8, 32, 32], strides = [1, 1, 1]} : vector<8x38x32xf32> to vector<8x32x32xf32>
    %76 = vector.broadcast %74 : vector<1x1x32xf32> to vector<8x32x32xf32>
    %77 = arith.mulf %75, %76 : vector<8x32x32xf32>
    %78 = arith.addf %47, %77 : vector<8x32x32xf32>
    %79 = vector.extract_strided_slice %5 {offsets = [9, 0], sizes = [1, 32], strides = [1, 1]} : vector<56x32xf32> to vector<1x32xf32>
    %80 = vector.shape_cast %79 : vector<1x32xf32> to vector<32xf32>
    %81 = vector.shape_cast %80 : vector<32xf32> to vector<1x1x32xf32>
    %82 = vector.extract_strided_slice %64 {offsets = [0, 2, 0], sizes = [8, 32, 32], strides = [1, 1, 1]} : vector<8x38x32xf32> to vector<8x32x32xf32>
    %83 = vector.broadcast %81 : vector<1x1x32xf32> to vector<8x32x32xf32>
    %84 = arith.mulf %82, %83 : vector<8x32x32xf32>
    %85 = arith.addf %54, %84 : vector<8x32x32xf32>
    %86 = vector.extract_strided_slice %5 {offsets = [10, 0], sizes = [1, 32], strides = [1, 1]} : vector<56x32xf32> to vector<1x32xf32>
    %87 = vector.shape_cast %86 : vector<1x32xf32> to vector<32xf32>
    %88 = vector.shape_cast %87 : vector<32xf32> to vector<1x1x32xf32>
    %89 = vector.extract_strided_slice %64 {offsets = [0, 3, 0], sizes = [8, 32, 32], strides = [1, 1, 1]} : vector<8x38x32xf32> to vector<8x32x32xf32>
    %90 = vector.broadcast %88 : vector<1x1x32xf32> to vector<8x32x32xf32>
    %91 = arith.mulf %89, %90 : vector<8x32x32xf32>
    %92 = arith.addf %61, %91 : vector<8x32x32xf32>
    %93 = vector.extract_strided_slice %5 {offsets = [11, 0], sizes = [1, 32], strides = [1, 1]} : vector<56x32xf32> to vector<1x32xf32>
    %94 = vector.shape_cast %93 : vector<1x32xf32> to vector<32xf32>
    %95 = vector.shape_cast %94 : vector<32xf32> to vector<1x1x32xf32>
    %96 = vector.extract_strided_slice %64 {offsets = [0, 4, 0], sizes = [8, 32, 32], strides = [1, 1, 1]} : vector<8x38x32xf32> to vector<8x32x32xf32>
    %97 = vector.broadcast %95 : vector<1x1x32xf32> to vector<8x32x32xf32>
    %98 = arith.mulf %96, %97 : vector<8x32x32xf32>
    %99 = arith.addf %71, %98 : vector<8x32x32xf32>
    %100 = vector.extract_strided_slice %5 {offsets = [12, 0], sizes = [1, 32], strides = [1, 1]} : vector<56x32xf32> to vector<1x32xf32>
    %101 = vector.shape_cast %100 : vector<1x32xf32> to vector<32xf32>
    %102 = vector.shape_cast %101 : vector<32xf32> to vector<1x1x32xf32>
    %103 = vector.extract_strided_slice %64 {offsets = [0, 5, 0], sizes = [8, 32, 32], strides = [1, 1, 1]} : vector<8x38x32xf32> to vector<8x32x32xf32>
    %104 = vector.broadcast %102 : vector<1x1x32xf32> to vector<8x32x32xf32>
    %105 = arith.mulf %103, %104 : vector<8x32x32xf32>
    %106 = arith.addf %78, %105 : vector<8x32x32xf32>
    %107 = vector.extract_strided_slice %5 {offsets = [13, 0], sizes = [1, 32], strides = [1, 1]} : vector<56x32xf32> to vector<1x32xf32>
    %108 = vector.shape_cast %107 : vector<1x32xf32> to vector<32xf32>
    %109 = vector.shape_cast %108 : vector<32xf32> to vector<1x1x32xf32>
    %110 = vector.extract_strided_slice %64 {offsets = [0, 6, 0], sizes = [8, 32, 32], strides = [1, 1, 1]} : vector<8x38x32xf32> to vector<8x32x32xf32>
    %111 = vector.broadcast %109 : vector<1x1x32xf32> to vector<8x32x32xf32>
    %112 = arith.mulf %110, %111 : vector<8x32x32xf32>
    %113 = arith.addf %85, %112 : vector<8x32x32xf32>
    %c2_i32 = arith.constant 2 : i32
    %114 = arith.addi %4, %c2_i32 : i32
    %115 = arith.index_cast %114 : i32 to index
    %c0_10 = arith.constant 0 : index
    %c0_11 = arith.constant 0 : index
    %116 = vector.load %arg11[%115, %c0_10, %c0_11] : memref<38x38x32xf32, #tpu.memory_space<vmem>>, vector<8x38x32xf32>
    %117 = vector.extract_strided_slice %5 {offsets = [14, 0], sizes = [1, 32], strides = [1, 1]} : vector<56x32xf32> to vector<1x32xf32>
    %118 = vector.shape_cast %117 : vector<1x32xf32> to vector<32xf32>
    %119 = vector.shape_cast %118 : vector<32xf32> to vector<1x1x32xf32>
    %120 = vector.extract_strided_slice %116 {offsets = [0, 0, 0], sizes = [8, 32, 32], strides = [1, 1, 1]} : vector<8x38x32xf32> to vector<8x32x32xf32>
    %121 = vector.broadcast %119 : vector<1x1x32xf32> to vector<8x32x32xf32>
    %122 = arith.mulf %120, %121 : vector<8x32x32xf32>
    %123 = arith.addf %92, %122 : vector<8x32x32xf32>
    %124 = vector.extract_strided_slice %5 {offsets = [15, 0], sizes = [1, 32], strides = [1, 1]} : vector<56x32xf32> to vector<1x32xf32>
    %125 = vector.shape_cast %124 : vector<1x32xf32> to vector<32xf32>
    %126 = vector.shape_cast %125 : vector<32xf32> to vector<1x1x32xf32>
    %127 = vector.extract_strided_slice %116 {offsets = [0, 1, 0], sizes = [8, 32, 32], strides = [1, 1, 1]} : vector<8x38x32xf32> to vector<8x32x32xf32>
    %128 = vector.broadcast %126 : vector<1x1x32xf32> to vector<8x32x32xf32>
    %129 = arith.mulf %127, %128 : vector<8x32x32xf32>
    %130 = arith.addf %99, %129 : vector<8x32x32xf32>
    %131 = vector.extract_strided_slice %5 {offsets = [16, 0], sizes = [1, 32], strides = [1, 1]} : vector<56x32xf32> to vector<1x32xf32>
    %132 = vector.shape_cast %131 : vector<1x32xf32> to vector<32xf32>
    %133 = vector.shape_cast %132 : vector<32xf32> to vector<1x1x32xf32>
    %134 = vector.extract_strided_slice %116 {offsets = [0, 2, 0], sizes = [8, 32, 32], strides = [1, 1, 1]} : vector<8x38x32xf32> to vector<8x32x32xf32>
    %135 = vector.broadcast %133 : vector<1x1x32xf32> to vector<8x32x32xf32>
    %136 = arith.mulf %134, %135 : vector<8x32x32xf32>
    %137 = arith.addf %106, %136 : vector<8x32x32xf32>
    %138 = vector.extract_strided_slice %5 {offsets = [17, 0], sizes = [1, 32], strides = [1, 1]} : vector<56x32xf32> to vector<1x32xf32>
    %139 = vector.shape_cast %138 : vector<1x32xf32> to vector<32xf32>
    %140 = vector.shape_cast %139 : vector<32xf32> to vector<1x1x32xf32>
    %141 = vector.extract_strided_slice %116 {offsets = [0, 3, 0], sizes = [8, 32, 32], strides = [1, 1, 1]} : vector<8x38x32xf32> to vector<8x32x32xf32>
    %142 = vector.broadcast %140 : vector<1x1x32xf32> to vector<8x32x32xf32>
    %143 = arith.mulf %141, %142 : vector<8x32x32xf32>
    %144 = arith.addf %113, %143 : vector<8x32x32xf32>
    %145 = vector.extract_strided_slice %5 {offsets = [18, 0], sizes = [1, 32], strides = [1, 1]} : vector<56x32xf32> to vector<1x32xf32>
    %146 = vector.shape_cast %145 : vector<1x32xf32> to vector<32xf32>
    %147 = vector.shape_cast %146 : vector<32xf32> to vector<1x1x32xf32>
    %148 = vector.extract_strided_slice %116 {offsets = [0, 4, 0], sizes = [8, 32, 32], strides = [1, 1, 1]} : vector<8x38x32xf32> to vector<8x32x32xf32>
    %149 = vector.broadcast %147 : vector<1x1x32xf32> to vector<8x32x32xf32>
    %150 = arith.mulf %148, %149 : vector<8x32x32xf32>
    %151 = arith.addf %123, %150 : vector<8x32x32xf32>
    %152 = vector.extract_strided_slice %5 {offsets = [19, 0], sizes = [1, 32], strides = [1, 1]} : vector<56x32xf32> to vector<1x32xf32>
    %153 = vector.shape_cast %152 : vector<1x32xf32> to vector<32xf32>
    %154 = vector.shape_cast %153 : vector<32xf32> to vector<1x1x32xf32>
    %155 = vector.extract_strided_slice %116 {offsets = [0, 5, 0], sizes = [8, 32, 32], strides = [1, 1, 1]} : vector<8x38x32xf32> to vector<8x32x32xf32>
    %156 = vector.broadcast %154 : vector<1x1x32xf32> to vector<8x32x32xf32>
    %157 = arith.mulf %155, %156 : vector<8x32x32xf32>
    %158 = arith.addf %130, %157 : vector<8x32x32xf32>
    %159 = vector.extract_strided_slice %5 {offsets = [20, 0], sizes = [1, 32], strides = [1, 1]} : vector<56x32xf32> to vector<1x32xf32>
    %160 = vector.shape_cast %159 : vector<1x32xf32> to vector<32xf32>
    %161 = vector.shape_cast %160 : vector<32xf32> to vector<1x1x32xf32>
    %162 = vector.extract_strided_slice %116 {offsets = [0, 6, 0], sizes = [8, 32, 32], strides = [1, 1, 1]} : vector<8x38x32xf32> to vector<8x32x32xf32>
    %163 = vector.broadcast %161 : vector<1x1x32xf32> to vector<8x32x32xf32>
    %164 = arith.mulf %162, %163 : vector<8x32x32xf32>
    %165 = arith.addf %137, %164 : vector<8x32x32xf32>
    %c3_i32 = arith.constant 3 : i32
    %166 = arith.addi %4, %c3_i32 : i32
    %167 = arith.index_cast %166 : i32 to index
    %c0_12 = arith.constant 0 : index
    %c0_13 = arith.constant 0 : index
    %168 = vector.load %arg11[%167, %c0_12, %c0_13] : memref<38x38x32xf32, #tpu.memory_space<vmem>>, vector<8x38x32xf32>
    %169 = vector.extract_strided_slice %5 {offsets = [21, 0], sizes = [1, 32], strides = [1, 1]} : vector<56x32xf32> to vector<1x32xf32>
    %170 = vector.shape_cast %169 : vector<1x32xf32> to vector<32xf32>
    %171 = vector.shape_cast %170 : vector<32xf32> to vector<1x1x32xf32>
    %172 = vector.extract_strided_slice %168 {offsets = [0, 0, 0], sizes = [8, 32, 32], strides = [1, 1, 1]} : vector<8x38x32xf32> to vector<8x32x32xf32>
    %173 = vector.broadcast %171 : vector<1x1x32xf32> to vector<8x32x32xf32>
    %174 = arith.mulf %172, %173 : vector<8x32x32xf32>
    %175 = arith.addf %144, %174 : vector<8x32x32xf32>
    %176 = vector.extract_strided_slice %5 {offsets = [22, 0], sizes = [1, 32], strides = [1, 1]} : vector<56x32xf32> to vector<1x32xf32>
    %177 = vector.shape_cast %176 : vector<1x32xf32> to vector<32xf32>
    %178 = vector.shape_cast %177 : vector<32xf32> to vector<1x1x32xf32>
    %179 = vector.extract_strided_slice %168 {offsets = [0, 1, 0], sizes = [8, 32, 32], strides = [1, 1, 1]} : vector<8x38x32xf32> to vector<8x32x32xf32>
    %180 = vector.broadcast %178 : vector<1x1x32xf32> to vector<8x32x32xf32>
    %181 = arith.mulf %179, %180 : vector<8x32x32xf32>
    %182 = arith.addf %151, %181 : vector<8x32x32xf32>
    %183 = vector.extract_strided_slice %5 {offsets = [23, 0], sizes = [1, 32], strides = [1, 1]} : vector<56x32xf32> to vector<1x32xf32>
    %184 = vector.shape_cast %183 : vector<1x32xf32> to vector<32xf32>
    %185 = vector.shape_cast %184 : vector<32xf32> to vector<1x1x32xf32>
    %186 = vector.extract_strided_slice %168 {offsets = [0, 2, 0], sizes = [8, 32, 32], strides = [1, 1, 1]} : vector<8x38x32xf32> to vector<8x32x32xf32>
    %187 = vector.broadcast %185 : vector<1x1x32xf32> to vector<8x32x32xf32>
    %188 = arith.mulf %186, %187 : vector<8x32x32xf32>
    %189 = arith.addf %158, %188 : vector<8x32x32xf32>
    %190 = vector.extract_strided_slice %5 {offsets = [24, 0], sizes = [1, 32], strides = [1, 1]} : vector<56x32xf32> to vector<1x32xf32>
    %191 = vector.shape_cast %190 : vector<1x32xf32> to vector<32xf32>
    %192 = vector.shape_cast %191 : vector<32xf32> to vector<1x1x32xf32>
    %193 = vector.extract_strided_slice %168 {offsets = [0, 3, 0], sizes = [8, 32, 32], strides = [1, 1, 1]} : vector<8x38x32xf32> to vector<8x32x32xf32>
    %194 = vector.broadcast %192 : vector<1x1x32xf32> to vector<8x32x32xf32>
    %195 = arith.mulf %193, %194 : vector<8x32x32xf32>
    %196 = arith.addf %165, %195 : vector<8x32x32xf32>
    %197 = vector.extract_strided_slice %5 {offsets = [25, 0], sizes = [1, 32], strides = [1, 1]} : vector<56x32xf32> to vector<1x32xf32>
    %198 = vector.shape_cast %197 : vector<1x32xf32> to vector<32xf32>
    %199 = vector.shape_cast %198 : vector<32xf32> to vector<1x1x32xf32>
    %200 = vector.extract_strided_slice %168 {offsets = [0, 4, 0], sizes = [8, 32, 32], strides = [1, 1, 1]} : vector<8x38x32xf32> to vector<8x32x32xf32>
    %201 = vector.broadcast %199 : vector<1x1x32xf32> to vector<8x32x32xf32>
    %202 = arith.mulf %200, %201 : vector<8x32x32xf32>
    %203 = arith.addf %175, %202 : vector<8x32x32xf32>
    %204 = vector.extract_strided_slice %5 {offsets = [26, 0], sizes = [1, 32], strides = [1, 1]} : vector<56x32xf32> to vector<1x32xf32>
    %205 = vector.shape_cast %204 : vector<1x32xf32> to vector<32xf32>
    %206 = vector.shape_cast %205 : vector<32xf32> to vector<1x1x32xf32>
    %207 = vector.extract_strided_slice %168 {offsets = [0, 5, 0], sizes = [8, 32, 32], strides = [1, 1, 1]} : vector<8x38x32xf32> to vector<8x32x32xf32>
    %208 = vector.broadcast %206 : vector<1x1x32xf32> to vector<8x32x32xf32>
    %209 = arith.mulf %207, %208 : vector<8x32x32xf32>
    %210 = arith.addf %182, %209 : vector<8x32x32xf32>
    %211 = vector.extract_strided_slice %5 {offsets = [27, 0], sizes = [1, 32], strides = [1, 1]} : vector<56x32xf32> to vector<1x32xf32>
    %212 = vector.shape_cast %211 : vector<1x32xf32> to vector<32xf32>
    %213 = vector.shape_cast %212 : vector<32xf32> to vector<1x1x32xf32>
    %214 = vector.extract_strided_slice %168 {offsets = [0, 6, 0], sizes = [8, 32, 32], strides = [1, 1, 1]} : vector<8x38x32xf32> to vector<8x32x32xf32>
    %215 = vector.broadcast %213 : vector<1x1x32xf32> to vector<8x32x32xf32>
    %216 = arith.mulf %214, %215 : vector<8x32x32xf32>
    %217 = arith.addf %189, %216 : vector<8x32x32xf32>
    %c4_i32 = arith.constant 4 : i32
    %218 = arith.addi %4, %c4_i32 : i32
    %219 = arith.index_cast %218 : i32 to index
    %c0_14 = arith.constant 0 : index
    %c0_15 = arith.constant 0 : index
    %220 = vector.load %arg11[%219, %c0_14, %c0_15] : memref<38x38x32xf32, #tpu.memory_space<vmem>>, vector<8x38x32xf32>
    %221 = vector.extract_strided_slice %5 {offsets = [28, 0], sizes = [1, 32], strides = [1, 1]} : vector<56x32xf32> to vector<1x32xf32>
    %222 = vector.shape_cast %221 : vector<1x32xf32> to vector<32xf32>
    %223 = vector.shape_cast %222 : vector<32xf32> to vector<1x1x32xf32>
    %224 = vector.extract_strided_slice %220 {offsets = [0, 0, 0], sizes = [8, 32, 32], strides = [1, 1, 1]} : vector<8x38x32xf32> to vector<8x32x32xf32>
    %225 = vector.broadcast %223 : vector<1x1x32xf32> to vector<8x32x32xf32>
    %226 = arith.mulf %224, %225 : vector<8x32x32xf32>
    %227 = arith.addf %196, %226 : vector<8x32x32xf32>
    %228 = vector.extract_strided_slice %5 {offsets = [29, 0], sizes = [1, 32], strides = [1, 1]} : vector<56x32xf32> to vector<1x32xf32>
    %229 = vector.shape_cast %228 : vector<1x32xf32> to vector<32xf32>
    %230 = vector.shape_cast %229 : vector<32xf32> to vector<1x1x32xf32>
    %231 = vector.extract_strided_slice %220 {offsets = [0, 1, 0], sizes = [8, 32, 32], strides = [1, 1, 1]} : vector<8x38x32xf32> to vector<8x32x32xf32>
    %232 = vector.broadcast %230 : vector<1x1x32xf32> to vector<8x32x32xf32>
    %233 = arith.mulf %231, %232 : vector<8x32x32xf32>
    %234 = arith.addf %203, %233 : vector<8x32x32xf32>
    %235 = vector.extract_strided_slice %5 {offsets = [30, 0], sizes = [1, 32], strides = [1, 1]} : vector<56x32xf32> to vector<1x32xf32>
    %236 = vector.shape_cast %235 : vector<1x32xf32> to vector<32xf32>
    %237 = vector.shape_cast %236 : vector<32xf32> to vector<1x1x32xf32>
    %238 = vector.extract_strided_slice %220 {offsets = [0, 2, 0], sizes = [8, 32, 32], strides = [1, 1, 1]} : vector<8x38x32xf32> to vector<8x32x32xf32>
    %239 = vector.broadcast %237 : vector<1x1x32xf32> to vector<8x32x32xf32>
    %240 = arith.mulf %238, %239 : vector<8x32x32xf32>
    %241 = arith.addf %210, %240 : vector<8x32x32xf32>
    %242 = vector.extract_strided_slice %5 {offsets = [31, 0], sizes = [1, 32], strides = [1, 1]} : vector<56x32xf32> to vector<1x32xf32>
    %243 = vector.shape_cast %242 : vector<1x32xf32> to vector<32xf32>
    %244 = vector.shape_cast %243 : vector<32xf32> to vector<1x1x32xf32>
    %245 = vector.extract_strided_slice %220 {offsets = [0, 3, 0], sizes = [8, 32, 32], strides = [1, 1, 1]} : vector<8x38x32xf32> to vector<8x32x32xf32>
    %246 = vector.broadcast %244 : vector<1x1x32xf32> to vector<8x32x32xf32>
    %247 = arith.mulf %245, %246 : vector<8x32x32xf32>
    %248 = arith.addf %217, %247 : vector<8x32x32xf32>
    %249 = vector.extract_strided_slice %5 {offsets = [32, 0], sizes = [1, 32], strides = [1, 1]} : vector<56x32xf32> to vector<1x32xf32>
    %250 = vector.shape_cast %249 : vector<1x32xf32> to vector<32xf32>
    %251 = vector.shape_cast %250 : vector<32xf32> to vector<1x1x32xf32>
    %252 = vector.extract_strided_slice %220 {offsets = [0, 4, 0], sizes = [8, 32, 32], strides = [1, 1, 1]} : vector<8x38x32xf32> to vector<8x32x32xf32>
    %253 = vector.broadcast %251 : vector<1x1x32xf32> to vector<8x32x32xf32>
    %254 = arith.mulf %252, %253 : vector<8x32x32xf32>
    %255 = arith.addf %227, %254 : vector<8x32x32xf32>
    %256 = vector.extract_strided_slice %5 {offsets = [33, 0], sizes = [1, 32], strides = [1, 1]} : vector<56x32xf32> to vector<1x32xf32>
    %257 = vector.shape_cast %256 : vector<1x32xf32> to vector<32xf32>
    %258 = vector.shape_cast %257 : vector<32xf32> to vector<1x1x32xf32>
    %259 = vector.extract_strided_slice %220 {offsets = [0, 5, 0], sizes = [8, 32, 32], strides = [1, 1, 1]} : vector<8x38x32xf32> to vector<8x32x32xf32>
    %260 = vector.broadcast %258 : vector<1x1x32xf32> to vector<8x32x32xf32>
    %261 = arith.mulf %259, %260 : vector<8x32x32xf32>
    %262 = arith.addf %234, %261 : vector<8x32x32xf32>
    %263 = vector.extract_strided_slice %5 {offsets = [34, 0], sizes = [1, 32], strides = [1, 1]} : vector<56x32xf32> to vector<1x32xf32>
    %264 = vector.shape_cast %263 : vector<1x32xf32> to vector<32xf32>
    %265 = vector.shape_cast %264 : vector<32xf32> to vector<1x1x32xf32>
    %266 = vector.extract_strided_slice %220 {offsets = [0, 6, 0], sizes = [8, 32, 32], strides = [1, 1, 1]} : vector<8x38x32xf32> to vector<8x32x32xf32>
    %267 = vector.broadcast %265 : vector<1x1x32xf32> to vector<8x32x32xf32>
    %268 = arith.mulf %266, %267 : vector<8x32x32xf32>
    %269 = arith.addf %241, %268 : vector<8x32x32xf32>
    %c5_i32 = arith.constant 5 : i32
    %270 = arith.addi %4, %c5_i32 : i32
    %271 = arith.index_cast %270 : i32 to index
    %c0_16 = arith.constant 0 : index
    %c0_17 = arith.constant 0 : index
    %272 = vector.load %arg11[%271, %c0_16, %c0_17] : memref<38x38x32xf32, #tpu.memory_space<vmem>>, vector<8x38x32xf32>
    %273 = vector.extract_strided_slice %5 {offsets = [35, 0], sizes = [1, 32], strides = [1, 1]} : vector<56x32xf32> to vector<1x32xf32>
    %274 = vector.shape_cast %273 : vector<1x32xf32> to vector<32xf32>
    %275 = vector.shape_cast %274 : vector<32xf32> to vector<1x1x32xf32>
    %276 = vector.extract_strided_slice %272 {offsets = [0, 0, 0], sizes = [8, 32, 32], strides = [1, 1, 1]} : vector<8x38x32xf32> to vector<8x32x32xf32>
    %277 = vector.broadcast %275 : vector<1x1x32xf32> to vector<8x32x32xf32>
    %278 = arith.mulf %276, %277 : vector<8x32x32xf32>
    %279 = arith.addf %248, %278 : vector<8x32x32xf32>
    %280 = vector.extract_strided_slice %5 {offsets = [36, 0], sizes = [1, 32], strides = [1, 1]} : vector<56x32xf32> to vector<1x32xf32>
    %281 = vector.shape_cast %280 : vector<1x32xf32> to vector<32xf32>
    %282 = vector.shape_cast %281 : vector<32xf32> to vector<1x1x32xf32>
    %283 = vector.extract_strided_slice %272 {offsets = [0, 1, 0], sizes = [8, 32, 32], strides = [1, 1, 1]} : vector<8x38x32xf32> to vector<8x32x32xf32>
    %284 = vector.broadcast %282 : vector<1x1x32xf32> to vector<8x32x32xf32>
    %285 = arith.mulf %283, %284 : vector<8x32x32xf32>
    %286 = arith.addf %255, %285 : vector<8x32x32xf32>
    %287 = vector.extract_strided_slice %5 {offsets = [37, 0], sizes = [1, 32], strides = [1, 1]} : vector<56x32xf32> to vector<1x32xf32>
    %288 = vector.shape_cast %287 : vector<1x32xf32> to vector<32xf32>
    %289 = vector.shape_cast %288 : vector<32xf32> to vector<1x1x32xf32>
    %290 = vector.extract_strided_slice %272 {offsets = [0, 2, 0], sizes = [8, 32, 32], strides = [1, 1, 1]} : vector<8x38x32xf32> to vector<8x32x32xf32>
    %291 = vector.broadcast %289 : vector<1x1x32xf32> to vector<8x32x32xf32>
    %292 = arith.mulf %290, %291 : vector<8x32x32xf32>
    %293 = arith.addf %262, %292 : vector<8x32x32xf32>
    %294 = vector.extract_strided_slice %5 {offsets = [38, 0], sizes = [1, 32], strides = [1, 1]} : vector<56x32xf32> to vector<1x32xf32>
    %295 = vector.shape_cast %294 : vector<1x32xf32> to vector<32xf32>
    %296 = vector.shape_cast %295 : vector<32xf32> to vector<1x1x32xf32>
    %297 = vector.extract_strided_slice %272 {offsets = [0, 3, 0], sizes = [8, 32, 32], strides = [1, 1, 1]} : vector<8x38x32xf32> to vector<8x32x32xf32>
    %298 = vector.broadcast %296 : vector<1x1x32xf32> to vector<8x32x32xf32>
    %299 = arith.mulf %297, %298 : vector<8x32x32xf32>
    %300 = arith.addf %269, %299 : vector<8x32x32xf32>
    %301 = vector.extract_strided_slice %5 {offsets = [39, 0], sizes = [1, 32], strides = [1, 1]} : vector<56x32xf32> to vector<1x32xf32>
    %302 = vector.shape_cast %301 : vector<1x32xf32> to vector<32xf32>
    %303 = vector.shape_cast %302 : vector<32xf32> to vector<1x1x32xf32>
    %304 = vector.extract_strided_slice %272 {offsets = [0, 4, 0], sizes = [8, 32, 32], strides = [1, 1, 1]} : vector<8x38x32xf32> to vector<8x32x32xf32>
    %305 = vector.broadcast %303 : vector<1x1x32xf32> to vector<8x32x32xf32>
    %306 = arith.mulf %304, %305 : vector<8x32x32xf32>
    %307 = arith.addf %279, %306 : vector<8x32x32xf32>
    %308 = vector.extract_strided_slice %5 {offsets = [40, 0], sizes = [1, 32], strides = [1, 1]} : vector<56x32xf32> to vector<1x32xf32>
    %309 = vector.shape_cast %308 : vector<1x32xf32> to vector<32xf32>
    %310 = vector.shape_cast %309 : vector<32xf32> to vector<1x1x32xf32>
    %311 = vector.extract_strided_slice %272 {offsets = [0, 5, 0], sizes = [8, 32, 32], strides = [1, 1, 1]} : vector<8x38x32xf32> to vector<8x32x32xf32>
    %312 = vector.broadcast %310 : vector<1x1x32xf32> to vector<8x32x32xf32>
    %313 = arith.mulf %311, %312 : vector<8x32x32xf32>
    %314 = arith.addf %286, %313 : vector<8x32x32xf32>
    %315 = vector.extract_strided_slice %5 {offsets = [41, 0], sizes = [1, 32], strides = [1, 1]} : vector<56x32xf32> to vector<1x32xf32>
    %316 = vector.shape_cast %315 : vector<1x32xf32> to vector<32xf32>
    %317 = vector.shape_cast %316 : vector<32xf32> to vector<1x1x32xf32>
    %318 = vector.extract_strided_slice %272 {offsets = [0, 6, 0], sizes = [8, 32, 32], strides = [1, 1, 1]} : vector<8x38x32xf32> to vector<8x32x32xf32>
    %319 = vector.broadcast %317 : vector<1x1x32xf32> to vector<8x32x32xf32>
    %320 = arith.mulf %318, %319 : vector<8x32x32xf32>
    %321 = arith.addf %293, %320 : vector<8x32x32xf32>
    %c6_i32 = arith.constant 6 : i32
    %322 = arith.addi %4, %c6_i32 : i32
    %323 = arith.index_cast %322 : i32 to index
    %c0_18 = arith.constant 0 : index
    %c0_19 = arith.constant 0 : index
    %324 = vector.load %arg11[%323, %c0_18, %c0_19] : memref<38x38x32xf32, #tpu.memory_space<vmem>>, vector<8x38x32xf32>
    %325 = vector.extract_strided_slice %5 {offsets = [42, 0], sizes = [1, 32], strides = [1, 1]} : vector<56x32xf32> to vector<1x32xf32>
    %326 = vector.shape_cast %325 : vector<1x32xf32> to vector<32xf32>
    %327 = vector.shape_cast %326 : vector<32xf32> to vector<1x1x32xf32>
    %328 = vector.extract_strided_slice %324 {offsets = [0, 0, 0], sizes = [8, 32, 32], strides = [1, 1, 1]} : vector<8x38x32xf32> to vector<8x32x32xf32>
    %329 = vector.broadcast %327 : vector<1x1x32xf32> to vector<8x32x32xf32>
    %330 = arith.mulf %328, %329 : vector<8x32x32xf32>
    %331 = arith.addf %300, %330 : vector<8x32x32xf32>
    %332 = vector.extract_strided_slice %5 {offsets = [43, 0], sizes = [1, 32], strides = [1, 1]} : vector<56x32xf32> to vector<1x32xf32>
    %333 = vector.shape_cast %332 : vector<1x32xf32> to vector<32xf32>
    %334 = vector.shape_cast %333 : vector<32xf32> to vector<1x1x32xf32>
    %335 = vector.extract_strided_slice %324 {offsets = [0, 1, 0], sizes = [8, 32, 32], strides = [1, 1, 1]} : vector<8x38x32xf32> to vector<8x32x32xf32>
    %336 = vector.broadcast %334 : vector<1x1x32xf32> to vector<8x32x32xf32>
    %337 = arith.mulf %335, %336 : vector<8x32x32xf32>
    %338 = arith.addf %307, %337 : vector<8x32x32xf32>
    %339 = vector.extract_strided_slice %5 {offsets = [44, 0], sizes = [1, 32], strides = [1, 1]} : vector<56x32xf32> to vector<1x32xf32>
    %340 = vector.shape_cast %339 : vector<1x32xf32> to vector<32xf32>
    %341 = vector.shape_cast %340 : vector<32xf32> to vector<1x1x32xf32>
    %342 = vector.extract_strided_slice %324 {offsets = [0, 2, 0], sizes = [8, 32, 32], strides = [1, 1, 1]} : vector<8x38x32xf32> to vector<8x32x32xf32>
    %343 = vector.broadcast %341 : vector<1x1x32xf32> to vector<8x32x32xf32>
    %344 = arith.mulf %342, %343 : vector<8x32x32xf32>
    %345 = arith.addf %314, %344 : vector<8x32x32xf32>
    %346 = vector.extract_strided_slice %5 {offsets = [45, 0], sizes = [1, 32], strides = [1, 1]} : vector<56x32xf32> to vector<1x32xf32>
    %347 = vector.shape_cast %346 : vector<1x32xf32> to vector<32xf32>
    %348 = vector.shape_cast %347 : vector<32xf32> to vector<1x1x32xf32>
    %349 = vector.extract_strided_slice %324 {offsets = [0, 3, 0], sizes = [8, 32, 32], strides = [1, 1, 1]} : vector<8x38x32xf32> to vector<8x32x32xf32>
    %350 = vector.broadcast %348 : vector<1x1x32xf32> to vector<8x32x32xf32>
    %351 = arith.mulf %349, %350 : vector<8x32x32xf32>
    %352 = arith.addf %321, %351 : vector<8x32x32xf32>
    %353 = vector.extract_strided_slice %5 {offsets = [46, 0], sizes = [1, 32], strides = [1, 1]} : vector<56x32xf32> to vector<1x32xf32>
    %354 = vector.shape_cast %353 : vector<1x32xf32> to vector<32xf32>
    %355 = vector.shape_cast %354 : vector<32xf32> to vector<1x1x32xf32>
    %356 = vector.extract_strided_slice %324 {offsets = [0, 4, 0], sizes = [8, 32, 32], strides = [1, 1, 1]} : vector<8x38x32xf32> to vector<8x32x32xf32>
    %357 = vector.broadcast %355 : vector<1x1x32xf32> to vector<8x32x32xf32>
    %358 = arith.mulf %356, %357 : vector<8x32x32xf32>
    %359 = arith.addf %331, %358 : vector<8x32x32xf32>
    %360 = vector.extract_strided_slice %5 {offsets = [47, 0], sizes = [1, 32], strides = [1, 1]} : vector<56x32xf32> to vector<1x32xf32>
    %361 = vector.shape_cast %360 : vector<1x32xf32> to vector<32xf32>
    %362 = vector.shape_cast %361 : vector<32xf32> to vector<1x1x32xf32>
    %363 = vector.extract_strided_slice %324 {offsets = [0, 5, 0], sizes = [8, 32, 32], strides = [1, 1, 1]} : vector<8x38x32xf32> to vector<8x32x32xf32>
    %364 = vector.broadcast %362 : vector<1x1x32xf32> to vector<8x32x32xf32>
    %365 = arith.mulf %363, %364 : vector<8x32x32xf32>
    %366 = arith.addf %338, %365 : vector<8x32x32xf32>
    %367 = vector.extract_strided_slice %5 {offsets = [48, 0], sizes = [1, 32], strides = [1, 1]} : vector<56x32xf32> to vector<1x32xf32>
    %368 = vector.shape_cast %367 : vector<1x32xf32> to vector<32xf32>
    %369 = vector.shape_cast %368 : vector<32xf32> to vector<1x1x32xf32>
    %370 = vector.extract_strided_slice %324 {offsets = [0, 6, 0], sizes = [8, 32, 32], strides = [1, 1, 1]} : vector<8x38x32xf32> to vector<8x32x32xf32>
    %371 = vector.broadcast %369 : vector<1x1x32xf32> to vector<8x32x32xf32>
    %372 = arith.mulf %370, %371 : vector<8x32x32xf32>
    %373 = arith.addf %345, %372 : vector<8x32x32xf32>
    %374 = arith.addf %373, %352 : vector<8x32x32xf32>
    %375 = arith.addf %359, %366 : vector<8x32x32xf32>
    %376 = arith.addf %374, %375 : vector<8x32x32xf32>
    %c0_20 = arith.constant 0 : index
    %c0_21 = arith.constant 0 : index
    %377 = vector.load %arg4[%c0_20, %c0_21] : memref<1x32xf32, #tpu.memory_space<vmem>>, vector<1x32xf32>
    %378 = vector.shape_cast %377 : vector<1x32xf32> to vector<1x1x32xf32>
    %379 = vector.broadcast %378 : vector<1x1x32xf32> to vector<8x32x32xf32>
    %380 = arith.addf %376, %379 : vector<8x32x32xf32>
    %381 = arith.mulf %380, %380 : vector<8x32x32xf32>
    %cst_22 = arith.constant dense<0.000000e+00> : vector<8x32xf32>
    %382 = vector.multi_reduction <add>, %381, %cst_22 [2] : vector<8x32x32xf32> to vector<8x32xf32>
    %383 = vector.shape_cast %382 : vector<8x32xf32> to vector<8x32x1xf32>
    %cst_23 = arith.constant 3.200000e+01 : f32
    %384 = vector.broadcast %cst_23 : f32 to vector<8x32x1xf32>
    %385 = arith.divf %383, %384 : vector<8x32x1xf32>
    %cst_24 = arith.constant 9.99999997E-7 : f32
    %386 = vector.broadcast %cst_24 : f32 to vector<8x32x1xf32>
    %387 = arith.addf %385, %386 : vector<8x32x1xf32>
    %388 = math.rsqrt %387 : vector<8x32x1xf32>
    %389 = vector.broadcast %388 : vector<8x32x1xf32> to vector<8x32x32xf32>
    %390 = arith.mulf %380, %389 : vector<8x32x32xf32>
    %c0_25 = arith.constant 0 : index
    %c0_26 = arith.constant 0 : index
    %391 = vector.load %arg5[%c0_25, %c0_26] : memref<1x32xf32, #tpu.memory_space<vmem>>, vector<1x32xf32>
    %392 = vector.shape_cast %391 : vector<1x32xf32> to vector<1x1x32xf32>
    %393 = vector.broadcast %392 : vector<1x1x32xf32> to vector<8x32x32xf32>
    %394 = arith.mulf %390, %393 : vector<8x32x32xf32>
    %395 = vector.shape_cast %394 : vector<8x32x32xf32> to vector<256x32xf32>
    %396 = arith.truncf %395 : vector<256x32xf32> to vector<256x32xbf16>
    %c0_27 = arith.constant 0 : index
    %c0_28 = arith.constant 0 : index
    %397 = vector.load %arg6[%c0_27, %c0_28] : memref<32x128xbf16, #tpu.memory_space<vmem>>, vector<32x128xbf16>
    %cst_29 = arith.constant dense<0.000000e+00> : vector<256x128xf32>
    %398 = tpu.matmul %396, %397, %cst_29 {dimension_numbers = #tpu.dot_dimension_numbers<[1], [0], [0], [1], [0, 0, 1, 1], [], []>} : vector<256x32xbf16>, vector<32x128xbf16>, vector<256x128xf32> -> vector<256x128xf32>
    %c0_30 = arith.constant 0 : index
    %c0_31 = arith.constant 0 : index
    %399 = vector.load %arg7[%c0_30, %c0_31] : memref<1x128xf32, #tpu.memory_space<vmem>>, vector<1x128xf32>
    %400 = vector.broadcast %399 : vector<1x128xf32> to vector<256x128xf32>
    %401 = arith.addf %398, %400 : vector<256x128xf32>
    %cst_32 = arith.constant 5.000000e-01 : f32
    %402 = vector.broadcast %cst_32 : f32 to vector<256x128xf32>
    %403 = arith.mulf %402, %401 : vector<256x128xf32>
    %cst_33 = arith.constant 0.707106769 : f32
    %404 = vector.broadcast %cst_33 : f32 to vector<256x128xf32>
    %405 = arith.mulf %401, %404 : vector<256x128xf32>
    %406 = math.erf %405 : vector<256x128xf32>
    %cst_34 = arith.constant 1.000000e+00 : f32
    %407 = vector.broadcast %cst_34 : f32 to vector<256x128xf32>
    %408 = arith.addf %407, %406 : vector<256x128xf32>
    %409 = arith.mulf %403, %408 : vector<256x128xf32>
    %410 = arith.truncf %409 : vector<256x128xf32> to vector<256x128xbf16>
    %c0_35 = arith.constant 0 : index
    %c0_36 = arith.constant 0 : index
    %411 = vector.load %arg8[%c0_35, %c0_36] : memref<128x32xbf16, #tpu.memory_space<vmem>>, vector<128x32xbf16>
    %cst_37 = arith.constant dense<0.000000e+00> : vector<256x32xf32>
    %412 = tpu.matmul %410, %411, %cst_37 {dimension_numbers = #tpu.dot_dimension_numbers<[1], [0], [0], [1], [0, 0, 1, 1], [], []>} : vector<256x128xbf16>, vector<128x32xbf16>, vector<256x32xf32> -> vector<256x32xf32>
    %c0_38 = arith.constant 0 : index
    %c0_39 = arith.constant 0 : index
    %413 = vector.load %arg9[%c0_38, %c0_39] : memref<1x32xf32, #tpu.memory_space<vmem>>, vector<1x32xf32>
    %414 = vector.broadcast %413 : vector<1x32xf32> to vector<256x32xf32>
    %415 = arith.addf %412, %414 : vector<256x32xf32>
    %c3_i32_40 = arith.constant 3 : i32
    %416 = arith.addi %4, %c3_i32_40 : i32
    %417 = arith.index_cast %416 : i32 to index
    %c3 = arith.constant 3 : index
    %c0_41 = arith.constant 0 : index
    %418 = vector.load %arg11[%417, %c3, %c0_41] : memref<38x38x32xf32, #tpu.memory_space<vmem>>, vector<8x32x32xf32>
    %419 = vector.shape_cast %415 : vector<256x32xf32> to vector<8x32x32xf32>
    %420 = arith.addf %418, %419 : vector<8x32x32xf32>
    %c0_42 = arith.constant 0 : index
    %c0_43 = arith.constant 0 : index
    %c0_44 = arith.constant 0 : index
    %c0_45 = arith.constant 0 : index
    %421 = vector.load %arg10[%c0_42, %c0_43, %c0_44, %c0_45] : memref<1x8x32x32xf32, #tpu.memory_space<vmem>>, vector<1x8x32x32xf32>
    %422 = vector.shape_cast %421 : vector<1x8x32x32xf32> to vector<8x32x32xf32>
    %423 = vector.shape_cast %420 : vector<8x32x32xf32> to vector<1x8x32x32xf32>
    tpu.vector_store %arg10[%c0_42, %c0_43, %c0_44, %c0_45], %423 {strides = array<i32>} : memref<1x8x32x32xf32, #tpu.memory_space<vmem>>, vector<1x8x32x32xf32>,
    return
  }
  func.func @transform_0(%arg0: i32, %arg1: i32) -> (i32, i32, i32, i32) {
    %c0_i32 = arith.constant 0 : i32
    %c0_i32_0 = arith.constant 0 : i32
    %c0_i32_1 = arith.constant 0 : i32
    %c0_i32_2 = arith.constant 0 : i32
    return %arg0, %c0_i32, %c0_i32_0, %c0_i32_1 : i32, i32, i32, i32
  }
  func.func @transform_1(%arg0: i32, %arg1: i32) -> (i32, i32) {
    %c0_i32 = arith.constant 0 : i32
    %c0_i32_0 = arith.constant 0 : i32
    %c0_i32_1 = arith.constant 0 : i32
    return %c0_i32, %c0_i32_0 : i32, i32
  }
  func.func @transform_2(%arg0: i32, %arg1: i32) -> (i32, i32) {
    %c0_i32 = arith.constant 0 : i32
    %c0_i32_0 = arith.constant 0 : i32
    %c0_i32_1 = arith.constant 0 : i32
    return %c0_i32, %c0_i32_0 : i32, i32
  }
  func.func @transform_3(%arg0: i32, %arg1: i32) -> (i32, i32) {
    %c0_i32 = arith.constant 0 : i32
    %c0_i32_0 = arith.constant 0 : i32
    %c0_i32_1 = arith.constant 0 : i32
    return %c0_i32, %c0_i32_0 : i32, i32
  }
  func.func @transform_4(%arg0: i32, %arg1: i32) -> (i32, i32) {
    %c0_i32 = arith.constant 0 : i32
    %c0_i32_0 = arith.constant 0 : i32
    %c0_i32_1 = arith.constant 0 : i32
    return %c0_i32, %c0_i32_0 : i32, i32
  }
  func.func @transform_5(%arg0: i32, %arg1: i32) -> (i32, i32) {
    %c0_i32 = arith.constant 0 : i32
    %c0_i32_0 = arith.constant 0 : i32
    %c0_i32_1 = arith.constant 0 : i32
    return %c0_i32, %c0_i32_0 : i32, i32
  }
  func.func @transform_6(%arg0: i32, %arg1: i32) -> (i32, i32) {
    %c0_i32 = arith.constant 0 : i32
    %c0_i32_0 = arith.constant 0 : i32
    %c0_i32_1 = arith.constant 0 : i32
    return %c0_i32, %c0_i32_0 : i32, i32
  }
  func.func @transform_7(%arg0: i32, %arg1: i32) -> (i32, i32) {
    %c0_i32 = arith.constant 0 : i32
    %c0_i32_0 = arith.constant 0 : i32
    %c0_i32_1 = arith.constant 0 : i32
    return %c0_i32, %c0_i32_0 : i32, i32
  }
  func.func @transform_8(%arg0: i32, %arg1: i32) -> (i32, i32, i32, i32) {
    %c0_i32 = arith.constant 0 : i32
    %c0_i32_0 = arith.constant 0 : i32
    %c0_i32_1 = arith.constant 0 : i32
    return %arg0, %arg1, %c0_i32, %c0_i32_0 : i32, i32, i32, i32
  }
}

</mosaic_0001>

<llo_original>
// kernel: tpu_custom_call.1
$region0: #{tpu_custom_call.1}
  #allocation0 [shape = 'u32[]', space=smem, size = 0x4, offset = 0x4, fixed_abs, tag = 'smem constant byte address 0x4 - core index']
  #allocation1 [shape = 'u32[144,128]{1,0:T(1,128)}', space=vmem, size = 0x12000, scoped, tag = 'internal scratch']
  #allocation2 [shape = 'f32[38,38,32]{2,1,0:T(8,128)}', space=vmem, size = 0xbe000, scoped, tag = 'scratch operand']
  %s0 = inlined_call_operand.hbm [shape: f32[2,32,32,32], index: 0, kind: input, shape index: {}]
  %s1 = inlined_call_operand.vmem [shape: f32[56,32], index: 1, kind: input, shape index: {}]
  %s2 = inlined_call_operand.vmem [shape: f32[1,32], index: 2, kind: input, shape index: {}]
  %s3 = inlined_call_operand.vmem [shape: f32[1,32], index: 3, kind: input, shape index: {}]
  %s4 = inlined_call_operand.vmem [shape: bf16[32,128], index: 4, kind: input, shape index: {}]
  %s5 = inlined_call_operand.vmem [shape: f32[1,128], index: 5, kind: input, shape index: {}]
  %s6 = inlined_call_operand.vmem [shape: bf16[128,32], index: 6, kind: input, shape index: {}]
  %s7 = inlined_call_operand.vmem [shape: f32[1,32], index: 7, kind: input, shape index: {}]
  %s8 = inlined_call_operand.hbm [shape: f32[2,32,32,32], index: 8, kind: output, shape index: {}]
  %s9 = sld [smem:[#allocation0]]
  $region73: #{tpu_custom_call.1} parent=0
    _
  %s11 = ssub.s32 1, %s9
  %s12 = scalar_select 0, %s11, %s9
  $region1: #{tpu_custom_call.1} parent=0
    #allocation3 [shape = 'u8[1048576]{0}', space=vmem, size = 0x100000, scoped, tag = 'input window, operand 0']
    #allocation4 [shape = 's32[2]{0}', space=sflag, size = 0x8, scoped, tag = 'scoped memory for tpu_custom_call.1']
    #allocation5 [shape = 's32[2]{0}', space=sflag, size = 0x8, scoped, tag = 'scoped memory for tpu_custom_call.1']
    #allocation6 [shape = 'u8[262144]{0}', space=vmem, size = 0x40000, scoped, tag = 'output window, operand 0']
    %13 = vsyncpa [#allocation4], 0
    %s14 = scalar_lea.sflag [#allocation4], 1
    %15 = vsyncpa %s14, 0
    %16 = vsyncpa [#allocation5], 0
    %s17 = scalar_lea.sflag [#allocation5], 1
    %18 = vsyncpa %s17, 0
    loop: start=0, step=1, limit=10
    $region2: #{tpu_custom_call.1} parent=1 // loop_pre_header
      _
    $region3: #{tpu_custom_call.1} parent=1 // loop_header
      %s20 = sphi 0, %s24
      %p21 = scmp.ge.s32.totalorder %s20, 10
      %s27 = sphi 0, %s39
      %s28 = sphi 0, %s35
      %s29 = sphi 0, %s27
      %s30 = sphi 0, %s28
      %s31 = sphi 0, %s29
      %s32 = sphi 0, %s30
      %s42 = sphi 0, %s44
      %s45 = sphi 0, %s42
      %s46 = sphi 0, %s45
      %s62 = sphi 0, %s46
      %s66 = sphi 0, %s66
      %s68 = sphi 0, %s66
      %s69 = sphi 0, %s68
      %s83 = sphi 0, %s69
      %s87 = sphi 0, %s87
      %s89 = sphi 0, %s87
      %s90 = sphi 0, %s89
      %s104 = sphi 0, %s90
      %s108 = sphi 0, %s108
      %s110 = sphi 0, %s108
      %s111 = sphi 0, %s110
      %s125 = sphi 0, %s111
      %s129 = sphi 0, %s129
      %s131 = sphi 0, %s129
      %s132 = sphi 0, %s131
      %s146 = sphi 0, %s132
      %s150 = sphi 0, %s150
      %s152 = sphi 0, %s150
      %s153 = sphi 0, %s152
      %s167 = sphi 0, %s153
      %s171 = sphi 0, %s171
      %s173 = sphi 0, %s171
      %s174 = sphi 0, %s173
      %s188 = sphi 0, %s174
      %s192 = sphi 0, %s192
      %s194 = sphi 0, %s192
      %s195 = sphi 0, %s194
      %s209 = sphi 0, %s195
      %s217 = sphi 0, %s219
      %s220 = sphi 0, %s217
      %s221 = sphi 0, %s220
      %s237 = sphi 0, %s221
    $region4: #{tpu_custom_call.1} parent=1 // loop_header_branch
      %23 = sbr.rel (%p21) target = $region8
    $region5: #{tpu_custom_call.1} parent=1 // loop_body
      %s25 = ssub.s32 %s20, 1
      %s26 = ssub.s32 %s20, 2
      %s33 = sadd.s32 1, %s28
      %p34 = scmp.ge.s32.totalorder %s33, 4
      %s35 = scalar_select %p34, 0, %s33
      %s36 = sadd.s32 1, %s27
      %s37 = scalar_select %p34, %s36, %s27
      %p38 = scmp.ge.s32.totalorder %s37, 2
      %s39 = scalar_select %p38, 0, %s37
      %s40 = ssub.s32 %s27, %s39
      %p41 = scmp.eq.s32.totalorder %s40, 0
      %s43 = sadd.s32 %s42, 1
      %s44 = scalar_select %p41, %s42, %s43
      %p47 = pneg %p41
      %p48 = scmp.eq.s32.totalorder %s20, 7
      %p49 = por %p47, %p48
      %p50 = scmp.ne.s32.totalorder %s42, %s45
      %p51 = scmp.eq.s32.totalorder %s20, 0
      %p52 = por %p50, %p51
      %p53 = scmp.ne.s32.totalorder %s42, %s45
      %p54 = scmp.eq.s32.totalorder %s25, 7
      %p55 = por %p53, %p54
      %p56 = scmp.ne.s32.totalorder %s45, %s46
      %p57 = scmp.eq.s32.totalorder %s25, 0
      %p58 = por %p56, %p57
      %p59 = scmp.ne.s32.totalorder %s45, %s46
      %p60 = scmp.eq.s32.totalorder %s26, 7
      %p61 = por %p59, %p60
      %p63 = scmp.ne.s32.totalorder %s46, %s62
      %p64 = scmp.eq.s32.totalorder %s26, 0
      %p65 = por %p63, %p64
      %s67 = sadd.s32 %s66, 1
      %p70 = scmp.eq.s32.totalorder %s20, 7
      %p71 = scmp.ne.s32.totalorder %s66, %s68
      %p72 = scmp.eq.s32.totalorder %s20, 0
      %p73 = por %p71, %p72
      %p74 = scmp.ne.s32.totalorder %s66, %s68
      %p75 = scmp.eq.s32.totalorder %s25, 7
      %p76 = por %p74, %p75
      %p77 = scmp.ne.s32.totalorder %s68, %s69
      %p78 = scmp.eq.s32.totalorder %s25, 0
      %p79 = por %p77, %p78
      %p80 = scmp.ne.s32.totalorder %s68, %s69
      %p81 = scmp.eq.s32.totalorder %s26, 7
      %p82 = por %p80, %p81
      %p84 = scmp.ne.s32.totalorder %s69, %s83
      %p85 = scmp.eq.s32.totalorder %s26, 0
      %p86 = por %p84, %p85
      %s88 = sadd.s32 %s87, 1
      %p91 = scmp.eq.s32.totalorder %s20, 7
      %p92 = scmp.ne.s32.totalorder %s87, %s89
      %p93 = scmp.eq.s32.totalorder %s20, 0
      %p94 = por %p92, %p93
      %p95 = scmp.ne.s32.totalorder %s87, %s89
      %p96 = scmp.eq.s32.totalorder %s25, 7
      %p97 = por %p95, %p96
      %p98 = scmp.ne.s32.totalorder %s89, %s90
      %p99 = scmp.eq.s32.totalorder %s25, 0
      %p100 = por %p98, %p99
      %p101 = scmp.ne.s32.totalorder %s89, %s90
      %p102 = scmp.eq.s32.totalorder %s26, 7
      %p103 = por %p101, %p102
      %p105 = scmp.ne.s32.totalorder %s90, %s104
      %p106 = scmp.eq.s32.totalorder %s26, 0
      %p107 = por %p105, %p106
      %s109 = sadd.s32 %s108, 1
      %p112 = scmp.eq.s32.totalorder %s20, 7
      %p113 = scmp.ne.s32.totalorder %s108, %s110
      %p114 = scmp.eq.s32.totalorder %s20, 0
      %p115 = por %p113, %p114
      %p116 = scmp.ne.s32.totalorder %s108, %s110
      %p117 = scmp.eq.s32.totalorder %s25, 7
      %p118 = por %p116, %p117
      %p119 = scmp.ne.s32.totalorder %s110, %s111
      %p120 = scmp.eq.s32.totalorder %s25, 0
      %p121 = por %p119, %p120
      %p122 = scmp.ne.s32.totalorder %s110, %s111
      %p123 = scmp.eq.s32.totalorder %s26, 7
      %p124 = por %p122, %p123
      %p126 = scmp.ne.s32.totalorder %s111, %s125
      %p127 = scmp.eq.s32.totalorder %s26, 0
      %p128 = por %p126, %p127
      %s130 = sadd.s32 %s129, 1
      %p133 = scmp.eq.s32.totalorder %s20, 7
      %p134 = scmp.ne.s32.totalorder %s129, %s131
      %p135 = scmp.eq.s32.totalorder %s20, 0
      %p136 = por %p134, %p135
      %p137 = scmp.ne.s32.totalorder %s129, %s131
      %p138 = scmp.eq.s32.totalorder %s25, 7
      %p139 = por %p137, %p138
      %p140 = scmp.ne.s32.totalorder %s131, %s132
      %p141 = scmp.eq.s32.totalorder %s25, 0
      %p142 = por %p140, %p141
      %p143 = scmp.ne.s32.totalorder %s131, %s132
      %p144 = scmp.eq.s32.totalorder %s26, 7
      %p145 = por %p143, %p144
      %p147 = scmp.ne.s32.totalorder %s132, %s146
      %p148 = scmp.eq.s32.totalorder %s26, 0
      %p149 = por %p147, %p148
      %s151 = sadd.s32 %s150, 1
      %p154 = scmp.eq.s32.totalorder %s20, 7
      %p155 = scmp.ne.s32.totalorder %s150, %s152
      %p156 = scmp.eq.s32.totalorder %s20, 0
      %p157 = por %p155, %p156
      %p158 = scmp.ne.s32.totalorder %s150, %s152
      %p159 = scmp.eq.s32.totalorder %s25, 7
      %p160 = por %p158, %p159
      %p161 = scmp.ne.s32.totalorder %s152, %s153
      %p162 = scmp.eq.s32.totalorder %s25, 0
      %p163 = por %p161, %p162
      %p164 = scmp.ne.s32.totalorder %s152, %s153
      %p165 = scmp.eq.s32.totalorder %s26, 7
      %p166 = por %p164, %p165
      %p168 = scmp.ne.s32.totalorder %s153, %s167
      %p169 = scmp.eq.s32.totalorder %s26, 0
      %p170 = por %p168, %p169
      %s172 = sadd.s32 %s171, 1
      %p175 = scmp.eq.s32.totalorder %s20, 7
      %p176 = scmp.ne.s32.totalorder %s171, %s173
      %p177 = scmp.eq.s32.totalorder %s20, 0
      %p178 = por %p176, %p177
      %p179 = scmp.ne.s32.totalorder %s171, %s173
      %p180 = scmp.eq.s32.totalorder %s25, 7
      %p181 = por %p179, %p180
      %p182 = scmp.ne.s32.totalorder %s173, %s174
      %p183 = scmp.eq.s32.totalorder %s25, 0
      %p184 = por %p182, %p183
      %p185 = scmp.ne.s32.totalorder %s173, %s174
      %p186 = scmp.eq.s32.totalorder %s26, 7
      %p187 = por %p185, %p186
      %p189 = scmp.ne.s32.totalorder %s174, %s188
      %p190 = scmp.eq.s32.totalorder %s26, 0
      %p191 = por %p189, %p190
      %s193 = sadd.s32 %s192, 1
      %p196 = scmp.eq.s32.totalorder %s20, 7
      %p197 = scmp.ne.s32.totalorder %s192, %s194
      %p198 = scmp.eq.s32.totalorder %s20, 0
      %p199 = por %p197, %p198
      %p200 = scmp.ne.s32.totalorder %s192, %s194
      %p201 = scmp.eq.s32.totalorder %s25, 7
      %p202 = por %p200, %p201
      %p203 = scmp.ne.s32.totalorder %s194, %s195
      %p204 = scmp.eq.s32.totalorder %s25, 0
      %p205 = por %p203, %p204
      %p206 = scmp.ne.s32.totalorder %s194, %s195
      %p207 = scmp.eq.s32.totalorder %s26, 7
      %p208 = por %p206, %p207
      %p210 = scmp.ne.s32.totalorder %s195, %s209
      %p211 = scmp.eq.s32.totalorder %s26, 0
      %p212 = por %p210, %p211
      %s213 = ssub.s32 %s27, %s39
      %s214 = ssub.s32 %s28, %s35
      %s215 = sor.u32 %s213, %s214
      %p216 = scmp.eq.s32.totalorder %s215, 0
      %s218 = sadd.s32 %s217, 1
      %s219 = scalar_select %p216, %s217, %s218
      %p222 = pneg %p216
      %p223 = scmp.eq.s32.totalorder %s20, 7
      %p224 = por %p222, %p223
      %p225 = scmp.ne.s32.totalorder %s217, %s220
      %p226 = scmp.eq.s32.totalorder %s20, 0
      %p227 = por %p225, %p226
      %p228 = scmp.ne.s32.totalorder %s217, %s220
      %p229 = scmp.eq.s32.totalorder %s25, 7
      %p230 = por %p228, %p229
      %p231 = scmp.ne.s32.totalorder %s220, %s221
      %p232 = scmp.eq.s32.totalorder %s25, 0
      %p233 = por %p231, %p232
      %p234 = scmp.ne.s32.totalorder %s220, %s221
      %p235 = scmp.eq.s32.totalorder %s26, 7
      %p236 = por %p234, %p235
      %p238 = scmp.ne.s32.totalorder %s221, %s237
      %p239 = scmp.eq.s32.totalorder %s26, 0
      %p240 = por %p238, %p239
      %p241 = scmp.le.s32.totalorder 1, %s20
      %p242 = scmp.lt.s32.totalorder %s20, 9
      %p243 = pnand %p241, %p242
      %p244 = pneg %p243
      // Predicated region
      $region9: #{tpu_custom_call.1} parent=5 // pred_check
        _
      $region10: #{tpu_custom_call.1} parent=5 // pred_check_branch
        %246 = sbr.rel (%p243) target = $region12
      $region11: #{tpu_custom_call.1} parent=5 // pred_region
        %s247 = ssub.s32 %s20, 1
        // Predicated region
        $region13: #{tpu_custom_call.1} parent=11 // pred_check
          %p248 = pneg %p79
        $region14: #{tpu_custom_call.1} parent=11 // pred_check_branch
          %250 = sbr.rel (%p248) target = $region16
        $region15: #{tpu_custom_call.1} parent=11 // pred_region
          _
        $region16: #{tpu_custom_call.1} parent=11 // pred_fallthru
          _
        // Predicated region
        $region17: #{tpu_custom_call.1} parent=11 // pred_check
          %p251 = pneg %p100
        $region18: #{tpu_custom_call.1} parent=11 // pred_check_branch
          %253 = sbr.rel (%p251) target = $region20
        $region19: #{tpu_custom_call.1} parent=11 // pred_region
          _
        $region20: #{tpu_custom_call.1} parent=11 // pred_fallthru
          _
        // Predicated region
        $region21: #{tpu_custom_call.1} parent=11 // pred_check
          %p254 = pneg %p121
        $region22: #{tpu_custom_call.1} parent=11 // pred_check_branch
          %256 = sbr.rel (%p254) target = $region24
        $region23: #{tpu_custom_call.1} parent=11 // pred_region
          _
        $region24: #{tpu_custom_call.1} parent=11 // pred_fallthru
          _
        // Predicated region
        $region25: #{tpu_custom_call.1} parent=11 // pred_check
          %p257 = pneg %p142
        $region26: #{tpu_custom_call.1} parent=11 // pred_check_branch
          %259 = sbr.rel (%p257) target = $region28
        $region27: #{tpu_custom_call.1} parent=11 // pred_region
          _
        $region28: #{tpu_custom_call.1} parent=11 // pred_fallthru
          _
        // Predicated region
        $region29: #{tpu_custom_call.1} parent=11 // pred_check
          %p260 = pneg %p163
        $region30: #{tpu_custom_call.1} parent=11 // pred_check_branch
          %262 = sbr.rel (%p260) target = $region32
        $region31: #{tpu_custom_call.1} parent=11 // pred_region
          _
        $region32: #{tpu_custom_call.1} parent=11 // pred_fallthru
          _
        // Predicated region
        $region33: #{tpu_custom_call.1} parent=11 // pred_check
          %p263 = pneg %p184
        $region34: #{tpu_custom_call.1} parent=11 // pred_check_branch
          %265 = sbr.rel (%p263) target = $region36
        $region35: #{tpu_custom_call.1} parent=11 // pred_region
          _
        $region36: #{tpu_custom_call.1} parent=11 // pred_fallthru
          _
        // Predicated region
        $region37: #{tpu_custom_call.1} parent=11 // pred_check
          %p266 = pneg %p205
        $region38: #{tpu_custom_call.1} parent=11 // pred_check_branch
          %268 = sbr.rel (%p266) target = $region40
        $region39: #{tpu_custom_call.1} parent=11 // pred_region
          _
        $region40: #{tpu_custom_call.1} parent=11 // pred_fallthru
          _
      $region12: #{tpu_custom_call.1} parent=5 // pred_fallthru
        _
      %p269 = scmp.lt.s32.totalorder %s20, 8
      // Predicated region
      $region41: #{tpu_custom_call.1} parent=5 // pred_check
        %p270 = pneg %p269
      $region42: #{tpu_custom_call.1} parent=5 // pred_check_branch
        %272 = sbr.rel (%p270) target = $region44
      $region43: #{tpu_custom_call.1} parent=5 // pred_region
        // Predicated region
        $region45: #{tpu_custom_call.1} parent=43 // pred_check
          %p273 = pneg %p52
        $region46: #{tpu_custom_call.1} parent=43 // pred_check_branch
          %275 = sbr.rel (%p273) target = $region48
        $region47: #{tpu_custom_call.1} parent=43 // pred_region
          %s276 = sand.u32 %s42, 1
          %s277 = scalar_lea.sflag [#allocation4], %s276
          %s278 = sand.u32 %s42, 1
          %s279 = smul.addr %s278, 1024
          %s280 = scalar_lea.vmem [#allocation3], %s279
          %s282 = ssub.s32 16384, 16384
          %283 = vsyncadd %s277, %s282
          %s284 = smul.addr %s27, 128
          %s285 = smul.addr %s284, 128
          %s286 = scalar_lea.hbm %s0, %s285
          %s287 = sshll.u32 %s280, 4
          %s288 = int_to_ptr.vmem [resolvable:$true] %s287
          %293 = dma.hbm_to_vmem [thread:$0]  %s286, 16384, %s288, %s277, 128, 128, 8
        $region48: #{tpu_custom_call.1} parent=43 // pred_fallthru
          _
      $region44: #{tpu_custom_call.1} parent=5 // pred_fallthru
        _
      %p294 = scmp.le.s32.totalorder 1, %s20
      %p295 = scmp.lt.s32.totalorder %s20, 9
      %p296 = pnand %p294, %p295
      %p297 = pneg %p296
      // Predicated region
      $region49: #{tpu_custom_call.1} parent=5 // pred_check
        _
      $region50: #{tpu_custom_call.1} parent=5 // pred_check_branch
        %299 = sbr.rel (%p296) target = $region52
      $region51: #{tpu_custom_call.1} parent=5 // pred_region
        %s300 = ssub.s32 %s20, 1
        %s301 = sand.u32 %s45, 1
        %s302 = scalar_lea.sflag [#allocation4], %s301
        %s303 = sand.u32 %s45, 1
        %s304 = smul.addr %s303, 1024
        %s305 = scalar_lea.vmem [#allocation3], %s304
        // Predicated region
        $region53: #{tpu_custom_call.1} parent=51 // pred_check
          %p306 = pneg %p58
        $region54: #{tpu_custom_call.1} parent=51 // pred_check_branch
          %308 = sbr.rel (%p306) target = $region56
        $region55: #{tpu_custom_call.1} parent=51 // pred_region
          %309 = dma.done %s302, 16384
        $region56: #{tpu_custom_call.1} parent=51 // pred_fallthru
          _
        %s310 = sand.u32 %s45, 1
        %s311 = scalar_lea.sflag [#allocation4], %s310
        %s312 = sand.u32 %s45, 1
        %s313 = smul.addr %s312, 1024
        %s314 = scalar_lea.vmem [#allocation3], %s313
        %p315 = pneg %p58
        %p316 = pneg %p55
        %p317 = pneg %p79
        %p318 = pneg %p76
        %p319 = pneg %p100
        %p320 = pneg %p97
        %p321 = pneg %p121
        %p322 = pneg %p118
        %p323 = pneg %p142
        %p324 = pneg %p139
        %p325 = pneg %p163
        %p326 = pneg %p160
        %p327 = pneg %p184
        %p328 = pneg %p181
        %p329 = pneg %p205
        %p330 = pneg %p202
        %p331 = pneg %p233
        %p332 = pneg %p230
        %s333 = sand.u32 %s220, 1
        %s334 = scalar_lea.sflag [#allocation5], %s333
        %s335 = sand.u32 %s220, 1
        %s336 = smul.addr %s335, 256
        %s337 = scalar_lea.vmem [#allocation6], %s336
        %s338 = smul.u32 8, %s30
        %p340 = scmp.eq.s32.totalorder %s30, 0
        // Predicated region
        $region57: #{tpu_custom_call.1} parent=51 // pred_check
          %p341 = pneg %p340
        $region58: #{tpu_custom_call.1} parent=51 // pred_check_branch
          %343 = sbr.rel (%p341) target = $region60
        $region59: #{tpu_custom_call.1} parent=51 // pred_region
          %vm344 = vcmask 261120
          %345 = vst.msk [vmem:[#allocation2] sm:$0xff] %vm344, 0.0
          %346 = vst.msk [vmem:[#allocation2 + $0x8] sm:$0xff] %vm344, 0.0
          %347 = vst.msk [vmem:[#allocation2 + $0x10] sm:$0xff] %vm344, 0.0
          %348 = vst.msk [vmem:[#allocation2 + $0x18] sm:$0xff] %vm344, 0.0
          %vm349 = vcmask 259072
          %350 = vst.msk [vmem:[#allocation2 + $0x20] sm:$0x3f] %vm349, 0.0
          %351 = vst.msk [vmem:[#allocation2 + $0x28] sm:$0xff] %vm344, 0.0
          %352 = vst.msk [vmem:[#allocation2 + $0x30] sm:$0xff] %vm344, 0.0
          %353 = vst.msk [vmem:[#allocation2 + $0x38] sm:$0xff] %vm344, 0.0
          %354 = vst.msk [vmem:[#allocation2 + $0x40] sm:$0xff] %vm344, 0.0
          %355 = vst.msk [vmem:[#allocation2 + $0x48] sm:$0x3f] %vm349, 0.0
          %356 = vst.msk [vmem:[#allocation2 + $0x50] sm:$0xff] %vm344, 0.0
          %357 = vst.msk [vmem:[#allocation2 + $0x58] sm:$0xff] %vm344, 0.0
          %358 = vst.msk [vmem:[#allocation2 + $0x60] sm:$0xff] %vm344, 0.0
          %359 = vst.msk [vmem:[#allocation2 + $0x68] sm:$0xff] %vm344, 0.0
          %360 = vst.msk [vmem:[#allocation2 + $0x70] sm:$0x3f] %vm349, 0.0
          %361 = vst.msk [vmem:[#allocation2 + $0x78] sm:$0xff] %vm344, 0.0
          %362 = vst.msk [vmem:[#allocation2 + $0x80] sm:$0xff] %vm344, 0.0
          %363 = vst.msk [vmem:[#allocation2 + $0x88] sm:$0xff] %vm344, 0.0
          %364 = vst.msk [vmem:[#allocation2 + $0x90] sm:$0xff] %vm344, 0.0
          %365 = vst.msk [vmem:[#allocation2 + $0x98] sm:$0x3f] %vm349, 0.0
          %366 = vst.msk [vmem:[#allocation2 + $0xa0] sm:$0xff] %vm344, 0.0
          %367 = vst.msk [vmem:[#allocation2 + $0xa8] sm:$0xff] %vm344, 0.0
          %368 = vst.msk [vmem:[#allocation2 + $0xb0] sm:$0xff] %vm344, 0.0
          %369 = vst.msk [vmem:[#allocation2 + $0xb8] sm:$0xff] %vm344, 0.0
          %370 = vst.msk [vmem:[#allocation2 + $0xc0] sm:$0x3f] %vm349, 0.0
          %371 = vst.msk [vmem:[#allocation2 + $0xc8] sm:$0xff] %vm344, 0.0
          %372 = vst.msk [vmem:[#allocation2 + $0xd0] sm:$0xff] %vm344, 0.0
          %373 = vst.msk [vmem:[#allocation2 + $0xd8] sm:$0xff] %vm344, 0.0
          %374 = vst.msk [vmem:[#allocation2 + $0xe0] sm:$0xff] %vm344, 0.0
          %375 = vst.msk [vmem:[#allocation2 + $0xe8] sm:$0x3f] %vm349, 0.0
          %376 = vst.msk [vmem:[#allocation2 + $0xf0] sm:$0xff] %vm344, 0.0
          %377 = vst.msk [vmem:[#allocation2 + $0xf8] sm:$0xff] %vm344, 0.0
          %378 = vst.msk [vmem:[#allocation2 + $0x100] sm:$0xff] %vm344, 0.0
          %379 = vst.msk [vmem:[#allocation2 + $0x108] sm:$0xff] %vm344, 0.0
          %380 = vst.msk [vmem:[#allocation2 + $0x110] sm:$0x3f] %vm349, 0.0
          %381 = vst.msk [vmem:[#allocation2 + $0x118] sm:$0xff] %vm344, 0.0
          %382 = vst.msk [vmem:[#allocation2 + $0x120] sm:$0xff] %vm344, 0.0
          %383 = vst.msk [vmem:[#allocation2 + $0x128] sm:$0xff] %vm344, 0.0
          %384 = vst.msk [vmem:[#allocation2 + $0x130] sm:$0xff] %vm344, 0.0
          %385 = vst.msk [vmem:[#allocation2 + $0x138] sm:$0x3f] %vm349, 0.0
          %386 = vst.msk [vmem:[#allocation2 + $0x140] sm:$0xff] %vm344, 0.0
          %387 = vst.msk [vmem:[#allocation2 + $0x148] sm:$0xff] %vm344, 0.0
          %388 = vst.msk [vmem:[#allocation2 + $0x150] sm:$0xff] %vm344, 0.0
          %389 = vst.msk [vmem:[#allocation2 + $0x158] sm:$0xff] %vm344, 0.0
          %390 = vst.msk [vmem:[#allocation2 + $0x160] sm:$0x3f] %vm349, 0.0
          %391 = vst.msk [vmem:[#allocation2 + $0x168] sm:$0xff] %vm344, 0.0
          %392 = vst.msk [vmem:[#allocation2 + $0x170] sm:$0xff] %vm344, 0.0
          %393 = vst.msk [vmem:[#allocation2 + $0x178] sm:$0xff] %vm344, 0.0
          %394 = vst.msk [vmem:[#allocation2 + $0x180] sm:$0xff] %vm344, 0.0
          %395 = vst.msk [vmem:[#allocation2 + $0x188] sm:$0x3f] %vm349, 0.0
          %396 = vst.msk [vmem:[#allocation2 + $0x190] sm:$0xff] %vm344, 0.0
          %397 = vst.msk [vmem:[#allocation2 + $0x198] sm:$0xff] %vm344, 0.0
          %398 = vst.msk [vmem:[#allocation2 + $0x1a0] sm:$0xff] %vm344, 0.0
          %399 = vst.msk [vmem:[#allocation2 + $0x1a8] sm:$0xff] %vm344, 0.0
          %400 = vst.msk [vmem:[#allocation2 + $0x1b0] sm:$0x3f] %vm349, 0.0
          %401 = vst.msk [vmem:[#allocation2 + $0x1b8] sm:$0xff] %vm344, 0.0
          %402 = vst.msk [vmem:[#allocation2 + $0x1c0] sm:$0xff] %vm344, 0.0
          %403 = vst.msk [vmem:[#allocation2 + $0x1c8] sm:$0xff] %vm344, 0.0
          %404 = vst.msk [vmem:[#allocation2 + $0x1d0] sm:$0xff] %vm344, 0.0
          %405 = vst.msk [vmem:[#allocation2 + $0x1d8] sm:$0x3f] %vm349, 0.0
          %406 = vst.msk [vmem:[#allocation2 + $0x1e0] sm:$0xff] %vm344, 0.0
          %407 = vst.msk [vmem:[#allocation2 + $0x1e8] sm:$0xff] %vm344, 0.0
          %408 = vst.msk [vmem:[#allocation2 + $0x1f0] sm:$0xff] %vm344, 0.0
          %409 = vst.msk [vmem:[#allocation2 + $0x1f8] sm:$0xff] %vm344, 0.0
          %410 = vst.msk [vmem:[#allocation2 + $0x200] sm:$0x3f] %vm349, 0.0
          %411 = vst.msk [vmem:[#allocation2 + $0x208] sm:$0xff] %vm344, 0.0
          %412 = vst.msk [vmem:[#allocation2 + $0x210] sm:$0xff] %vm344, 0.0
          %413 = vst.msk [vmem:[#allocation2 + $0x218] sm:$0xff] %vm344, 0.0
          %414 = vst.msk [vmem:[#allocation2 + $0x220] sm:$0xff] %vm344, 0.0
          %415 = vst.msk [vmem:[#allocation2 + $0x228] sm:$0x3f] %vm349, 0.0
          %416 = vst.msk [vmem:[#allocation2 + $0x230] sm:$0xff] %vm344, 0.0
          %417 = vst.msk [vmem:[#allocation2 + $0x238] sm:$0xff] %vm344, 0.0
          %418 = vst.msk [vmem:[#allocation2 + $0x240] sm:$0xff] %vm344, 0.0
          %419 = vst.msk [vmem:[#allocation2 + $0x248] sm:$0xff] %vm344, 0.0
          %420 = vst.msk [vmem:[#allocation2 + $0x250] sm:$0x3f] %vm349, 0.0
          %421 = vst.msk [vmem:[#allocation2 + $0x258] sm:$0xff] %vm344, 0.0
          %422 = vst.msk [vmem:[#allocation2 + $0x260] sm:$0xff] %vm344, 0.0
          %423 = vst.msk [vmem:[#allocation2 + $0x268] sm:$0xff] %vm344, 0.0
          %424 = vst.msk [vmem:[#allocation2 + $0x270] sm:$0xff] %vm344, 0.0
          %425 = vst.msk [vmem:[#allocation2 + $0x278] sm:$0x3f] %vm349, 0.0
          %426 = vst.msk [vmem:[#allocation2 + $0x280] sm:$0xff] %vm344, 0.0
          %427 = vst.msk [vmem:[#allocation2 + $0x288] sm:$0xff] %vm344, 0.0
          %428 = vst.msk [vmem:[#allocation2 + $0x290] sm:$0xff] %vm344, 0.0
          %429 = vst.msk [vmem:[#allocation2 + $0x298] sm:$0xff] %vm344, 0.0
          %430 = vst.msk [vmem:[#allocation2 + $0x2a0] sm:$0x3f] %vm349, 0.0
          %431 = vst.msk [vmem:[#allocation2 + $0x2a8] sm:$0xff] %vm344, 0.0
          %432 = vst.msk [vmem:[#allocation2 + $0x2b0] sm:$0xff] %vm344, 0.0
          %433 = vst.msk [vmem:[#allocation2 + $0x2b8] sm:$0xff] %vm344, 0.0
          %434 = vst.msk [vmem:[#allocation2 + $0x2c0] sm:$0xff] %vm344, 0.0
          %435 = vst.msk [vmem:[#allocation2 + $0x2c8] sm:$0x3f] %vm349, 0.0
          %436 = vst.msk [vmem:[#allocation2 + $0x2d0] sm:$0xff] %vm344, 0.0
          %437 = vst.msk [vmem:[#allocation2 + $0x2d8] sm:$0xff] %vm344, 0.0
          %438 = vst.msk [vmem:[#allocation2 + $0x2e0] sm:$0xff] %vm344, 0.0
          %439 = vst.msk [vmem:[#allocation2 + $0x2e8] sm:$0xff] %vm344, 0.0
          %440 = vst.msk [vmem:[#allocation2 + $0x2f0] sm:$0x3f] %vm349, 0.0
          %441 = vst.msk [vmem:[#allocation2 + $0x2f8] sm:$0xff] %vm344, 0.0
          %442 = vst.msk [vmem:[#allocation2 + $0x300] sm:$0xff] %vm344, 0.0
          %443 = vst.msk [vmem:[#allocation2 + $0x308] sm:$0xff] %vm344, 0.0
          %444 = vst.msk [vmem:[#allocation2 + $0x310] sm:$0xff] %vm344, 0.0
          %445 = vst.msk [vmem:[#allocation2 + $0x318] sm:$0x3f] %vm349, 0.0
          %446 = vst.msk [vmem:[#allocation2 + $0x320] sm:$0xff] %vm344, 0.0
          %447 = vst.msk [vmem:[#allocation2 + $0x328] sm:$0xff] %vm344, 0.0
          %448 = vst.msk [vmem:[#allocation2 + $0x330] sm:$0xff] %vm344, 0.0
          %449 = vst.msk [vmem:[#allocation2 + $0x338] sm:$0xff] %vm344, 0.0
          %450 = vst.msk [vmem:[#allocation2 + $0x340] sm:$0x3f] %vm349, 0.0
          %451 = vst.msk [vmem:[#allocation2 + $0x348] sm:$0xff] %vm344, 0.0
          %452 = vst.msk [vmem:[#allocation2 + $0x350] sm:$0xff] %vm344, 0.0
          %453 = vst.msk [vmem:[#allocation2 + $0x358] sm:$0xff] %vm344, 0.0
          %454 = vst.msk [vmem:[#allocation2 + $0x360] sm:$0xff] %vm344, 0.0
          %455 = vst.msk [vmem:[#allocation2 + $0x368] sm:$0x3f] %vm349, 0.0
          %456 = vst.msk [vmem:[#allocation2 + $0x370] sm:$0xff] %vm344, 0.0
          %457 = vst.msk [vmem:[#allocation2 + $0x378] sm:$0xff] %vm344, 0.0
          %458 = vst.msk [vmem:[#allocation2 + $0x380] sm:$0xff] %vm344, 0.0
          %459 = vst.msk [vmem:[#allocation2 + $0x388] sm:$0xff] %vm344, 0.0
          %460 = vst.msk [vmem:[#allocation2 + $0x390] sm:$0x3f] %vm349, 0.0
          %461 = vst.msk [vmem:[#allocation2 + $0x398] sm:$0xff] %vm344, 0.0
          %462 = vst.msk [vmem:[#allocation2 + $0x3a0] sm:$0xff] %vm344, 0.0
          %463 = vst.msk [vmem:[#allocation2 + $0x3a8] sm:$0xff] %vm344, 0.0
          %464 = vst.msk [vmem:[#allocation2 + $0x3b0] sm:$0xff] %vm344, 0.0
          %465 = vst.msk [vmem:[#allocation2 + $0x3b8] sm:$0x3f] %vm349, 0.0
          %466 = vst.msk [vmem:[#allocation2 + $0x3c0] sm:$0xff] %vm344, 0.0
          %467 = vst.msk [vmem:[#allocation2 + $0x3c8] sm:$0xff] %vm344, 0.0
          %468 = vst.msk [vmem:[#allocation2 + $0x3d0] sm:$0xff] %vm344, 0.0
          %469 = vst.msk [vmem:[#allocation2 + $0x3d8] sm:$0xff] %vm344, 0.0
          %470 = vst.msk [vmem:[#allocation2 + $0x3e0] sm:$0x3f] %vm349, 0.0
          %471 = vst.msk [vmem:[#allocation2 + $0x3e8] sm:$0xff] %vm344, 0.0
          %472 = vst.msk [vmem:[#allocation2 + $0x3f0] sm:$0xff] %vm344, 0.0
          %473 = vst.msk [vmem:[#allocation2 + $0x3f8] sm:$0xff] %vm344, 0.0
          %474 = vst.msk [vmem:[#allocation2 + $0x400] sm:$0xff] %vm344, 0.0
          %475 = vst.msk [vmem:[#allocation2 + $0x408] sm:$0x3f] %vm349, 0.0
          %476 = vst.msk [vmem:[#allocation2 + $0x410] sm:$0xff] %vm344, 0.0
          %477 = vst.msk [vmem:[#allocation2 + $0x418] sm:$0xff] %vm344, 0.0
          %478 = vst.msk [vmem:[#allocation2 + $0x420] sm:$0xff] %vm344, 0.0
          %479 = vst.msk [vmem:[#allocation2 + $0x428] sm:$0xff] %vm344, 0.0
          %480 = vst.msk [vmem:[#allocation2 + $0x430] sm:$0x3f] %vm349, 0.0
          %481 = vst.msk [vmem:[#allocation2 + $0x438] sm:$0xff] %vm344, 0.0
          %482 = vst.msk [vmem:[#allocation2 + $0x440] sm:$0xff] %vm344, 0.0
          %483 = vst.msk [vmem:[#allocation2 + $0x448] sm:$0xff] %vm344, 0.0
          %484 = vst.msk [vmem:[#allocation2 + $0x450] sm:$0xff] %vm344, 0.0
          %485 = vst.msk [vmem:[#allocation2 + $0x458] sm:$0x3f] %vm349, 0.0
          %486 = vst.msk [vmem:[#allocation2 + $0x460] sm:$0xff] %vm344, 0.0
          %487 = vst.msk [vmem:[#allocation2 + $0x468] sm:$0xff] %vm344, 0.0
          %488 = vst.msk [vmem:[#allocation2 + $0x470] sm:$0xff] %vm344, 0.0
          %489 = vst.msk [vmem:[#allocation2 + $0x478] sm:$0xff] %vm344, 0.0
          %490 = vst.msk [vmem:[#allocation2 + $0x480] sm:$0x3f] %vm349, 0.0
          %491 = vst.msk [vmem:[#allocation2 + $0x488] sm:$0xff] %vm344, 0.0
          %492 = vst.msk [vmem:[#allocation2 + $0x490] sm:$0xff] %vm344, 0.0
          %493 = vst.msk [vmem:[#allocation2 + $0x498] sm:$0xff] %vm344, 0.0
          %494 = vst.msk [vmem:[#allocation2 + $0x4a0] sm:$0xff] %vm344, 0.0
          %495 = vst.msk [vmem:[#allocation2 + $0x4a8] sm:$0x3f] %vm349, 0.0
          %496 = vst.msk [vmem:[#allocation2 + $0x4b0] sm:$0xff] %vm344, 0.0
          %497 = vst.msk [vmem:[#allocation2 + $0x4b8] sm:$0xff] %vm344, 0.0
          %498 = vst.msk [vmem:[#allocation2 + $0x4c0] sm:$0xff] %vm344, 0.0
          %499 = vst.msk [vmem:[#allocation2 + $0x4c8] sm:$0xff] %vm344, 0.0
          %500 = vst.msk [vmem:[#allocation2 + $0x4d0] sm:$0x3f] %vm349, 0.0
          %501 = vst.msk [vmem:[#allocation2 + $0x4d8] sm:$0xff] %vm344, 0.0
          %502 = vst.msk [vmem:[#allocation2 + $0x4e0] sm:$0xff] %vm344, 0.0
          %503 = vst.msk [vmem:[#allocation2 + $0x4e8] sm:$0xff] %vm344, 0.0
          %504 = vst.msk [vmem:[#allocation2 + $0x4f0] sm:$0xff] %vm344, 0.0
          %505 = vst.msk [vmem:[#allocation2 + $0x4f8] sm:$0x3f] %vm349, 0.0
          %506 = vst.msk [vmem:[#allocation2 + $0x500] sm:$0xff] %vm344, 0.0
          %507 = vst.msk [vmem:[#allocation2 + $0x508] sm:$0xff] %vm344, 0.0
          %508 = vst.msk [vmem:[#allocation2 + $0x510] sm:$0xff] %vm344, 0.0
          %509 = vst.msk [vmem:[#allocation2 + $0x518] sm:$0xff] %vm344, 0.0
          %510 = vst.msk [vmem:[#allocation2 + $0x520] sm:$0x3f] %vm349, 0.0
          %511 = vst.msk [vmem:[#allocation2 + $0x528] sm:$0xff] %vm344, 0.0
          %512 = vst.msk [vmem:[#allocation2 + $0x530] sm:$0xff] %vm344, 0.0
          %513 = vst.msk [vmem:[#allocation2 + $0x538] sm:$0xff] %vm344, 0.0
          %514 = vst.msk [vmem:[#allocation2 + $0x540] sm:$0xff] %vm344, 0.0
          %515 = vst.msk [vmem:[#allocation2 + $0x548] sm:$0x3f] %vm349, 0.0
          %516 = vst.msk [vmem:[#allocation2 + $0x550] sm:$0xff] %vm344, 0.0
          %517 = vst.msk [vmem:[#allocation2 + $0x558] sm:$0xff] %vm344, 0.0
          %518 = vst.msk [vmem:[#allocation2 + $0x560] sm:$0xff] %vm344, 0.0
          %519 = vst.msk [vmem:[#allocation2 + $0x568] sm:$0xff] %vm344, 0.0
          %520 = vst.msk [vmem:[#allocation2 + $0x570] sm:$0x3f] %vm349, 0.0
          %521 = vst.msk [vmem:[#allocation2 + $0x578] sm:$0xff] %vm344, 0.0
          %522 = vst.msk [vmem:[#allocation2 + $0x580] sm:$0xff] %vm344, 0.0
          %523 = vst.msk [vmem:[#allocation2 + $0x588] sm:$0xff] %vm344, 0.0
          %524 = vst.msk [vmem:[#allocation2 + $0x590] sm:$0xff] %vm344, 0.0
          %525 = vst.msk [vmem:[#allocation2 + $0x598] sm:$0x3f] %vm349, 0.0
          %526 = vst.msk [vmem:[#allocation2 + $0x5a0] sm:$0xff] %vm344, 0.0
          %527 = vst.msk [vmem:[#allocation2 + $0x5a8] sm:$0xff] %vm344, 0.0
          %528 = vst.msk [vmem:[#allocation2 + $0x5b0] sm:$0xff] %vm344, 0.0
          %529 = vst.msk [vmem:[#allocation2 + $0x5b8] sm:$0xff] %vm344, 0.0
          %530 = vst.msk [vmem:[#allocation2 + $0x5c0] sm:$0x3f] %vm349, 0.0
          %531 = vst.msk [vmem:[#allocation2 + $0x5c8] sm:$0xff] %vm344, 0.0
          %532 = vst.msk [vmem:[#allocation2 + $0x5d0] sm:$0xff] %vm344, 0.0
          %533 = vst.msk [vmem:[#allocation2 + $0x5d8] sm:$0xff] %vm344, 0.0
          %534 = vst.msk [vmem:[#allocation2 + $0x5e0] sm:$0xff] %vm344, 0.0
          %535 = vst.msk [vmem:[#allocation2 + $0x5e8] sm:$0x3f] %vm349, 0.0
          %v536 = vld [vmem:[%s305] sm:$0xff]
          %v537 = vld [vmem:[%s305 + $0x8] sm:$0xff]
          %v538 = vld [vmem:[%s305 + $0x10] sm:$0xff]
          %v539 = vld [vmem:[%s305 + $0x18] sm:$0xff]
          %v540 = vld [vmem:[%s305 + $0x20] sm:$0xff]
          %v541 = vld [vmem:[%s305 + $0x28] sm:$0xff]
          %v542 = vld [vmem:[%s305 + $0x30] sm:$0xff]
          %v543 = vld [vmem:[%s305 + $0x38] sm:$0xff]
          %v544 = vld [vmem:[%s305 + $0x40] sm:$0xff]
          %v545 = vld [vmem:[%s305 + $0x48] sm:$0xff]
          %v546 = vld [vmem:[%s305 + $0x50] sm:$0xff]
          %v547 = vld [vmem:[%s305 + $0x58] sm:$0xff]
          %v548 = vld [vmem:[%s305 + $0x60] sm:$0xff]
          %v549 = vld [vmem:[%s305 + $0x68] sm:$0xff]
          %v550 = vld [vmem:[%s305 + $0x70] sm:$0xff]
          %v551 = vld [vmem:[%s305 + $0x78] sm:$0xff]
          %v552 = vld [vmem:[%s305 + $0x80] sm:$0xff]
          %v553 = vld [vmem:[%s305 + $0x88] sm:$0xff]
          %v554 = vld [vmem:[%s305 + $0x90] sm:$0xff]
          %v555 = vld [vmem:[%s305 + $0x98] sm:$0xff]
          %v556 = vld [vmem:[%s305 + $0xa0] sm:$0xff]
          %v557 = vld [vmem:[%s305 + $0xa8] sm:$0xff]
          %v558 = vld [vmem:[%s305 + $0xb0] sm:$0xff]
          %v559 = vld [vmem:[%s305 + $0xb8] sm:$0xff]
          %v560 = vld [vmem:[%s305 + $0xc0] sm:$0xff]
          %v561 = vld [vmem:[%s305 + $0xc8] sm:$0xff]
          %v562 = vld [vmem:[%s305 + $0xd0] sm:$0xff]
          %v563 = vld [vmem:[%s305 + $0xd8] sm:$0xff]
          %v564 = vld [vmem:[%s305 + $0xe0] sm:$0xff]
          %v565 = vld [vmem:[%s305 + $0xe8] sm:$0xff]
          %v566 = vld [vmem:[%s305 + $0xf0] sm:$0xff]
          %v567 = vld [vmem:[%s305 + $0xf8] sm:$0xff]
          %v568 = vld [vmem:[%s305 + $0x100] sm:$0xff]
          %v569 = vld [vmem:[%s305 + $0x108] sm:$0xff]
          %v570 = vld [vmem:[%s305 + $0x110] sm:$0xff]
          %v571 = vld [vmem:[%s305 + $0x118] sm:$0xff]
          %v572 = vld [vmem:[%s305 + $0x120] sm:$0xff]
          %v573 = vld [vmem:[%s305 + $0x128] sm:$0xff]
          %v574 = vld [vmem:[%s305 + $0x130] sm:$0xff]
          %v575 = vld [vmem:[%s305 + $0x138] sm:$0xff]
          %v576 = vld [vmem:[%s305 + $0x140] sm:$0xff]
          %v577 = vld [vmem:[%s305 + $0x148] sm:$0xff]
          %v578 = vld [vmem:[%s305 + $0x150] sm:$0xff]
          %v579 = vld [vmem:[%s305 + $0x158] sm:$0xff]
          %v580 = vld [vmem:[%s305 + $0x160] sm:$0xff]
          %v581 = vld [vmem:[%s305 + $0x168] sm:$0xff]
          %v582 = vld [vmem:[%s305 + $0x170] sm:$0xff]
          %v583 = vld [vmem:[%s305 + $0x178] sm:$0xff]
          %v584 = vld [vmem:[%s305 + $0x180] sm:$0xff]
          %v585 = vld [vmem:[%s305 + $0x188] sm:$0xff]
          %v586 = vld [vmem:[%s305 + $0x190] sm:$0xff]
          %v587 = vld [vmem:[%s305 + $0x198] sm:$0xff]
          %v588 = vld [vmem:[%s305 + $0x1a0] sm:$0xff]
          %v589 = vld [vmem:[%s305 + $0x1a8] sm:$0xff]
          %v590 = vld [vmem:[%s305 + $0x1b0] sm:$0xff]
          %v591 = vld [vmem:[%s305 + $0x1b8] sm:$0xff]
          %v592 = vld [vmem:[%s305 + $0x1c0] sm:$0xff]
          %v593 = vld [vmem:[%s305 + $0x1c8] sm:$0xff]
          %v594 = vld [vmem:[%s305 + $0x1d0] sm:$0xff]
          %v595 = vld [vmem:[%s305 + $0x1d8] sm:$0xff]
          %v596 = vld [vmem:[%s305 + $0x1e0] sm:$0xff]
          %v597 = vld [vmem:[%s305 + $0x1e8] sm:$0xff]
          %v598 = vld [vmem:[%s305 + $0x1f0] sm:$0xff]
          %v599 = vld [vmem:[%s305 + $0x1f8] sm:$0xff]
          %v600 = vld [vmem:[%s305 + $0x200] sm:$0xff]
          %v601 = vld [vmem:[%s305 + $0x208] sm:$0xff]
          %v602 = vld [vmem:[%s305 + $0x210] sm:$0xff]
          %v603 = vld [vmem:[%s305 + $0x218] sm:$0xff]
          %v604 = vld [vmem:[%s305 + $0x220] sm:$0xff]
          %v605 = vld [vmem:[%s305 + $0x228] sm:$0xff]
          %v606 = vld [vmem:[%s305 + $0x230] sm:$0xff]
          %v607 = vld [vmem:[%s305 + $0x238] sm:$0xff]
          %v608 = vld [vmem:[%s305 + $0x240] sm:$0xff]
          %v609 = vld [vmem:[%s305 + $0x248] sm:$0xff]
          %v610 = vld [vmem:[%s305 + $0x250] sm:$0xff]
          %v611 = vld [vmem:[%s305 + $0x258] sm:$0xff]
          %v612 = vld [vmem:[%s305 + $0x260] sm:$0xff]
          %v613 = vld [vmem:[%s305 + $0x268] sm:$0xff]
          %v614 = vld [vmem:[%s305 + $0x270] sm:$0xff]
          %v615 = vld [vmem:[%s305 + $0x278] sm:$0xff]
          %v616 = vld [vmem:[%s305 + $0x280] sm:$0xff]
          %v617 = vld [vmem:[%s305 + $0x288] sm:$0xff]
          %v618 = vld [vmem:[%s305 + $0x290] sm:$0xff]
          %v619 = vld [vmem:[%s305 + $0x298] sm:$0xff]
          %v620 = vld [vmem:[%s305 + $0x2a0] sm:$0xff]
          %v621 = vld [vmem:[%s305 + $0x2a8] sm:$0xff]
          %v622 = vld [vmem:[%s305 + $0x2b0] sm:$0xff]
          %v623 = vld [vmem:[%s305 + $0x2b8] sm:$0xff]
          %v624 = vld [vmem:[%s305 + $0x2c0] sm:$0xff]
          %v625 = vld [vmem:[%s305 + $0x2c8] sm:$0xff]
          %v626 = vld [vmem:[%s305 + $0x2d0] sm:$0xff]
          %v627 = vld [vmem:[%s305 + $0x2d8] sm:$0xff]
          %v628 = vld [vmem:[%s305 + $0x2e0] sm:$0xff]
          %v629 = vld [vmem:[%s305 + $0x2e8] sm:$0xff]
          %v630 = vld [vmem:[%s305 + $0x2f0] sm:$0xff]
          %v631 = vld [vmem:[%s305 + $0x2f8] sm:$0xff]
          %v632 = vld [vmem:[%s305 + $0x300] sm:$0xff]
          %v633 = vld [vmem:[%s305 + $0x308] sm:$0xff]
          %v634 = vld [vmem:[%s305 + $0x310] sm:$0xff]
          %v635 = vld [vmem:[%s305 + $0x318] sm:$0xff]
          %v636 = vld [vmem:[%s305 + $0x320] sm:$0xff]
          %v637 = vld [vmem:[%s305 + $0x328] sm:$0xff]
          %v638 = vld [vmem:[%s305 + $0x330] sm:$0xff]
          %v639 = vld [vmem:[%s305 + $0x338] sm:$0xff]
          %v640 = vld [vmem:[%s305 + $0x340] sm:$0xff]
          %v641 = vld [vmem:[%s305 + $0x348] sm:$0xff]
          %v642 = vld [vmem:[%s305 + $0x350] sm:$0xff]
          %v643 = vld [vmem:[%s305 + $0x358] sm:$0xff]
          %v644 = vld [vmem:[%s305 + $0x360] sm:$0xff]
          %v645 = vld [vmem:[%s305 + $0x368] sm:$0xff]
          %v646 = vld [vmem:[%s305 + $0x370] sm:$0xff]
          %v647 = vld [vmem:[%s305 + $0x378] sm:$0xff]
          %v648 = vld [vmem:[%s305 + $0x380] sm:$0xff]
          %v649 = vld [vmem:[%s305 + $0x388] sm:$0xff]
          %v650 = vld [vmem:[%s305 + $0x390] sm:$0xff]
          %v651 = vld [vmem:[%s305 + $0x398] sm:$0xff]
          %v652 = vld [vmem:[%s305 + $0x3a0] sm:$0xff]
          %v653 = vld [vmem:[%s305 + $0x3a8] sm:$0xff]
          %v654 = vld [vmem:[%s305 + $0x3b0] sm:$0xff]
          %v655 = vld [vmem:[%s305 + $0x3b8] sm:$0xff]
          %v656 = vld [vmem:[%s305 + $0x3c0] sm:$0xff]
          %v657 = vld [vmem:[%s305 + $0x3c8] sm:$0xff]
          %v658 = vld [vmem:[%s305 + $0x3d0] sm:$0xff]
          %v659 = vld [vmem:[%s305 + $0x3d8] sm:$0xff]
          %v660 = vld [vmem:[%s305 + $0x3e0] sm:$0xff]
          %v661 = vld [vmem:[%s305 + $0x3e8] sm:$0xff]
          %v662 = vld [vmem:[%s305 + $0x3f0] sm:$0xff]
          %v663 = vld [vmem:[%s305 + $0x3f8] sm:$0xff]
          %s664 = scalar_lea.vmem [#allocation2], 120
          %665 = vst.msk [vmem:[%s664 + $0x3] sm:$0xff] %vm344, %v536
          %666 = vst.msk [vmem:[%s664 + $0xb] sm:$0xff] %vm344, %v537
          %667 = vst.msk [vmem:[%s664 + $0x13] sm:$0xff] %vm344, %v538
          %668 = vst.msk [vmem:[%s664 + $0x1b] sm:$0xff] %vm344, %v539
          %669 = vst.msk [vmem:[%s664 + $0x2b] sm:$0xff] %vm344, %v540
          %670 = vst.msk [vmem:[%s664 + $0x33] sm:$0xff] %vm344, %v541
          %671 = vst.msk [vmem:[%s664 + $0x3b] sm:$0xff] %vm344, %v542
          %672 = vst.msk [vmem:[%s664 + $0x43] sm:$0xff] %vm344, %v543
          %673 = vst.msk [vmem:[%s664 + $0x53] sm:$0xff] %vm344, %v544
          %674 = vst.msk [vmem:[%s664 + $0x5b] sm:$0xff] %vm344, %v545
          %675 = vst.msk [vmem:[%s664 + $0x63] sm:$0xff] %vm344, %v546
          %676 = vst.msk [vmem:[%s664 + $0x6b] sm:$0xff] %vm344, %v547
          %677 = vst.msk [vmem:[%s664 + $0x7b] sm:$0xff] %vm344, %v548
          %678 = vst.msk [vmem:[%s664 + $0x83] sm:$0xff] %vm344, %v549
          %679 = vst.msk [vmem:[%s664 + $0x8b] sm:$0xff] %vm344, %v550
          %680 = vst.msk [vmem:[%s664 + $0x93] sm:$0xff] %vm344, %v551
          %681 = vst.msk [vmem:[%s664 + $0xa3] sm:$0xff] %vm344, %v552
          %682 = vst.msk [vmem:[%s664 + $0xab] sm:$0xff] %vm344, %v553
          %683 = vst.msk [vmem:[%s664 + $0xb3] sm:$0xff] %vm344, %v554
          %684 = vst.msk [vmem:[%s664 + $0xbb] sm:$0xff] %vm344, %v555
          %685 = vst.msk [vmem:[%s664 + $0xcb] sm:$0xff] %vm344, %v556
          %686 = vst.msk [vmem:[%s664 + $0xd3] sm:$0xff] %vm344, %v557
          %687 = vst.msk [vmem:[%s664 + $0xdb] sm:$0xff] %vm344, %v558
          %688 = vst.msk [vmem:[%s664 + $0xe3] sm:$0xff] %vm344, %v559
          %689 = vst.msk [vmem:[%s664 + $0xf3] sm:$0xff] %vm344, %v560
          %690 = vst.msk [vmem:[%s664 + $0xfb] sm:$0xff] %vm344, %v561
          %691 = vst.msk [vmem:[%s664 + $0x103] sm:$0xff] %vm344, %v562
          %692 = vst.msk [vmem:[%s664 + $0x10b] sm:$0xff] %vm344, %v563
          %693 = vst.msk [vmem:[%s664 + $0x11b] sm:$0xff] %vm344, %v564
          %694 = vst.msk [vmem:[%s664 + $0x123] sm:$0xff] %vm344, %v565
          %695 = vst.msk [vmem:[%s664 + $0x12b] sm:$0xff] %vm344, %v566
          %696 = vst.msk [vmem:[%s664 + $0x133] sm:$0xff] %vm344, %v567
          %697 = vst.msk [vmem:[%s664 + $0x143] sm:$0xff] %vm344, %v568
          %698 = vst.msk [vmem:[%s664 + $0x14b] sm:$0xff] %vm344, %v569
          %699 = vst.msk [vmem:[%s664 + $0x153] sm:$0xff] %vm344, %v570
          %700 = vst.msk [vmem:[%s664 + $0x15b] sm:$0xff] %vm344, %v571
          %701 = vst.msk [vmem:[%s664 + $0x16b] sm:$0xff] %vm344, %v572
          %702 = vst.msk [vmem:[%s664 + $0x173] sm:$0xff] %vm344, %v573
          %703 = vst.msk [vmem:[%s664 + $0x17b] sm:$0xff] %vm344, %v574
          %704 = vst.msk [vmem:[%s664 + $0x183] sm:$0xff] %vm344, %v575
          %705 = vst.msk [vmem:[%s664 + $0x193] sm:$0xff] %vm344, %v576
          %706 = vst.msk [vmem:[%s664 + $0x19b] sm:$0xff] %vm344, %v577
          %707 = vst.msk [vmem:[%s664 + $0x1a3] sm:$0xff] %vm344, %v578
          %708 = vst.msk [vmem:[%s664 + $0x1ab] sm:$0xff] %vm344, %v579
          %709 = vst.msk [vmem:[%s664 + $0x1bb] sm:$0xff] %vm344, %v580
          %710 = vst.msk [vmem:[%s664 + $0x1c3] sm:$0xff] %vm344, %v581
          %711 = vst.msk [vmem:[%s664 + $0x1cb] sm:$0xff] %vm344, %v582
          %712 = vst.msk [vmem:[%s664 + $0x1d3] sm:$0xff] %vm344, %v583
          %713 = vst.msk [vmem:[%s664 + $0x1e3] sm:$0xff] %vm344, %v584
          %714 = vst.msk [vmem:[%s664 + $0x1eb] sm:$0xff] %vm344, %v585
          %715 = vst.msk [vmem:[%s664 + $0x1f3] sm:$0xff] %vm344, %v586
          %716 = vst.msk [vmem:[%s664 + $0x1fb] sm:$0xff] %vm344, %v587
          %717 = vst.msk [vmem:[%s664 + $0x20b] sm:$0xff] %vm344, %v588
          %718 = vst.msk [vmem:[%s664 + $0x213] sm:$0xff] %vm344, %v589
          %719 = vst.msk [vmem:[%s664 + $0x21b] sm:$0xff] %vm344, %v590
          %720 = vst.msk [vmem:[%s664 + $0x223] sm:$0xff] %vm344, %v591
          %721 = vst.msk [vmem:[%s664 + $0x233] sm:$0xff] %vm344, %v592
          %722 = vst.msk [vmem:[%s664 + $0x23b] sm:$0xff] %vm344, %v593
          %723 = vst.msk [vmem:[%s664 + $0x243] sm:$0xff] %vm344, %v594
          %724 = vst.msk [vmem:[%s664 + $0x24b] sm:$0xff] %vm344, %v595
          %725 = vst.msk [vmem:[%s664 + $0x25b] sm:$0xff] %vm344, %v596
          %726 = vst.msk [vmem:[%s664 + $0x263] sm:$0xff] %vm344, %v597
          %727 = vst.msk [vmem:[%s664 + $0x26b] sm:$0xff] %vm344, %v598
          %728 = vst.msk [vmem:[%s664 + $0x273] sm:$0xff] %vm344, %v599
          %729 = vst.msk [vmem:[%s664 + $0x283] sm:$0xff] %vm344, %v600
          %730 = vst.msk [vmem:[%s664 + $0x28b] sm:$0xff] %vm344, %v601
          %731 = vst.msk [vmem:[%s664 + $0x293] sm:$0xff] %vm344, %v602
          %732 = vst.msk [vmem:[%s664 + $0x29b] sm:$0xff] %vm344, %v603
          %733 = vst.msk [vmem:[%s664 + $0x2ab] sm:$0xff] %vm344, %v604
          %734 = vst.msk [vmem:[%s664 + $0x2b3] sm:$0xff] %vm344, %v605
          %735 = vst.msk [vmem:[%s664 + $0x2bb] sm:$0xff] %vm344, %v606
          %736 = vst.msk [vmem:[%s664 + $0x2c3] sm:$0xff] %vm344, %v607
          %737 = vst.msk [vmem:[%s664 + $0x2d3] sm:$0xff] %vm344, %v608
          %738 = vst.msk [vmem:[%s664 + $0x2db] sm:$0xff] %vm344, %v609
          %739 = vst.msk [vmem:[%s664 + $0x2e3] sm:$0xff] %vm344, %v610
          %740 = vst.msk [vmem:[%s664 + $0x2eb] sm:$0xff] %vm344, %v611
          %741 = vst.msk [vmem:[%s664 + $0x2fb] sm:$0xff] %vm344, %v612
          %742 = vst.msk [vmem:[%s664 + $0x303] sm:$0xff] %vm344, %v613
          %743 = vst.msk [vmem:[%s664 + $0x30b] sm:$0xff] %vm344, %v614
          %744 = vst.msk [vmem:[%s664 + $0x313] sm:$0xff] %vm344, %v615
          %745 = vst.msk [vmem:[%s664 + $0x323] sm:$0xff] %vm344, %v616
          %746 = vst.msk [vmem:[%s664 + $0x32b] sm:$0xff] %vm344, %v617
          %747 = vst.msk [vmem:[%s664 + $0x333] sm:$0xff] %vm344, %v618
          %748 = vst.msk [vmem:[%s664 + $0x33b] sm:$0xff] %vm344, %v619
          %749 = vst.msk [vmem:[%s664 + $0x34b] sm:$0xff] %vm344, %v620
          %750 = vst.msk [vmem:[%s664 + $0x353] sm:$0xff] %vm344, %v621
          %751 = vst.msk [vmem:[%s664 + $0x35b] sm:$0xff] %vm344, %v622
          %752 = vst.msk [vmem:[%s664 + $0x363] sm:$0xff] %vm344, %v623
          %753 = vst.msk [vmem:[%s664 + $0x373] sm:$0xff] %vm344, %v624
          %754 = vst.msk [vmem:[%s664 + $0x37b] sm:$0xff] %vm344, %v625
          %755 = vst.msk [vmem:[%s664 + $0x383] sm:$0xff] %vm344, %v626
          %756 = vst.msk [vmem:[%s664 + $0x38b] sm:$0xff] %vm344, %v627
          %757 = vst.msk [vmem:[%s664 + $0x39b] sm:$0xff] %vm344, %v628
          %758 = vst.msk [vmem:[%s664 + $0x3a3] sm:$0xff] %vm344, %v629
          %759 = vst.msk [vmem:[%s664 + $0x3ab] sm:$0xff] %vm344, %v630
          %760 = vst.msk [vmem:[%s664 + $0x3b3] sm:$0xff] %vm344, %v631
          %761 = vst.msk [vmem:[%s664 + $0x3c3] sm:$0xff] %vm344, %v632
          %762 = vst.msk [vmem:[%s664 + $0x3cb] sm:$0xff] %vm344, %v633
          %763 = vst.msk [vmem:[%s664 + $0x3d3] sm:$0xff] %vm344, %v634
          %764 = vst.msk [vmem:[%s664 + $0x3db] sm:$0xff] %vm344, %v635
          %765 = vst.msk [vmem:[%s664 + $0x3eb] sm:$0xff] %vm344, %v636
          %766 = vst.msk [vmem:[%s664 + $0x3f3] sm:$0xff] %vm344, %v637
          %767 = vst.msk [vmem:[%s664 + $0x3fb] sm:$0xff] %vm344, %v638
          %768 = vst.msk [vmem:[%s664 + $0x403] sm:$0xff] %vm344, %v639
          %769 = vst.msk [vmem:[%s664 + $0x413] sm:$0xff] %vm344, %v640
          %770 = vst.msk [vmem:[%s664 + $0x41b] sm:$0xff] %vm344, %v641
          %771 = vst.msk [vmem:[%s664 + $0x423] sm:$0xff] %vm344, %v642
          %772 = vst.msk [vmem:[%s664 + $0x42b] sm:$0xff] %vm344, %v643
          %773 = vst.msk [vmem:[%s664 + $0x43b] sm:$0xff] %vm344, %v644
          %774 = vst.msk [vmem:[%s664 + $0x443] sm:$0xff] %vm344, %v645
          %775 = vst.msk [vmem:[%s664 + $0x44b] sm:$0xff] %vm344, %v646
          %776 = vst.msk [vmem:[%s664 + $0x453] sm:$0xff] %vm344, %v647
          %777 = vst.msk [vmem:[%s664 + $0x463] sm:$0xff] %vm344, %v648
          %778 = vst.msk [vmem:[%s664 + $0x46b] sm:$0xff] %vm344, %v649
          %779 = vst.msk [vmem:[%s664 + $0x473] sm:$0xff] %vm344, %v650
          %780 = vst.msk [vmem:[%s664 + $0x47b] sm:$0xff] %vm344, %v651
          %781 = vst.msk [vmem:[%s664 + $0x48b] sm:$0xff] %vm344, %v652
          %782 = vst.msk [vmem:[%s664 + $0x493] sm:$0xff] %vm344, %v653
          %783 = vst.msk [vmem:[%s664 + $0x49b] sm:$0xff] %vm344, %v654
          %784 = vst.msk [vmem:[%s664 + $0x4a3] sm:$0xff] %vm344, %v655
          %785 = vst.msk [vmem:[%s664 + $0x4b3] sm:$0xff] %vm344, %v656
          %786 = vst.msk [vmem:[%s664 + $0x4bb] sm:$0xff] %vm344, %v657
          %787 = vst.msk [vmem:[%s664 + $0x4c3] sm:$0xff] %vm344, %v658
          %788 = vst.msk [vmem:[%s664 + $0x4cb] sm:$0xff] %vm344, %v659
          %789 = vst.msk [vmem:[%s664 + $0x4db] sm:$0xff] %vm344, %v660
          %790 = vst.msk [vmem:[%s664 + $0x4e3] sm:$0xff] %vm344, %v661
          %791 = vst.msk [vmem:[%s664 + $0x4eb] sm:$0xff] %vm344, %v662
          %792 = vst.msk [vmem:[%s664 + $0x4f3] sm:$0xff] %vm344, %v663
        $region60: #{tpu_custom_call.1} parent=51 // pred_fallthru
          _
        %s793 = smul.u32 %s30, 8
        %v794 = vld [vmem:[%s1] sm:$0xff]
        %v795 = vld [vmem:[%s1 + $0x8] sm:$0xff]
        %v796 = vld [vmem:[%s1 + $0x10] sm:$0xff]
        %v797 = vld [vmem:[%s1 + $0x18] sm:$0xff]
        %v798 = vld [vmem:[%s1 + $0x20] sm:$0xff]
        %v799 = vld [vmem:[%s1 + $0x28] sm:$0xff]
        %v800 = vld [vmem:[%s1 + $0x30] sm:$0xff]
        %s801 = smul.u32 %s793, 40
        %s802 = scalar_lea.vmem [#allocation2], %s801
        %v803 = vld [vmem:[%s802] sm:$0xff]
        %v804 = vld [vmem:[%s802 + $0x8] sm:$0xff]
        %v805 = vld [vmem:[%s802 + $0x10] sm:$0xff]
        %v806 = vld [vmem:[%s802 + $0x18] sm:$0xff]
        %v807 = vld [vmem:[%s802 + $0x20] sm:$0x3f]
        %v808 = vld [vmem:[%s802 + $0x28] sm:$0xff]
        %v809 = vld [vmem:[%s802 + $0x30] sm:$0xff]
        %v810 = vld [vmem:[%s802 + $0x38] sm:$0xff]
        %v811 = vld [vmem:[%s802 + $0x40] sm:$0xff]
        %v812 = vld [vmem:[%s802 + $0x48] sm:$0x3f]
        %v813 = vld [vmem:[%s802 + $0x50] sm:$0xff]
        %v814 = vld [vmem:[%s802 + $0x58] sm:$0xff]
        %v815 = vld [vmem:[%s802 + $0x60] sm:$0xff]
        %v816 = vld [vmem:[%s802 + $0x68] sm:$0xff]
        %v817 = vld [vmem:[%s802 + $0x70] sm:$0x3f]
        %v818 = vld [vmem:[%s802 + $0x78] sm:$0xff]
        %v819 = vld [vmem:[%s802 + $0x80] sm:$0xff]
        %v820 = vld [vmem:[%s802 + $0x88] sm:$0xff]
        %v821 = vld [vmem:[%s802 + $0x90] sm:$0xff]
        %v822 = vld [vmem:[%s802 + $0x98] sm:$0x3f]
        %v823 = vld [vmem:[%s802 + $0xa0] sm:$0xff]
        %v824 = vld [vmem:[%s802 + $0xa8] sm:$0xff]
        %v825 = vld [vmem:[%s802 + $0xb0] sm:$0xff]
        %v826 = vld [vmem:[%s802 + $0xb8] sm:$0xff]
        %v827 = vld [vmem:[%s802 + $0xc0] sm:$0x3f]
        %v828 = vld [vmem:[%s802 + $0xc8] sm:$0xff]
        %v829 = vld [vmem:[%s802 + $0xd0] sm:$0xff]
        %v830 = vld [vmem:[%s802 + $0xd8] sm:$0xff]
        %v831 = vld [vmem:[%s802 + $0xe0] sm:$0xff]
        %v832 = vld [vmem:[%s802 + $0xe8] sm:$0x3f]
        %v833 = vld [vmem:[%s802 + $0xf0] sm:$0xff]
        %v834 = vld [vmem:[%s802 + $0xf8] sm:$0xff]
        %v835 = vld [vmem:[%s802 + $0x100] sm:$0xff]
        %v836 = vld [vmem:[%s802 + $0x108] sm:$0xff]
        %v837 = vld [vmem:[%s802 + $0x110] sm:$0x3f]
        %v838 = vld [vmem:[%s802 + $0x118] sm:$0xff]
        %v839 = vld [vmem:[%s802 + $0x120] sm:$0xff]
        %v840 = vld [vmem:[%s802 + $0x128] sm:$0xff]
        %v841 = vld [vmem:[%s802 + $0x130] sm:$0xff]
        %v842 = vld [vmem:[%s802 + $0x138] sm:$0x3f]
        %v843 = vlaneseq
        %v844 = vshrl.u32 %v843, 7
        %v845 = vsub.s32 0, %v844
        %v846 = vrot.slane %v794, %v845
        %v847 = vmul.f32 %v803, %v846
        %v848 = vmul.f32 %v804, %v846
        %v849 = vmul.f32 %v805, %v846
        %v850 = vmul.f32 %v806, %v846
        %v851 = vmul.f32 %v808, %v846
        %v852 = vmul.f32 %v809, %v846
        %v853 = vmul.f32 %v810, %v846
        %v854 = vmul.f32 %v811, %v846
        %v855 = vmul.f32 %v813, %v846
        %v856 = vmul.f32 %v814, %v846
        %v857 = vmul.f32 %v815, %v846
        %v858 = vmul.f32 %v816, %v846
        %v859 = vmul.f32 %v818, %v846
        %v860 = vmul.f32 %v819, %v846
        %v861 = vmul.f32 %v820, %v846
        %v862 = vmul.f32 %v821, %v846
        %v863 = vmul.f32 %v823, %v846
        %v864 = vmul.f32 %v824, %v846
        %v865 = vmul.f32 %v825, %v846
        %v866 = vmul.f32 %v826, %v846
        %v867 = vmul.f32 %v828, %v846
        %v868 = vmul.f32 %v829, %v846
        %v869 = vmul.f32 %v830, %v846
        %v870 = vmul.f32 %v831, %v846
        %v871 = vmul.f32 %v833, %v846
        %v872 = vmul.f32 %v834, %v846
        %v873 = vmul.f32 %v835, %v846
        %v874 = vmul.f32 %v836, %v846
        %v875 = vmul.f32 %v838, %v846
        %v876 = vmul.f32 %v839, %v846
        %v877 = vmul.f32 %v840, %v846
        %v878 = vmul.f32 %v841, %v846
        %v879 = vadd.f32 %v847, 0.0
        %v880 = vadd.f32 %v848, 0.0
        %v881 = vadd.f32 %v849, 0.0
        %v882 = vadd.f32 %v850, 0.0
        %v883 = vadd.f32 %v851, 0.0
        %v884 = vadd.f32 %v852, 0.0
        %v885 = vadd.f32 %v853, 0.0
        %v886 = vadd.f32 %v854, 0.0
        %v887 = vadd.f32 %v855, 0.0
        %v888 = vadd.f32 %v856, 0.0
        %v889 = vadd.f32 %v857, 0.0
        %v890 = vadd.f32 %v858, 0.0
        %v891 = vadd.f32 %v859, 0.0
        %v892 = vadd.f32 %v860, 0.0
        %v893 = vadd.f32 %v861, 0.0
        %v894 = vadd.f32 %v862, 0.0
        %v895 = vadd.f32 %v863, 0.0
        %v896 = vadd.f32 %v864, 0.0
        %v897 = vadd.f32 %v865, 0.0
        %v898 = vadd.f32 %v866, 0.0
        %v899 = vadd.f32 %v867, 0.0
        %v900 = vadd.f32 %v868, 0.0
        %v901 = vadd.f32 %v869, 0.0
        %v902 = vadd.f32 %v870, 0.0
        %v903 = vadd.f32 %v871, 0.0
        %v904 = vadd.f32 %v872, 0.0
        %v905 = vadd.f32 %v873, 0.0
        %v906 = vadd.f32 %v874, 0.0
        %v907 = vadd.f32 %v875, 0.0
        %v908 = vadd.f32 %v876, 0.0
        %v909 = vadd.f32 %v877, 0.0
        %v910 = vadd.f32 %v878, 0.0
        %v911 = vlaneseq
        %v912 = vshrl.u32 %v911, 7
        %v913 = vsub.s32 1, %v912
        %v914 = vrot.slane %v794, %v913
        %v915 = vmul.f32 %v803, %v914
        %v916 = vmul.f32 %v804, %v914
        %v917 = vmul.f32 %v805, %v914
        %v918 = vmul.f32 %v806, %v914
        %v919 = vmul.f32 %v807, %v914
        %v920 = vmul.f32 %v808, %v914
        %v921 = vmul.f32 %v809, %v914
        %v922 = vmul.f32 %v810, %v914
        %v923 = vmul.f32 %v811, %v914
        %v924 = vmul.f32 %v812, %v914
        %v925 = vmul.f32 %v813, %v914
        %v926 = vmul.f32 %v814, %v914
        %v927 = vmul.f32 %v815, %v914
        %v928 = vmul.f32 %v816, %v914
        %v929 = vmul.f32 %v817, %v914
        %v930 = vmul.f32 %v818, %v914
        %v931 = vmul.f32 %v819, %v914
        %v932 = vmul.f32 %v820, %v914
        %v933 = vmul.f32 %v821, %v914
        %v934 = vmul.f32 %v822, %v914
        %v935 = vmul.f32 %v823, %v914
        %v936 = vmul.f32 %v824, %v914
        %v937 = vmul.f32 %v825, %v914
        %v938 = vmul.f32 %v826, %v914
        %v939 = vmul.f32 %v827, %v914
        %v940 = vmul.f32 %v828, %v914
        %v941 = vmul.f32 %v829, %v914
        %v942 = vmul.f32 %v830, %v914
        %v943 = vmul.f32 %v831, %v914
        %v944 = vmul.f32 %v832, %v914
        %v945 = vmul.f32 %v833, %v914
        %v946 = vmul.f32 %v834, %v914
        %v947 = vmul.f32 %v835, %v914
        %v948 = vmul.f32 %v836, %v914
        %v949 = vmul.f32 %v837, %v914
        %v950 = vmul.f32 %v838, %v914
        %v951 = vmul.f32 %v839, %v914
        %v952 = vmul.f32 %v840, %v914
        %v953 = vmul.f32 %v841, %v914
        %v954 = vmul.f32 %v842, %v914
        %v955 = vadd.f32 %v915, 0.0
        %v956 = vadd.f32 %v916, 0.0
        %v957 = vadd.f32 %v917, 0.0
        %v958 = vadd.f32 %v918, 0.0
        %v959 = vadd.f32 %v919, 0.0
        %v960 = vadd.f32 %v920, 0.0
        %v961 = vadd.f32 %v921, 0.0
        %v962 = vadd.f32 %v922, 0.0
        %v963 = vadd.f32 %v923, 0.0
        %v964 = vadd.f32 %v924, 0.0
        %v965 = vadd.f32 %v925, 0.0
        %v966 = vadd.f32 %v926, 0.0
        %v967 = vadd.f32 %v927, 0.0
        %v968 = vadd.f32 %v928, 0.0
        %v969 = vadd.f32 %v929, 0.0
        %v970 = vadd.f32 %v930, 0.0
        %v971 = vadd.f32 %v931, 0.0
        %v972 = vadd.f32 %v932, 0.0
        %v973 = vadd.f32 %v933, 0.0
        %v974 = vadd.f32 %v934, 0.0
        %v975 = vadd.f32 %v935, 0.0
        %v976 = vadd.f32 %v936, 0.0
        %v977 = vadd.f32 %v937, 0.0
        %v978 = vadd.f32 %v938, 0.0
        %v979 = vadd.f32 %v939, 0.0
        %v980 = vadd.f32 %v940, 0.0
        %v981 = vadd.f32 %v941, 0.0
        %v982 = vadd.f32 %v942, 0.0
        %v983 = vadd.f32 %v943, 0.0
        %v984 = vadd.f32 %v944, 0.0
        %v985 = vadd.f32 %v945, 0.0
        %v986 = vadd.f32 %v946, 0.0
        %v987 = vadd.f32 %v947, 0.0
        %v988 = vadd.f32 %v948, 0.0
        %v989 = vadd.f32 %v949, 0.0
        %v990 = vadd.f32 %v950, 0.0
        %v991 = vadd.f32 %v951, 0.0
        %v992 = vadd.f32 %v952, 0.0
        %v993 = vadd.f32 %v953, 0.0
        %v994 = vadd.f32 %v954, 0.0
        %v995 = vlaneseq
        %v996 = vshrl.u32 %v995, 7
        %v997 = vsub.s32 2, %v996
        %v998 = vrot.slane %v794, %v997
        %v999 = vmul.f32 %v803, %v998
        %v1000 = vmul.f32 %v804, %v998
        %v1001 = vmul.f32 %v805, %v998
        %v1002 = vmul.f32 %v806, %v998
        %v1003 = vmul.f32 %v807, %v998
        %v1004 = vmul.f32 %v808, %v998
        %v1005 = vmul.f32 %v809, %v998
        %v1006 = vmul.f32 %v810, %v998
        %v1007 = vmul.f32 %v811, %v998
        %v1008 = vmul.f32 %v812, %v998
        %v1009 = vmul.f32 %v813, %v998
        %v1010 = vmul.f32 %v814, %v998
        %v1011 = vmul.f32 %v815, %v998
        %v1012 = vmul.f32 %v816, %v998
        %v1013 = vmul.f32 %v817, %v998
        %v1014 = vmul.f32 %v818, %v998
        %v1015 = vmul.f32 %v819, %v998
        %v1016 = vmul.f32 %v820, %v998
        %v1017 = vmul.f32 %v821, %v998
        %v1018 = vmul.f32 %v822, %v998
        %v1019 = vmul.f32 %v823, %v998
        %v1020 = vmul.f32 %v824, %v998
        %v1021 = vmul.f32 %v825, %v998
        %v1022 = vmul.f32 %v826, %v998
        %v1023 = vmul.f32 %v827, %v998
        %v1024 = vmul.f32 %v828, %v998
        %v1025 = vmul.f32 %v829, %v998
        %v1026 = vmul.f32 %v830, %v998
        %v1027 = vmul.f32 %v831, %v998
        %v1028 = vmul.f32 %v832, %v998
        %v1029 = vmul.f32 %v833, %v998
        %v1030 = vmul.f32 %v834, %v998
        %v1031 = vmul.f32 %v835, %v998
        %v1032 = vmul.f32 %v836, %v998
        %v1033 = vmul.f32 %v837, %v998
        %v1034 = vmul.f32 %v838, %v998
        %v1035 = vmul.f32 %v839, %v998
        %v1036 = vmul.f32 %v840, %v998
        %v1037 = vmul.f32 %v841, %v998
        %v1038 = vmul.f32 %v842, %v998
        %v1039 = vadd.f32 %v999, 0.0
        %v1040 = vadd.f32 %v1000, 0.0
        %v1041 = vadd.f32 %v1001, 0.0
        %v1042 = vadd.f32 %v1002, 0.0
        %v1043 = vadd.f32 %v1003, 0.0
        %v1044 = vadd.f32 %v1004, 0.0
        %v1045 = vadd.f32 %v1005, 0.0
        %v1046 = vadd.f32 %v1006, 0.0
        %v1047 = vadd.f32 %v1007, 0.0
        %v1048 = vadd.f32 %v1008, 0.0
        %v1049 = vadd.f32 %v1009, 0.0
        %v1050 = vadd.f32 %v1010, 0.0
        %v1051 = vadd.f32 %v1011, 0.0
        %v1052 = vadd.f32 %v1012, 0.0
        %v1053 = vadd.f32 %v1013, 0.0
        %v1054 = vadd.f32 %v1014, 0.0
        %v1055 = vadd.f32 %v1015, 0.0
        %v1056 = vadd.f32 %v1016, 0.0
        %v1057 = vadd.f32 %v1017, 0.0
        %v1058 = vadd.f32 %v1018, 0.0
        %v1059 = vadd.f32 %v1019, 0.0
        %v1060 = vadd.f32 %v1020, 0.0
        %v1061 = vadd.f32 %v1021, 0.0
        %v1062 = vadd.f32 %v1022, 0.0
        %v1063 = vadd.f32 %v1023, 0.0
        %v1064 = vadd.f32 %v1024, 0.0
        %v1065 = vadd.f32 %v1025, 0.0
        %v1066 = vadd.f32 %v1026, 0.0
        %v1067 = vadd.f32 %v1027, 0.0
        %v1068 = vadd.f32 %v1028, 0.0
        %v1069 = vadd.f32 %v1029, 0.0
        %v1070 = vadd.f32 %v1030, 0.0
        %v1071 = vadd.f32 %v1031, 0.0
        %v1072 = vadd.f32 %v1032, 0.0
        %v1073 = vadd.f32 %v1033, 0.0
        %v1074 = vadd.f32 %v1034, 0.0
        %v1075 = vadd.f32 %v1035, 0.0
        %v1076 = vadd.f32 %v1036, 0.0
        %v1077 = vadd.f32 %v1037, 0.0
        %v1078 = vadd.f32 %v1038, 0.0
        %v1079 = vlaneseq
        %v1080 = vshrl.u32 %v1079, 7
        %v1081 = vsub.s32 3, %v1080
        %v1082 = vrot.slane %v794, %v1081
        %v1083 = vmul.f32 %v803, %v1082
        %v1084 = vmul.f32 %v804, %v1082
        %v1085 = vmul.f32 %v805, %v1082
        %v1086 = vmul.f32 %v806, %v1082
        %v1087 = vmul.f32 %v807, %v1082
        %v1088 = vmul.f32 %v808, %v1082
        %v1089 = vmul.f32 %v809, %v1082
        %v1090 = vmul.f32 %v810, %v1082
        %v1091 = vmul.f32 %v811, %v1082
        %v1092 = vmul.f32 %v812, %v1082
        %v1093 = vmul.f32 %v813, %v1082
        %v1094 = vmul.f32 %v814, %v1082
        %v1095 = vmul.f32 %v815, %v1082
        %v1096 = vmul.f32 %v816, %v1082
        %v1097 = vmul.f32 %v817, %v1082
        %v1098 = vmul.f32 %v818, %v1082
        %v1099 = vmul.f32 %v819, %v1082
        %v1100 = vmul.f32 %v820, %v1082
        %v1101 = vmul.f32 %v821, %v1082
        %v1102 = vmul.f32 %v822, %v1082
        %v1103 = vmul.f32 %v823, %v1082
        %v1104 = vmul.f32 %v824, %v1082
        %v1105 = vmul.f32 %v825, %v1082
        %v1106 = vmul.f32 %v826, %v1082
        %v1107 = vmul.f32 %v827, %v1082
        %v1108 = vmul.f32 %v828, %v1082
        %v1109 = vmul.f32 %v829, %v1082
        %v1110 = vmul.f32 %v830, %v1082
        %v1111 = vmul.f32 %v831, %v1082
        %v1112 = vmul.f32 %v832, %v1082
        %v1113 = vmul.f32 %v833, %v1082
        %v1114 = vmul.f32 %v834, %v1082
        %v1115 = vmul.f32 %v835, %v1082
        %v1116 = vmul.f32 %v836, %v1082
        %v1117 = vmul.f32 %v837, %v1082
        %v1118 = vmul.f32 %v838, %v1082
        %v1119 = vmul.f32 %v839, %v1082
        %v1120 = vmul.f32 %v840, %v1082
        %v1121 = vmul.f32 %v841, %v1082
        %v1122 = vmul.f32 %v842, %v1082
        %v1123 = vadd.f32 %v1083, 0.0
        %v1124 = vadd.f32 %v1084, 0.0
        %v1125 = vadd.f32 %v1085, 0.0
        %v1126 = vadd.f32 %v1086, 0.0
        %v1127 = vadd.f32 %v1087, 0.0
        %v1128 = vadd.f32 %v1088, 0.0
        %v1129 = vadd.f32 %v1089, 0.0
        %v1130 = vadd.f32 %v1090, 0.0
        %v1131 = vadd.f32 %v1091, 0.0
        %v1132 = vadd.f32 %v1092, 0.0
        %v1133 = vadd.f32 %v1093, 0.0
        %v1134 = vadd.f32 %v1094, 0.0
        %v1135 = vadd.f32 %v1095, 0.0
        %v1136 = vadd.f32 %v1096, 0.0
        %v1137 = vadd.f32 %v1097, 0.0
        %v1138 = vadd.f32 %v1098, 0.0
        %v1139 = vadd.f32 %v1099, 0.0
        %v1140 = vadd.f32 %v1100, 0.0
        %v1141 = vadd.f32 %v1101, 0.0
        %v1142 = vadd.f32 %v1102, 0.0
        %v1143 = vadd.f32 %v1103, 0.0
        %v1144 = vadd.f32 %v1104, 0.0
        %v1145 = vadd.f32 %v1105, 0.0
        %v1146 = vadd.f32 %v1106, 0.0
        %v1147 = vadd.f32 %v1107, 0.0
        %v1148 = vadd.f32 %v1108, 0.0
        %v1149 = vadd.f32 %v1109, 0.0
        %v1150 = vadd.f32 %v1110, 0.0
        %v1151 = vadd.f32 %v1111, 0.0
        %v1152 = vadd.f32 %v1112, 0.0
        %v1153 = vadd.f32 %v1113, 0.0
        %v1154 = vadd.f32 %v1114, 0.0
        %v1155 = vadd.f32 %v1115, 0.0
        %v1156 = vadd.f32 %v1116, 0.0
        %v1157 = vadd.f32 %v1117, 0.0
        %v1158 = vadd.f32 %v1118, 0.0
        %v1159 = vadd.f32 %v1119, 0.0
        %v1160 = vadd.f32 %v1120, 0.0
        %v1161 = vadd.f32 %v1121, 0.0
        %v1162 = vadd.f32 %v1122, 0.0
        %v1163 = vlaneseq
        %v1164 = vshrl.u32 %v1163, 7
        %v1165 = vsub.s32 4, %v1164
        %v1166 = vrot.slane %v794, %v1165
        %v1167 = vmul.f32 %v803, %v1166
        %v1168 = vmul.f32 %v804, %v1166
        %v1169 = vmul.f32 %v805, %v1166
        %v1170 = vmul.f32 %v806, %v1166
        %v1171 = vmul.f32 %v807, %v1166
        %v1172 = vmul.f32 %v808, %v1166
        %v1173 = vmul.f32 %v809, %v1166
        %v1174 = vmul.f32 %v810, %v1166
        %v1175 = vmul.f32 %v811, %v1166
        %v1176 = vmul.f32 %v812, %v1166
        %v1177 = vmul.f32 %v813, %v1166
        %v1178 = vmul.f32 %v814, %v1166
        %v1179 = vmul.f32 %v815, %v1166
        %v1180 = vmul.f32 %v816, %v1166
        %v1181 = vmul.f32 %v817, %v1166
        %v1182 = vmul.f32 %v818, %v1166
        %v1183 = vmul.f32 %v819, %v1166
        %v1184 = vmul.f32 %v820, %v1166
        %v1185 = vmul.f32 %v821, %v1166
        %v1186 = vmul.f32 %v822, %v1166
        %v1187 = vmul.f32 %v823, %v1166
        %v1188 = vmul.f32 %v824, %v1166
        %v1189 = vmul.f32 %v825, %v1166
        %v1190 = vmul.f32 %v826, %v1166
        %v1191 = vmul.f32 %v827, %v1166
        %v1192 = vmul.f32 %v828, %v1166
        %v1193 = vmul.f32 %v829, %v1166
        %v1194 = vmul.f32 %v830, %v1166
        %v1195 = vmul.f32 %v831, %v1166
        %v1196 = vmul.f32 %v832, %v1166
        %v1197 = vmul.f32 %v833, %v1166
        %v1198 = vmul.f32 %v834, %v1166
        %v1199 = vmul.f32 %v835, %v1166
        %v1200 = vmul.f32 %v836, %v1166
        %v1201 = vmul.f32 %v837, %v1166
        %v1202 = vmul.f32 %v838, %v1166
        %v1203 = vmul.f32 %v839, %v1166
        %v1204 = vmul.f32 %v840, %v1166
        %v1205 = vmul.f32 %v841, %v1166
        %v1206 = vmul.f32 %v842, %v1166
        %vm1247 = vcmask 1043456
        %v1248 = vrot.slane %v1167, 4
        %v1249 = vrot.slane %v1168, 4
        %v1250 = vsel %vm1247, %v1248, %v1249
        %v1251 = vrot.slane %v1169, 4
        %v1252 = vsel %vm1247, %v1249, %v1251
        %v1253 = vrot.slane %v1170, 4
        %v1254 = vsel %vm1247, %v1251, %v1253
        %v1255 = vrot.slane %v1171, 4
        %v1256 = vsel %vm1247, %v1253, %v1255
        %v1257 = vrot.slane %v1172, 4
        %v1258 = vrot.slane %v1173, 4
        %v1259 = vsel %vm1247, %v1257, %v1258
        %v1260 = vrot.slane %v1174, 4
        %v1261 = vsel %vm1247, %v1258, %v1260
        %v1262 = vrot.slane %v1175, 4
        %v1263 = vsel %vm1247, %v1260, %v1262
        %v1264 = vrot.slane %v1176, 4
        %v1265 = vsel %vm1247, %v1262, %v1264
        %v1266 = vrot.slane %v1177, 4
        %v1267 = vrot.slane %v1178, 4
        %v1268 = vsel %vm1247, %v1266, %v1267
        %v1269 = vrot.slane %v1179, 4
        %v1270 = vsel %vm1247, %v1267, %v1269
        %v1271 = vrot.slane %v1180, 4
        %v1272 = vsel %vm1247, %v1269, %v1271
        %v1273 = vrot.slane %v1181, 4
        %v1274 = vsel %vm1247, %v1271, %v1273
        %v1275 = vrot.slane %v1182, 4
        %v1276 = vrot.slane %v1183, 4
        %v1277 = vsel %vm1247, %v1275, %v1276
        %v1278 = vrot.slane %v1184, 4
        %v1279 = vsel %vm1247, %v1276, %v1278
        %v1280 = vrot.slane %v1185, 4
        %v1281 = vsel %vm1247, %v1278, %v1280
        %v1282 = vrot.slane %v1186, 4
        %v1283 = vsel %vm1247, %v1280, %v1282
        %v1284 = vrot.slane %v1187, 4
        %v1285 = vrot.slane %v1188, 4
        %v1286 = vsel %vm1247, %v1284, %v1285
        %v1287 = vrot.slane %v1189, 4
        %v1288 = vsel %vm1247, %v1285, %v1287
        %v1289 = vrot.slane %v1190, 4
        %v1290 = vsel %vm1247, %v1287, %v1289
        %v1291 = vrot.slane %v1191, 4
        %v1292 = vsel %vm1247, %v1289, %v1291
        %v1293 = vrot.slane %v1192, 4
        %v1294 = vrot.slane %v1193, 4
        %v1295 = vsel %vm1247, %v1293, %v1294
        %v1296 = vrot.slane %v1194, 4
        %v1297 = vsel %vm1247, %v1294, %v1296
        %v1298 = vrot.slane %v1195, 4
        %v1299 = vsel %vm1247, %v1296, %v1298
        %v1300 = vrot.slane %v1196, 4
        %v1301 = vsel %vm1247, %v1298, %v1300
        %v1302 = vrot.slane %v1197, 4
        %v1303 = vrot.slane %v1198, 4
        %v1304 = vsel %vm1247, %v1302, %v1303
        %v1305 = vrot.slane %v1199, 4
        %v1306 = vsel %vm1247, %v1303, %v1305
        %v1307 = vrot.slane %v1200, 4
        %v1308 = vsel %vm1247, %v1305, %v1307
        %v1309 = vrot.slane %v1201, 4
        %v1310 = vsel %vm1247, %v1307, %v1309
        %v1311 = vrot.slane %v1202, 4
        %v1312 = vrot.slane %v1203, 4
        %v1313 = vsel %vm1247, %v1311, %v1312
        %v1314 = vrot.slane %v1204, 4
        %v1315 = vsel %vm1247, %v1312, %v1314
        %v1316 = vrot.slane %v1205, 4
        %v1317 = vsel %vm1247, %v1314, %v1316
        %v1318 = vrot.slane %v1206, 4
        %v1319 = vsel %vm1247, %v1316, %v1318
        %v1352 = vadd.f32 %v879, %v1250
        %v1353 = vadd.f32 %v880, %v1252
        %v1354 = vadd.f32 %v881, %v1254
        %v1355 = vadd.f32 %v882, %v1256
        %v1356 = vadd.f32 %v883, %v1259
        %v1357 = vadd.f32 %v884, %v1261
        %v1358 = vadd.f32 %v885, %v1263
        %v1359 = vadd.f32 %v886, %v1265
        %v1360 = vadd.f32 %v887, %v1268
        %v1361 = vadd.f32 %v888, %v1270
        %v1362 = vadd.f32 %v889, %v1272
        %v1363 = vadd.f32 %v890, %v1274
        %v1364 = vadd.f32 %v891, %v1277
        %v1365 = vadd.f32 %v892, %v1279
        %v1366 = vadd.f32 %v893, %v1281
        %v1367 = vadd.f32 %v894, %v1283
        %v1368 = vadd.f32 %v895, %v1286
        %v1369 = vadd.f32 %v896, %v1288
        %v1370 = vadd.f32 %v897, %v1290
        %v1371 = vadd.f32 %v898, %v1292
        %v1372 = vadd.f32 %v899, %v1295
        %v1373 = vadd.f32 %v900, %v1297
        %v1374 = vadd.f32 %v901, %v1299
        %v1375 = vadd.f32 %v902, %v1301
        %v1376 = vadd.f32 %v903, %v1304
        %v1377 = vadd.f32 %v904, %v1306
        %v1378 = vadd.f32 %v905, %v1308
        %v1379 = vadd.f32 %v906, %v1310
        %v1380 = vadd.f32 %v907, %v1313
        %v1381 = vadd.f32 %v908, %v1315
        %v1382 = vadd.f32 %v909, %v1317
        %v1383 = vadd.f32 %v910, %v1319
        %v1384 = vlaneseq
        %v1385 = vshrl.u32 %v1384, 7
        %v1386 = vsub.s32 5, %v1385
        %v1387 = vrot.slane %v794, %v1386
        %v1388 = vmul.f32 %v803, %v1387
        %v1389 = vmul.f32 %v804, %v1387
        %v1390 = vmul.f32 %v805, %v1387
        %v1391 = vmul.f32 %v806, %v1387
        %v1392 = vmul.f32 %v807, %v1387
        %v1393 = vmul.f32 %v808, %v1387
        %v1394 = vmul.f32 %v809, %v1387
        %v1395 = vmul.f32 %v810, %v1387
        %v1396 = vmul.f32 %v811, %v1387
        %v1397 = vmul.f32 %v812, %v1387
        %v1398 = vmul.f32 %v813, %v1387
        %v1399 = vmul.f32 %v814, %v1387
        %v1400 = vmul.f32 %v815, %v1387
        %v1401 = vmul.f32 %v816, %v1387
        %v1402 = vmul.f32 %v817, %v1387
        %v1403 = vmul.f32 %v818, %v1387
        %v1404 = vmul.f32 %v819, %v1387
        %v1405 = vmul.f32 %v820, %v1387
        %v1406 = vmul.f32 %v821, %v1387
        %v1407 = vmul.f32 %v822, %v1387
        %v1408 = vmul.f32 %v823, %v1387
        %v1409 = vmul.f32 %v824, %v1387
        %v1410 = vmul.f32 %v825, %v1387
        %v1411 = vmul.f32 %v826, %v1387
        %v1412 = vmul.f32 %v827, %v1387
        %v1413 = vmul.f32 %v828, %v1387
        %v1414 = vmul.f32 %v829, %v1387
        %v1415 = vmul.f32 %v830, %v1387
        %v1416 = vmul.f32 %v831, %v1387
        %v1417 = vmul.f32 %v832, %v1387
        %v1418 = vmul.f32 %v833, %v1387
        %v1419 = vmul.f32 %v834, %v1387
        %v1420 = vmul.f32 %v835, %v1387
        %v1421 = vmul.f32 %v836, %v1387
        %v1422 = vmul.f32 %v837, %v1387
        %v1423 = vmul.f32 %v838, %v1387
        %v1424 = vmul.f32 %v839, %v1387
        %v1425 = vmul.f32 %v840, %v1387
        %v1426 = vmul.f32 %v841, %v1387
        %v1427 = vmul.f32 %v842, %v1387
        %v1468 = vrot.slane %v1388, 4
        %v1469 = vrot.slane %v1389, 4
        %v1470 = vsel %vm1247, %v1468, %v1469
        %v1471 = vrot.slane %v1390, 4
        %v1472 = vsel %vm1247, %v1469, %v1471
        %v1473 = vrot.slane %v1391, 4
        %v1474 = vsel %vm1247, %v1471, %v1473
        %v1475 = vrot.slane %v1392, 4
        %v1476 = vsel %vm1247, %v1473, %v1475
        %v1477 = vrot.slane %v1393, 4
        %v1478 = vrot.slane %v1394, 4
        %v1479 = vsel %vm1247, %v1477, %v1478
        %v1480 = vrot.slane %v1395, 4
        %v1481 = vsel %vm1247, %v1478, %v1480
        %v1482 = vrot.slane %v1396, 4
        %v1483 = vsel %vm1247, %v1480, %v1482
        %v1484 = vrot.slane %v1397, 4
        %v1485 = vsel %vm1247, %v1482, %v1484
        %v1486 = vrot.slane %v1398, 4
        %v1487 = vrot.slane %v1399, 4
        %v1488 = vsel %vm1247, %v1486, %v1487
        %v1489 = vrot.slane %v1400, 4
        %v1490 = vsel %vm1247, %v1487, %v1489
        %v1491 = vrot.slane %v1401, 4
        %v1492 = vsel %vm1247, %v1489, %v1491
        %v1493 = vrot.slane %v1402, 4
        %v1494 = vsel %vm1247, %v1491, %v1493
        %v1495 = vrot.slane %v1403, 4
        %v1496 = vrot.slane %v1404, 4
        %v1497 = vsel %vm1247, %v1495, %v1496
        %v1498 = vrot.slane %v1405, 4
        %v1499 = vsel %vm1247, %v1496, %v1498
        %v1500 = vrot.slane %v1406, 4
        %v1501 = vsel %vm1247, %v1498, %v1500
        %v1502 = vrot.slane %v1407, 4
        %v1503 = vsel %vm1247, %v1500, %v1502
        %v1504 = vrot.slane %v1408, 4
        %v1505 = vrot.slane %v1409, 4
        %v1506 = vsel %vm1247, %v1504, %v1505
        %v1507 = vrot.slane %v1410, 4
        %v1508 = vsel %vm1247, %v1505, %v1507
        %v1509 = vrot.slane %v1411, 4
        %v1510 = vsel %vm1247, %v1507, %v1509
        %v1511 = vrot.slane %v1412, 4
        %v1512 = vsel %vm1247, %v1509, %v1511
        %v1513 = vrot.slane %v1413, 4
        %v1514 = vrot.slane %v1414, 4
        %v1515 = vsel %vm1247, %v1513, %v1514
        %v1516 = vrot.slane %v1415, 4
        %v1517 = vsel %vm1247, %v1514, %v1516
        %v1518 = vrot.slane %v1416, 4
        %v1519 = vsel %vm1247, %v1516, %v1518
        %v1520 = vrot.slane %v1417, 4
        %v1521 = vsel %vm1247, %v1518, %v1520
        %v1522 = vrot.slane %v1418, 4
        %v1523 = vrot.slane %v1419, 4
        %v1524 = vsel %vm1247, %v1522, %v1523
        %v1525 = vrot.slane %v1420, 4
        %v1526 = vsel %vm1247, %v1523, %v1525
        %v1527 = vrot.slane %v1421, 4
        %v1528 = vsel %vm1247, %v1525, %v1527
        %v1529 = vrot.slane %v1422, 4
        %v1530 = vsel %vm1247, %v1527, %v1529
        %v1531 = vrot.slane %v1423, 4
        %v1532 = vrot.slane %v1424, 4
        %v1533 = vsel %vm1247, %v1531, %v1532
        %v1534 = vrot.slane %v1425, 4
        %v1535 = vsel %vm1247, %v1532, %v1534
        %v1536 = vrot.slane %v1426, 4
        %v1537 = vsel %vm1247, %v1534, %v1536
        %v1538 = vrot.slane %v1427, 4
        %v1539 = vsel %vm1247, %v1536, %v1538
        %v1580 = vadd.f32 %v955, %v1470
        %v1581 = vadd.f32 %v956, %v1472
        %v1582 = vadd.f32 %v957, %v1474
        %v1583 = vadd.f32 %v958, %v1476
        %v1584 = vadd.f32 %v959, %v1475
        %v1585 = vadd.f32 %v960, %v1479
        %v1586 = vadd.f32 %v961, %v1481
        %v1587 = vadd.f32 %v962, %v1483
        %v1588 = vadd.f32 %v963, %v1485
        %v1589 = vadd.f32 %v964, %v1484
        %v1590 = vadd.f32 %v965, %v1488
        %v1591 = vadd.f32 %v966, %v1490
        %v1592 = vadd.f32 %v967, %v1492
        %v1593 = vadd.f32 %v968, %v1494
        %v1594 = vadd.f32 %v969, %v1493
        %v1595 = vadd.f32 %v970, %v1497
        %v1596 = vadd.f32 %v971, %v1499
        %v1597 = vadd.f32 %v972, %v1501
        %v1598 = vadd.f32 %v973, %v1503
        %v1599 = vadd.f32 %v974, %v1502
        %v1600 = vadd.f32 %v975, %v1506
        %v1601 = vadd.f32 %v976, %v1508
        %v1602 = vadd.f32 %v977, %v1510
        %v1603 = vadd.f32 %v978, %v1512
        %v1604 = vadd.f32 %v979, %v1511
        %v1605 = vadd.f32 %v980, %v1515
        %v1606 = vadd.f32 %v981, %v1517
        %v1607 = vadd.f32 %v982, %v1519
        %v1608 = vadd.f32 %v983, %v1521
        %v1609 = vadd.f32 %v984, %v1520
        %v1610 = vadd.f32 %v985, %v1524
        %v1611 = vadd.f32 %v986, %v1526
        %v1612 = vadd.f32 %v987, %v1528
        %v1613 = vadd.f32 %v988, %v1530
        %v1614 = vadd.f32 %v989, %v1529
        %v1615 = vadd.f32 %v990, %v1533
        %v1616 = vadd.f32 %v991, %v1535
        %v1617 = vadd.f32 %v992, %v1537
        %v1618 = vadd.f32 %v993, %v1539
        %v1619 = vadd.f32 %v994, %v1538
        %v1620 = vlaneseq
        %v1621 = vshrl.u32 %v1620, 7
        %v1622 = vsub.s32 6, %v1621
        %v1623 = vrot.slane %v794, %v1622
        %v1624 = vmul.f32 %v803, %v1623
        %v1625 = vmul.f32 %v804, %v1623
        %v1626 = vmul.f32 %v805, %v1623
        %v1627 = vmul.f32 %v806, %v1623
        %v1628 = vmul.f32 %v807, %v1623
        %v1629 = vmul.f32 %v808, %v1623
        %v1630 = vmul.f32 %v809, %v1623
        %v1631 = vmul.f32 %v810, %v1623
        %v1632 = vmul.f32 %v811, %v1623
        %v1633 = vmul.f32 %v812, %v1623
        %v1634 = vmul.f32 %v813, %v1623
        %v1635 = vmul.f32 %v814, %v1623
        %v1636 = vmul.f32 %v815, %v1623
        %v1637 = vmul.f32 %v816, %v1623
        %v1638 = vmul.f32 %v817, %v1623
        %v1639 = vmul.f32 %v818, %v1623
        %v1640 = vmul.f32 %v819, %v1623
        %v1641 = vmul.f32 %v820, %v1623
        %v1642 = vmul.f32 %v821, %v1623
        %v1643 = vmul.f32 %v822, %v1623
        %v1644 = vmul.f32 %v823, %v1623
        %v1645 = vmul.f32 %v824, %v1623
        %v1646 = vmul.f32 %v825, %v1623
        %v1647 = vmul.f32 %v826, %v1623
        %v1648 = vmul.f32 %v827, %v1623
        %v1649 = vmul.f32 %v828, %v1623
        %v1650 = vmul.f32 %v829, %v1623
        %v1651 = vmul.f32 %v830, %v1623
        %v1652 = vmul.f32 %v831, %v1623
        %v1653 = vmul.f32 %v832, %v1623
        %v1654 = vmul.f32 %v833, %v1623
        %v1655 = vmul.f32 %v834, %v1623
        %v1656 = vmul.f32 %v835, %v1623
        %v1657 = vmul.f32 %v836, %v1623
        %v1658 = vmul.f32 %v837, %v1623
        %v1659 = vmul.f32 %v838, %v1623
        %v1660 = vmul.f32 %v839, %v1623
        %v1661 = vmul.f32 %v840, %v1623
        %v1662 = vmul.f32 %v841, %v1623
        %v1663 = vmul.f32 %v842, %v1623
        %v1704 = vrot.slane %v1624, 4
        %v1705 = vrot.slane %v1625, 4
        %v1706 = vsel %vm1247, %v1704, %v1705
        %v1707 = vrot.slane %v1626, 4
        %v1708 = vsel %vm1247, %v1705, %v1707
        %v1709 = vrot.slane %v1627, 4
        %v1710 = vsel %vm1247, %v1707, %v1709
        %v1711 = vrot.slane %v1628, 4
        %v1712 = vsel %vm1247, %v1709, %v1711
        %v1713 = vrot.slane %v1629, 4
        %v1714 = vrot.slane %v1630, 4
        %v1715 = vsel %vm1247, %v1713, %v1714
        %v1716 = vrot.slane %v1631, 4
        %v1717 = vsel %vm1247, %v1714, %v1716
        %v1718 = vrot.slane %v1632, 4
        %v1719 = vsel %vm1247, %v1716, %v1718
        %v1720 = vrot.slane %v1633, 4
        %v1721 = vsel %vm1247, %v1718, %v1720
        %v1722 = vrot.slane %v1634, 4
        %v1723 = vrot.slane %v1635, 4
        %v1724 = vsel %vm1247, %v1722, %v1723
        %v1725 = vrot.slane %v1636, 4
        %v1726 = vsel %vm1247, %v1723, %v1725
        %v1727 = vrot.slane %v1637, 4
        %v1728 = vsel %vm1247, %v1725, %v1727
        %v1729 = vrot.slane %v1638, 4
        %v1730 = vsel %vm1247, %v1727, %v1729
        %v1731 = vrot.slane %v1639, 4
        %v1732 = vrot.slane %v1640, 4
        %v1733 = vsel %vm1247, %v1731, %v1732
        %v1734 = vrot.slane %v1641, 4
        %v1735 = vsel %vm1247, %v1732, %v1734
        %v1736 = vrot.slane %v1642, 4
        %v1737 = vsel %vm1247, %v1734, %v1736
        %v1738 = vrot.slane %v1643, 4
        %v1739 = vsel %vm1247, %v1736, %v1738
        %v1740 = vrot.slane %v1644, 4
        %v1741 = vrot.slane %v1645, 4
        %v1742 = vsel %vm1247, %v1740, %v1741
        %v1743 = vrot.slane %v1646, 4
        %v1744 = vsel %vm1247, %v1741, %v1743
        %v1745 = vrot.slane %v1647, 4
        %v1746 = vsel %vm1247, %v1743, %v1745
        %v1747 = vrot.slane %v1648, 4
        %v1748 = vsel %vm1247, %v1745, %v1747
        %v1749 = vrot.slane %v1649, 4
        %v1750 = vrot.slane %v1650, 4
        %v1751 = vsel %vm1247, %v1749, %v1750
        %v1752 = vrot.slane %v1651, 4
        %v1753 = vsel %vm1247, %v1750, %v1752
        %v1754 = vrot.slane %v1652, 4
        %v1755 = vsel %vm1247, %v1752, %v1754
        %v1756 = vrot.slane %v1653, 4
        %v1757 = vsel %vm1247, %v1754, %v1756
        %v1758 = vrot.slane %v1654, 4
        %v1759 = vrot.slane %v1655, 4
        %v1760 = vsel %vm1247, %v1758, %v1759
        %v1761 = vrot.slane %v1656, 4
        %v1762 = vsel %vm1247, %v1759, %v1761
        %v1763 = vrot.slane %v1657, 4
        %v1764 = vsel %vm1247, %v1761, %v1763
        %v1765 = vrot.slane %v1658, 4
        %v1766 = vsel %vm1247, %v1763, %v1765
        %v1767 = vrot.slane %v1659, 4
        %v1768 = vrot.slane %v1660, 4
        %v1769 = vsel %vm1247, %v1767, %v1768
        %v1770 = vrot.slane %v1661, 4
        %v1771 = vsel %vm1247, %v1768, %v1770
        %v1772 = vrot.slane %v1662, 4
        %v1773 = vsel %vm1247, %v1770, %v1772
        %v1774 = vrot.slane %v1663, 4
        %v1775 = vsel %vm1247, %v1772, %v1774
        %v1816 = vadd.f32 %v1039, %v1706
        %v1817 = vadd.f32 %v1040, %v1708
        %v1818 = vadd.f32 %v1041, %v1710
        %v1819 = vadd.f32 %v1042, %v1712
        %v1820 = vadd.f32 %v1043, %v1711
        %v1821 = vadd.f32 %v1044, %v1715
        %v1822 = vadd.f32 %v1045, %v1717
        %v1823 = vadd.f32 %v1046, %v1719
        %v1824 = vadd.f32 %v1047, %v1721
        %v1825 = vadd.f32 %v1048, %v1720
        %v1826 = vadd.f32 %v1049, %v1724
        %v1827 = vadd.f32 %v1050, %v1726
        %v1828 = vadd.f32 %v1051, %v1728
        %v1829 = vadd.f32 %v1052, %v1730
        %v1830 = vadd.f32 %v1053, %v1729
        %v1831 = vadd.f32 %v1054, %v1733
        %v1832 = vadd.f32 %v1055, %v1735
        %v1833 = vadd.f32 %v1056, %v1737
        %v1834 = vadd.f32 %v1057, %v1739
        %v1835 = vadd.f32 %v1058, %v1738
        %v1836 = vadd.f32 %v1059, %v1742
        %v1837 = vadd.f32 %v1060, %v1744
        %v1838 = vadd.f32 %v1061, %v1746
        %v1839 = vadd.f32 %v1062, %v1748
        %v1840 = vadd.f32 %v1063, %v1747
        %v1841 = vadd.f32 %v1064, %v1751
        %v1842 = vadd.f32 %v1065, %v1753
        %v1843 = vadd.f32 %v1066, %v1755
        %v1844 = vadd.f32 %v1067, %v1757
        %v1845 = vadd.f32 %v1068, %v1756
        %v1846 = vadd.f32 %v1069, %v1760
        %v1847 = vadd.f32 %v1070, %v1762
        %v1848 = vadd.f32 %v1071, %v1764
        %v1849 = vadd.f32 %v1072, %v1766
        %v1850 = vadd.f32 %v1073, %v1765
        %v1851 = vadd.f32 %v1074, %v1769
        %v1852 = vadd.f32 %v1075, %v1771
        %v1853 = vadd.f32 %v1076, %v1773
        %v1854 = vadd.f32 %v1077, %v1775
        %v1855 = vadd.f32 %v1078, %v1774
        %s1856 = sadd.s32 %s793, 1
        %s1857 = smul.u32 %s1856, 40
        %s1858 = scalar_lea.vmem [#allocation2], %s1857
        %v1859 = vld [vmem:[%s1858] sm:$0xff]
        %v1860 = vld [vmem:[%s1858 + $0x8] sm:$0xff]
        %v1861 = vld [vmem:[%s1858 + $0x10] sm:$0xff]
        %v1862 = vld [vmem:[%s1858 + $0x18] sm:$0xff]
        %v1863 = vld [vmem:[%s1858 + $0x20] sm:$0x3f]
        %v1864 = vld [vmem:[%s1858 + $0x28] sm:$0xff]
        %v1865 = vld [vmem:[%s1858 + $0x30] sm:$0xff]
        %v1866 = vld [vmem:[%s1858 + $0x38] sm:$0xff]
        %v1867 = vld [vmem:[%s1858 + $0x40] sm:$0xff]
        %v1868 = vld [vmem:[%s1858 + $0x48] sm:$0x3f]
        %v1869 = vld [vmem:[%s1858 + $0x50] sm:$0xff]
        %v1870 = vld [vmem:[%s1858 + $0x58] sm:$0xff]
        %v1871 = vld [vmem:[%s1858 + $0x60] sm:$0xff]
        %v1872 = vld [vmem:[%s1858 + $0x68] sm:$0xff]
        %v1873 = vld [vmem:[%s1858 + $0x70] sm:$0x3f]
        %v1874 = vld [vmem:[%s1858 + $0x78] sm:$0xff]
        %v1875 = vld [vmem:[%s1858 + $0x80] sm:$0xff]
        %v1876 = vld [vmem:[%s1858 + $0x88] sm:$0xff]
        %v1877 = vld [vmem:[%s1858 + $0x90] sm:$0xff]
        %v1878 = vld [vmem:[%s1858 + $0x98] sm:$0x3f]
        %v1879 = vld [vmem:[%s1858 + $0xa0] sm:$0xff]
        %v1880 = vld [vmem:[%s1858 + $0xa8] sm:$0xff]
        %v1881 = vld [vmem:[%s1858 + $0xb0] sm:$0xff]
        %v1882 = vld [vmem:[%s1858 + $0xb8] sm:$0xff]
        %v1883 = vld [vmem:[%s1858 + $0xc0] sm:$0x3f]
        %v1884 = vld [vmem:[%s1858 + $0xc8] sm:$0xff]
        %v1885 = vld [vmem:[%s1858 + $0xd0] sm:$0xff]
        %v1886 = vld [vmem:[%s1858 + $0xd8] sm:$0xff]
        %v1887 = vld [vmem:[%s1858 + $0xe0] sm:$0xff]
        %v1888 = vld [vmem:[%s1858 + $0xe8] sm:$0x3f]
        %v1889 = vld [vmem:[%s1858 + $0xf0] sm:$0xff]
        %v1890 = vld [vmem:[%s1858 + $0xf8] sm:$0xff]
        %v1891 = vld [vmem:[%s1858 + $0x100] sm:$0xff]
        %v1892 = vld [vmem:[%s1858 + $0x108] sm:$0xff]
        %v1893 = vld [vmem:[%s1858 + $0x110] sm:$0x3f]
        %v1894 = vld [vmem:[%s1858 + $0x118] sm:$0xff]
        %v1895 = vld [vmem:[%s1858 + $0x120] sm:$0xff]
        %v1896 = vld [vmem:[%s1858 + $0x128] sm:$0xff]
        %v1897 = vld [vmem:[%s1858 + $0x130] sm:$0xff]
        %v1898 = vld [vmem:[%s1858 + $0x138] sm:$0x3f]
        %v1899 = vlaneseq
        %v1900 = vshrl.u32 %v1899, 7
        %v1901 = vsub.s32 7, %v1900
        %v1902 = vrot.slane %v794, %v1901
        %v1903 = vmul.f32 %v1859, %v1902
        %v1904 = vmul.f32 %v1860, %v1902
        %v1905 = vmul.f32 %v1861, %v1902
        %v1906 = vmul.f32 %v1862, %v1902
        %v1907 = vmul.f32 %v1864, %v1902
        %v1908 = vmul.f32 %v1865, %v1902
        %v1909 = vmul.f32 %v1866, %v1902
        %v1910 = vmul.f32 %v1867, %v1902
        %v1911 = vmul.f32 %v1869, %v1902
        %v1912 = vmul.f32 %v1870, %v1902
        %v1913 = vmul.f32 %v1871, %v1902
        %v1914 = vmul.f32 %v1872, %v1902
        %v1915 = vmul.f32 %v1874, %v1902
        %v1916 = vmul.f32 %v1875, %v1902
        %v1917 = vmul.f32 %v1876, %v1902
        %v1918 = vmul.f32 %v1877, %v1902
        %v1919 = vmul.f32 %v1879, %v1902
        %v1920 = vmul.f32 %v1880, %v1902
        %v1921 = vmul.f32 %v1881, %v1902
        %v1922 = vmul.f32 %v1882, %v1902
        %v1923 = vmul.f32 %v1884, %v1902
        %v1924 = vmul.f32 %v1885, %v1902
        %v1925 = vmul.f32 %v1886, %v1902
        %v1926 = vmul.f32 %v1887, %v1902
        %v1927 = vmul.f32 %v1889, %v1902
        %v1928 = vmul.f32 %v1890, %v1902
        %v1929 = vmul.f32 %v1891, %v1902
        %v1930 = vmul.f32 %v1892, %v1902
        %v1931 = vmul.f32 %v1894, %v1902
        %v1932 = vmul.f32 %v1895, %v1902
        %v1933 = vmul.f32 %v1896, %v1902
        %v1934 = vmul.f32 %v1897, %v1902
        %vm1967 = vcmask 1042432
        %v1968 = vrot.slane %v1903, 5
        %v1969 = vrot.slane %v1904, 5
        %v1970 = vsel %vm1967, %v1968, %v1969
        %v1971 = vrot.slane %v1905, 5
        %v1972 = vsel %vm1967, %v1969, %v1971
        %v1973 = vrot.slane %v1906, 5
        %v1974 = vsel %vm1967, %v1971, %v1973
        %v1975 = vrot.slane %v1907, 5
        %v1976 = vrot.slane %v1908, 5
        %v1977 = vsel %vm1967, %v1975, %v1976
        %v1978 = vrot.slane %v1909, 5
        %v1979 = vsel %vm1967, %v1976, %v1978
        %v1980 = vrot.slane %v1910, 5
        %v1981 = vsel %vm1967, %v1978, %v1980
        %v1982 = vrot.slane %v1911, 5
        %v1983 = vrot.slane %v1912, 5
        %v1984 = vsel %vm1967, %v1982, %v1983
        %v1985 = vrot.slane %v1913, 5
        %v1986 = vsel %vm1967, %v1983, %v1985
        %v1987 = vrot.slane %v1914, 5
        %v1988 = vsel %vm1967, %v1985, %v1987
        %v1989 = vrot.slane %v1915, 5
        %v1990 = vrot.slane %v1916, 5
        %v1991 = vsel %vm1967, %v1989, %v1990
        %v1992 = vrot.slane %v1917, 5
        %v1993 = vsel %vm1967, %v1990, %v1992
        %v1994 = vrot.slane %v1918, 5
        %v1995 = vsel %vm1967, %v1992, %v1994
        %v1996 = vrot.slane %v1919, 5
        %v1997 = vrot.slane %v1920, 5
        %v1998 = vsel %vm1967, %v1996, %v1997
        %v1999 = vrot.slane %v1921, 5
        %v2000 = vsel %vm1967, %v1997, %v1999
        %v2001 = vrot.slane %v1922, 5
        %v2002 = vsel %vm1967, %v1999, %v2001
        %v2003 = vrot.slane %v1923, 5
        %v2004 = vrot.slane %v1924, 5
        %v2005 = vsel %vm1967, %v2003, %v2004
        %v2006 = vrot.slane %v1925, 5
        %v2007 = vsel %vm1967, %v2004, %v2006
        %v2008 = vrot.slane %v1926, 5
        %v2009 = vsel %vm1967, %v2006, %v2008
        %v2010 = vrot.slane %v1927, 5
        %v2011 = vrot.slane %v1928, 5
        %v2012 = vsel %vm1967, %v2010, %v2011
        %v2013 = vrot.slane %v1929, 5
        %v2014 = vsel %vm1967, %v2011, %v2013
        %v2015 = vrot.slane %v1930, 5
        %v2016 = vsel %vm1967, %v2013, %v2015
        %v2017 = vrot.slane %v1931, 5
        %v2018 = vrot.slane %v1932, 5
        %v2019 = vsel %vm1967, %v2017, %v2018
        %v2020 = vrot.slane %v1933, 5
        %v2021 = vsel %vm1967, %v2018, %v2020
        %v2022 = vrot.slane %v1934, 5
        %v2023 = vsel %vm1967, %v2020, %v2022
        %v2064 = vadd.f32 %v1123, %v1968
        %v2065 = vadd.f32 %v1124, %v1970
        %v2066 = vadd.f32 %v1125, %v1972
        %v2067 = vadd.f32 %v1126, %v1974
        %v2068 = vadd.f32 %v1127, %v1973
        %v2069 = vadd.f32 %v1128, %v1975
        %v2070 = vadd.f32 %v1129, %v1977
        %v2071 = vadd.f32 %v1130, %v1979
        %v2072 = vadd.f32 %v1131, %v1981
        %v2073 = vadd.f32 %v1132, %v1980
        %v2074 = vadd.f32 %v1133, %v1982
        %v2075 = vadd.f32 %v1134, %v1984
        %v2076 = vadd.f32 %v1135, %v1986
        %v2077 = vadd.f32 %v1136, %v1988
        %v2078 = vadd.f32 %v1137, %v1987
        %v2079 = vadd.f32 %v1138, %v1989
        %v2080 = vadd.f32 %v1139, %v1991
        %v2081 = vadd.f32 %v1140, %v1993
        %v2082 = vadd.f32 %v1141, %v1995
        %v2083 = vadd.f32 %v1142, %v1994
        %v2084 = vadd.f32 %v1143, %v1996
        %v2085 = vadd.f32 %v1144, %v1998
        %v2086 = vadd.f32 %v1145, %v2000
        %v2087 = vadd.f32 %v1146, %v2002
        %v2088 = vadd.f32 %v1147, %v2001
        %v2089 = vadd.f32 %v1148, %v2003
        %v2090 = vadd.f32 %v1149, %v2005
        %v2091 = vadd.f32 %v1150, %v2007
        %v2092 = vadd.f32 %v1151, %v2009
        %v2093 = vadd.f32 %v1152, %v2008
        %v2094 = vadd.f32 %v1153, %v2010
        %v2095 = vadd.f32 %v1154, %v2012
        %v2096 = vadd.f32 %v1155, %v2014
        %v2097 = vadd.f32 %v1156, %v2016
        %v2098 = vadd.f32 %v1157, %v2015
        %v2099 = vadd.f32 %v1158, %v2017
        %v2100 = vadd.f32 %v1159, %v2019
        %v2101 = vadd.f32 %v1160, %v2021
        %v2102 = vadd.f32 %v1161, %v2023
        %v2103 = vadd.f32 %v1162, %v2022
        %v2104 = vlaneseq
        %v2105 = vshrl.u32 %v2104, 7
        %v2106 = vsub.s32 0, %v2105
        %v2107 = vrot.slane %v795, %v2106
        %v2108 = vmul.f32 %v1859, %v2107
        %v2109 = vmul.f32 %v1860, %v2107
        %v2110 = vmul.f32 %v1861, %v2107
        %v2111 = vmul.f32 %v1862, %v2107
        %v2112 = vmul.f32 %v1863, %v2107
        %v2113 = vmul.f32 %v1864, %v2107
        %v2114 = vmul.f32 %v1865, %v2107
        %v2115 = vmul.f32 %v1866, %v2107
        %v2116 = vmul.f32 %v1867, %v2107
        %v2117 = vmul.f32 %v1868, %v2107
        %v2118 = vmul.f32 %v1869, %v2107
        %v2119 = vmul.f32 %v1870, %v2107
        %v2120 = vmul.f32 %v1871, %v2107
        %v2121 = vmul.f32 %v1872, %v2107
        %v2122 = vmul.f32 %v1873, %v2107
        %v2123 = vmul.f32 %v1874, %v2107
        %v2124 = vmul.f32 %v1875, %v2107
        %v2125 = vmul.f32 %v1876, %v2107
        %v2126 = vmul.f32 %v1877, %v2107
        %v2127 = vmul.f32 %v1878, %v2107
        %v2128 = vmul.f32 %v1879, %v2107
        %v2129 = vmul.f32 %v1880, %v2107
        %v2130 = vmul.f32 %v1881, %v2107
        %v2131 = vmul.f32 %v1882, %v2107
        %v2132 = vmul.f32 %v1883, %v2107
        %v2133 = vmul.f32 %v1884, %v2107
        %v2134 = vmul.f32 %v1885, %v2107
        %v2135 = vmul.f32 %v1886, %v2107
        %v2136 = vmul.f32 %v1887, %v2107
        %v2137 = vmul.f32 %v1888, %v2107
        %v2138 = vmul.f32 %v1889, %v2107
        %v2139 = vmul.f32 %v1890, %v2107
        %v2140 = vmul.f32 %v1891, %v2107
        %v2141 = vmul.f32 %v1892, %v2107
        %v2142 = vmul.f32 %v1893, %v2107
        %v2143 = vmul.f32 %v1894, %v2107
        %v2144 = vmul.f32 %v1895, %v2107
        %v2145 = vmul.f32 %v1896, %v2107
        %v2146 = vmul.f32 %v1897, %v2107
        %v2147 = vmul.f32 %v1898, %v2107
        %vm2188 = vcmask 1046528
        %v2189 = vrot.slane %v2108, 1
        %v2190 = vrot.slane %v2109, 1
        %v2191 = vsel %vm2188, %v2189, %v2190
        %v2192 = vrot.slane %v2110, 1
        %v2193 = vsel %vm2188, %v2190, %v2192
        %v2194 = vrot.slane %v2111, 1
        %v2195 = vsel %vm2188, %v2192, %v2194
        %v2196 = vrot.slane %v2112, 1
        %v2197 = vsel %vm2188, %v2194, %v2196
        %v2198 = vrot.slane %v2113, 1
        %v2199 = vrot.slane %v2114, 1
        %v2200 = vsel %vm2188, %v2198, %v2199
        %v2201 = vrot.slane %v2115, 1
        %v2202 = vsel %vm2188, %v2199, %v2201
        %v2203 = vrot.slane %v2116, 1
        %v2204 = vsel %vm2188, %v2201, %v2203
        %v2205 = vrot.slane %v2117, 1
        %v2206 = vsel %vm2188, %v2203, %v2205
        %v2207 = vrot.slane %v2118, 1
        %v2208 = vrot.slane %v2119, 1
        %v2209 = vsel %vm2188, %v2207, %v2208
        %v2210 = vrot.slane %v2120, 1
        %v2211 = vsel %vm2188, %v2208, %v2210
        %v2212 = vrot.slane %v2121, 1
        %v2213 = vsel %vm2188, %v2210, %v2212
        %v2214 = vrot.slane %v2122, 1
        %v2215 = vsel %vm2188, %v2212, %v2214
        %v2216 = vrot.slane %v2123, 1
        %v2217 = vrot.slane %v2124, 1
        %v2218 = vsel %vm2188, %v2216, %v2217
        %v2219 = vrot.slane %v2125, 1
        %v2220 = vsel %vm2188, %v2217, %v2219
        %v2221 = vrot.slane %v2126, 1
        %v2222 = vsel %vm2188, %v2219, %v2221
        %v2223 = vrot.slane %v2127, 1
        %v2224 = vsel %vm2188, %v2221, %v2223
        %v2225 = vrot.slane %v2128, 1
        %v2226 = vrot.slane %v2129, 1
        %v2227 = vsel %vm2188, %v2225, %v2226
        %v2228 = vrot.slane %v2130, 1
        %v2229 = vsel %vm2188, %v2226, %v2228
        %v2230 = vrot.slane %v2131, 1
        %v2231 = vsel %vm2188, %v2228, %v2230
        %v2232 = vrot.slane %v2132, 1
        %v2233 = vsel %vm2188, %v2230, %v2232
        %v2234 = vrot.slane %v2133, 1
        %v2235 = vrot.slane %v2134, 1
        %v2236 = vsel %vm2188, %v2234, %v2235
        %v2237 = vrot.slane %v2135, 1
        %v2238 = vsel %vm2188, %v2235, %v2237
        %v2239 = vrot.slane %v2136, 1
        %v2240 = vsel %vm2188, %v2237, %v2239
        %v2241 = vrot.slane %v2137, 1
        %v2242 = vsel %vm2188, %v2239, %v2241
        %v2243 = vrot.slane %v2138, 1
        %v2244 = vrot.slane %v2139, 1
        %v2245 = vsel %vm2188, %v2243, %v2244
        %v2246 = vrot.slane %v2140, 1
        %v2247 = vsel %vm2188, %v2244, %v2246
        %v2248 = vrot.slane %v2141, 1
        %v2249 = vsel %vm2188, %v2246, %v2248
        %v2250 = vrot.slane %v2142, 1
        %v2251 = vsel %vm2188, %v2248, %v2250
        %v2252 = vrot.slane %v2143, 1
        %v2253 = vrot.slane %v2144, 1
        %v2254 = vsel %vm2188, %v2252, %v2253
        %v2255 = vrot.slane %v2145, 1
        %v2256 = vsel %vm2188, %v2253, %v2255
        %v2257 = vrot.slane %v2146, 1
        %v2258 = vsel %vm2188, %v2255, %v2257
        %v2259 = vrot.slane %v2147, 1
        %v2260 = vsel %vm2188, %v2257, %v2259
        %v2293 = vadd.f32 %v1352, %v2191
        %v2294 = vadd.f32 %v1353, %v2193
        %v2295 = vadd.f32 %v1354, %v2195
        %v2296 = vadd.f32 %v1355, %v2197
        %v2297 = vadd.f32 %v1356, %v2200
        %v2298 = vadd.f32 %v1357, %v2202
        %v2299 = vadd.f32 %v1358, %v2204
        %v2300 = vadd.f32 %v1359, %v2206
        %v2301 = vadd.f32 %v1360, %v2209
        %v2302 = vadd.f32 %v1361, %v2211
        %v2303 = vadd.f32 %v1362, %v2213
        %v2304 = vadd.f32 %v1363, %v2215
        %v2305 = vadd.f32 %v1364, %v2218
        %v2306 = vadd.f32 %v1365, %v2220
        %v2307 = vadd.f32 %v1366, %v2222
        %v2308 = vadd.f32 %v1367, %v2224
        %v2309 = vadd.f32 %v1368, %v2227
        %v2310 = vadd.f32 %v1369, %v2229
        %v2311 = vadd.f32 %v1370, %v2231
        %v2312 = vadd.f32 %v1371, %v2233
        %v2313 = vadd.f32 %v1372, %v2236
        %v2314 = vadd.f32 %v1373, %v2238
        %v2315 = vadd.f32 %v1374, %v2240
        %v2316 = vadd.f32 %v1375, %v2242
        %v2317 = vadd.f32 %v1376, %v2245
        %v2318 = vadd.f32 %v1377, %v2247
        %v2319 = vadd.f32 %v1378, %v2249
        %v2320 = vadd.f32 %v1379, %v2251
        %v2321 = vadd.f32 %v1380, %v2254
        %v2322 = vadd.f32 %v1381, %v2256
        %v2323 = vadd.f32 %v1382, %v2258
        %v2324 = vadd.f32 %v1383, %v2260
        %v2325 = vlaneseq
        %v2326 = vshrl.u32 %v2325, 7
        %v2327 = vsub.s32 1, %v2326
        %v2328 = vrot.slane %v795, %v2327
        %v2329 = vmul.f32 %v1859, %v2328
        %v2330 = vmul.f32 %v1860, %v2328
        %v2331 = vmul.f32 %v1861, %v2328
        %v2332 = vmul.f32 %v1862, %v2328
        %v2333 = vmul.f32 %v1863, %v2328
        %v2334 = vmul.f32 %v1864, %v2328
        %v2335 = vmul.f32 %v1865, %v2328
        %v2336 = vmul.f32 %v1866, %v2328
        %v2337 = vmul.f32 %v1867, %v2328
        %v2338 = vmul.f32 %v1868, %v2328
        %v2339 = vmul.f32 %v1869, %v2328
        %v2340 = vmul.f32 %v1870, %v2328
        %v2341 = vmul.f32 %v1871, %v2328
        %v2342 = vmul.f32 %v1872, %v2328
        %v2343 = vmul.f32 %v1873, %v2328
        %v2344 = vmul.f32 %v1874, %v2328
        %v2345 = vmul.f32 %v1875, %v2328
        %v2346 = vmul.f32 %v1876, %v2328
        %v2347 = vmul.f32 %v1877, %v2328
        %v2348 = vmul.f32 %v1878, %v2328
        %v2349 = vmul.f32 %v1879, %v2328
        %v2350 = vmul.f32 %v1880, %v2328
        %v2351 = vmul.f32 %v1881, %v2328
        %v2352 = vmul.f32 %v1882, %v2328
        %v2353 = vmul.f32 %v1883, %v2328
        %v2354 = vmul.f32 %v1884, %v2328
        %v2355 = vmul.f32 %v1885, %v2328
        %v2356 = vmul.f32 %v1886, %v2328
        %v2357 = vmul.f32 %v1887, %v2328
        %v2358 = vmul.f32 %v1888, %v2328
        %v2359 = vmul.f32 %v1889, %v2328
        %v2360 = vmul.f32 %v1890, %v2328
        %v2361 = vmul.f32 %v1891, %v2328
        %v2362 = vmul.f32 %v1892, %v2328
        %v2363 = vmul.f32 %v1893, %v2328
        %v2364 = vmul.f32 %v1894, %v2328
        %v2365 = vmul.f32 %v1895, %v2328
        %v2366 = vmul.f32 %v1896, %v2328
        %v2367 = vmul.f32 %v1897, %v2328
        %v2368 = vmul.f32 %v1898, %v2328
        %v2409 = vrot.slane %v2329, 1
        %v2410 = vrot.slane %v2330, 1
        %v2411 = vsel %vm2188, %v2409, %v2410
        %v2412 = vrot.slane %v2331, 1
        %v2413 = vsel %vm2188, %v2410, %v2412
        %v2414 = vrot.slane %v2332, 1
        %v2415 = vsel %vm2188, %v2412, %v2414
        %v2416 = vrot.slane %v2333, 1
        %v2417 = vsel %vm2188, %v2414, %v2416
        %v2418 = vrot.slane %v2334, 1
        %v2419 = vrot.slane %v2335, 1
        %v2420 = vsel %vm2188, %v2418, %v2419
        %v2421 = vrot.slane %v2336, 1
        %v2422 = vsel %vm2188, %v2419, %v2421
        %v2423 = vrot.slane %v2337, 1
        %v2424 = vsel %vm2188, %v2421, %v2423
        %v2425 = vrot.slane %v2338, 1
        %v2426 = vsel %vm2188, %v2423, %v2425
        %v2427 = vrot.slane %v2339, 1
        %v2428 = vrot.slane %v2340, 1
        %v2429 = vsel %vm2188, %v2427, %v2428
        %v2430 = vrot.slane %v2341, 1
        %v2431 = vsel %vm2188, %v2428, %v2430
        %v2432 = vrot.slane %v2342, 1
        %v2433 = vsel %vm2188, %v2430, %v2432
        %v2434 = vrot.slane %v2343, 1
        %v2435 = vsel %vm2188, %v2432, %v2434
        %v2436 = vrot.slane %v2344, 1
        %v2437 = vrot.slane %v2345, 1
        %v2438 = vsel %vm2188, %v2436, %v2437
        %v2439 = vrot.slane %v2346, 1
        %v2440 = vsel %vm2188, %v2437, %v2439
        %v2441 = vrot.slane %v2347, 1
        %v2442 = vsel %vm2188, %v2439, %v2441
        %v2443 = vrot.slane %v2348, 1
        %v2444 = vsel %vm2188, %v2441, %v2443
        %v2445 = vrot.slane %v2349, 1
        %v2446 = vrot.slane %v2350, 1
        %v2447 = vsel %vm2188, %v2445, %v2446
        %v2448 = vrot.slane %v2351, 1
        %v2449 = vsel %vm2188, %v2446, %v2448
        %v2450 = vrot.slane %v2352, 1
        %v2451 = vsel %vm2188, %v2448, %v2450
        %v2452 = vrot.slane %v2353, 1
        %v2453 = vsel %vm2188, %v2450, %v2452
        %v2454 = vrot.slane %v2354, 1
        %v2455 = vrot.slane %v2355, 1
        %v2456 = vsel %vm2188, %v2454, %v2455
        %v2457 = vrot.slane %v2356, 1
        %v2458 = vsel %vm2188, %v2455, %v2457
        %v2459 = vrot.slane %v2357, 1
        %v2460 = vsel %vm2188, %v2457, %v2459
        %v2461 = vrot.slane %v2358, 1
        %v2462 = vsel %vm2188, %v2459, %v2461
        %v2463 = vrot.slane %v2359, 1
        %v2464 = vrot.slane %v2360, 1
        %v2465 = vsel %vm2188, %v2463, %v2464
        %v2466 = vrot.slane %v2361, 1
        %v2467 = vsel %vm2188, %v2464, %v2466
        %v2468 = vrot.slane %v2362, 1
        %v2469 = vsel %vm2188, %v2466, %v2468
        %v2470 = vrot.slane %v2363, 1
        %v2471 = vsel %vm2188, %v2468, %v2470
        %v2472 = vrot.slane %v2364, 1
        %v2473 = vrot.slane %v2365, 1
        %v2474 = vsel %vm2188, %v2472, %v2473
        %v2475 = vrot.slane %v2366, 1
        %v2476 = vsel %vm2188, %v2473, %v2475
        %v2477 = vrot.slane %v2367, 1
        %v2478 = vsel %vm2188, %v2475, %v2477
        %v2479 = vrot.slane %v2368, 1
        %v2480 = vsel %vm2188, %v2477, %v2479
        %v2521 = vadd.f32 %v1580, %v2411
        %v2522 = vadd.f32 %v1581, %v2413
        %v2523 = vadd.f32 %v1582, %v2415
        %v2524 = vadd.f32 %v1583, %v2417
        %v2525 = vadd.f32 %v1584, %v2416
        %v2526 = vadd.f32 %v1585, %v2420
        %v2527 = vadd.f32 %v1586, %v2422
        %v2528 = vadd.f32 %v1587, %v2424
        %v2529 = vadd.f32 %v1588, %v2426
        %v2530 = vadd.f32 %v1589, %v2425
        %v2531 = vadd.f32 %v1590, %v2429
        %v2532 = vadd.f32 %v1591, %v2431
        %v2533 = vadd.f32 %v1592, %v2433
        %v2534 = vadd.f32 %v1593, %v2435
        %v2535 = vadd.f32 %v1594, %v2434
        %v2536 = vadd.f32 %v1595, %v2438
        %v2537 = vadd.f32 %v1596, %v2440
        %v2538 = vadd.f32 %v1597, %v2442
        %v2539 = vadd.f32 %v1598, %v2444
        %v2540 = vadd.f32 %v1599, %v2443
        %v2541 = vadd.f32 %v1600, %v2447
        %v2542 = vadd.f32 %v1601, %v2449
        %v2543 = vadd.f32 %v1602, %v2451
        %v2544 = vadd.f32 %v1603, %v2453
        %v2545 = vadd.f32 %v1604, %v2452
        %v2546 = vadd.f32 %v1605, %v2456
        %v2547 = vadd.f32 %v1606, %v2458
        %v2548 = vadd.f32 %v1607, %v2460
        %v2549 = vadd.f32 %v1608, %v2462
        %v2550 = vadd.f32 %v1609, %v2461
        %v2551 = vadd.f32 %v1610, %v2465
        %v2552 = vadd.f32 %v1611, %v2467
        %v2553 = vadd.f32 %v1612, %v2469
        %v2554 = vadd.f32 %v1613, %v2471
        %v2555 = vadd.f32 %v1614, %v2470
        %v2556 = vadd.f32 %v1615, %v2474
        %v2557 = vadd.f32 %v1616, %v2476
        %v2558 = vadd.f32 %v1617, %v2478
        %v2559 = vadd.f32 %v1618, %v2480
        %v2560 = vadd.f32 %v1619, %v2479
        %v2561 = vlaneseq
        %v2562 = vshrl.u32 %v2561, 7
        %v2563 = vsub.s32 2, %v2562
        %v2564 = vrot.slane %v795, %v2563
        %v2565 = vmul.f32 %v1859, %v2564
        %v2566 = vmul.f32 %v1860, %v2564
        %v2567 = vmul.f32 %v1861, %v2564
        %v2568 = vmul.f32 %v1862, %v2564
        %v2569 = vmul.f32 %v1863, %v2564
        %v2570 = vmul.f32 %v1864, %v2564
        %v2571 = vmul.f32 %v1865, %v2564
        %v2572 = vmul.f32 %v1866, %v2564
        %v2573 = vmul.f32 %v1867, %v2564
        %v2574 = vmul.f32 %v1868, %v2564
        %v2575 = vmul.f32 %v1869, %v2564
        %v2576 = vmul.f32 %v1870, %v2564
        %v2577 = vmul.f32 %v1871, %v2564
        %v2578 = vmul.f32 %v1872, %v2564
        %v2579 = vmul.f32 %v1873, %v2564
        %v2580 = vmul.f32 %v1874, %v2564
        %v2581 = vmul.f32 %v1875, %v2564
        %v2582 = vmul.f32 %v1876, %v2564
        %v2583 = vmul.f32 %v1877, %v2564
        %v2584 = vmul.f32 %v1878, %v2564
        %v2585 = vmul.f32 %v1879, %v2564
        %v2586 = vmul.f32 %v1880, %v2564
        %v2587 = vmul.f32 %v1881, %v2564
        %v2588 = vmul.f32 %v1882, %v2564
        %v2589 = vmul.f32 %v1883, %v2564
        %v2590 = vmul.f32 %v1884, %v2564
        %v2591 = vmul.f32 %v1885, %v2564
        %v2592 = vmul.f32 %v1886, %v2564
        %v2593 = vmul.f32 %v1887, %v2564
        %v2594 = vmul.f32 %v1888, %v2564
        %v2595 = vmul.f32 %v1889, %v2564
        %v2596 = vmul.f32 %v1890, %v2564
        %v2597 = vmul.f32 %v1891, %v2564
        %v2598 = vmul.f32 %v1892, %v2564
        %v2599 = vmul.f32 %v1893, %v2564
        %v2600 = vmul.f32 %v1894, %v2564
        %v2601 = vmul.f32 %v1895, %v2564
        %v2602 = vmul.f32 %v1896, %v2564
        %v2603 = vmul.f32 %v1897, %v2564
        %v2604 = vmul.f32 %v1898, %v2564
        %v2645 = vrot.slane %v2565, 1
        %v2646 = vrot.slane %v2566, 1
        %v2647 = vsel %vm2188, %v2645, %v2646
        %v2648 = vrot.slane %v2567, 1
        %v2649 = vsel %vm2188, %v2646, %v2648
        %v2650 = vrot.slane %v2568, 1
        %v2651 = vsel %vm2188, %v2648, %v2650
        %v2652 = vrot.slane %v2569, 1
        %v2653 = vsel %vm2188, %v2650, %v2652
        %v2654 = vrot.slane %v2570, 1
        %v2655 = vrot.slane %v2571, 1
        %v2656 = vsel %vm2188, %v2654, %v2655
        %v2657 = vrot.slane %v2572, 1
        %v2658 = vsel %vm2188, %v2655, %v2657
        %v2659 = vrot.slane %v2573, 1
        %v2660 = vsel %vm2188, %v2657, %v2659
        %v2661 = vrot.slane %v2574, 1
        %v2662 = vsel %vm2188, %v2659, %v2661
        %v2663 = vrot.slane %v2575, 1
        %v2664 = vrot.slane %v2576, 1
        %v2665 = vsel %vm2188, %v2663, %v2664
        %v2666 = vrot.slane %v2577, 1
        %v2667 = vsel %vm2188, %v2664, %v2666
        %v2668 = vrot.slane %v2578, 1
        %v2669 = vsel %vm2188, %v2666, %v2668
        %v2670 = vrot.slane %v2579, 1
        %v2671 = vsel %vm2188, %v2668, %v2670
        %v2672 = vrot.slane %v2580, 1
        %v2673 = vrot.slane %v2581, 1
        %v2674 = vsel %vm2188, %v2672, %v2673
        %v2675 = vrot.slane %v2582, 1
        %v2676 = vsel %vm2188, %v2673, %v2675
        %v2677 = vrot.slane %v2583, 1
        %v2678 = vsel %vm2188, %v2675, %v2677
        %v2679 = vrot.slane %v2584, 1
        %v2680 = vsel %vm2188, %v2677, %v2679
        %v2681 = vrot.slane %v2585, 1
        %v2682 = vrot.slane %v2586, 1
        %v2683 = vsel %vm2188, %v2681, %v2682
        %v2684 = vrot.slane %v2587, 1
        %v2685 = vsel %vm2188, %v2682, %v2684
        %v2686 = vrot.slane %v2588, 1
        %v2687 = vsel %vm2188, %v2684, %v2686
        %v2688 = vrot.slane %v2589, 1
        %v2689 = vsel %vm2188, %v2686, %v2688
        %v2690 = vrot.slane %v2590, 1
        %v2691 = vrot.slane %v2591, 1
        %v2692 = vsel %vm2188, %v2690, %v2691
        %v2693 = vrot.slane %v2592, 1
        %v2694 = vsel %vm2188, %v2691, %v2693
        %v2695 = vrot.slane %v2593, 1
        %v2696 = vsel %vm2188, %v2693, %v2695
        %v2697 = vrot.slane %v2594, 1
        %v2698 = vsel %vm2188, %v2695, %v2697
        %v2699 = vrot.slane %v2595, 1
        %v2700 = vrot.slane %v2596, 1
        %v2701 = vsel %vm2188, %v2699, %v2700
        %v2702 = vrot.slane %v2597, 1
        %v2703 = vsel %vm2188, %v2700, %v2702
        %v2704 = vrot.slane %v2598, 1
        %v2705 = vsel %vm2188, %v2702, %v2704
        %v2706 = vrot.slane %v2599, 1
        %v2707 = vsel %vm2188, %v2704, %v2706
        %v2708 = vrot.slane %v2600, 1
        %v2709 = vrot.slane %v2601, 1
        %v2710 = vsel %vm2188, %v2708, %v2709
        %v2711 = vrot.slane %v2602, 1
        %v2712 = vsel %vm2188, %v2709, %v2711
        %v2713 = vrot.slane %v2603, 1
        %v2714 = vsel %vm2188, %v2711, %v2713
        %v2715 = vrot.slane %v2604, 1
        %v2716 = vsel %vm2188, %v2713, %v2715
        %v2757 = vadd.f32 %v1816, %v2647
        %v2758 = vadd.f32 %v1817, %v2649
        %v2759 = vadd.f32 %v1818, %v2651
        %v2760 = vadd.f32 %v1819, %v2653
        %v2761 = vadd.f32 %v1820, %v2652
        %v2762 = vadd.f32 %v1821, %v2656
        %v2763 = vadd.f32 %v1822, %v2658
        %v2764 = vadd.f32 %v1823, %v2660
        %v2765 = vadd.f32 %v1824, %v2662
        %v2766 = vadd.f32 %v1825, %v2661
        %v2767 = vadd.f32 %v1826, %v2665
        %v2768 = vadd.f32 %v1827, %v2667
        %v2769 = vadd.f32 %v1828, %v2669
        %v2770 = vadd.f32 %v1829, %v2671
        %v2771 = vadd.f32 %v1830, %v2670
        %v2772 = vadd.f32 %v1831, %v2674
        %v2773 = vadd.f32 %v1832, %v2676
        %v2774 = vadd.f32 %v1833, %v2678
        %v2775 = vadd.f32 %v1834, %v2680
        %v2776 = vadd.f32 %v1835, %v2679
        %v2777 = vadd.f32 %v1836, %v2683
        %v2778 = vadd.f32 %v1837, %v2685
        %v2779 = vadd.f32 %v1838, %v2687
        %v2780 = vadd.f32 %v1839, %v2689
        %v2781 = vadd.f32 %v1840, %v2688
        %v2782 = vadd.f32 %v1841, %v2692
        %v2783 = vadd.f32 %v1842, %v2694
        %v2784 = vadd.f32 %v1843, %v2696
        %v2785 = vadd.f32 %v1844, %v2698
        %v2786 = vadd.f32 %v1845, %v2697
        %v2787 = vadd.f32 %v1846, %v2701
        %v2788 = vadd.f32 %v1847, %v2703
        %v2789 = vadd.f32 %v1848, %v2705
        %v2790 = vadd.f32 %v1849, %v2707
        %v2791 = vadd.f32 %v1850, %v2706
        %v2792 = vadd.f32 %v1851, %v2710
        %v2793 = vadd.f32 %v1852, %v2712
        %v2794 = vadd.f32 %v1853, %v2714
        %v2795 = vadd.f32 %v1854, %v2716
        %v2796 = vadd.f32 %v1855, %v2715
        %v2797 = vlaneseq
        %v2798 = vshrl.u32 %v2797, 7
        %v2799 = vsub.s32 3, %v2798
        %v2800 = vrot.slane %v795, %v2799
        %v2801 = vmul.f32 %v1859, %v2800
        %v2802 = vmul.f32 %v1860, %v2800
        %v2803 = vmul.f32 %v1861, %v2800
        %v2804 = vmul.f32 %v1862, %v2800
        %v2805 = vmul.f32 %v1863, %v2800
        %v2806 = vmul.f32 %v1864, %v2800
        %v2807 = vmul.f32 %v1865, %v2800
        %v2808 = vmul.f32 %v1866, %v2800
        %v2809 = vmul.f32 %v1867, %v2800
        %v2810 = vmul.f32 %v1868, %v2800
        %v2811 = vmul.f32 %v1869, %v2800
        %v2812 = vmul.f32 %v1870, %v2800
        %v2813 = vmul.f32 %v1871, %v2800
        %v2814 = vmul.f32 %v1872, %v2800
        %v2815 = vmul.f32 %v1873, %v2800
        %v2816 = vmul.f32 %v1874, %v2800
        %v2817 = vmul.f32 %v1875, %v2800
        %v2818 = vmul.f32 %v1876, %v2800
        %v2819 = vmul.f32 %v1877, %v2800
        %v2820 = vmul.f32 %v1878, %v2800
        %v2821 = vmul.f32 %v1879, %v2800
        %v2822 = vmul.f32 %v1880, %v2800
        %v2823 = vmul.f32 %v1881, %v2800
        %v2824 = vmul.f32 %v1882, %v2800
        %v2825 = vmul.f32 %v1883, %v2800
        %v2826 = vmul.f32 %v1884, %v2800
        %v2827 = vmul.f32 %v1885, %v2800
        %v2828 = vmul.f32 %v1886, %v2800
        %v2829 = vmul.f32 %v1887, %v2800
        %v2830 = vmul.f32 %v1888, %v2800
        %v2831 = vmul.f32 %v1889, %v2800
        %v2832 = vmul.f32 %v1890, %v2800
        %v2833 = vmul.f32 %v1891, %v2800
        %v2834 = vmul.f32 %v1892, %v2800
        %v2835 = vmul.f32 %v1893, %v2800
        %v2836 = vmul.f32 %v1894, %v2800
        %v2837 = vmul.f32 %v1895, %v2800
        %v2838 = vmul.f32 %v1896, %v2800
        %v2839 = vmul.f32 %v1897, %v2800
        %v2840 = vmul.f32 %v1898, %v2800
        %v2881 = vrot.slane %v2801, 1
        %v2882 = vrot.slane %v2802, 1
        %v2883 = vsel %vm2188, %v2881, %v2882
        %v2884 = vrot.slane %v2803, 1
        %v2885 = vsel %vm2188, %v2882, %v2884
        %v2886 = vrot.slane %v2804, 1
        %v2887 = vsel %vm2188, %v2884, %v2886
        %v2888 = vrot.slane %v2805, 1
        %v2889 = vsel %vm2188, %v2886, %v2888
        %v2890 = vrot.slane %v2806, 1
        %v2891 = vrot.slane %v2807, 1
        %v2892 = vsel %vm2188, %v2890, %v2891
        %v2893 = vrot.slane %v2808, 1
        %v2894 = vsel %vm2188, %v2891, %v2893
        %v2895 = vrot.slane %v2809, 1
        %v2896 = vsel %vm2188, %v2893, %v2895
        %v2897 = vrot.slane %v2810, 1
        %v2898 = vsel %vm2188, %v2895, %v2897
        %v2899 = vrot.slane %v2811, 1
        %v2900 = vrot.slane %v2812, 1
        %v2901 = vsel %vm2188, %v2899, %v2900
        %v2902 = vrot.slane %v2813, 1
        %v2903 = vsel %vm2188, %v2900, %v2902
        %v2904 = vrot.slane %v2814, 1
        %v2905 = vsel %vm2188, %v2902, %v2904
        %v2906 = vrot.slane %v2815, 1
        %v2907 = vsel %vm2188, %v2904, %v2906
        %v2908 = vrot.slane %v2816, 1
        %v2909 = vrot.slane %v2817, 1
        %v2910 = vsel %vm2188, %v2908, %v2909
        %v2911 = vrot.slane %v2818, 1
        %v2912 = vsel %vm2188, %v2909, %v2911
        %v2913 = vrot.slane %v2819, 1
        %v2914 = vsel %vm2188, %v2911, %v2913
        %v2915 = vrot.slane %v2820, 1
        %v2916 = vsel %vm2188, %v2913, %v2915
        %v2917 = vrot.slane %v2821, 1
        %v2918 = vrot.slane %v2822, 1
        %v2919 = vsel %vm2188, %v2917, %v2918
        %v2920 = vrot.slane %v2823, 1
        %v2921 = vsel %vm2188, %v2918, %v2920
        %v2922 = vrot.slane %v2824, 1
        %v2923 = vsel %vm2188, %v2920, %v2922
        %v2924 = vrot.slane %v2825, 1
        %v2925 = vsel %vm2188, %v2922, %v2924
        %v2926 = vrot.slane %v2826, 1
        %v2927 = vrot.slane %v2827, 1
        %v2928 = vsel %vm2188, %v2926, %v2927
        %v2929 = vrot.slane %v2828, 1
        %v2930 = vsel %vm2188, %v2927, %v2929
        %v2931 = vrot.slane %v2829, 1
        %v2932 = vsel %vm2188, %v2929, %v2931
        %v2933 = vrot.slane %v2830, 1
        %v2934 = vsel %vm2188, %v2931, %v2933
        %v2935 = vrot.slane %v2831, 1
        %v2936 = vrot.slane %v2832, 1
        %v2937 = vsel %vm2188, %v2935, %v2936
        %v2938 = vrot.slane %v2833, 1
        %v2939 = vsel %vm2188, %v2936, %v2938
        %v2940 = vrot.slane %v2834, 1
        %v2941 = vsel %vm2188, %v2938, %v2940
        %v2942 = vrot.slane %v2835, 1
        %v2943 = vsel %vm2188, %v2940, %v2942
        %v2944 = vrot.slane %v2836, 1
        %v2945 = vrot.slane %v2837, 1
        %v2946 = vsel %vm2188, %v2944, %v2945
        %v2947 = vrot.slane %v2838, 1
        %v2948 = vsel %vm2188, %v2945, %v2947
        %v2949 = vrot.slane %v2839, 1
        %v2950 = vsel %vm2188, %v2947, %v2949
        %v2951 = vrot.slane %v2840, 1
        %v2952 = vsel %vm2188, %v2949, %v2951
        %v2993 = vadd.f32 %v2064, %v2883
        %v2994 = vadd.f32 %v2065, %v2885
        %v2995 = vadd.f32 %v2066, %v2887
        %v2996 = vadd.f32 %v2067, %v2889
        %v2997 = vadd.f32 %v2068, %v2888
        %v2998 = vadd.f32 %v2069, %v2892
        %v2999 = vadd.f32 %v2070, %v2894
        %v3000 = vadd.f32 %v2071, %v2896
        %v3001 = vadd.f32 %v2072, %v2898
        %v3002 = vadd.f32 %v2073, %v2897
        %v3003 = vadd.f32 %v2074, %v2901
        %v3004 = vadd.f32 %v2075, %v2903
        %v3005 = vadd.f32 %v2076, %v2905
        %v3006 = vadd.f32 %v2077, %v2907
        %v3007 = vadd.f32 %v2078, %v2906
        %v3008 = vadd.f32 %v2079, %v2910
        %v3009 = vadd.f32 %v2080, %v2912
        %v3010 = vadd.f32 %v2081, %v2914
        %v3011 = vadd.f32 %v2082, %v2916
        %v3012 = vadd.f32 %v2083, %v2915
        %v3013 = vadd.f32 %v2084, %v2919
        %v3014 = vadd.f32 %v2085, %v2921
        %v3015 = vadd.f32 %v2086, %v2923
        %v3016 = vadd.f32 %v2087, %v2925
        %v3017 = vadd.f32 %v2088, %v2924
        %v3018 = vadd.f32 %v2089, %v2928
        %v3019 = vadd.f32 %v2090, %v2930
        %v3020 = vadd.f32 %v2091, %v2932
        %v3021 = vadd.f32 %v2092, %v2934
        %v3022 = vadd.f32 %v2093, %v2933
        %v3023 = vadd.f32 %v2094, %v2937
        %v3024 = vadd.f32 %v2095, %v2939
        %v3025 = vadd.f32 %v2096, %v2941
        %v3026 = vadd.f32 %v2097, %v2943
        %v3027 = vadd.f32 %v2098, %v2942
        %v3028 = vadd.f32 %v2099, %v2946
        %v3029 = vadd.f32 %v2100, %v2948
        %v3030 = vadd.f32 %v2101, %v2950
        %v3031 = vadd.f32 %v2102, %v2952
        %v3032 = vadd.f32 %v2103, %v2951
        %v3033 = vlaneseq
        %v3034 = vshrl.u32 %v3033, 7
        %v3035 = vsub.s32 4, %v3034
        %v3036 = vrot.slane %v795, %v3035
        %v3037 = vmul.f32 %v1859, %v3036
        %v3038 = vmul.f32 %v1860, %v3036
        %v3039 = vmul.f32 %v1861, %v3036
        %v3040 = vmul.f32 %v1862, %v3036
        %v3041 = vmul.f32 %v1863, %v3036
        %v3042 = vmul.f32 %v1864, %v3036
        %v3043 = vmul.f32 %v1865, %v3036
        %v3044 = vmul.f32 %v1866, %v3036
        %v3045 = vmul.f32 %v1867, %v3036
        %v3046 = vmul.f32 %v1868, %v3036
        %v3047 = vmul.f32 %v1869, %v3036
        %v3048 = vmul.f32 %v1870, %v3036
        %v3049 = vmul.f32 %v1871, %v3036
        %v3050 = vmul.f32 %v1872, %v3036
        %v3051 = vmul.f32 %v1873, %v3036
        %v3052 = vmul.f32 %v1874, %v3036
        %v3053 = vmul.f32 %v1875, %v3036
        %v3054 = vmul.f32 %v1876, %v3036
        %v3055 = vmul.f32 %v1877, %v3036
        %v3056 = vmul.f32 %v1878, %v3036
        %v3057 = vmul.f32 %v1879, %v3036
        %v3058 = vmul.f32 %v1880, %v3036
        %v3059 = vmul.f32 %v1881, %v3036
        %v3060 = vmul.f32 %v1882, %v3036
        %v3061 = vmul.f32 %v1883, %v3036
        %v3062 = vmul.f32 %v1884, %v3036
        %v3063 = vmul.f32 %v1885, %v3036
        %v3064 = vmul.f32 %v1886, %v3036
        %v3065 = vmul.f32 %v1887, %v3036
        %v3066 = vmul.f32 %v1888, %v3036
        %v3067 = vmul.f32 %v1889, %v3036
        %v3068 = vmul.f32 %v1890, %v3036
        %v3069 = vmul.f32 %v1891, %v3036
        %v3070 = vmul.f32 %v1892, %v3036
        %v3071 = vmul.f32 %v1893, %v3036
        %v3072 = vmul.f32 %v1894, %v3036
        %v3073 = vmul.f32 %v1895, %v3036
        %v3074 = vmul.f32 %v1896, %v3036
        %v3075 = vmul.f32 %v1897, %v3036
        %v3076 = vmul.f32 %v1898, %v3036
        %v3117 = vrot.slane %v3037, 5
        %v3118 = vrot.slane %v3038, 5
        %v3119 = vsel %vm1967, %v3117, %v3118
        %v3120 = vrot.slane %v3039, 5
        %v3121 = vsel %vm1967, %v3118, %v3120
        %v3122 = vrot.slane %v3040, 5
        %v3123 = vsel %vm1967, %v3120, %v3122
        %v3124 = vrot.slane %v3041, 5
        %v3125 = vsel %vm1967, %v3122, %v3124
        %v3126 = vrot.slane %v3042, 5
        %v3127 = vrot.slane %v3043, 5
        %v3128 = vsel %vm1967, %v3126, %v3127
        %v3129 = vrot.slane %v3044, 5
        %v3130 = vsel %vm1967, %v3127, %v3129
        %v3131 = vrot.slane %v3045, 5
        %v3132 = vsel %vm1967, %v3129, %v3131
        %v3133 = vrot.slane %v3046, 5
        %v3134 = vsel %vm1967, %v3131, %v3133
        %v3135 = vrot.slane %v3047, 5
        %v3136 = vrot.slane %v3048, 5
        %v3137 = vsel %vm1967, %v3135, %v3136
        %v3138 = vrot.slane %v3049, 5
        %v3139 = vsel %vm1967, %v3136, %v3138
        %v3140 = vrot.slane %v3050, 5
        %v3141 = vsel %vm1967, %v3138, %v3140
        %v3142 = vrot.slane %v3051, 5
        %v3143 = vsel %vm1967, %v3140, %v3142
        %v3144 = vrot.slane %v3052, 5
        %v3145 = vrot.slane %v3053, 5
        %v3146 = vsel %vm1967, %v3144, %v3145
        %v3147 = vrot.slane %v3054, 5
        %v3148 = vsel %vm1967, %v3145, %v3147
        %v3149 = vrot.slane %v3055, 5
        %v3150 = vsel %vm1967, %v3147, %v3149
        %v3151 = vrot.slane %v3056, 5
        %v3152 = vsel %vm1967, %v3149, %v3151
        %v3153 = vrot.slane %v3057, 5
        %v3154 = vrot.slane %v3058, 5
        %v3155 = vsel %vm1967, %v3153, %v3154
        %v3156 = vrot.slane %v3059, 5
        %v3157 = vsel %vm1967, %v3154, %v3156
        %v3158 = vrot.slane %v3060, 5
        %v3159 = vsel %vm1967, %v3156, %v3158
        %v3160 = vrot.slane %v3061, 5
        %v3161 = vsel %vm1967, %v3158, %v3160
        %v3162 = vrot.slane %v3062, 5
        %v3163 = vrot.slane %v3063, 5
        %v3164 = vsel %vm1967, %v3162, %v3163
        %v3165 = vrot.slane %v3064, 5
        %v3166 = vsel %vm1967, %v3163, %v3165
        %v3167 = vrot.slane %v3065, 5
        %v3168 = vsel %vm1967, %v3165, %v3167
        %v3169 = vrot.slane %v3066, 5
        %v3170 = vsel %vm1967, %v3167, %v3169
        %v3171 = vrot.slane %v3067, 5
        %v3172 = vrot.slane %v3068, 5
        %v3173 = vsel %vm1967, %v3171, %v3172
        %v3174 = vrot.slane %v3069, 5
        %v3175 = vsel %vm1967, %v3172, %v3174
        %v3176 = vrot.slane %v3070, 5
        %v3177 = vsel %vm1967, %v3174, %v3176
        %v3178 = vrot.slane %v3071, 5
        %v3179 = vsel %vm1967, %v3176, %v3178
        %v3180 = vrot.slane %v3072, 5
        %v3181 = vrot.slane %v3073, 5
        %v3182 = vsel %vm1967, %v3180, %v3181
        %v3183 = vrot.slane %v3074, 5
        %v3184 = vsel %vm1967, %v3181, %v3183
        %v3185 = vrot.slane %v3075, 5
        %v3186 = vsel %vm1967, %v3183, %v3185
        %v3187 = vrot.slane %v3076, 5
        %v3188 = vsel %vm1967, %v3185, %v3187
        %v3221 = vadd.f32 %v2293, %v3119
        %v3222 = vadd.f32 %v2294, %v3121
        %v3223 = vadd.f32 %v2295, %v3123
        %v3224 = vadd.f32 %v2296, %v3125
        %v3225 = vadd.f32 %v2297, %v3128
        %v3226 = vadd.f32 %v2298, %v3130
        %v3227 = vadd.f32 %v2299, %v3132
        %v3228 = vadd.f32 %v2300, %v3134
        %v3229 = vadd.f32 %v2301, %v3137
        %v3230 = vadd.f32 %v2302, %v3139
        %v3231 = vadd.f32 %v2303, %v3141
        %v3232 = vadd.f32 %v2304, %v3143
        %v3233 = vadd.f32 %v2305, %v3146
        %v3234 = vadd.f32 %v2306, %v3148
        %v3235 = vadd.f32 %v2307, %v3150
        %v3236 = vadd.f32 %v2308, %v3152
        %v3237 = vadd.f32 %v2309, %v3155
        %v3238 = vadd.f32 %v2310, %v3157
        %v3239 = vadd.f32 %v2311, %v3159
        %v3240 = vadd.f32 %v2312, %v3161
        %v3241 = vadd.f32 %v2313, %v3164
        %v3242 = vadd.f32 %v2314, %v3166
        %v3243 = vadd.f32 %v2315, %v3168
        %v3244 = vadd.f32 %v2316, %v3170
        %v3245 = vadd.f32 %v2317, %v3173
        %v3246 = vadd.f32 %v2318, %v3175
        %v3247 = vadd.f32 %v2319, %v3177
        %v3248 = vadd.f32 %v2320, %v3179
        %v3249 = vadd.f32 %v2321, %v3182
        %v3250 = vadd.f32 %v2322, %v3184
        %v3251 = vadd.f32 %v2323, %v3186
        %v3252 = vadd.f32 %v2324, %v3188
        %v3253 = vlaneseq
        %v3254 = vshrl.u32 %v3253, 7
        %v3255 = vsub.s32 5, %v3254
        %v3256 = vrot.slane %v795, %v3255
        %v3257 = vmul.f32 %v1859, %v3256
        %v3258 = vmul.f32 %v1860, %v3256
        %v3259 = vmul.f32 %v1861, %v3256
        %v3260 = vmul.f32 %v1862, %v3256
        %v3261 = vmul.f32 %v1863, %v3256
        %v3262 = vmul.f32 %v1864, %v3256
        %v3263 = vmul.f32 %v1865, %v3256
        %v3264 = vmul.f32 %v1866, %v3256
        %v3265 = vmul.f32 %v1867, %v3256
        %v3266 = vmul.f32 %v1868, %v3256
        %v3267 = vmul.f32 %v1869, %v3256
        %v3268 = vmul.f32 %v1870, %v3256
        %v3269 = vmul.f32 %v1871, %v3256
        %v3270 = vmul.f32 %v1872, %v3256
        %v3271 = vmul.f32 %v1873, %v3256
        %v3272 = vmul.f32 %v1874, %v3256
        %v3273 = vmul.f32 %v1875, %v3256
        %v3274 = vmul.f32 %v1876, %v3256
        %v3275 = vmul.f32 %v1877, %v3256
        %v3276 = vmul.f32 %v1878, %v3256
        %v3277 = vmul.f32 %v1879, %v3256
        %v3278 = vmul.f32 %v1880, %v3256
        %v3279 = vmul.f32 %v1881, %v3256
        %v3280 = vmul.f32 %v1882, %v3256
        %v3281 = vmul.f32 %v1883, %v3256
        %v3282 = vmul.f32 %v1884, %v3256
        %v3283 = vmul.f32 %v1885, %v3256
        %v3284 = vmul.f32 %v1886, %v3256
        %v3285 = vmul.f32 %v1887, %v3256
        %v3286 = vmul.f32 %v1888, %v3256
        %v3287 = vmul.f32 %v1889, %v3256
        %v3288 = vmul.f32 %v1890, %v3256
        %v3289 = vmul.f32 %v1891, %v3256
        %v3290 = vmul.f32 %v1892, %v3256
        %v3291 = vmul.f32 %v1893, %v3256
        %v3292 = vmul.f32 %v1894, %v3256
        %v3293 = vmul.f32 %v1895, %v3256
        %v3294 = vmul.f32 %v1896, %v3256
        %v3295 = vmul.f32 %v1897, %v3256
        %v3296 = vmul.f32 %v1898, %v3256
        %v3337 = vrot.slane %v3257, 5
        %v3338 = vrot.slane %v3258, 5
        %v3339 = vsel %vm1967, %v3337, %v3338
        %v3340 = vrot.slane %v3259, 5
        %v3341 = vsel %vm1967, %v3338, %v3340
        %v3342 = vrot.slane %v3260, 5
        %v3343 = vsel %vm1967, %v3340, %v3342
        %v3344 = vrot.slane %v3261, 5
        %v3345 = vsel %vm1967, %v3342, %v3344
        %v3346 = vrot.slane %v3262, 5
        %v3347 = vrot.slane %v3263, 5
        %v3348 = vsel %vm1967, %v3346, %v3347
        %v3349 = vrot.slane %v3264, 5
        %v3350 = vsel %vm1967, %v3347, %v3349
        %v3351 = vrot.slane %v3265, 5
        %v3352 = vsel %vm1967, %v3349, %v3351
        %v3353 = vrot.slane %v3266, 5
        %v3354 = vsel %vm1967, %v3351, %v3353
        %v3355 = vrot.slane %v3267, 5
        %v3356 = vrot.slane %v3268, 5
        %v3357 = vsel %vm1967, %v3355, %v3356
        %v3358 = vrot.slane %v3269, 5
        %v3359 = vsel %vm1967, %v3356, %v3358
        %v3360 = vrot.slane %v3270, 5
        %v3361 = vsel %vm1967, %v3358, %v3360
        %v3362 = vrot.slane %v3271, 5
        %v3363 = vsel %vm1967, %v3360, %v3362
        %v3364 = vrot.slane %v3272, 5
        %v3365 = vrot.slane %v3273, 5
        %v3366 = vsel %vm1967, %v3364, %v3365
        %v3367 = vrot.slane %v3274, 5
        %v3368 = vsel %vm1967, %v3365, %v3367
        %v3369 = vrot.slane %v3275, 5
        %v3370 = vsel %vm1967, %v3367, %v3369
        %v3371 = vrot.slane %v3276, 5
        %v3372 = vsel %vm1967, %v3369, %v3371
        %v3373 = vrot.slane %v3277, 5
        %v3374 = vrot.slane %v3278, 5
        %v3375 = vsel %vm1967, %v3373, %v3374
        %v3376 = vrot.slane %v3279, 5
        %v3377 = vsel %vm1967, %v3374, %v3376
        %v3378 = vrot.slane %v3280, 5
        %v3379 = vsel %vm1967, %v3376, %v3378
        %v3380 = vrot.slane %v3281, 5
        %v3381 = vsel %vm1967, %v3378, %v3380
        %v3382 = vrot.slane %v3282, 5
        %v3383 = vrot.slane %v3283, 5
        %v3384 = vsel %vm1967, %v3382, %v3383
        %v3385 = vrot.slane %v3284, 5
        %v3386 = vsel %vm1967, %v3383, %v3385
        %v3387 = vrot.slane %v3285, 5
        %v3388 = vsel %vm1967, %v3385, %v3387
        %v3389 = vrot.slane %v3286, 5
        %v3390 = vsel %vm1967, %v3387, %v3389
        %v3391 = vrot.slane %v3287, 5
        %v3392 = vrot.slane %v3288, 5
        %v3393 = vsel %vm1967, %v3391, %v3392
        %v3394 = vrot.slane %v3289, 5
        %v3395 = vsel %vm1967, %v3392, %v3394
        %v3396 = vrot.slane %v3290, 5
        %v3397 = vsel %vm1967, %v3394, %v3396
        %v3398 = vrot.slane %v3291, 5
        %v3399 = vsel %vm1967, %v3396, %v3398
        %v3400 = vrot.slane %v3292, 5
        %v3401 = vrot.slane %v3293, 5
        %v3402 = vsel %vm1967, %v3400, %v3401
        %v3403 = vrot.slane %v3294, 5
        %v3404 = vsel %vm1967, %v3401, %v3403
        %v3405 = vrot.slane %v3295, 5
        %v3406 = vsel %vm1967, %v3403, %v3405
        %v3407 = vrot.slane %v3296, 5
        %v3408 = vsel %vm1967, %v3405, %v3407
        %v3449 = vadd.f32 %v2521, %v3339
        %v3450 = vadd.f32 %v2522, %v3341
        %v3451 = vadd.f32 %v2523, %v3343
        %v3452 = vadd.f32 %v2524, %v3345
        %v3453 = vadd.f32 %v2525, %v3344
        %v3454 = vadd.f32 %v2526, %v3348
        %v3455 = vadd.f32 %v2527, %v3350
        %v3456 = vadd.f32 %v2528, %v3352
        %v3457 = vadd.f32 %v2529, %v3354
        %v3458 = vadd.f32 %v2530, %v3353
        %v3459 = vadd.f32 %v2531, %v3357
        %v3460 = vadd.f32 %v2532, %v3359
        %v3461 = vadd.f32 %v2533, %v3361
        %v3462 = vadd.f32 %v2534, %v3363
        %v3463 = vadd.f32 %v2535, %v3362
        %v3464 = vadd.f32 %v2536, %v3366
        %v3465 = vadd.f32 %v2537, %v3368
        %v3466 = vadd.f32 %v2538, %v3370
        %v3467 = vadd.f32 %v2539, %v3372
        %v3468 = vadd.f32 %v2540, %v3371
        %v3469 = vadd.f32 %v2541, %v3375
        %v3470 = vadd.f32 %v2542, %v3377
        %v3471 = vadd.f32 %v2543, %v3379
        %v3472 = vadd.f32 %v2544, %v3381
        %v3473 = vadd.f32 %v2545, %v3380
        %v3474 = vadd.f32 %v2546, %v3384
        %v3475 = vadd.f32 %v2547, %v3386
        %v3476 = vadd.f32 %v2548, %v3388
        %v3477 = vadd.f32 %v2549, %v3390
        %v3478 = vadd.f32 %v2550, %v3389
        %v3479 = vadd.f32 %v2551, %v3393
        %v3480 = vadd.f32 %v2552, %v3395
        %v3481 = vadd.f32 %v2553, %v3397
        %v3482 = vadd.f32 %v2554, %v3399
        %v3483 = vadd.f32 %v2555, %v3398
        %v3484 = vadd.f32 %v2556, %v3402
        %v3485 = vadd.f32 %v2557, %v3404
        %v3486 = vadd.f32 %v2558, %v3406
        %v3487 = vadd.f32 %v2559, %v3408
        %v3488 = vadd.f32 %v2560, %v3407
        %s3489 = sadd.s32 %s793, 2
        %s3490 = smul.u32 %s3489, 40
        %s3491 = scalar_lea.vmem [#allocation2], %s3490
        %v3492 = vld [vmem:[%s3491] sm:$0xff]
        %v3493 = vld [vmem:[%s3491 + $0x8] sm:$0xff]
        %v3494 = vld [vmem:[%s3491 + $0x10] sm:$0xff]
        %v3495 = vld [vmem:[%s3491 + $0x18] sm:$0xff]
        %v3496 = vld [vmem:[%s3491 + $0x20] sm:$0x3f]
        %v3497 = vld [vmem:[%s3491 + $0x28] sm:$0xff]
        %v3498 = vld [vmem:[%s3491 + $0x30] sm:$0xff]
        %v3499 = vld [vmem:[%s3491 + $0x38] sm:$0xff]
        %v3500 = vld [vmem:[%s3491 + $0x40] sm:$0xff]
        %v3501 = vld [vmem:[%s3491 + $0x48] sm:$0x3f]
        %v3502 = vld [vmem:[%s3491 + $0x50] sm:$0xff]
        %v3503 = vld [vmem:[%s3491 + $0x58] sm:$0xff]
        %v3504 = vld [vmem:[%s3491 + $0x60] sm:$0xff]
        %v3505 = vld [vmem:[%s3491 + $0x68] sm:$0xff]
        %v3506 = vld [vmem:[%s3491 + $0x70] sm:$0x3f]
        %v3507 = vld [vmem:[%s3491 + $0x78] sm:$0xff]
        %v3508 = vld [vmem:[%s3491 + $0x80] sm:$0xff]
        %v3509 = vld [vmem:[%s3491 + $0x88] sm:$0xff]
        %v3510 = vld [vmem:[%s3491 + $0x90] sm:$0xff]
        %v3511 = vld [vmem:[%s3491 + $0x98] sm:$0x3f]
        %v3512 = vld [vmem:[%s3491 + $0xa0] sm:$0xff]
        %v3513 = vld [vmem:[%s3491 + $0xa8] sm:$0xff]
        %v3514 = vld [vmem:[%s3491 + $0xb0] sm:$0xff]
        %v3515 = vld [vmem:[%s3491 + $0xb8] sm:$0xff]
        %v3516 = vld [vmem:[%s3491 + $0xc0] sm:$0x3f]
        %v3517 = vld [vmem:[%s3491 + $0xc8] sm:$0xff]
        %v3518 = vld [vmem:[%s3491 + $0xd0] sm:$0xff]
        %v3519 = vld [vmem:[%s3491 + $0xd8] sm:$0xff]
        %v3520 = vld [vmem:[%s3491 + $0xe0] sm:$0xff]
        %v3521 = vld [vmem:[%s3491 + $0xe8] sm:$0x3f]
        %v3522 = vld [vmem:[%s3491 + $0xf0] sm:$0xff]
        %v3523 = vld [vmem:[%s3491 + $0xf8] sm:$0xff]
        %v3524 = vld [vmem:[%s3491 + $0x100] sm:$0xff]
        %v3525 = vld [vmem:[%s3491 + $0x108] sm:$0xff]
        %v3526 = vld [vmem:[%s3491 + $0x110] sm:$0x3f]
        %v3527 = vld [vmem:[%s3491 + $0x118] sm:$0xff]
        %v3528 = vld [vmem:[%s3491 + $0x120] sm:$0xff]
        %v3529 = vld [vmem:[%s3491 + $0x128] sm:$0xff]
        %v3530 = vld [vmem:[%s3491 + $0x130] sm:$0xff]
        %v3531 = vld [vmem:[%s3491 + $0x138] sm:$0x3f]
        %v3532 = vlaneseq
        %v3533 = vshrl.u32 %v3532, 7
        %v3534 = vsub.s32 6, %v3533
        %v3535 = vrot.slane %v795, %v3534
        %v3536 = vmul.f32 %v3492, %v3535
        %v3537 = vmul.f32 %v3493, %v3535
        %v3538 = vmul.f32 %v3494, %v3535
        %v3539 = vmul.f32 %v3495, %v3535
        %v3540 = vmul.f32 %v3497, %v3535
        %v3541 = vmul.f32 %v3498, %v3535
        %v3542 = vmul.f32 %v3499, %v3535
        %v3543 = vmul.f32 %v3500, %v3535
        %v3544 = vmul.f32 %v3502, %v3535
        %v3545 = vmul.f32 %v3503, %v3535
        %v3546 = vmul.f32 %v3504, %v3535
        %v3547 = vmul.f32 %v3505, %v3535
        %v3548 = vmul.f32 %v3507, %v3535
        %v3549 = vmul.f32 %v3508, %v3535
        %v3550 = vmul.f32 %v3509, %v3535
        %v3551 = vmul.f32 %v3510, %v3535
        %v3552 = vmul.f32 %v3512, %v3535
        %v3553 = vmul.f32 %v3513, %v3535
        %v3554 = vmul.f32 %v3514, %v3535
        %v3555 = vmul.f32 %v3515, %v3535
        %v3556 = vmul.f32 %v3517, %v3535
        %v3557 = vmul.f32 %v3518, %v3535
        %v3558 = vmul.f32 %v3519, %v3535
        %v3559 = vmul.f32 %v3520, %v3535
        %v3560 = vmul.f32 %v3522, %v3535
        %v3561 = vmul.f32 %v3523, %v3535
        %v3562 = vmul.f32 %v3524, %v3535
        %v3563 = vmul.f32 %v3525, %v3535
        %v3564 = vmul.f32 %v3527, %v3535
        %v3565 = vmul.f32 %v3528, %v3535
        %v3566 = vmul.f32 %v3529, %v3535
        %v3567 = vmul.f32 %v3530, %v3535
        %vm3600 = vcmask 1041408
        %v3601 = vrot.slane %v3536, 6
        %v3602 = vrot.slane %v3537, 6
        %v3603 = vsel %vm3600, %v3601, %v3602
        %v3604 = vrot.slane %v3538, 6
        %v3605 = vsel %vm3600, %v3602, %v3604
        %v3606 = vrot.slane %v3539, 6
        %v3607 = vsel %vm3600, %v3604, %v3606
        %v3608 = vrot.slane %v3540, 6
        %v3609 = vrot.slane %v3541, 6
        %v3610 = vsel %vm3600, %v3608, %v3609
        %v3611 = vrot.slane %v3542, 6
        %v3612 = vsel %vm3600, %v3609, %v3611
        %v3613 = vrot.slane %v3543, 6
        %v3614 = vsel %vm3600, %v3611, %v3613
        %v3615 = vrot.slane %v3544, 6
        %v3616 = vrot.slane %v3545, 6
        %v3617 = vsel %vm3600, %v3615, %v3616
        %v3618 = vrot.slane %v3546, 6
        %v3619 = vsel %vm3600, %v3616, %v3618
        %v3620 = vrot.slane %v3547, 6
        %v3621 = vsel %vm3600, %v3618, %v3620
        %v3622 = vrot.slane %v3548, 6
        %v3623 = vrot.slane %v3549, 6
        %v3624 = vsel %vm3600, %v3622, %v3623
        %v3625 = vrot.slane %v3550, 6
        %v3626 = vsel %vm3600, %v3623, %v3625
        %v3627 = vrot.slane %v3551, 6
        %v3628 = vsel %vm3600, %v3625, %v3627
        %v3629 = vrot.slane %v3552, 6
        %v3630 = vrot.slane %v3553, 6
        %v3631 = vsel %vm3600, %v3629, %v3630
        %v3632 = vrot.slane %v3554, 6
        %v3633 = vsel %vm3600, %v3630, %v3632
        %v3634 = vrot.slane %v3555, 6
        %v3635 = vsel %vm3600, %v3632, %v3634
        %v3636 = vrot.slane %v3556, 6
        %v3637 = vrot.slane %v3557, 6
        %v3638 = vsel %vm3600, %v3636, %v3637
        %v3639 = vrot.slane %v3558, 6
        %v3640 = vsel %vm3600, %v3637, %v3639
        %v3641 = vrot.slane %v3559, 6
        %v3642 = vsel %vm3600, %v3639, %v3641
        %v3643 = vrot.slane %v3560, 6
        %v3644 = vrot.slane %v3561, 6
        %v3645 = vsel %vm3600, %v3643, %v3644
        %v3646 = vrot.slane %v3562, 6
        %v3647 = vsel %vm3600, %v3644, %v3646
        %v3648 = vrot.slane %v3563, 6
        %v3649 = vsel %vm3600, %v3646, %v3648
        %v3650 = vrot.slane %v3564, 6
        %v3651 = vrot.slane %v3565, 6
        %v3652 = vsel %vm3600, %v3650, %v3651
        %v3653 = vrot.slane %v3566, 6
        %v3654 = vsel %vm3600, %v3651, %v3653
        %v3655 = vrot.slane %v3567, 6
        %v3656 = vsel %vm3600, %v3653, %v3655
        %v3697 = vadd.f32 %v2757, %v3601
        %v3698 = vadd.f32 %v2758, %v3603
        %v3699 = vadd.f32 %v2759, %v3605
        %v3700 = vadd.f32 %v2760, %v3607
        %v3701 = vadd.f32 %v2761, %v3606
        %v3702 = vadd.f32 %v2762, %v3608
        %v3703 = vadd.f32 %v2763, %v3610
        %v3704 = vadd.f32 %v2764, %v3612
        %v3705 = vadd.f32 %v2765, %v3614
        %v3706 = vadd.f32 %v2766, %v3613
        %v3707 = vadd.f32 %v2767, %v3615
        %v3708 = vadd.f32 %v2768, %v3617
        %v3709 = vadd.f32 %v2769, %v3619
        %v3710 = vadd.f32 %v2770, %v3621
        %v3711 = vadd.f32 %v2771, %v3620
        %v3712 = vadd.f32 %v2772, %v3622
        %v3713 = vadd.f32 %v2773, %v3624
        %v3714 = vadd.f32 %v2774, %v3626
        %v3715 = vadd.f32 %v2775, %v3628
        %v3716 = vadd.f32 %v2776, %v3627
        %v3717 = vadd.f32 %v2777, %v3629
        %v3718 = vadd.f32 %v2778, %v3631
        %v3719 = vadd.f32 %v2779, %v3633
        %v3720 = vadd.f32 %v2780, %v3635
        %v3721 = vadd.f32 %v2781, %v3634
        %v3722 = vadd.f32 %v2782, %v3636
        %v3723 = vadd.f32 %v2783, %v3638
        %v3724 = vadd.f32 %v2784, %v3640
        %v3725 = vadd.f32 %v2785, %v3642
        %v3726 = vadd.f32 %v2786, %v3641
        %v3727 = vadd.f32 %v2787, %v3643
        %v3728 = vadd.f32 %v2788, %v3645
        %v3729 = vadd.f32 %v2789, %v3647
        %v3730 = vadd.f32 %v2790, %v3649
        %v3731 = vadd.f32 %v2791, %v3648
        %v3732 = vadd.f32 %v2792, %v3650
        %v3733 = vadd.f32 %v2793, %v3652
        %v3734 = vadd.f32 %v2794, %v3654
        %v3735 = vadd.f32 %v2795, %v3656
        %v3736 = vadd.f32 %v2796, %v3655
        %v3737 = vlaneseq
        %v3738 = vshrl.u32 %v3737, 7
        %v3739 = vsub.s32 7, %v3738
        %v3740 = vrot.slane %v795, %v3739
        %v3741 = vmul.f32 %v3492, %v3740
        %v3742 = vmul.f32 %v3493, %v3740
        %v3743 = vmul.f32 %v3494, %v3740
        %v3744 = vmul.f32 %v3495, %v3740
        %v3745 = vmul.f32 %v3496, %v3740
        %v3746 = vmul.f32 %v3497, %v3740
        %v3747 = vmul.f32 %v3498, %v3740
        %v3748 = vmul.f32 %v3499, %v3740
        %v3749 = vmul.f32 %v3500, %v3740
        %v3750 = vmul.f32 %v3501, %v3740
        %v3751 = vmul.f32 %v3502, %v3740
        %v3752 = vmul.f32 %v3503, %v3740
        %v3753 = vmul.f32 %v3504, %v3740
        %v3754 = vmul.f32 %v3505, %v3740
        %v3755 = vmul.f32 %v3506, %v3740
        %v3756 = vmul.f32 %v3507, %v3740
        %v3757 = vmul.f32 %v3508, %v3740
        %v3758 = vmul.f32 %v3509, %v3740
        %v3759 = vmul.f32 %v3510, %v3740
        %v3760 = vmul.f32 %v3511, %v3740
        %v3761 = vmul.f32 %v3512, %v3740
        %v3762 = vmul.f32 %v3513, %v3740
        %v3763 = vmul.f32 %v3514, %v3740
        %v3764 = vmul.f32 %v3515, %v3740
        %v3765 = vmul.f32 %v3516, %v3740
        %v3766 = vmul.f32 %v3517, %v3740
        %v3767 = vmul.f32 %v3518, %v3740
        %v3768 = vmul.f32 %v3519, %v3740
        %v3769 = vmul.f32 %v3520, %v3740
        %v3770 = vmul.f32 %v3521, %v3740
        %v3771 = vmul.f32 %v3522, %v3740
        %v3772 = vmul.f32 %v3523, %v3740
        %v3773 = vmul.f32 %v3524, %v3740
        %v3774 = vmul.f32 %v3525, %v3740
        %v3775 = vmul.f32 %v3526, %v3740
        %v3776 = vmul.f32 %v3527, %v3740
        %v3777 = vmul.f32 %v3528, %v3740
        %v3778 = vmul.f32 %v3529, %v3740
        %v3779 = vmul.f32 %v3530, %v3740
        %v3780 = vmul.f32 %v3531, %v3740
        %v3821 = vrot.slane %v3741, 6
        %v3822 = vrot.slane %v3742, 6
        %v3823 = vsel %vm3600, %v3821, %v3822
        %v3824 = vrot.slane %v3743, 6
        %v3825 = vsel %vm3600, %v3822, %v3824
        %v3826 = vrot.slane %v3744, 6
        %v3827 = vsel %vm3600, %v3824, %v3826
        %v3828 = vrot.slane %v3745, 6
        %v3829 = vsel %vm3600, %v3826, %v3828
        %v3830 = vrot.slane %v3746, 6
        %v3831 = vrot.slane %v3747, 6
        %v3832 = vsel %vm3600, %v3830, %v3831
        %v3833 = vrot.slane %v3748, 6
        %v3834 = vsel %vm3600, %v3831, %v3833
        %v3835 = vrot.slane %v3749, 6
        %v3836 = vsel %vm3600, %v3833, %v3835
        %v3837 = vrot.slane %v3750, 6
        %v3838 = vsel %vm3600, %v3835, %v3837
        %v3839 = vrot.slane %v3751, 6
        %v3840 = vrot.slane %v3752, 6
        %v3841 = vsel %vm3600, %v3839, %v3840
        %v3842 = vrot.slane %v3753, 6
        %v3843 = vsel %vm3600, %v3840, %v3842
        %v3844 = vrot.slane %v3754, 6
        %v3845 = vsel %vm3600, %v3842, %v3844
        %v3846 = vrot.slane %v3755, 6
        %v3847 = vsel %vm3600, %v3844, %v3846
        %v3848 = vrot.slane %v3756, 6
        %v3849 = vrot.slane %v3757, 6
        %v3850 = vsel %vm3600, %v3848, %v3849
        %v3851 = vrot.slane %v3758, 6
        %v3852 = vsel %vm3600, %v3849, %v3851
        %v3853 = vrot.slane %v3759, 6
        %v3854 = vsel %vm3600, %v3851, %v3853
        %v3855 = vrot.slane %v3760, 6
        %v3856 = vsel %vm3600, %v3853, %v3855
        %v3857 = vrot.slane %v3761, 6
        %v3858 = vrot.slane %v3762, 6
        %v3859 = vsel %vm3600, %v3857, %v3858
        %v3860 = vrot.slane %v3763, 6
        %v3861 = vsel %vm3600, %v3858, %v3860
        %v3862 = vrot.slane %v3764, 6
        %v3863 = vsel %vm3600, %v3860, %v3862
        %v3864 = vrot.slane %v3765, 6
        %v3865 = vsel %vm3600, %v3862, %v3864
        %v3866 = vrot.slane %v3766, 6
        %v3867 = vrot.slane %v3767, 6
        %v3868 = vsel %vm3600, %v3866, %v3867
        %v3869 = vrot.slane %v3768, 6
        %v3870 = vsel %vm3600, %v3867, %v3869
        %v3871 = vrot.slane %v3769, 6
        %v3872 = vsel %vm3600, %v3869, %v3871
        %v3873 = vrot.slane %v3770, 6
        %v3874 = vsel %vm3600, %v3871, %v3873
        %v3875 = vrot.slane %v3771, 6
        %v3876 = vrot.slane %v3772, 6
        %v3877 = vsel %vm3600, %v3875, %v3876
        %v3878 = vrot.slane %v3773, 6
        %v3879 = vsel %vm3600, %v3876, %v3878
        %v3880 = vrot.slane %v3774, 6
        %v3881 = vsel %vm3600, %v3878, %v3880
        %v3882 = vrot.slane %v3775, 6
        %v3883 = vsel %vm3600, %v3880, %v3882
        %v3884 = vrot.slane %v3776, 6
        %v3885 = vrot.slane %v3777, 6
        %v3886 = vsel %vm3600, %v3884, %v3885
        %v3887 = vrot.slane %v3778, 6
        %v3888 = vsel %vm3600, %v3885, %v3887
        %v3889 = vrot.slane %v3779, 6
        %v3890 = vsel %vm3600, %v3887, %v3889
        %v3891 = vrot.slane %v3780, 6
        %v3892 = vsel %vm3600, %v3889, %v3891
        %v3933 = vadd.f32 %v2993, %v3821
        %v3934 = vadd.f32 %v2994, %v3823
        %v3935 = vadd.f32 %v2995, %v3825
        %v3936 = vadd.f32 %v2996, %v3827
        %v3937 = vadd.f32 %v2997, %v3829
        %v3938 = vadd.f32 %v2998, %v3830
        %v3939 = vadd.f32 %v2999, %v3832
        %v3940 = vadd.f32 %v3000, %v3834
        %v3941 = vadd.f32 %v3001, %v3836
        %v3942 = vadd.f32 %v3002, %v3838
        %v3943 = vadd.f32 %v3003, %v3839
        %v3944 = vadd.f32 %v3004, %v3841
        %v3945 = vadd.f32 %v3005, %v3843
        %v3946 = vadd.f32 %v3006, %v3845
        %v3947 = vadd.f32 %v3007, %v3847
        %v3948 = vadd.f32 %v3008, %v3848
        %v3949 = vadd.f32 %v3009, %v3850
        %v3950 = vadd.f32 %v3010, %v3852
        %v3951 = vadd.f32 %v3011, %v3854
        %v3952 = vadd.f32 %v3012, %v3856
        %v3953 = vadd.f32 %v3013, %v3857
        %v3954 = vadd.f32 %v3014, %v3859
        %v3955 = vadd.f32 %v3015, %v3861
        %v3956 = vadd.f32 %v3016, %v3863
        %v3957 = vadd.f32 %v3017, %v3865
        %v3958 = vadd.f32 %v3018, %v3866
        %v3959 = vadd.f32 %v3019, %v3868
        %v3960 = vadd.f32 %v3020, %v3870
        %v3961 = vadd.f32 %v3021, %v3872
        %v3962 = vadd.f32 %v3022, %v3874
        %v3963 = vadd.f32 %v3023, %v3875
        %v3964 = vadd.f32 %v3024, %v3877
        %v3965 = vadd.f32 %v3025, %v3879
        %v3966 = vadd.f32 %v3026, %v3881
        %v3967 = vadd.f32 %v3027, %v3883
        %v3968 = vadd.f32 %v3028, %v3884
        %v3969 = vadd.f32 %v3029, %v3886
        %v3970 = vadd.f32 %v3030, %v3888
        %v3971 = vadd.f32 %v3031, %v3890
        %v3972 = vadd.f32 %v3032, %v3892
        %v3973 = vlaneseq
        %v3974 = vshrl.u32 %v3973, 7
        %v3975 = vsub.s32 0, %v3974
        %v3976 = vrot.slane %v796, %v3975
        %v3977 = vmul.f32 %v3492, %v3976
        %v3978 = vmul.f32 %v3493, %v3976
        %v3979 = vmul.f32 %v3494, %v3976
        %v3980 = vmul.f32 %v3495, %v3976
        %v3981 = vmul.f32 %v3496, %v3976
        %v3982 = vmul.f32 %v3497, %v3976
        %v3983 = vmul.f32 %v3498, %v3976
        %v3984 = vmul.f32 %v3499, %v3976
        %v3985 = vmul.f32 %v3500, %v3976
        %v3986 = vmul.f32 %v3501, %v3976
        %v3987 = vmul.f32 %v3502, %v3976
        %v3988 = vmul.f32 %v3503, %v3976
        %v3989 = vmul.f32 %v3504, %v3976
        %v3990 = vmul.f32 %v3505, %v3976
        %v3991 = vmul.f32 %v3506, %v3976
        %v3992 = vmul.f32 %v3507, %v3976
        %v3993 = vmul.f32 %v3508, %v3976
        %v3994 = vmul.f32 %v3509, %v3976
        %v3995 = vmul.f32 %v3510, %v3976
        %v3996 = vmul.f32 %v3511, %v3976
        %v3997 = vmul.f32 %v3512, %v3976
        %v3998 = vmul.f32 %v3513, %v3976
        %v3999 = vmul.f32 %v3514, %v3976
        %v4000 = vmul.f32 %v3515, %v3976
        %v4001 = vmul.f32 %v3516, %v3976
        %v4002 = vmul.f32 %v3517, %v3976
        %v4003 = vmul.f32 %v3518, %v3976
        %v4004 = vmul.f32 %v3519, %v3976
        %v4005 = vmul.f32 %v3520, %v3976
        %v4006 = vmul.f32 %v3521, %v3976
        %v4007 = vmul.f32 %v3522, %v3976
        %v4008 = vmul.f32 %v3523, %v3976
        %v4009 = vmul.f32 %v3524, %v3976
        %v4010 = vmul.f32 %v3525, %v3976
        %v4011 = vmul.f32 %v3526, %v3976
        %v4012 = vmul.f32 %v3527, %v3976
        %v4013 = vmul.f32 %v3528, %v3976
        %v4014 = vmul.f32 %v3529, %v3976
        %v4015 = vmul.f32 %v3530, %v3976
        %v4016 = vmul.f32 %v3531, %v3976
        %vm4057 = vcmask 1045504
        %v4058 = vrot.slane %v3977, 2
        %v4059 = vrot.slane %v3978, 2
        %v4060 = vsel %vm4057, %v4058, %v4059
        %v4061 = vrot.slane %v3979, 2
        %v4062 = vsel %vm4057, %v4059, %v4061
        %v4063 = vrot.slane %v3980, 2
        %v4064 = vsel %vm4057, %v4061, %v4063
        %v4065 = vrot.slane %v3981, 2
        %v4066 = vsel %vm4057, %v4063, %v4065
        %v4067 = vrot.slane %v3982, 2
        %v4068 = vrot.slane %v3983, 2
        %v4069 = vsel %vm4057, %v4067, %v4068
        %v4070 = vrot.slane %v3984, 2
        %v4071 = vsel %vm4057, %v4068, %v4070
        %v4072 = vrot.slane %v3985, 2
        %v4073 = vsel %vm4057, %v4070, %v4072
        %v4074 = vrot.slane %v3986, 2
        %v4075 = vsel %vm4057, %v4072, %v4074
        %v4076 = vrot.slane %v3987, 2
        %v4077 = vrot.slane %v3988, 2
        %v4078 = vsel %vm4057, %v4076, %v4077
        %v4079 = vrot.slane %v3989, 2
        %v4080 = vsel %vm4057, %v4077, %v4079
        %v4081 = vrot.slane %v3990, 2
        %v4082 = vsel %vm4057, %v4079, %v4081
        %v4083 = vrot.slane %v3991, 2
        %v4084 = vsel %vm4057, %v4081, %v4083
        %v4085 = vrot.slane %v3992, 2
        %v4086 = vrot.slane %v3993, 2
        %v4087 = vsel %vm4057, %v4085, %v4086
        %v4088 = vrot.slane %v3994, 2
        %v4089 = vsel %vm4057, %v4086, %v4088
        %v4090 = vrot.slane %v3995, 2
        %v4091 = vsel %vm4057, %v4088, %v4090
        %v4092 = vrot.slane %v3996, 2
        %v4093 = vsel %vm4057, %v4090, %v4092
        %v4094 = vrot.slane %v3997, 2
        %v4095 = vrot.slane %v3998, 2
        %v4096 = vsel %vm4057, %v4094, %v4095
        %v4097 = vrot.slane %v3999, 2
        %v4098 = vsel %vm4057, %v4095, %v4097
        %v4099 = vrot.slane %v4000, 2
        %v4100 = vsel %vm4057, %v4097, %v4099
        %v4101 = vrot.slane %v4001, 2
        %v4102 = vsel %vm4057, %v4099, %v4101
        %v4103 = vrot.slane %v4002, 2
        %v4104 = vrot.slane %v4003, 2
        %v4105 = vsel %vm4057, %v4103, %v4104
        %v4106 = vrot.slane %v4004, 2
        %v4107 = vsel %vm4057, %v4104, %v4106
        %v4108 = vrot.slane %v4005, 2
        %v4109 = vsel %vm4057, %v4106, %v4108
        %v4110 = vrot.slane %v4006, 2
        %v4111 = vsel %vm4057, %v4108, %v4110
        %v4112 = vrot.slane %v4007, 2
        %v4113 = vrot.slane %v4008, 2
        %v4114 = vsel %vm4057, %v4112, %v4113
        %v4115 = vrot.slane %v4009, 2
        %v4116 = vsel %vm4057, %v4113, %v4115
        %v4117 = vrot.slane %v4010, 2
        %v4118 = vsel %vm4057, %v4115, %v4117
        %v4119 = vrot.slane %v4011, 2
        %v4120 = vsel %vm4057, %v4117, %v4119
        %v4121 = vrot.slane %v4012, 2
        %v4122 = vrot.slane %v4013, 2
        %v4123 = vsel %vm4057, %v4121, %v4122
        %v4124 = vrot.slane %v4014, 2
        %v4125 = vsel %vm4057, %v4122, %v4124
        %v4126 = vrot.slane %v4015, 2
        %v4127 = vsel %vm4057, %v4124, %v4126
        %v4128 = vrot.slane %v4016, 2
        %v4129 = vsel %vm4057, %v4126, %v4128
        %v4162 = vadd.f32 %v3221, %v4060
        %v4163 = vadd.f32 %v3222, %v4062
        %v4164 = vadd.f32 %v3223, %v4064
        %v4165 = vadd.f32 %v3224, %v4066
        %v4166 = vadd.f32 %v3225, %v4069
        %v4167 = vadd.f32 %v3226, %v4071
        %v4168 = vadd.f32 %v3227, %v4073
        %v4169 = vadd.f32 %v3228, %v4075
        %v4170 = vadd.f32 %v3229, %v4078
        %v4171 = vadd.f32 %v3230, %v4080
        %v4172 = vadd.f32 %v3231, %v4082
        %v4173 = vadd.f32 %v3232, %v4084
        %v4174 = vadd.f32 %v3233, %v4087
        %v4175 = vadd.f32 %v3234, %v4089
        %v4176 = vadd.f32 %v3235, %v4091
        %v4177 = vadd.f32 %v3236, %v4093
        %v4178 = vadd.f32 %v3237, %v4096
        %v4179 = vadd.f32 %v3238, %v4098
        %v4180 = vadd.f32 %v3239, %v4100
        %v4181 = vadd.f32 %v3240, %v4102
        %v4182 = vadd.f32 %v3241, %v4105
        %v4183 = vadd.f32 %v3242, %v4107
        %v4184 = vadd.f32 %v3243, %v4109
        %v4185 = vadd.f32 %v3244, %v4111
        %v4186 = vadd.f32 %v3245, %v4114
        %v4187 = vadd.f32 %v3246, %v4116
        %v4188 = vadd.f32 %v3247, %v4118
        %v4189 = vadd.f32 %v3248, %v4120
        %v4190 = vadd.f32 %v3249, %v4123
        %v4191 = vadd.f32 %v3250, %v4125
        %v4192 = vadd.f32 %v3251, %v4127
        %v4193 = vadd.f32 %v3252, %v4129
        %v4194 = vlaneseq
        %v4195 = vshrl.u32 %v4194, 7
        %v4196 = vsub.s32 1, %v4195
        %v4197 = vrot.slane %v796, %v4196
        %v4198 = vmul.f32 %v3492, %v4197
        %v4199 = vmul.f32 %v3493, %v4197
        %v4200 = vmul.f32 %v3494, %v4197
        %v4201 = vmul.f32 %v3495, %v4197
        %v4202 = vmul.f32 %v3496, %v4197
        %v4203 = vmul.f32 %v3497, %v4197
        %v4204 = vmul.f32 %v3498, %v4197
        %v4205 = vmul.f32 %v3499, %v4197
        %v4206 = vmul.f32 %v3500, %v4197
        %v4207 = vmul.f32 %v3501, %v4197
        %v4208 = vmul.f32 %v3502, %v4197
        %v4209 = vmul.f32 %v3503, %v4197
        %v4210 = vmul.f32 %v3504, %v4197
        %v4211 = vmul.f32 %v3505, %v4197
        %v4212 = vmul.f32 %v3506, %v4197
        %v4213 = vmul.f32 %v3507, %v4197
        %v4214 = vmul.f32 %v3508, %v4197
        %v4215 = vmul.f32 %v3509, %v4197
        %v4216 = vmul.f32 %v3510, %v4197
        %v4217 = vmul.f32 %v3511, %v4197
        %v4218 = vmul.f32 %v3512, %v4197
        %v4219 = vmul.f32 %v3513, %v4197
        %v4220 = vmul.f32 %v3514, %v4197
        %v4221 = vmul.f32 %v3515, %v4197
        %v4222 = vmul.f32 %v3516, %v4197
        %v4223 = vmul.f32 %v3517, %v4197
        %v4224 = vmul.f32 %v3518, %v4197
        %v4225 = vmul.f32 %v3519, %v4197
        %v4226 = vmul.f32 %v3520, %v4197
        %v4227 = vmul.f32 %v3521, %v4197
        %v4228 = vmul.f32 %v3522, %v4197
        %v4229 = vmul.f32 %v3523, %v4197
        %v4230 = vmul.f32 %v3524, %v4197
        %v4231 = vmul.f32 %v3525, %v4197
        %v4232 = vmul.f32 %v3526, %v4197
        %v4233 = vmul.f32 %v3527, %v4197
        %v4234 = vmul.f32 %v3528, %v4197
        %v4235 = vmul.f32 %v3529, %v4197
        %v4236 = vmul.f32 %v3530, %v4197
        %v4237 = vmul.f32 %v3531, %v4197
        %v4278 = vrot.slane %v4198, 2
        %v4279 = vrot.slane %v4199, 2
        %v4280 = vsel %vm4057, %v4278, %v4279
        %v4281 = vrot.slane %v4200, 2
        %v4282 = vsel %vm4057, %v4279, %v4281
        %v4283 = vrot.slane %v4201, 2
        %v4284 = vsel %vm4057, %v4281, %v4283
        %v4285 = vrot.slane %v4202, 2
        %v4286 = vsel %vm4057, %v4283, %v4285
        %v4287 = vrot.slane %v4203, 2
        %v4288 = vrot.slane %v4204, 2
        %v4289 = vsel %vm4057, %v4287, %v4288
        %v4290 = vrot.slane %v4205, 2
        %v4291 = vsel %vm4057, %v4288, %v4290
        %v4292 = vrot.slane %v4206, 2
        %v4293 = vsel %vm4057, %v4290, %v4292
        %v4294 = vrot.slane %v4207, 2
        %v4295 = vsel %vm4057, %v4292, %v4294
        %v4296 = vrot.slane %v4208, 2
        %v4297 = vrot.slane %v4209, 2
        %v4298 = vsel %vm4057, %v4296, %v4297
        %v4299 = vrot.slane %v4210, 2
        %v4300 = vsel %vm4057, %v4297, %v4299
        %v4301 = vrot.slane %v4211, 2
        %v4302 = vsel %vm4057, %v4299, %v4301
        %v4303 = vrot.slane %v4212, 2
        %v4304 = vsel %vm4057, %v4301, %v4303
        %v4305 = vrot.slane %v4213, 2
        %v4306 = vrot.slane %v4214, 2
        %v4307 = vsel %vm4057, %v4305, %v4306
        %v4308 = vrot.slane %v4215, 2
        %v4309 = vsel %vm4057, %v4306, %v4308
        %v4310 = vrot.slane %v4216, 2
        %v4311 = vsel %vm4057, %v4308, %v4310
        %v4312 = vrot.slane %v4217, 2
        %v4313 = vsel %vm4057, %v4310, %v4312
        %v4314 = vrot.slane %v4218, 2
        %v4315 = vrot.slane %v4219, 2
        %v4316 = vsel %vm4057, %v4314, %v4315
        %v4317 = vrot.slane %v4220, 2
        %v4318 = vsel %vm4057, %v4315, %v4317
        %v4319 = vrot.slane %v4221, 2
        %v4320 = vsel %vm4057, %v4317, %v4319
        %v4321 = vrot.slane %v4222, 2
        %v4322 = vsel %vm4057, %v4319, %v4321
        %v4323 = vrot.slane %v4223, 2
        %v4324 = vrot.slane %v4224, 2
        %v4325 = vsel %vm4057, %v4323, %v4324
        %v4326 = vrot.slane %v4225, 2
        %v4327 = vsel %vm4057, %v4324, %v4326
        %v4328 = vrot.slane %v4226, 2
        %v4329 = vsel %vm4057, %v4326, %v4328
        %v4330 = vrot.slane %v4227, 2
        %v4331 = vsel %vm4057, %v4328, %v4330
        %v4332 = vrot.slane %v4228, 2
        %v4333 = vrot.slane %v4229, 2
        %v4334 = vsel %vm4057, %v4332, %v4333
        %v4335 = vrot.slane %v4230, 2
        %v4336 = vsel %vm4057, %v4333, %v4335
        %v4337 = vrot.slane %v4231, 2
        %v4338 = vsel %vm4057, %v4335, %v4337
        %v4339 = vrot.slane %v4232, 2
        %v4340 = vsel %vm4057, %v4337, %v4339
        %v4341 = vrot.slane %v4233, 2
        %v4342 = vrot.slane %v4234, 2
        %v4343 = vsel %vm4057, %v4341, %v4342
        %v4344 = vrot.slane %v4235, 2
        %v4345 = vsel %vm4057, %v4342, %v4344
        %v4346 = vrot.slane %v4236, 2
        %v4347 = vsel %vm4057, %v4344, %v4346
        %v4348 = vrot.slane %v4237, 2
        %v4349 = vsel %vm4057, %v4346, %v4348
        %v4390 = vadd.f32 %v3449, %v4280
        %v4391 = vadd.f32 %v3450, %v4282
        %v4392 = vadd.f32 %v3451, %v4284
        %v4393 = vadd.f32 %v3452, %v4286
        %v4394 = vadd.f32 %v3453, %v4285
        %v4395 = vadd.f32 %v3454, %v4289
        %v4396 = vadd.f32 %v3455, %v4291
        %v4397 = vadd.f32 %v3456, %v4293
        %v4398 = vadd.f32 %v3457, %v4295
        %v4399 = vadd.f32 %v3458, %v4294
        %v4400 = vadd.f32 %v3459, %v4298
        %v4401 = vadd.f32 %v3460, %v4300
        %v4402 = vadd.f32 %v3461, %v4302
        %v4403 = vadd.f32 %v3462, %v4304
        %v4404 = vadd.f32 %v3463, %v4303
        %v4405 = vadd.f32 %v3464, %v4307
        %v4406 = vadd.f32 %v3465, %v4309
        %v4407 = vadd.f32 %v3466, %v4311
        %v4408 = vadd.f32 %v3467, %v4313
        %v4409 = vadd.f32 %v3468, %v4312
        %v4410 = vadd.f32 %v3469, %v4316
        %v4411 = vadd.f32 %v3470, %v4318
        %v4412 = vadd.f32 %v3471, %v4320
        %v4413 = vadd.f32 %v3472, %v4322
        %v4414 = vadd.f32 %v3473, %v4321
        %v4415 = vadd.f32 %v3474, %v4325
        %v4416 = vadd.f32 %v3475, %v4327
        %v4417 = vadd.f32 %v3476, %v4329
        %v4418 = vadd.f32 %v3477, %v4331
        %v4419 = vadd.f32 %v3478, %v4330
        %v4420 = vadd.f32 %v3479, %v4334
        %v4421 = vadd.f32 %v3480, %v4336
        %v4422 = vadd.f32 %v3481, %v4338
        %v4423 = vadd.f32 %v3482, %v4340
        %v4424 = vadd.f32 %v3483, %v4339
        %v4425 = vadd.f32 %v3484, %v4343
        %v4426 = vadd.f32 %v3485, %v4345
        %v4427 = vadd.f32 %v3486, %v4347
        %v4428 = vadd.f32 %v3487, %v4349
        %v4429 = vadd.f32 %v3488, %v4348
        %v4430 = vlaneseq
        %v4431 = vshrl.u32 %v4430, 7
        %v4432 = vsub.s32 2, %v4431
        %v4433 = vrot.slane %v796, %v4432
        %v4434 = vmul.f32 %v3492, %v4433
        %v4435 = vmul.f32 %v3493, %v4433
        %v4436 = vmul.f32 %v3494, %v4433
        %v4437 = vmul.f32 %v3495, %v4433
        %v4438 = vmul.f32 %v3496, %v4433
        %v4439 = vmul.f32 %v3497, %v4433
        %v4440 = vmul.f32 %v3498, %v4433
        %v4441 = vmul.f32 %v3499, %v4433
        %v4442 = vmul.f32 %v3500, %v4433
        %v4443 = vmul.f32 %v3501, %v4433
        %v4444 = vmul.f32 %v3502, %v4433
        %v4445 = vmul.f32 %v3503, %v4433
        %v4446 = vmul.f32 %v3504, %v4433
        %v4447 = vmul.f32 %v3505, %v4433
        %v4448 = vmul.f32 %v3506, %v4433
        %v4449 = vmul.f32 %v3507, %v4433
        %v4450 = vmul.f32 %v3508, %v4433
        %v4451 = vmul.f32 %v3509, %v4433
        %v4452 = vmul.f32 %v3510, %v4433
        %v4453 = vmul.f32 %v3511, %v4433
        %v4454 = vmul.f32 %v3512, %v4433
        %v4455 = vmul.f32 %v3513, %v4433
        %v4456 = vmul.f32 %v3514, %v4433
        %v4457 = vmul.f32 %v3515, %v4433
        %v4458 = vmul.f32 %v3516, %v4433
        %v4459 = vmul.f32 %v3517, %v4433
        %v4460 = vmul.f32 %v3518, %v4433
        %v4461 = vmul.f32 %v3519, %v4433
        %v4462 = vmul.f32 %v3520, %v4433
        %v4463 = vmul.f32 %v3521, %v4433
        %v4464 = vmul.f32 %v3522, %v4433
        %v4465 = vmul.f32 %v3523, %v4433
        %v4466 = vmul.f32 %v3524, %v4433
        %v4467 = vmul.f32 %v3525, %v4433
        %v4468 = vmul.f32 %v3526, %v4433
        %v4469 = vmul.f32 %v3527, %v4433
        %v4470 = vmul.f32 %v3528, %v4433
        %v4471 = vmul.f32 %v3529, %v4433
        %v4472 = vmul.f32 %v3530, %v4433
        %v4473 = vmul.f32 %v3531, %v4433
        %v4514 = vrot.slane %v4434, 2
        %v4515 = vrot.slane %v4435, 2
        %v4516 = vsel %vm4057, %v4514, %v4515
        %v4517 = vrot.slane %v4436, 2
        %v4518 = vsel %vm4057, %v4515, %v4517
        %v4519 = vrot.slane %v4437, 2
        %v4520 = vsel %vm4057, %v4517, %v4519
        %v4521 = vrot.slane %v4438, 2
        %v4522 = vsel %vm4057, %v4519, %v4521
        %v4523 = vrot.slane %v4439, 2
        %v4524 = vrot.slane %v4440, 2
        %v4525 = vsel %vm4057, %v4523, %v4524
        %v4526 = vrot.slane %v4441, 2
        %v4527 = vsel %vm4057, %v4524, %v4526
        %v4528 = vrot.slane %v4442, 2
        %v4529 = vsel %vm4057, %v4526, %v4528
        %v4530 = vrot.slane %v4443, 2
        %v4531 = vsel %vm4057, %v4528, %v4530
        %v4532 = vrot.slane %v4444, 2
        %v4533 = vrot.slane %v4445, 2
        %v4534 = vsel %vm4057, %v4532, %v4533
        %v4535 = vrot.slane %v4446, 2
        %v4536 = vsel %vm4057, %v4533, %v4535
        %v4537 = vrot.slane %v4447, 2
        %v4538 = vsel %vm4057, %v4535, %v4537
        %v4539 = vrot.slane %v4448, 2
        %v4540 = vsel %vm4057, %v4537, %v4539
        %v4541 = vrot.slane %v4449, 2
        %v4542 = vrot.slane %v4450, 2
        %v4543 = vsel %vm4057, %v4541, %v4542
        %v4544 = vrot.slane %v4451, 2
        %v4545 = vsel %vm4057, %v4542, %v4544
        %v4546 = vrot.slane %v4452, 2
        %v4547 = vsel %vm4057, %v4544, %v4546
        %v4548 = vrot.slane %v4453, 2
        %v4549 = vsel %vm4057, %v4546, %v4548
        %v4550 = vrot.slane %v4454, 2
        %v4551 = vrot.slane %v4455, 2
        %v4552 = vsel %vm4057, %v4550, %v4551
        %v4553 = vrot.slane %v4456, 2
        %v4554 = vsel %vm4057, %v4551, %v4553
        %v4555 = vrot.slane %v4457, 2
        %v4556 = vsel %vm4057, %v4553, %v4555
        %v4557 = vrot.slane %v4458, 2
        %v4558 = vsel %vm4057, %v4555, %v4557
        %v4559 = vrot.slane %v4459, 2
        %v4560 = vrot.slane %v4460, 2
        %v4561 = vsel %vm4057, %v4559, %v4560
        %v4562 = vrot.slane %v4461, 2
        %v4563 = vsel %vm4057, %v4560, %v4562
        %v4564 = vrot.slane %v4462, 2
        %v4565 = vsel %vm4057, %v4562, %v4564
        %v4566 = vrot.slane %v4463, 2
        %v4567 = vsel %vm4057, %v4564, %v4566
        %v4568 = vrot.slane %v4464, 2
        %v4569 = vrot.slane %v4465, 2
        %v4570 = vsel %vm4057, %v4568, %v4569
        %v4571 = vrot.slane %v4466, 2
        %v4572 = vsel %vm4057, %v4569, %v4571
        %v4573 = vrot.slane %v4467, 2
        %v4574 = vsel %vm4057, %v4571, %v4573
        %v4575 = vrot.slane %v4468, 2
        %v4576 = vsel %vm4057, %v4573, %v4575
        %v4577 = vrot.slane %v4469, 2
        %v4578 = vrot.slane %v4470, 2
        %v4579 = vsel %vm4057, %v4577, %v4578
        %v4580 = vrot.slane %v4471, 2
        %v4581 = vsel %vm4057, %v4578, %v4580
        %v4582 = vrot.slane %v4472, 2
        %v4583 = vsel %vm4057, %v4580, %v4582
        %v4584 = vrot.slane %v4473, 2
        %v4585 = vsel %vm4057, %v4582, %v4584
        %v4626 = vadd.f32 %v3697, %v4516
        %v4627 = vadd.f32 %v3698, %v4518
        %v4628 = vadd.f32 %v3699, %v4520
        %v4629 = vadd.f32 %v3700, %v4522
        %v4630 = vadd.f32 %v3701, %v4521
        %v4631 = vadd.f32 %v3702, %v4525
        %v4632 = vadd.f32 %v3703, %v4527
        %v4633 = vadd.f32 %v3704, %v4529
        %v4634 = vadd.f32 %v3705, %v4531
        %v4635 = vadd.f32 %v3706, %v4530
        %v4636 = vadd.f32 %v3707, %v4534
        %v4637 = vadd.f32 %v3708, %v4536
        %v4638 = vadd.f32 %v3709, %v4538
        %v4639 = vadd.f32 %v3710, %v4540
        %v4640 = vadd.f32 %v3711, %v4539
        %v4641 = vadd.f32 %v3712, %v4543
        %v4642 = vadd.f32 %v3713, %v4545
        %v4643 = vadd.f32 %v3714, %v4547
        %v4644 = vadd.f32 %v3715, %v4549
        %v4645 = vadd.f32 %v3716, %v4548
        %v4646 = vadd.f32 %v3717, %v4552
        %v4647 = vadd.f32 %v3718, %v4554
        %v4648 = vadd.f32 %v3719, %v4556
        %v4649 = vadd.f32 %v3720, %v4558
        %v4650 = vadd.f32 %v3721, %v4557
        %v4651 = vadd.f32 %v3722, %v4561
        %v4652 = vadd.f32 %v3723, %v4563
        %v4653 = vadd.f32 %v3724, %v4565
        %v4654 = vadd.f32 %v3725, %v4567
        %v4655 = vadd.f32 %v3726, %v4566
        %v4656 = vadd.f32 %v3727, %v4570
        %v4657 = vadd.f32 %v3728, %v4572
        %v4658 = vadd.f32 %v3729, %v4574
        %v4659 = vadd.f32 %v3730, %v4576
        %v4660 = vadd.f32 %v3731, %v4575
        %v4661 = vadd.f32 %v3732, %v4579
        %v4662 = vadd.f32 %v3733, %v4581
        %v4663 = vadd.f32 %v3734, %v4583
        %v4664 = vadd.f32 %v3735, %v4585
        %v4665 = vadd.f32 %v3736, %v4584
        %v4666 = vlaneseq
        %v4667 = vshrl.u32 %v4666, 7
        %v4668 = vsub.s32 3, %v4667
        %v4669 = vrot.slane %v796, %v4668
        %v4670 = vmul.f32 %v3492, %v4669
        %v4671 = vmul.f32 %v3493, %v4669
        %v4672 = vmul.f32 %v3494, %v4669
        %v4673 = vmul.f32 %v3495, %v4669
        %v4674 = vmul.f32 %v3496, %v4669
        %v4675 = vmul.f32 %v3497, %v4669
        %v4676 = vmul.f32 %v3498, %v4669
        %v4677 = vmul.f32 %v3499, %v4669
        %v4678 = vmul.f32 %v3500, %v4669
        %v4679 = vmul.f32 %v3501, %v4669
        %v4680 = vmul.f32 %v3502, %v4669
        %v4681 = vmul.f32 %v3503, %v4669
        %v4682 = vmul.f32 %v3504, %v4669
        %v4683 = vmul.f32 %v3505, %v4669
        %v4684 = vmul.f32 %v3506, %v4669
        %v4685 = vmul.f32 %v3507, %v4669
        %v4686 = vmul.f32 %v3508, %v4669
        %v4687 = vmul.f32 %v3509, %v4669
        %v4688 = vmul.f32 %v3510, %v4669
        %v4689 = vmul.f32 %v3511, %v4669
        %v4690 = vmul.f32 %v3512, %v4669
        %v4691 = vmul.f32 %v3513, %v4669
        %v4692 = vmul.f32 %v3514, %v4669
        %v4693 = vmul.f32 %v3515, %v4669
        %v4694 = vmul.f32 %v3516, %v4669
        %v4695 = vmul.f32 %v3517, %v4669
        %v4696 = vmul.f32 %v3518, %v4669
        %v4697 = vmul.f32 %v3519, %v4669
        %v4698 = vmul.f32 %v3520, %v4669
        %v4699 = vmul.f32 %v3521, %v4669
        %v4700 = vmul.f32 %v3522, %v4669
        %v4701 = vmul.f32 %v3523, %v4669
        %v4702 = vmul.f32 %v3524, %v4669
        %v4703 = vmul.f32 %v3525, %v4669
        %v4704 = vmul.f32 %v3526, %v4669
        %v4705 = vmul.f32 %v3527, %v4669
        %v4706 = vmul.f32 %v3528, %v4669
        %v4707 = vmul.f32 %v3529, %v4669
        %v4708 = vmul.f32 %v3530, %v4669
        %v4709 = vmul.f32 %v3531, %v4669
        %v4750 = vrot.slane %v4670, 2
        %v4751 = vrot.slane %v4671, 2
        %v4752 = vsel %vm4057, %v4750, %v4751
        %v4753 = vrot.slane %v4672, 2
        %v4754 = vsel %vm4057, %v4751, %v4753
        %v4755 = vrot.slane %v4673, 2
        %v4756 = vsel %vm4057, %v4753, %v4755
        %v4757 = vrot.slane %v4674, 2
        %v4758 = vsel %vm4057, %v4755, %v4757
        %v4759 = vrot.slane %v4675, 2
        %v4760 = vrot.slane %v4676, 2
        %v4761 = vsel %vm4057, %v4759, %v4760
        %v4762 = vrot.slane %v4677, 2
        %v4763 = vsel %vm4057, %v4760, %v4762
        %v4764 = vrot.slane %v4678, 2
        %v4765 = vsel %vm4057, %v4762, %v4764
        %v4766 = vrot.slane %v4679, 2
        %v4767 = vsel %vm4057, %v4764, %v4766
        %v4768 = vrot.slane %v4680, 2
        %v4769 = vrot.slane %v4681, 2
        %v4770 = vsel %vm4057, %v4768, %v4769
        %v4771 = vrot.slane %v4682, 2
        %v4772 = vsel %vm4057, %v4769, %v4771
        %v4773 = vrot.slane %v4683, 2
        %v4774 = vsel %vm4057, %v4771, %v4773
        %v4775 = vrot.slane %v4684, 2
        %v4776 = vsel %vm4057, %v4773, %v4775
        %v4777 = vrot.slane %v4685, 2
        %v4778 = vrot.slane %v4686, 2
        %v4779 = vsel %vm4057, %v4777, %v4778
        %v4780 = vrot.slane %v4687, 2
        %v4781 = vsel %vm4057, %v4778, %v4780
        %v4782 = vrot.slane %v4688, 2
        %v4783 = vsel %vm4057, %v4780, %v4782
        %v4784 = vrot.slane %v4689, 2
        %v4785 = vsel %vm4057, %v4782, %v4784
        %v4786 = vrot.slane %v4690, 2
        %v4787 = vrot.slane %v4691, 2
        %v4788 = vsel %vm4057, %v4786, %v4787
        %v4789 = vrot.slane %v4692, 2
        %v4790 = vsel %vm4057, %v4787, %v4789
        %v4791 = vrot.slane %v4693, 2
        %v4792 = vsel %vm4057, %v4789, %v4791
        %v4793 = vrot.slane %v4694, 2
        %v4794 = vsel %vm4057, %v4791, %v4793
        %v4795 = vrot.slane %v4695, 2
        %v4796 = vrot.slane %v4696, 2
        %v4797 = vsel %vm4057, %v4795, %v4796
        %v4798 = vrot.slane %v4697, 2
        %v4799 = vsel %vm4057, %v4796, %v4798
        %v4800 = vrot.slane %v4698, 2
        %v4801 = vsel %vm4057, %v4798, %v4800
        %v4802 = vrot.slane %v4699, 2
        %v4803 = vsel %vm4057, %v4800, %v4802
        %v4804 = vrot.slane %v4700, 2
        %v4805 = vrot.slane %v4701, 2
        %v4806 = vsel %vm4057, %v4804, %v4805
        %v4807 = vrot.slane %v4702, 2
        %v4808 = vsel %vm4057, %v4805, %v4807
        %v4809 = vrot.slane %v4703, 2
        %v4810 = vsel %vm4057, %v4807, %v4809
        %v4811 = vrot.slane %v4704, 2
        %v4812 = vsel %vm4057, %v4809, %v4811
        %v4813 = vrot.slane %v4705, 2
        %v4814 = vrot.slane %v4706, 2
        %v4815 = vsel %vm4057, %v4813, %v4814
        %v4816 = vrot.slane %v4707, 2
        %v4817 = vsel %vm4057, %v4814, %v4816
        %v4818 = vrot.slane %v4708, 2
        %v4819 = vsel %vm4057, %v4816, %v4818
        %v4820 = vrot.slane %v4709, 2
        %v4821 = vsel %vm4057, %v4818, %v4820
        %v4862 = vadd.f32 %v3933, %v4752
        %v4863 = vadd.f32 %v3934, %v4754
        %v4864 = vadd.f32 %v3935, %v4756
        %v4865 = vadd.f32 %v3936, %v4758
        %v4866 = vadd.f32 %v3937, %v4757
        %v4867 = vadd.f32 %v3938, %v4761
        %v4868 = vadd.f32 %v3939, %v4763
        %v4869 = vadd.f32 %v3940, %v4765
        %v4870 = vadd.f32 %v3941, %v4767
        %v4871 = vadd.f32 %v3942, %v4766
        %v4872 = vadd.f32 %v3943, %v4770
        %v4873 = vadd.f32 %v3944, %v4772
        %v4874 = vadd.f32 %v3945, %v4774
        %v4875 = vadd.f32 %v3946, %v4776
        %v4876 = vadd.f32 %v3947, %v4775
        %v4877 = vadd.f32 %v3948, %v4779
        %v4878 = vadd.f32 %v3949, %v4781
        %v4879 = vadd.f32 %v3950, %v4783
        %v4880 = vadd.f32 %v3951, %v4785
        %v4881 = vadd.f32 %v3952, %v4784
        %v4882 = vadd.f32 %v3953, %v4788
        %v4883 = vadd.f32 %v3954, %v4790
        %v4884 = vadd.f32 %v3955, %v4792
        %v4885 = vadd.f32 %v3956, %v4794
        %v4886 = vadd.f32 %v3957, %v4793
        %v4887 = vadd.f32 %v3958, %v4797
        %v4888 = vadd.f32 %v3959, %v4799
        %v4889 = vadd.f32 %v3960, %v4801
        %v4890 = vadd.f32 %v3961, %v4803
        %v4891 = vadd.f32 %v3962, %v4802
        %v4892 = vadd.f32 %v3963, %v4806
        %v4893 = vadd.f32 %v3964, %v4808
        %v4894 = vadd.f32 %v3965, %v4810
        %v4895 = vadd.f32 %v3966, %v4812
        %v4896 = vadd.f32 %v3967, %v4811
        %v4897 = vadd.f32 %v3968, %v4815
        %v4898 = vadd.f32 %v3969, %v4817
        %v4899 = vadd.f32 %v3970, %v4819
        %v4900 = vadd.f32 %v3971, %v4821
        %v4901 = vadd.f32 %v3972, %v4820
        %v4902 = vlaneseq
        %v4903 = vshrl.u32 %v4902, 7
        %v4904 = vsub.s32 4, %v4903
        %v4905 = vrot.slane %v796, %v4904
        %v4906 = vmul.f32 %v3492, %v4905
        %v4907 = vmul.f32 %v3493, %v4905
        %v4908 = vmul.f32 %v3494, %v4905
        %v4909 = vmul.f32 %v3495, %v4905
        %v4910 = vmul.f32 %v3496, %v4905
        %v4911 = vmul.f32 %v3497, %v4905
        %v4912 = vmul.f32 %v3498, %v4905
        %v4913 = vmul.f32 %v3499, %v4905
        %v4914 = vmul.f32 %v3500, %v4905
        %v4915 = vmul.f32 %v3501, %v4905
        %v4916 = vmul.f32 %v3502, %v4905
        %v4917 = vmul.f32 %v3503, %v4905
        %v4918 = vmul.f32 %v3504, %v4905
        %v4919 = vmul.f32 %v3505, %v4905
        %v4920 = vmul.f32 %v3506, %v4905
        %v4921 = vmul.f32 %v3507, %v4905
        %v4922 = vmul.f32 %v3508, %v4905
        %v4923 = vmul.f32 %v3509, %v4905
        %v4924 = vmul.f32 %v3510, %v4905
        %v4925 = vmul.f32 %v3511, %v4905
        %v4926 = vmul.f32 %v3512, %v4905
        %v4927 = vmul.f32 %v3513, %v4905
        %v4928 = vmul.f32 %v3514, %v4905
        %v4929 = vmul.f32 %v3515, %v4905
        %v4930 = vmul.f32 %v3516, %v4905
        %v4931 = vmul.f32 %v3517, %v4905
        %v4932 = vmul.f32 %v3518, %v4905
        %v4933 = vmul.f32 %v3519, %v4905
        %v4934 = vmul.f32 %v3520, %v4905
        %v4935 = vmul.f32 %v3521, %v4905
        %v4936 = vmul.f32 %v3522, %v4905
        %v4937 = vmul.f32 %v3523, %v4905
        %v4938 = vmul.f32 %v3524, %v4905
        %v4939 = vmul.f32 %v3525, %v4905
        %v4940 = vmul.f32 %v3526, %v4905
        %v4941 = vmul.f32 %v3527, %v4905
        %v4942 = vmul.f32 %v3528, %v4905
        %v4943 = vmul.f32 %v3529, %v4905
        %v4944 = vmul.f32 %v3530, %v4905
        %v4945 = vmul.f32 %v3531, %v4905
        %v4986 = vrot.slane %v4906, 6
        %v4987 = vrot.slane %v4907, 6
        %v4988 = vsel %vm3600, %v4986, %v4987
        %v4989 = vrot.slane %v4908, 6
        %v4990 = vsel %vm3600, %v4987, %v4989
        %v4991 = vrot.slane %v4909, 6
        %v4992 = vsel %vm3600, %v4989, %v4991
        %v4993 = vrot.slane %v4910, 6
        %v4994 = vsel %vm3600, %v4991, %v4993
        %v4995 = vrot.slane %v4911, 6
        %v4996 = vrot.slane %v4912, 6
        %v4997 = vsel %vm3600, %v4995, %v4996
        %v4998 = vrot.slane %v4913, 6
        %v4999 = vsel %vm3600, %v4996, %v4998
        %v5000 = vrot.slane %v4914, 6
        %v5001 = vsel %vm3600, %v4998, %v5000
        %v5002 = vrot.slane %v4915, 6
        %v5003 = vsel %vm3600, %v5000, %v5002
        %v5004 = vrot.slane %v4916, 6
        %v5005 = vrot.slane %v4917, 6
        %v5006 = vsel %vm3600, %v5004, %v5005
        %v5007 = vrot.slane %v4918, 6
        %v5008 = vsel %vm3600, %v5005, %v5007
        %v5009 = vrot.slane %v4919, 6
        %v5010 = vsel %vm3600, %v5007, %v5009
        %v5011 = vrot.slane %v4920, 6
        %v5012 = vsel %vm3600, %v5009, %v5011
        %v5013 = vrot.slane %v4921, 6
        %v5014 = vrot.slane %v4922, 6
        %v5015 = vsel %vm3600, %v5013, %v5014
        %v5016 = vrot.slane %v4923, 6
        %v5017 = vsel %vm3600, %v5014, %v5016
        %v5018 = vrot.slane %v4924, 6
        %v5019 = vsel %vm3600, %v5016, %v5018
        %v5020 = vrot.slane %v4925, 6
        %v5021 = vsel %vm3600, %v5018, %v5020
        %v5022 = vrot.slane %v4926, 6
        %v5023 = vrot.slane %v4927, 6
        %v5024 = vsel %vm3600, %v5022, %v5023
        %v5025 = vrot.slane %v4928, 6
        %v5026 = vsel %vm3600, %v5023, %v5025
        %v5027 = vrot.slane %v4929, 6
        %v5028 = vsel %vm3600, %v5025, %v5027
        %v5029 = vrot.slane %v4930, 6
        %v5030 = vsel %vm3600, %v5027, %v5029
        %v5031 = vrot.slane %v4931, 6
        %v5032 = vrot.slane %v4932, 6
        %v5033 = vsel %vm3600, %v5031, %v5032
        %v5034 = vrot.slane %v4933, 6
        %v5035 = vsel %vm3600, %v5032, %v5034
        %v5036 = vrot.slane %v4934, 6
        %v5037 = vsel %vm3600, %v5034, %v5036
        %v5038 = vrot.slane %v4935, 6
        %v5039 = vsel %vm3600, %v5036, %v5038
        %v5040 = vrot.slane %v4936, 6
        %v5041 = vrot.slane %v4937, 6
        %v5042 = vsel %vm3600, %v5040, %v5041
        %v5043 = vrot.slane %v4938, 6
        %v5044 = vsel %vm3600, %v5041, %v5043
        %v5045 = vrot.slane %v4939, 6
        %v5046 = vsel %vm3600, %v5043, %v5045
        %v5047 = vrot.slane %v4940, 6
        %v5048 = vsel %vm3600, %v5045, %v5047
        %v5049 = vrot.slane %v4941, 6
        %v5050 = vrot.slane %v4942, 6
        %v5051 = vsel %vm3600, %v5049, %v5050
        %v5052 = vrot.slane %v4943, 6
        %v5053 = vsel %vm3600, %v5050, %v5052
        %v5054 = vrot.slane %v4944, 6
        %v5055 = vsel %vm3600, %v5052, %v5054
        %v5056 = vrot.slane %v4945, 6
        %v5057 = vsel %vm3600, %v5054, %v5056
        %v5090 = vadd.f32 %v4162, %v4988
        %v5091 = vadd.f32 %v4163, %v4990
        %v5092 = vadd.f32 %v4164, %v4992
        %v5093 = vadd.f32 %v4165, %v4994
        %v5094 = vadd.f32 %v4166, %v4997
        %v5095 = vadd.f32 %v4167, %v4999
        %v5096 = vadd.f32 %v4168, %v5001
        %v5097 = vadd.f32 %v4169, %v5003
        %v5098 = vadd.f32 %v4170, %v5006
        %v5099 = vadd.f32 %v4171, %v5008
        %v5100 = vadd.f32 %v4172, %v5010
        %v5101 = vadd.f32 %v4173, %v5012
        %v5102 = vadd.f32 %v4174, %v5015
        %v5103 = vadd.f32 %v4175, %v5017
        %v5104 = vadd.f32 %v4176, %v5019
        %v5105 = vadd.f32 %v4177, %v5021
        %v5106 = vadd.f32 %v4178, %v5024
        %v5107 = vadd.f32 %v4179, %v5026
        %v5108 = vadd.f32 %v4180, %v5028
        %v5109 = vadd.f32 %v4181, %v5030
        %v5110 = vadd.f32 %v4182, %v5033
        %v5111 = vadd.f32 %v4183, %v5035
        %v5112 = vadd.f32 %v4184, %v5037
        %v5113 = vadd.f32 %v4185, %v5039
        %v5114 = vadd.f32 %v4186, %v5042
        %v5115 = vadd.f32 %v4187, %v5044
        %v5116 = vadd.f32 %v4188, %v5046
        %v5117 = vadd.f32 %v4189, %v5048
        %v5118 = vadd.f32 %v4190, %v5051
        %v5119 = vadd.f32 %v4191, %v5053
        %v5120 = vadd.f32 %v4192, %v5055
        %v5121 = vadd.f32 %v4193, %v5057
        %s5122 = sadd.s32 %s793, 3
        %s5123 = smul.u32 %s5122, 40
        %s5124 = scalar_lea.vmem [#allocation2], %s5123
        %v5125 = vld [vmem:[%s5124] sm:$0xff]
        %v5126 = vld [vmem:[%s5124 + $0x8] sm:$0xff]
        %v5127 = vld [vmem:[%s5124 + $0x10] sm:$0xff]
        %v5128 = vld [vmem:[%s5124 + $0x18] sm:$0xff]
        %v5129 = vld [vmem:[%s5124 + $0x20] sm:$0x3f]
        %v5130 = vld [vmem:[%s5124 + $0x28] sm:$0xff]
        %v5131 = vld [vmem:[%s5124 + $0x30] sm:$0xff]
        %v5132 = vld [vmem:[%s5124 + $0x38] sm:$0xff]
        %v5133 = vld [vmem:[%s5124 + $0x40] sm:$0xff]
        %v5134 = vld [vmem:[%s5124 + $0x48] sm:$0x3f]
        %v5135 = vld [vmem:[%s5124 + $0x50] sm:$0xff]
        %v5136 = vld [vmem:[%s5124 + $0x58] sm:$0xff]
        %v5137 = vld [vmem:[%s5124 + $0x60] sm:$0xff]
        %v5138 = vld [vmem:[%s5124 + $0x68] sm:$0xff]
        %v5139 = vld [vmem:[%s5124 + $0x70] sm:$0x3f]
        %v5140 = vld [vmem:[%s5124 + $0x78] sm:$0xff]
        %v5141 = vld [vmem:[%s5124 + $0x80] sm:$0xff]
        %v5142 = vld [vmem:[%s5124 + $0x88] sm:$0xff]
        %v5143 = vld [vmem:[%s5124 + $0x90] sm:$0xff]
        %v5144 = vld [vmem:[%s5124 + $0x98] sm:$0x3f]
        %v5145 = vld [vmem:[%s5124 + $0xa0] sm:$0xff]
        %v5146 = vld [vmem:[%s5124 + $0xa8] sm:$0xff]
        %v5147 = vld [vmem:[%s5124 + $0xb0] sm:$0xff]
        %v5148 = vld [vmem:[%s5124 + $0xb8] sm:$0xff]
        %v5149 = vld [vmem:[%s5124 + $0xc0] sm:$0x3f]
        %v5150 = vld [vmem:[%s5124 + $0xc8] sm:$0xff]
        %v5151 = vld [vmem:[%s5124 + $0xd0] sm:$0xff]
        %v5152 = vld [vmem:[%s5124 + $0xd8] sm:$0xff]
        %v5153 = vld [vmem:[%s5124 + $0xe0] sm:$0xff]
        %v5154 = vld [vmem:[%s5124 + $0xe8] sm:$0x3f]
        %v5155 = vld [vmem:[%s5124 + $0xf0] sm:$0xff]
        %v5156 = vld [vmem:[%s5124 + $0xf8] sm:$0xff]
        %v5157 = vld [vmem:[%s5124 + $0x100] sm:$0xff]
        %v5158 = vld [vmem:[%s5124 + $0x108] sm:$0xff]
        %v5159 = vld [vmem:[%s5124 + $0x110] sm:$0x3f]
        %v5160 = vld [vmem:[%s5124 + $0x118] sm:$0xff]
        %v5161 = vld [vmem:[%s5124 + $0x120] sm:$0xff]
        %v5162 = vld [vmem:[%s5124 + $0x128] sm:$0xff]
        %v5163 = vld [vmem:[%s5124 + $0x130] sm:$0xff]
        %v5164 = vld [vmem:[%s5124 + $0x138] sm:$0x3f]
        %v5165 = vlaneseq
        %v5166 = vshrl.u32 %v5165, 7
        %v5167 = vsub.s32 5, %v5166
        %v5168 = vrot.slane %v796, %v5167
        %v5169 = vmul.f32 %v5125, %v5168
        %v5170 = vmul.f32 %v5126, %v5168
        %v5171 = vmul.f32 %v5127, %v5168
        %v5172 = vmul.f32 %v5128, %v5168
        %v5173 = vmul.f32 %v5130, %v5168
        %v5174 = vmul.f32 %v5131, %v5168
        %v5175 = vmul.f32 %v5132, %v5168
        %v5176 = vmul.f32 %v5133, %v5168
        %v5177 = vmul.f32 %v5135, %v5168
        %v5178 = vmul.f32 %v5136, %v5168
        %v5179 = vmul.f32 %v5137, %v5168
        %v5180 = vmul.f32 %v5138, %v5168
        %v5181 = vmul.f32 %v5140, %v5168
        %v5182 = vmul.f32 %v5141, %v5168
        %v5183 = vmul.f32 %v5142, %v5168
        %v5184 = vmul.f32 %v5143, %v5168
        %v5185 = vmul.f32 %v5145, %v5168
        %v5186 = vmul.f32 %v5146, %v5168
        %v5187 = vmul.f32 %v5147, %v5168
        %v5188 = vmul.f32 %v5148, %v5168
        %v5189 = vmul.f32 %v5150, %v5168
        %v5190 = vmul.f32 %v5151, %v5168
        %v5191 = vmul.f32 %v5152, %v5168
        %v5192 = vmul.f32 %v5153, %v5168
        %v5193 = vmul.f32 %v5155, %v5168
        %v5194 = vmul.f32 %v5156, %v5168
        %v5195 = vmul.f32 %v5157, %v5168
        %v5196 = vmul.f32 %v5158, %v5168
        %v5197 = vmul.f32 %v5160, %v5168
        %v5198 = vmul.f32 %v5161, %v5168
        %v5199 = vmul.f32 %v5162, %v5168
        %v5200 = vmul.f32 %v5163, %v5168
        %vm5233 = vcmask 1040384
        %v5234 = vrot.slane %v5169, 7
        %v5235 = vrot.slane %v5170, 7
        %v5236 = vsel %vm5233, %v5234, %v5235
        %v5237 = vrot.slane %v5171, 7
        %v5238 = vsel %vm5233, %v5235, %v5237
        %v5239 = vrot.slane %v5172, 7
        %v5240 = vsel %vm5233, %v5237, %v5239
        %v5241 = vrot.slane %v5173, 7
        %v5242 = vrot.slane %v5174, 7
        %v5243 = vsel %vm5233, %v5241, %v5242
        %v5244 = vrot.slane %v5175, 7
        %v5245 = vsel %vm5233, %v5242, %v5244
        %v5246 = vrot.slane %v5176, 7
        %v5247 = vsel %vm5233, %v5244, %v5246
        %v5248 = vrot.slane %v5177, 7
        %v5249 = vrot.slane %v5178, 7
        %v5250 = vsel %vm5233, %v5248, %v5249
        %v5251 = vrot.slane %v5179, 7
        %v5252 = vsel %vm5233, %v5249, %v5251
        %v5253 = vrot.slane %v5180, 7
        %v5254 = vsel %vm5233, %v5251, %v5253
        %v5255 = vrot.slane %v5181, 7
        %v5256 = vrot.slane %v5182, 7
        %v5257 = vsel %vm5233, %v5255, %v5256
        %v5258 = vrot.slane %v5183, 7
        %v5259 = vsel %vm5233, %v5256, %v5258
        %v5260 = vrot.slane %v5184, 7
        %v5261 = vsel %vm5233, %v5258, %v5260
        %v5262 = vrot.slane %v5185, 7
        %v5263 = vrot.slane %v5186, 7
        %v5264 = vsel %vm5233, %v5262, %v5263
        %v5265 = vrot.slane %v5187, 7
        %v5266 = vsel %vm5233, %v5263, %v5265
        %v5267 = vrot.slane %v5188, 7
        %v5268 = vsel %vm5233, %v5265, %v5267
        %v5269 = vrot.slane %v5189, 7
        %v5270 = vrot.slane %v5190, 7
        %v5271 = vsel %vm5233, %v5269, %v5270
        %v5272 = vrot.slane %v5191, 7
        %v5273 = vsel %vm5233, %v5270, %v5272
        %v5274 = vrot.slane %v5192, 7
        %v5275 = vsel %vm5233, %v5272, %v5274
        %v5276 = vrot.slane %v5193, 7
        %v5277 = vrot.slane %v5194, 7
        %v5278 = vsel %vm5233, %v5276, %v5277
        %v5279 = vrot.slane %v5195, 7
        %v5280 = vsel %vm5233, %v5277, %v5279
        %v5281 = vrot.slane %v5196, 7
        %v5282 = vsel %vm5233, %v5279, %v5281
        %v5283 = vrot.slane %v5197, 7
        %v5284 = vrot.slane %v5198, 7
        %v5285 = vsel %vm5233, %v5283, %v5284
        %v5286 = vrot.slane %v5199, 7
        %v5287 = vsel %vm5233, %v5284, %v5286
        %v5288 = vrot.slane %v5200, 7
        %v5289 = vsel %vm5233, %v5286, %v5288
        %v5330 = vadd.f32 %v4390, %v5234
        %v5331 = vadd.f32 %v4391, %v5236
        %v5332 = vadd.f32 %v4392, %v5238
        %v5333 = vadd.f32 %v4393, %v5240
        %v5334 = vadd.f32 %v4394, %v5239
        %v5335 = vadd.f32 %v4395, %v5241
        %v5336 = vadd.f32 %v4396, %v5243
        %v5337 = vadd.f32 %v4397, %v5245
        %v5338 = vadd.f32 %v4398, %v5247
        %v5339 = vadd.f32 %v4399, %v5246
        %v5340 = vadd.f32 %v4400, %v5248
        %v5341 = vadd.f32 %v4401, %v5250
        %v5342 = vadd.f32 %v4402, %v5252
        %v5343 = vadd.f32 %v4403, %v5254
        %v5344 = vadd.f32 %v4404, %v5253
        %v5345 = vadd.f32 %v4405, %v5255
        %v5346 = vadd.f32 %v4406, %v5257
        %v5347 = vadd.f32 %v4407, %v5259
        %v5348 = vadd.f32 %v4408, %v5261
        %v5349 = vadd.f32 %v4409, %v5260
        %v5350 = vadd.f32 %v4410, %v5262
        %v5351 = vadd.f32 %v4411, %v5264
        %v5352 = vadd.f32 %v4412, %v5266
        %v5353 = vadd.f32 %v4413, %v5268
        %v5354 = vadd.f32 %v4414, %v5267
        %v5355 = vadd.f32 %v4415, %v5269
        %v5356 = vadd.f32 %v4416, %v5271
        %v5357 = vadd.f32 %v4417, %v5273
        %v5358 = vadd.f32 %v4418, %v5275
        %v5359 = vadd.f32 %v4419, %v5274
        %v5360 = vadd.f32 %v4420, %v5276
        %v5361 = vadd.f32 %v4421, %v5278
        %v5362 = vadd.f32 %v4422, %v5280
        %v5363 = vadd.f32 %v4423, %v5282
        %v5364 = vadd.f32 %v4424, %v5281
        %v5365 = vadd.f32 %v4425, %v5283
        %v5366 = vadd.f32 %v4426, %v5285
        %v5367 = vadd.f32 %v4427, %v5287
        %v5368 = vadd.f32 %v4428, %v5289
        %v5369 = vadd.f32 %v4429, %v5288
        %v5370 = vlaneseq
        %v5371 = vshrl.u32 %v5370, 7
        %v5372 = vsub.s32 6, %v5371
        %v5373 = vrot.slane %v796, %v5372
        %v5374 = vmul.f32 %v5125, %v5373
        %v5375 = vmul.f32 %v5126, %v5373
        %v5376 = vmul.f32 %v5127, %v5373
        %v5377 = vmul.f32 %v5128, %v5373
        %v5378 = vmul.f32 %v5129, %v5373
        %v5379 = vmul.f32 %v5130, %v5373
        %v5380 = vmul.f32 %v5131, %v5373
        %v5381 = vmul.f32 %v5132, %v5373
        %v5382 = vmul.f32 %v5133, %v5373
        %v5383 = vmul.f32 %v5134, %v5373
        %v5384 = vmul.f32 %v5135, %v5373
        %v5385 = vmul.f32 %v5136, %v5373
        %v5386 = vmul.f32 %v5137, %v5373
        %v5387 = vmul.f32 %v5138, %v5373
        %v5388 = vmul.f32 %v5139, %v5373
        %v5389 = vmul.f32 %v5140, %v5373
        %v5390 = vmul.f32 %v5141, %v5373
        %v5391 = vmul.f32 %v5142, %v5373
        %v5392 = vmul.f32 %v5143, %v5373
        %v5393 = vmul.f32 %v5144, %v5373
        %v5394 = vmul.f32 %v5145, %v5373
        %v5395 = vmul.f32 %v5146, %v5373
        %v5396 = vmul.f32 %v5147, %v5373
        %v5397 = vmul.f32 %v5148, %v5373
        %v5398 = vmul.f32 %v5149, %v5373
        %v5399 = vmul.f32 %v5150, %v5373
        %v5400 = vmul.f32 %v5151, %v5373
        %v5401 = vmul.f32 %v5152, %v5373
        %v5402 = vmul.f32 %v5153, %v5373
        %v5403 = vmul.f32 %v5154, %v5373
        %v5404 = vmul.f32 %v5155, %v5373
        %v5405 = vmul.f32 %v5156, %v5373
        %v5406 = vmul.f32 %v5157, %v5373
        %v5407 = vmul.f32 %v5158, %v5373
        %v5408 = vmul.f32 %v5159, %v5373
        %v5409 = vmul.f32 %v5160, %v5373
        %v5410 = vmul.f32 %v5161, %v5373
        %v5411 = vmul.f32 %v5162, %v5373
        %v5412 = vmul.f32 %v5163, %v5373
        %v5413 = vmul.f32 %v5164, %v5373
        %v5454 = vrot.slane %v5374, 7
        %v5455 = vrot.slane %v5375, 7
        %v5456 = vsel %vm5233, %v5454, %v5455
        %v5457 = vrot.slane %v5376, 7
        %v5458 = vsel %vm5233, %v5455, %v5457
        %v5459 = vrot.slane %v5377, 7
        %v5460 = vsel %vm5233, %v5457, %v5459
        %v5461 = vrot.slane %v5378, 7
        %v5462 = vsel %vm5233, %v5459, %v5461
        %v5463 = vrot.slane %v5379, 7
        %v5464 = vrot.slane %v5380, 7
        %v5465 = vsel %vm5233, %v5463, %v5464
        %v5466 = vrot.slane %v5381, 7
        %v5467 = vsel %vm5233, %v5464, %v5466
        %v5468 = vrot.slane %v5382, 7
        %v5469 = vsel %vm5233, %v5466, %v5468
        %v5470 = vrot.slane %v5383, 7
        %v5471 = vsel %vm5233, %v5468, %v5470
        %v5472 = vrot.slane %v5384, 7
        %v5473 = vrot.slane %v5385, 7
        %v5474 = vsel %vm5233, %v5472, %v5473
        %v5475 = vrot.slane %v5386, 7
        %v5476 = vsel %vm5233, %v5473, %v5475
        %v5477 = vrot.slane %v5387, 7
        %v5478 = vsel %vm5233, %v5475, %v5477
        %v5479 = vrot.slane %v5388, 7
        %v5480 = vsel %vm5233, %v5477, %v5479
        %v5481 = vrot.slane %v5389, 7
        %v5482 = vrot.slane %v5390, 7
        %v5483 = vsel %vm5233, %v5481, %v5482
        %v5484 = vrot.slane %v5391, 7
        %v5485 = vsel %vm5233, %v5482, %v5484
        %v5486 = vrot.slane %v5392, 7
        %v5487 = vsel %vm5233, %v5484, %v5486
        %v5488 = vrot.slane %v5393, 7
        %v5489 = vsel %vm5233, %v5486, %v5488
        %v5490 = vrot.slane %v5394, 7
        %v5491 = vrot.slane %v5395, 7
        %v5492 = vsel %vm5233, %v5490, %v5491
        %v5493 = vrot.slane %v5396, 7
        %v5494 = vsel %vm5233, %v5491, %v5493
        %v5495 = vrot.slane %v5397, 7
        %v5496 = vsel %vm5233, %v5493, %v5495
        %v5497 = vrot.slane %v5398, 7
        %v5498 = vsel %vm5233, %v5495, %v5497
        %v5499 = vrot.slane %v5399, 7
        %v5500 = vrot.slane %v5400, 7
        %v5501 = vsel %vm5233, %v5499, %v5500
        %v5502 = vrot.slane %v5401, 7
        %v5503 = vsel %vm5233, %v5500, %v5502
        %v5504 = vrot.slane %v5402, 7
        %v5505 = vsel %vm5233, %v5502, %v5504
        %v5506 = vrot.slane %v5403, 7
        %v5507 = vsel %vm5233, %v5504, %v5506
        %v5508 = vrot.slane %v5404, 7
        %v5509 = vrot.slane %v5405, 7
        %v5510 = vsel %vm5233, %v5508, %v5509
        %v5511 = vrot.slane %v5406, 7
        %v5512 = vsel %vm5233, %v5509, %v5511
        %v5513 = vrot.slane %v5407, 7
        %v5514 = vsel %vm5233, %v5511, %v5513
        %v5515 = vrot.slane %v5408, 7
        %v5516 = vsel %vm5233, %v5513, %v5515
        %v5517 = vrot.slane %v5409, 7
        %v5518 = vrot.slane %v5410, 7
        %v5519 = vsel %vm5233, %v5517, %v5518
        %v5520 = vrot.slane %v5411, 7
        %v5521 = vsel %vm5233, %v5518, %v5520
        %v5522 = vrot.slane %v5412, 7
        %v5523 = vsel %vm5233, %v5520, %v5522
        %v5524 = vrot.slane %v5413, 7
        %v5525 = vsel %vm5233, %v5522, %v5524
        %v5566 = vadd.f32 %v4626, %v5454
        %v5567 = vadd.f32 %v4627, %v5456
        %v5568 = vadd.f32 %v4628, %v5458
        %v5569 = vadd.f32 %v4629, %v5460
        %v5570 = vadd.f32 %v4630, %v5462
        %v5571 = vadd.f32 %v4631, %v5463
        %v5572 = vadd.f32 %v4632, %v5465
        %v5573 = vadd.f32 %v4633, %v5467
        %v5574 = vadd.f32 %v4634, %v5469
        %v5575 = vadd.f32 %v4635, %v5471
        %v5576 = vadd.f32 %v4636, %v5472
        %v5577 = vadd.f32 %v4637, %v5474
        %v5578 = vadd.f32 %v4638, %v5476
        %v5579 = vadd.f32 %v4639, %v5478
        %v5580 = vadd.f32 %v4640, %v5480
        %v5581 = vadd.f32 %v4641, %v5481
        %v5582 = vadd.f32 %v4642, %v5483
        %v5583 = vadd.f32 %v4643, %v5485
        %v5584 = vadd.f32 %v4644, %v5487
        %v5585 = vadd.f32 %v4645, %v5489
        %v5586 = vadd.f32 %v4646, %v5490
        %v5587 = vadd.f32 %v4647, %v5492
        %v5588 = vadd.f32 %v4648, %v5494
        %v5589 = vadd.f32 %v4649, %v5496
        %v5590 = vadd.f32 %v4650, %v5498
        %v5591 = vadd.f32 %v4651, %v5499
        %v5592 = vadd.f32 %v4652, %v5501
        %v5593 = vadd.f32 %v4653, %v5503
        %v5594 = vadd.f32 %v4654, %v5505
        %v5595 = vadd.f32 %v4655, %v5507
        %v5596 = vadd.f32 %v4656, %v5508
        %v5597 = vadd.f32 %v4657, %v5510
        %v5598 = vadd.f32 %v4658, %v5512
        %v5599 = vadd.f32 %v4659, %v5514
        %v5600 = vadd.f32 %v4660, %v5516
        %v5601 = vadd.f32 %v4661, %v5517
        %v5602 = vadd.f32 %v4662, %v5519
        %v5603 = vadd.f32 %v4663, %v5521
        %v5604 = vadd.f32 %v4664, %v5523
        %v5605 = vadd.f32 %v4665, %v5525
        %v5606 = vlaneseq
        %v5607 = vshrl.u32 %v5606, 7
        %v5608 = vsub.s32 7, %v5607
        %v5609 = vrot.slane %v796, %v5608
        %v5610 = vmul.f32 %v5125, %v5609
        %v5611 = vmul.f32 %v5126, %v5609
        %v5612 = vmul.f32 %v5127, %v5609
        %v5613 = vmul.f32 %v5128, %v5609
        %v5614 = vmul.f32 %v5129, %v5609
        %v5615 = vmul.f32 %v5130, %v5609
        %v5616 = vmul.f32 %v5131, %v5609
        %v5617 = vmul.f32 %v5132, %v5609
        %v5618 = vmul.f32 %v5133, %v5609
        %v5619 = vmul.f32 %v5134, %v5609
        %v5620 = vmul.f32 %v5135, %v5609
        %v5621 = vmul.f32 %v5136, %v5609
        %v5622 = vmul.f32 %v5137, %v5609
        %v5623 = vmul.f32 %v5138, %v5609
        %v5624 = vmul.f32 %v5139, %v5609
        %v5625 = vmul.f32 %v5140, %v5609
        %v5626 = vmul.f32 %v5141, %v5609
        %v5627 = vmul.f32 %v5142, %v5609
        %v5628 = vmul.f32 %v5143, %v5609
        %v5629 = vmul.f32 %v5144, %v5609
        %v5630 = vmul.f32 %v5145, %v5609
        %v5631 = vmul.f32 %v5146, %v5609
        %v5632 = vmul.f32 %v5147, %v5609
        %v5633 = vmul.f32 %v5148, %v5609
        %v5634 = vmul.f32 %v5149, %v5609
        %v5635 = vmul.f32 %v5150, %v5609
        %v5636 = vmul.f32 %v5151, %v5609
        %v5637 = vmul.f32 %v5152, %v5609
        %v5638 = vmul.f32 %v5153, %v5609
        %v5639 = vmul.f32 %v5154, %v5609
        %v5640 = vmul.f32 %v5155, %v5609
        %v5641 = vmul.f32 %v5156, %v5609
        %v5642 = vmul.f32 %v5157, %v5609
        %v5643 = vmul.f32 %v5158, %v5609
        %v5644 = vmul.f32 %v5159, %v5609
        %v5645 = vmul.f32 %v5160, %v5609
        %v5646 = vmul.f32 %v5161, %v5609
        %v5647 = vmul.f32 %v5162, %v5609
        %v5648 = vmul.f32 %v5163, %v5609
        %v5649 = vmul.f32 %v5164, %v5609
        %v5690 = vrot.slane %v5610, 7
        %v5691 = vrot.slane %v5611, 7
        %v5692 = vsel %vm5233, %v5690, %v5691
        %v5693 = vrot.slane %v5612, 7
        %v5694 = vsel %vm5233, %v5691, %v5693
        %v5695 = vrot.slane %v5613, 7
        %v5696 = vsel %vm5233, %v5693, %v5695
        %v5697 = vrot.slane %v5614, 7
        %v5698 = vsel %vm5233, %v5695, %v5697
        %v5699 = vrot.slane %v5615, 7
        %v5700 = vrot.slane %v5616, 7
        %v5701 = vsel %vm5233, %v5699, %v5700
        %v5702 = vrot.slane %v5617, 7
        %v5703 = vsel %vm5233, %v5700, %v5702
        %v5704 = vrot.slane %v5618, 7
        %v5705 = vsel %vm5233, %v5702, %v5704
        %v5706 = vrot.slane %v5619, 7
        %v5707 = vsel %vm5233, %v5704, %v5706
        %v5708 = vrot.slane %v5620, 7
        %v5709 = vrot.slane %v5621, 7
        %v5710 = vsel %vm5233, %v5708, %v5709
        %v5711 = vrot.slane %v5622, 7
        %v5712 = vsel %vm5233, %v5709, %v5711
        %v5713 = vrot.slane %v5623, 7
        %v5714 = vsel %vm5233, %v5711, %v5713
        %v5715 = vrot.slane %v5624, 7
        %v5716 = vsel %vm5233, %v5713, %v5715
        %v5717 = vrot.slane %v5625, 7
        %v5718 = vrot.slane %v5626, 7
        %v5719 = vsel %vm5233, %v5717, %v5718
        %v5720 = vrot.slane %v5627, 7
        %v5721 = vsel %vm5233, %v5718, %v5720
        %v5722 = vrot.slane %v5628, 7
        %v5723 = vsel %vm5233, %v5720, %v5722
        %v5724 = vrot.slane %v5629, 7
        %v5725 = vsel %vm5233, %v5722, %v5724
        %v5726 = vrot.slane %v5630, 7
        %v5727 = vrot.slane %v5631, 7
        %v5728 = vsel %vm5233, %v5726, %v5727
        %v5729 = vrot.slane %v5632, 7
        %v5730 = vsel %vm5233, %v5727, %v5729
        %v5731 = vrot.slane %v5633, 7
        %v5732 = vsel %vm5233, %v5729, %v5731
        %v5733 = vrot.slane %v5634, 7
        %v5734 = vsel %vm5233, %v5731, %v5733
        %v5735 = vrot.slane %v5635, 7
        %v5736 = vrot.slane %v5636, 7
        %v5737 = vsel %vm5233, %v5735, %v5736
        %v5738 = vrot.slane %v5637, 7
        %v5739 = vsel %vm5233, %v5736, %v5738
        %v5740 = vrot.slane %v5638, 7
        %v5741 = vsel %vm5233, %v5738, %v5740
        %v5742 = vrot.slane %v5639, 7
        %v5743 = vsel %vm5233, %v5740, %v5742
        %v5744 = vrot.slane %v5640, 7
        %v5745 = vrot.slane %v5641, 7
        %v5746 = vsel %vm5233, %v5744, %v5745
        %v5747 = vrot.slane %v5642, 7
        %v5748 = vsel %vm5233, %v5745, %v5747
        %v5749 = vrot.slane %v5643, 7
        %v5750 = vsel %vm5233, %v5747, %v5749
        %v5751 = vrot.slane %v5644, 7
        %v5752 = vsel %vm5233, %v5749, %v5751
        %v5753 = vrot.slane %v5645, 7
        %v5754 = vrot.slane %v5646, 7
        %v5755 = vsel %vm5233, %v5753, %v5754
        %v5756 = vrot.slane %v5647, 7
        %v5757 = vsel %vm5233, %v5754, %v5756
        %v5758 = vrot.slane %v5648, 7
        %v5759 = vsel %vm5233, %v5756, %v5758
        %v5760 = vrot.slane %v5649, 7
        %v5761 = vsel %vm5233, %v5758, %v5760
        %v5802 = vadd.f32 %v4862, %v5690
        %v5803 = vadd.f32 %v4863, %v5692
        %v5804 = vadd.f32 %v4864, %v5694
        %v5805 = vadd.f32 %v4865, %v5696
        %v5806 = vadd.f32 %v4866, %v5698
        %v5807 = vadd.f32 %v4867, %v5699
        %v5808 = vadd.f32 %v4868, %v5701
        %v5809 = vadd.f32 %v4869, %v5703
        %v5810 = vadd.f32 %v4870, %v5705
        %v5811 = vadd.f32 %v4871, %v5707
        %v5812 = vadd.f32 %v4872, %v5708
        %v5813 = vadd.f32 %v4873, %v5710
        %v5814 = vadd.f32 %v4874, %v5712
        %v5815 = vadd.f32 %v4875, %v5714
        %v5816 = vadd.f32 %v4876, %v5716
        %v5817 = vadd.f32 %v4877, %v5717
        %v5818 = vadd.f32 %v4878, %v5719
        %v5819 = vadd.f32 %v4879, %v5721
        %v5820 = vadd.f32 %v4880, %v5723
        %v5821 = vadd.f32 %v4881, %v5725
        %v5822 = vadd.f32 %v4882, %v5726
        %v5823 = vadd.f32 %v4883, %v5728
        %v5824 = vadd.f32 %v4884, %v5730
        %v5825 = vadd.f32 %v4885, %v5732
        %v5826 = vadd.f32 %v4886, %v5734
        %v5827 = vadd.f32 %v4887, %v5735
        %v5828 = vadd.f32 %v4888, %v5737
        %v5829 = vadd.f32 %v4889, %v5739
        %v5830 = vadd.f32 %v4890, %v5741
        %v5831 = vadd.f32 %v4891, %v5743
        %v5832 = vadd.f32 %v4892, %v5744
        %v5833 = vadd.f32 %v4893, %v5746
        %v5834 = vadd.f32 %v4894, %v5748
        %v5835 = vadd.f32 %v4895, %v5750
        %v5836 = vadd.f32 %v4896, %v5752
        %v5837 = vadd.f32 %v4897, %v5753
        %v5838 = vadd.f32 %v4898, %v5755
        %v5839 = vadd.f32 %v4899, %v5757
        %v5840 = vadd.f32 %v4900, %v5759
        %v5841 = vadd.f32 %v4901, %v5761
        %v5842 = vlaneseq
        %v5843 = vshrl.u32 %v5842, 7
        %v5844 = vsub.s32 0, %v5843
        %v5845 = vrot.slane %v797, %v5844
        %v5846 = vmul.f32 %v5125, %v5845
        %v5847 = vmul.f32 %v5126, %v5845
        %v5848 = vmul.f32 %v5127, %v5845
        %v5849 = vmul.f32 %v5128, %v5845
        %v5850 = vmul.f32 %v5129, %v5845
        %v5851 = vmul.f32 %v5130, %v5845
        %v5852 = vmul.f32 %v5131, %v5845
        %v5853 = vmul.f32 %v5132, %v5845
        %v5854 = vmul.f32 %v5133, %v5845
        %v5855 = vmul.f32 %v5134, %v5845
        %v5856 = vmul.f32 %v5135, %v5845
        %v5857 = vmul.f32 %v5136, %v5845
        %v5858 = vmul.f32 %v5137, %v5845
        %v5859 = vmul.f32 %v5138, %v5845
        %v5860 = vmul.f32 %v5139, %v5845
        %v5861 = vmul.f32 %v5140, %v5845
        %v5862 = vmul.f32 %v5141, %v5845
        %v5863 = vmul.f32 %v5142, %v5845
        %v5864 = vmul.f32 %v5143, %v5845
        %v5865 = vmul.f32 %v5144, %v5845
        %v5866 = vmul.f32 %v5145, %v5845
        %v5867 = vmul.f32 %v5146, %v5845
        %v5868 = vmul.f32 %v5147, %v5845
        %v5869 = vmul.f32 %v5148, %v5845
        %v5870 = vmul.f32 %v5149, %v5845
        %v5871 = vmul.f32 %v5150, %v5845
        %v5872 = vmul.f32 %v5151, %v5845
        %v5873 = vmul.f32 %v5152, %v5845
        %v5874 = vmul.f32 %v5153, %v5845
        %v5875 = vmul.f32 %v5154, %v5845
        %v5876 = vmul.f32 %v5155, %v5845
        %v5877 = vmul.f32 %v5156, %v5845
        %v5878 = vmul.f32 %v5157, %v5845
        %v5879 = vmul.f32 %v5158, %v5845
        %v5880 = vmul.f32 %v5159, %v5845
        %v5881 = vmul.f32 %v5160, %v5845
        %v5882 = vmul.f32 %v5161, %v5845
        %v5883 = vmul.f32 %v5162, %v5845
        %v5884 = vmul.f32 %v5163, %v5845
        %v5885 = vmul.f32 %v5164, %v5845
        %vm5926 = vcmask 1044480
        %v5927 = vrot.slane %v5846, 3
        %v5928 = vrot.slane %v5847, 3
        %v5929 = vsel %vm5926, %v5927, %v5928
        %v5930 = vrot.slane %v5848, 3
        %v5931 = vsel %vm5926, %v5928, %v5930
        %v5932 = vrot.slane %v5849, 3
        %v5933 = vsel %vm5926, %v5930, %v5932
        %v5934 = vrot.slane %v5850, 3
        %v5935 = vsel %vm5926, %v5932, %v5934
        %v5936 = vrot.slane %v5851, 3
        %v5937 = vrot.slane %v5852, 3
        %v5938 = vsel %vm5926, %v5936, %v5937
        %v5939 = vrot.slane %v5853, 3
        %v5940 = vsel %vm5926, %v5937, %v5939
        %v5941 = vrot.slane %v5854, 3
        %v5942 = vsel %vm5926, %v5939, %v5941
        %v5943 = vrot.slane %v5855, 3
        %v5944 = vsel %vm5926, %v5941, %v5943
        %v5945 = vrot.slane %v5856, 3
        %v5946 = vrot.slane %v5857, 3
        %v5947 = vsel %vm5926, %v5945, %v5946
        %v5948 = vrot.slane %v5858, 3
        %v5949 = vsel %vm5926, %v5946, %v5948
        %v5950 = vrot.slane %v5859, 3
        %v5951 = vsel %vm5926, %v5948, %v5950
        %v5952 = vrot.slane %v5860, 3
        %v5953 = vsel %vm5926, %v5950, %v5952
        %v5954 = vrot.slane %v5861, 3
        %v5955 = vrot.slane %v5862, 3
        %v5956 = vsel %vm5926, %v5954, %v5955
        %v5957 = vrot.slane %v5863, 3
        %v5958 = vsel %vm5926, %v5955, %v5957
        %v5959 = vrot.slane %v5864, 3
        %v5960 = vsel %vm5926, %v5957, %v5959
        %v5961 = vrot.slane %v5865, 3
        %v5962 = vsel %vm5926, %v5959, %v5961
        %v5963 = vrot.slane %v5866, 3
        %v5964 = vrot.slane %v5867, 3
        %v5965 = vsel %vm5926, %v5963, %v5964
        %v5966 = vrot.slane %v5868, 3
        %v5967 = vsel %vm5926, %v5964, %v5966
        %v5968 = vrot.slane %v5869, 3
        %v5969 = vsel %vm5926, %v5966, %v5968
        %v5970 = vrot.slane %v5870, 3
        %v5971 = vsel %vm5926, %v5968, %v5970
        %v5972 = vrot.slane %v5871, 3
        %v5973 = vrot.slane %v5872, 3
        %v5974 = vsel %vm5926, %v5972, %v5973
        %v5975 = vrot.slane %v5873, 3
        %v5976 = vsel %vm5926, %v5973, %v5975
        %v5977 = vrot.slane %v5874, 3
        %v5978 = vsel %vm5926, %v5975, %v5977
        %v5979 = vrot.slane %v5875, 3
        %v5980 = vsel %vm5926, %v5977, %v5979
        %v5981 = vrot.slane %v5876, 3
        %v5982 = vrot.slane %v5877, 3
        %v5983 = vsel %vm5926, %v5981, %v5982
        %v5984 = vrot.slane %v5878, 3
        %v5985 = vsel %vm5926, %v5982, %v5984
        %v5986 = vrot.slane %v5879, 3
        %v5987 = vsel %vm5926, %v5984, %v5986
        %v5988 = vrot.slane %v5880, 3
        %v5989 = vsel %vm5926, %v5986, %v5988
        %v5990 = vrot.slane %v5881, 3
        %v5991 = vrot.slane %v5882, 3
        %v5992 = vsel %vm5926, %v5990, %v5991
        %v5993 = vrot.slane %v5883, 3
        %v5994 = vsel %vm5926, %v5991, %v5993
        %v5995 = vrot.slane %v5884, 3
        %v5996 = vsel %vm5926, %v5993, %v5995
        %v5997 = vrot.slane %v5885, 3
        %v5998 = vsel %vm5926, %v5995, %v5997
        %v6031 = vadd.f32 %v5090, %v5929
        %v6032 = vadd.f32 %v5091, %v5931
        %v6033 = vadd.f32 %v5092, %v5933
        %v6034 = vadd.f32 %v5093, %v5935
        %v6035 = vadd.f32 %v5094, %v5938
        %v6036 = vadd.f32 %v5095, %v5940
        %v6037 = vadd.f32 %v5096, %v5942
        %v6038 = vadd.f32 %v5097, %v5944
        %v6039 = vadd.f32 %v5098, %v5947
        %v6040 = vadd.f32 %v5099, %v5949
        %v6041 = vadd.f32 %v5100, %v5951
        %v6042 = vadd.f32 %v5101, %v5953
        %v6043 = vadd.f32 %v5102, %v5956
        %v6044 = vadd.f32 %v5103, %v5958
        %v6045 = vadd.f32 %v5104, %v5960
        %v6046 = vadd.f32 %v5105, %v5962
        %v6047 = vadd.f32 %v5106, %v5965
        %v6048 = vadd.f32 %v5107, %v5967
        %v6049 = vadd.f32 %v5108, %v5969
        %v6050 = vadd.f32 %v5109, %v5971
        %v6051 = vadd.f32 %v5110, %v5974
        %v6052 = vadd.f32 %v5111, %v5976
        %v6053 = vadd.f32 %v5112, %v5978
        %v6054 = vadd.f32 %v5113, %v5980
        %v6055 = vadd.f32 %v5114, %v5983
        %v6056 = vadd.f32 %v5115, %v5985
        %v6057 = vadd.f32 %v5116, %v5987
        %v6058 = vadd.f32 %v5117, %v5989
        %v6059 = vadd.f32 %v5118, %v5992
        %v6060 = vadd.f32 %v5119, %v5994
        %v6061 = vadd.f32 %v5120, %v5996
        %v6062 = vadd.f32 %v5121, %v5998
        %v6063 = vlaneseq
        %v6064 = vshrl.u32 %v6063, 7
        %v6065 = vsub.s32 1, %v6064
        %v6066 = vrot.slane %v797, %v6065
        %v6067 = vmul.f32 %v5125, %v6066
        %v6068 = vmul.f32 %v5126, %v6066
        %v6069 = vmul.f32 %v5127, %v6066
        %v6070 = vmul.f32 %v5128, %v6066
        %v6071 = vmul.f32 %v5129, %v6066
        %v6072 = vmul.f32 %v5130, %v6066
        %v6073 = vmul.f32 %v5131, %v6066
        %v6074 = vmul.f32 %v5132, %v6066
        %v6075 = vmul.f32 %v5133, %v6066
        %v6076 = vmul.f32 %v5134, %v6066
        %v6077 = vmul.f32 %v5135, %v6066
        %v6078 = vmul.f32 %v5136, %v6066
        %v6079 = vmul.f32 %v5137, %v6066
        %v6080 = vmul.f32 %v5138, %v6066
        %v6081 = vmul.f32 %v5139, %v6066
        %v6082 = vmul.f32 %v5140, %v6066
        %v6083 = vmul.f32 %v5141, %v6066
        %v6084 = vmul.f32 %v5142, %v6066
        %v6085 = vmul.f32 %v5143, %v6066
        %v6086 = vmul.f32 %v5144, %v6066
        %v6087 = vmul.f32 %v5145, %v6066
        %v6088 = vmul.f32 %v5146, %v6066
        %v6089 = vmul.f32 %v5147, %v6066
        %v6090 = vmul.f32 %v5148, %v6066
        %v6091 = vmul.f32 %v5149, %v6066
        %v6092 = vmul.f32 %v5150, %v6066
        %v6093 = vmul.f32 %v5151, %v6066
        %v6094 = vmul.f32 %v5152, %v6066
        %v6095 = vmul.f32 %v5153, %v6066
        %v6096 = vmul.f32 %v5154, %v6066
        %v6097 = vmul.f32 %v5155, %v6066
        %v6098 = vmul.f32 %v5156, %v6066
        %v6099 = vmul.f32 %v5157, %v6066
        %v6100 = vmul.f32 %v5158, %v6066
        %v6101 = vmul.f32 %v5159, %v6066
        %v6102 = vmul.f32 %v5160, %v6066
        %v6103 = vmul.f32 %v5161, %v6066
        %v6104 = vmul.f32 %v5162, %v6066
        %v6105 = vmul.f32 %v5163, %v6066
        %v6106 = vmul.f32 %v5164, %v6066
        %v6147 = vrot.slane %v6067, 3
        %v6148 = vrot.slane %v6068, 3
        %v6149 = vsel %vm5926, %v6147, %v6148
        %v6150 = vrot.slane %v6069, 3
        %v6151 = vsel %vm5926, %v6148, %v6150
        %v6152 = vrot.slane %v6070, 3
        %v6153 = vsel %vm5926, %v6150, %v6152
        %v6154 = vrot.slane %v6071, 3
        %v6155 = vsel %vm5926, %v6152, %v6154
        %v6156 = vrot.slane %v6072, 3
        %v6157 = vrot.slane %v6073, 3
        %v6158 = vsel %vm5926, %v6156, %v6157
        %v6159 = vrot.slane %v6074, 3
        %v6160 = vsel %vm5926, %v6157, %v6159
        %v6161 = vrot.slane %v6075, 3
        %v6162 = vsel %vm5926, %v6159, %v6161
        %v6163 = vrot.slane %v6076, 3
        %v6164 = vsel %vm5926, %v6161, %v6163
        %v6165 = vrot.slane %v6077, 3
        %v6166 = vrot.slane %v6078, 3
        %v6167 = vsel %vm5926, %v6165, %v6166
        %v6168 = vrot.slane %v6079, 3
        %v6169 = vsel %vm5926, %v6166, %v6168
        %v6170 = vrot.slane %v6080, 3
        %v6171 = vsel %vm5926, %v6168, %v6170
        %v6172 = vrot.slane %v6081, 3
        %v6173 = vsel %vm5926, %v6170, %v6172
        %v6174 = vrot.slane %v6082, 3
        %v6175 = vrot.slane %v6083, 3
        %v6176 = vsel %vm5926, %v6174, %v6175
        %v6177 = vrot.slane %v6084, 3
        %v6178 = vsel %vm5926, %v6175, %v6177
        %v6179 = vrot.slane %v6085, 3
        %v6180 = vsel %vm5926, %v6177, %v6179
        %v6181 = vrot.slane %v6086, 3
        %v6182 = vsel %vm5926, %v6179, %v6181
        %v6183 = vrot.slane %v6087, 3
        %v6184 = vrot.slane %v6088, 3
        %v6185 = vsel %vm5926, %v6183, %v6184
        %v6186 = vrot.slane %v6089, 3
        %v6187 = vsel %vm5926, %v6184, %v6186
        %v6188 = vrot.slane %v6090, 3
        %v6189 = vsel %vm5926, %v6186, %v6188
        %v6190 = vrot.slane %v6091, 3
        %v6191 = vsel %vm5926, %v6188, %v6190
        %v6192 = vrot.slane %v6092, 3
        %v6193 = vrot.slane %v6093, 3
        %v6194 = vsel %vm5926, %v6192, %v6193
        %v6195 = vrot.slane %v6094, 3
        %v6196 = vsel %vm5926, %v6193, %v6195
        %v6197 = vrot.slane %v6095, 3
        %v6198 = vsel %vm5926, %v6195, %v6197
        %v6199 = vrot.slane %v6096, 3
        %v6200 = vsel %vm5926, %v6197, %v6199
        %v6201 = vrot.slane %v6097, 3
        %v6202 = vrot.slane %v6098, 3
        %v6203 = vsel %vm5926, %v6201, %v6202
        %v6204 = vrot.slane %v6099, 3
        %v6205 = vsel %vm5926, %v6202, %v6204
        %v6206 = vrot.slane %v6100, 3
        %v6207 = vsel %vm5926, %v6204, %v6206
        %v6208 = vrot.slane %v6101, 3
        %v6209 = vsel %vm5926, %v6206, %v6208
        %v6210 = vrot.slane %v6102, 3
        %v6211 = vrot.slane %v6103, 3
        %v6212 = vsel %vm5926, %v6210, %v6211
        %v6213 = vrot.slane %v6104, 3
        %v6214 = vsel %vm5926, %v6211, %v6213
        %v6215 = vrot.slane %v6105, 3
        %v6216 = vsel %vm5926, %v6213, %v6215
        %v6217 = vrot.slane %v6106, 3
        %v6218 = vsel %vm5926, %v6215, %v6217
        %v6259 = vadd.f32 %v5330, %v6149
        %v6260 = vadd.f32 %v5331, %v6151
        %v6261 = vadd.f32 %v5332, %v6153
        %v6262 = vadd.f32 %v5333, %v6155
        %v6263 = vadd.f32 %v5334, %v6154
        %v6264 = vadd.f32 %v5335, %v6158
        %v6265 = vadd.f32 %v5336, %v6160
        %v6266 = vadd.f32 %v5337, %v6162
        %v6267 = vadd.f32 %v5338, %v6164
        %v6268 = vadd.f32 %v5339, %v6163
        %v6269 = vadd.f32 %v5340, %v6167
        %v6270 = vadd.f32 %v5341, %v6169
        %v6271 = vadd.f32 %v5342, %v6171
        %v6272 = vadd.f32 %v5343, %v6173
        %v6273 = vadd.f32 %v5344, %v6172
        %v6274 = vadd.f32 %v5345, %v6176
        %v6275 = vadd.f32 %v5346, %v6178
        %v6276 = vadd.f32 %v5347, %v6180
        %v6277 = vadd.f32 %v5348, %v6182
        %v6278 = vadd.f32 %v5349, %v6181
        %v6279 = vadd.f32 %v5350, %v6185
        %v6280 = vadd.f32 %v5351, %v6187
        %v6281 = vadd.f32 %v5352, %v6189
        %v6282 = vadd.f32 %v5353, %v6191
        %v6283 = vadd.f32 %v5354, %v6190
        %v6284 = vadd.f32 %v5355, %v6194
        %v6285 = vadd.f32 %v5356, %v6196
        %v6286 = vadd.f32 %v5357, %v6198
        %v6287 = vadd.f32 %v5358, %v6200
        %v6288 = vadd.f32 %v5359, %v6199
        %v6289 = vadd.f32 %v5360, %v6203
        %v6290 = vadd.f32 %v5361, %v6205
        %v6291 = vadd.f32 %v5362, %v6207
        %v6292 = vadd.f32 %v5363, %v6209
        %v6293 = vadd.f32 %v5364, %v6208
        %v6294 = vadd.f32 %v5365, %v6212
        %v6295 = vadd.f32 %v5366, %v6214
        %v6296 = vadd.f32 %v5367, %v6216
        %v6297 = vadd.f32 %v5368, %v6218
        %v6298 = vadd.f32 %v5369, %v6217
        %v6299 = vlaneseq
        %v6300 = vshrl.u32 %v6299, 7
        %v6301 = vsub.s32 2, %v6300
        %v6302 = vrot.slane %v797, %v6301
        %v6303 = vmul.f32 %v5125, %v6302
        %v6304 = vmul.f32 %v5126, %v6302
        %v6305 = vmul.f32 %v5127, %v6302
        %v6306 = vmul.f32 %v5128, %v6302
        %v6307 = vmul.f32 %v5129, %v6302
        %v6308 = vmul.f32 %v5130, %v6302
        %v6309 = vmul.f32 %v5131, %v6302
        %v6310 = vmul.f32 %v5132, %v6302
        %v6311 = vmul.f32 %v5133, %v6302
        %v6312 = vmul.f32 %v5134, %v6302
        %v6313 = vmul.f32 %v5135, %v6302
        %v6314 = vmul.f32 %v5136, %v6302
        %v6315 = vmul.f32 %v5137, %v6302
        %v6316 = vmul.f32 %v5138, %v6302
        %v6317 = vmul.f32 %v5139, %v6302
        %v6318 = vmul.f32 %v5140, %v6302
        %v6319 = vmul.f32 %v5141, %v6302
        %v6320 = vmul.f32 %v5142, %v6302
        %v6321 = vmul.f32 %v5143, %v6302
        %v6322 = vmul.f32 %v5144, %v6302
        %v6323 = vmul.f32 %v5145, %v6302
        %v6324 = vmul.f32 %v5146, %v6302
        %v6325 = vmul.f32 %v5147, %v6302
        %v6326 = vmul.f32 %v5148, %v6302
        %v6327 = vmul.f32 %v5149, %v6302
        %v6328 = vmul.f32 %v5150, %v6302
        %v6329 = vmul.f32 %v5151, %v6302
        %v6330 = vmul.f32 %v5152, %v6302
        %v6331 = vmul.f32 %v5153, %v6302
        %v6332 = vmul.f32 %v5154, %v6302
        %v6333 = vmul.f32 %v5155, %v6302
        %v6334 = vmul.f32 %v5156, %v6302
        %v6335 = vmul.f32 %v5157, %v6302
        %v6336 = vmul.f32 %v5158, %v6302
        %v6337 = vmul.f32 %v5159, %v6302
        %v6338 = vmul.f32 %v5160, %v6302
        %v6339 = vmul.f32 %v5161, %v6302
        %v6340 = vmul.f32 %v5162, %v6302
        %v6341 = vmul.f32 %v5163, %v6302
        %v6342 = vmul.f32 %v5164, %v6302
        %v6383 = vrot.slane %v6303, 3
        %v6384 = vrot.slane %v6304, 3
        %v6385 = vsel %vm5926, %v6383, %v6384
        %v6386 = vrot.slane %v6305, 3
        %v6387 = vsel %vm5926, %v6384, %v6386
        %v6388 = vrot.slane %v6306, 3
        %v6389 = vsel %vm5926, %v6386, %v6388
        %v6390 = vrot.slane %v6307, 3
        %v6391 = vsel %vm5926, %v6388, %v6390
        %v6392 = vrot.slane %v6308, 3
        %v6393 = vrot.slane %v6309, 3
        %v6394 = vsel %vm5926, %v6392, %v6393
        %v6395 = vrot.slane %v6310, 3
        %v6396 = vsel %vm5926, %v6393, %v6395
        %v6397 = vrot.slane %v6311, 3
        %v6398 = vsel %vm5926, %v6395, %v6397
        %v6399 = vrot.slane %v6312, 3
        %v6400 = vsel %vm5926, %v6397, %v6399
        %v6401 = vrot.slane %v6313, 3
        %v6402 = vrot.slane %v6314, 3
        %v6403 = vsel %vm5926, %v6401, %v6402
        %v6404 = vrot.slane %v6315, 3
        %v6405 = vsel %vm5926, %v6402, %v6404
        %v6406 = vrot.slane %v6316, 3
        %v6407 = vsel %vm5926, %v6404, %v6406
        %v6408 = vrot.slane %v6317, 3
        %v6409 = vsel %vm5926, %v6406, %v6408
        %v6410 = vrot.slane %v6318, 3
        %v6411 = vrot.slane %v6319, 3
        %v6412 = vsel %vm5926, %v6410, %v6411
        %v6413 = vrot.slane %v6320, 3
        %v6414 = vsel %vm5926, %v6411, %v6413
        %v6415 = vrot.slane %v6321, 3
        %v6416 = vsel %vm5926, %v6413, %v6415
        %v6417 = vrot.slane %v6322, 3
        %v6418 = vsel %vm5926, %v6415, %v6417
        %v6419 = vrot.slane %v6323, 3
        %v6420 = vrot.slane %v6324, 3
        %v6421 = vsel %vm5926, %v6419, %v6420
        %v6422 = vrot.slane %v6325, 3
        %v6423 = vsel %vm5926, %v6420, %v6422
        %v6424 = vrot.slane %v6326, 3
        %v6425 = vsel %vm5926, %v6422, %v6424
        %v6426 = vrot.slane %v6327, 3
        %v6427 = vsel %vm5926, %v6424, %v6426
        %v6428 = vrot.slane %v6328, 3
        %v6429 = vrot.slane %v6329, 3
        %v6430 = vsel %vm5926, %v6428, %v6429
        %v6431 = vrot.slane %v6330, 3
        %v6432 = vsel %vm5926, %v6429, %v6431
        %v6433 = vrot.slane %v6331, 3
        %v6434 = vsel %vm5926, %v6431, %v6433
        %v6435 = vrot.slane %v6332, 3
        %v6436 = vsel %vm5926, %v6433, %v6435
        %v6437 = vrot.slane %v6333, 3
        %v6438 = vrot.slane %v6334, 3
        %v6439 = vsel %vm5926, %v6437, %v6438
        %v6440 = vrot.slane %v6335, 3
        %v6441 = vsel %vm5926, %v6438, %v6440
        %v6442 = vrot.slane %v6336, 3
        %v6443 = vsel %vm5926, %v6440, %v6442
        %v6444 = vrot.slane %v6337, 3
        %v6445 = vsel %vm5926, %v6442, %v6444
        %v6446 = vrot.slane %v6338, 3
        %v6447 = vrot.slane %v6339, 3
        %v6448 = vsel %vm5926, %v6446, %v6447
        %v6449 = vrot.slane %v6340, 3
        %v6450 = vsel %vm5926, %v6447, %v6449
        %v6451 = vrot.slane %v6341, 3
        %v6452 = vsel %vm5926, %v6449, %v6451
        %v6453 = vrot.slane %v6342, 3
        %v6454 = vsel %vm5926, %v6451, %v6453
        %v6495 = vadd.f32 %v5566, %v6385
        %v6496 = vadd.f32 %v5567, %v6387
        %v6497 = vadd.f32 %v5568, %v6389
        %v6498 = vadd.f32 %v5569, %v6391
        %v6499 = vadd.f32 %v5570, %v6390
        %v6500 = vadd.f32 %v5571, %v6394
        %v6501 = vadd.f32 %v5572, %v6396
        %v6502 = vadd.f32 %v5573, %v6398
        %v6503 = vadd.f32 %v5574, %v6400
        %v6504 = vadd.f32 %v5575, %v6399
        %v6505 = vadd.f32 %v5576, %v6403
        %v6506 = vadd.f32 %v5577, %v6405
        %v6507 = vadd.f32 %v5578, %v6407
        %v6508 = vadd.f32 %v5579, %v6409
        %v6509 = vadd.f32 %v5580, %v6408
        %v6510 = vadd.f32 %v5581, %v6412
        %v6511 = vadd.f32 %v5582, %v6414
        %v6512 = vadd.f32 %v5583, %v6416
        %v6513 = vadd.f32 %v5584, %v6418
        %v6514 = vadd.f32 %v5585, %v6417
        %v6515 = vadd.f32 %v5586, %v6421
        %v6516 = vadd.f32 %v5587, %v6423
        %v6517 = vadd.f32 %v5588, %v6425
        %v6518 = vadd.f32 %v5589, %v6427
        %v6519 = vadd.f32 %v5590, %v6426
        %v6520 = vadd.f32 %v5591, %v6430
        %v6521 = vadd.f32 %v5592, %v6432
        %v6522 = vadd.f32 %v5593, %v6434
        %v6523 = vadd.f32 %v5594, %v6436
        %v6524 = vadd.f32 %v5595, %v6435
        %v6525 = vadd.f32 %v5596, %v6439
        %v6526 = vadd.f32 %v5597, %v6441
        %v6527 = vadd.f32 %v5598, %v6443
        %v6528 = vadd.f32 %v5599, %v6445
        %v6529 = vadd.f32 %v5600, %v6444
        %v6530 = vadd.f32 %v5601, %v6448
        %v6531 = vadd.f32 %v5602, %v6450
        %v6532 = vadd.f32 %v5603, %v6452
        %v6533 = vadd.f32 %v5604, %v6454
        %v6534 = vadd.f32 %v5605, %v6453
        %v6535 = vlaneseq
        %v6536 = vshrl.u32 %v6535, 7
        %v6537 = vsub.s32 3, %v6536
        %v6538 = vrot.slane %v797, %v6537
        %v6539 = vmul.f32 %v5125, %v6538
        %v6540 = vmul.f32 %v5126, %v6538
        %v6541 = vmul.f32 %v5127, %v6538
        %v6542 = vmul.f32 %v5128, %v6538
        %v6543 = vmul.f32 %v5129, %v6538
        %v6544 = vmul.f32 %v5130, %v6538
        %v6545 = vmul.f32 %v5131, %v6538
        %v6546 = vmul.f32 %v5132, %v6538
        %v6547 = vmul.f32 %v5133, %v6538
        %v6548 = vmul.f32 %v5134, %v6538
        %v6549 = vmul.f32 %v5135, %v6538
        %v6550 = vmul.f32 %v5136, %v6538
        %v6551 = vmul.f32 %v5137, %v6538
        %v6552 = vmul.f32 %v5138, %v6538
        %v6553 = vmul.f32 %v5139, %v6538
        %v6554 = vmul.f32 %v5140, %v6538
        %v6555 = vmul.f32 %v5141, %v6538
        %v6556 = vmul.f32 %v5142, %v6538
        %v6557 = vmul.f32 %v5143, %v6538
        %v6558 = vmul.f32 %v5144, %v6538
        %v6559 = vmul.f32 %v5145, %v6538
        %v6560 = vmul.f32 %v5146, %v6538
        %v6561 = vmul.f32 %v5147, %v6538
        %v6562 = vmul.f32 %v5148, %v6538
        %v6563 = vmul.f32 %v5149, %v6538
        %v6564 = vmul.f32 %v5150, %v6538
        %v6565 = vmul.f32 %v5151, %v6538
        %v6566 = vmul.f32 %v5152, %v6538
        %v6567 = vmul.f32 %v5153, %v6538
        %v6568 = vmul.f32 %v5154, %v6538
        %v6569 = vmul.f32 %v5155, %v6538
        %v6570 = vmul.f32 %v5156, %v6538
        %v6571 = vmul.f32 %v5157, %v6538
        %v6572 = vmul.f32 %v5158, %v6538
        %v6573 = vmul.f32 %v5159, %v6538
        %v6574 = vmul.f32 %v5160, %v6538
        %v6575 = vmul.f32 %v5161, %v6538
        %v6576 = vmul.f32 %v5162, %v6538
        %v6577 = vmul.f32 %v5163, %v6538
        %v6578 = vmul.f32 %v5164, %v6538
        %v6619 = vrot.slane %v6539, 3
        %v6620 = vrot.slane %v6540, 3
        %v6621 = vsel %vm5926, %v6619, %v6620
        %v6622 = vrot.slane %v6541, 3
        %v6623 = vsel %vm5926, %v6620, %v6622
        %v6624 = vrot.slane %v6542, 3
        %v6625 = vsel %vm5926, %v6622, %v6624
        %v6626 = vrot.slane %v6543, 3
        %v6627 = vsel %vm5926, %v6624, %v6626
        %v6628 = vrot.slane %v6544, 3
        %v6629 = vrot.slane %v6545, 3
        %v6630 = vsel %vm5926, %v6628, %v6629
        %v6631 = vrot.slane %v6546, 3
        %v6632 = vsel %vm5926, %v6629, %v6631
        %v6633 = vrot.slane %v6547, 3
        %v6634 = vsel %vm5926, %v6631, %v6633
        %v6635 = vrot.slane %v6548, 3
        %v6636 = vsel %vm5926, %v6633, %v6635
        %v6637 = vrot.slane %v6549, 3
        %v6638 = vrot.slane %v6550, 3
        %v6639 = vsel %vm5926, %v6637, %v6638
        %v6640 = vrot.slane %v6551, 3
        %v6641 = vsel %vm5926, %v6638, %v6640
        %v6642 = vrot.slane %v6552, 3
        %v6643 = vsel %vm5926, %v6640, %v6642
        %v6644 = vrot.slane %v6553, 3
        %v6645 = vsel %vm5926, %v6642, %v6644
        %v6646 = vrot.slane %v6554, 3
        %v6647 = vrot.slane %v6555, 3
        %v6648 = vsel %vm5926, %v6646, %v6647
        %v6649 = vrot.slane %v6556, 3
        %v6650 = vsel %vm5926, %v6647, %v6649
        %v6651 = vrot.slane %v6557, 3
        %v6652 = vsel %vm5926, %v6649, %v6651
        %v6653 = vrot.slane %v6558, 3
        %v6654 = vsel %vm5926, %v6651, %v6653
        %v6655 = vrot.slane %v6559, 3
        %v6656 = vrot.slane %v6560, 3
        %v6657 = vsel %vm5926, %v6655, %v6656
        %v6658 = vrot.slane %v6561, 3
        %v6659 = vsel %vm5926, %v6656, %v6658
        %v6660 = vrot.slane %v6562, 3
        %v6661 = vsel %vm5926, %v6658, %v6660
        %v6662 = vrot.slane %v6563, 3
        %v6663 = vsel %vm5926, %v6660, %v6662
        %v6664 = vrot.slane %v6564, 3
        %v6665 = vrot.slane %v6565, 3
        %v6666 = vsel %vm5926, %v6664, %v6665
        %v6667 = vrot.slane %v6566, 3
        %v6668 = vsel %vm5926, %v6665, %v6667
        %v6669 = vrot.slane %v6567, 3
        %v6670 = vsel %vm5926, %v6667, %v6669
        %v6671 = vrot.slane %v6568, 3
        %v6672 = vsel %vm5926, %v6669, %v6671
        %v6673 = vrot.slane %v6569, 3
        %v6674 = vrot.slane %v6570, 3
        %v6675 = vsel %vm5926, %v6673, %v6674
        %v6676 = vrot.slane %v6571, 3
        %v6677 = vsel %vm5926, %v6674, %v6676
        %v6678 = vrot.slane %v6572, 3
        %v6679 = vsel %vm5926, %v6676, %v6678
        %v6680 = vrot.slane %v6573, 3
        %v6681 = vsel %vm5926, %v6678, %v6680
        %v6682 = vrot.slane %v6574, 3
        %v6683 = vrot.slane %v6575, 3
        %v6684 = vsel %vm5926, %v6682, %v6683
        %v6685 = vrot.slane %v6576, 3
        %v6686 = vsel %vm5926, %v6683, %v6685
        %v6687 = vrot.slane %v6577, 3
        %v6688 = vsel %vm5926, %v6685, %v6687
        %v6689 = vrot.slane %v6578, 3
        %v6690 = vsel %vm5926, %v6687, %v6689
        %v6731 = vadd.f32 %v5802, %v6621
        %v6732 = vadd.f32 %v5803, %v6623
        %v6733 = vadd.f32 %v5804, %v6625
        %v6734 = vadd.f32 %v5805, %v6627
        %v6735 = vadd.f32 %v5806, %v6626
        %v6736 = vadd.f32 %v5807, %v6630
        %v6737 = vadd.f32 %v5808, %v6632
        %v6738 = vadd.f32 %v5809, %v6634
        %v6739 = vadd.f32 %v5810, %v6636
        %v6740 = vadd.f32 %v5811, %v6635
        %v6741 = vadd.f32 %v5812, %v6639
        %v6742 = vadd.f32 %v5813, %v6641
        %v6743 = vadd.f32 %v5814, %v6643
        %v6744 = vadd.f32 %v5815, %v6645
        %v6745 = vadd.f32 %v5816, %v6644
        %v6746 = vadd.f32 %v5817, %v6648
        %v6747 = vadd.f32 %v5818, %v6650
        %v6748 = vadd.f32 %v5819, %v6652
        %v6749 = vadd.f32 %v5820, %v6654
        %v6750 = vadd.f32 %v5821, %v6653
        %v6751 = vadd.f32 %v5822, %v6657
        %v6752 = vadd.f32 %v5823, %v6659
        %v6753 = vadd.f32 %v5824, %v6661
        %v6754 = vadd.f32 %v5825, %v6663
        %v6755 = vadd.f32 %v5826, %v6662
        %v6756 = vadd.f32 %v5827, %v6666
        %v6757 = vadd.f32 %v5828, %v6668
        %v6758 = vadd.f32 %v5829, %v6670
        %v6759 = vadd.f32 %v5830, %v6672
        %v6760 = vadd.f32 %v5831, %v6671
        %v6761 = vadd.f32 %v5832, %v6675
        %v6762 = vadd.f32 %v5833, %v6677
        %v6763 = vadd.f32 %v5834, %v6679
        %v6764 = vadd.f32 %v5835, %v6681
        %v6765 = vadd.f32 %v5836, %v6680
        %v6766 = vadd.f32 %v5837, %v6684
        %v6767 = vadd.f32 %v5838, %v6686
        %v6768 = vadd.f32 %v5839, %v6688
        %v6769 = vadd.f32 %v5840, %v6690
        %v6770 = vadd.f32 %v5841, %v6689
        %s6771 = sadd.s32 %s793, 4
        %s6772 = smul.u32 %s6771, 40
        %s6773 = scalar_lea.vmem [#allocation2], %s6772
        %v6774 = vld [vmem:[%s6773] sm:$0xff]
        %v6775 = vld [vmem:[%s6773 + $0x8] sm:$0xff]
        %v6776 = vld [vmem:[%s6773 + $0x10] sm:$0xff]
        %v6777 = vld [vmem:[%s6773 + $0x18] sm:$0xff]
        %v6778 = vld [vmem:[%s6773 + $0x20] sm:$0x3f]
        %v6779 = vld [vmem:[%s6773 + $0x28] sm:$0xff]
        %v6780 = vld [vmem:[%s6773 + $0x30] sm:$0xff]
        %v6781 = vld [vmem:[%s6773 + $0x38] sm:$0xff]
        %v6782 = vld [vmem:[%s6773 + $0x40] sm:$0xff]
        %v6783 = vld [vmem:[%s6773 + $0x48] sm:$0x3f]
        %v6784 = vld [vmem:[%s6773 + $0x50] sm:$0xff]
        %v6785 = vld [vmem:[%s6773 + $0x58] sm:$0xff]
        %v6786 = vld [vmem:[%s6773 + $0x60] sm:$0xff]
        %v6787 = vld [vmem:[%s6773 + $0x68] sm:$0xff]
        %v6788 = vld [vmem:[%s6773 + $0x70] sm:$0x3f]
        %v6789 = vld [vmem:[%s6773 + $0x78] sm:$0xff]
        %v6790 = vld [vmem:[%s6773 + $0x80] sm:$0xff]
        %v6791 = vld [vmem:[%s6773 + $0x88] sm:$0xff]
        %v6792 = vld [vmem:[%s6773 + $0x90] sm:$0xff]
        %v6793 = vld [vmem:[%s6773 + $0x98] sm:$0x3f]
        %v6794 = vld [vmem:[%s6773 + $0xa0] sm:$0xff]
        %v6795 = vld [vmem:[%s6773 + $0xa8] sm:$0xff]
        %v6796 = vld [vmem:[%s6773 + $0xb0] sm:$0xff]
        %v6797 = vld [vmem:[%s6773 + $0xb8] sm:$0xff]
        %v6798 = vld [vmem:[%s6773 + $0xc0] sm:$0x3f]
        %v6799 = vld [vmem:[%s6773 + $0xc8] sm:$0xff]
        %v6800 = vld [vmem:[%s6773 + $0xd0] sm:$0xff]
        %v6801 = vld [vmem:[%s6773 + $0xd8] sm:$0xff]
        %v6802 = vld [vmem:[%s6773 + $0xe0] sm:$0xff]
        %v6803 = vld [vmem:[%s6773 + $0xe8] sm:$0x3f]
        %v6804 = vld [vmem:[%s6773 + $0xf0] sm:$0xff]
        %v6805 = vld [vmem:[%s6773 + $0xf8] sm:$0xff]
        %v6806 = vld [vmem:[%s6773 + $0x100] sm:$0xff]
        %v6807 = vld [vmem:[%s6773 + $0x108] sm:$0xff]
        %v6808 = vld [vmem:[%s6773 + $0x110] sm:$0x3f]
        %v6809 = vld [vmem:[%s6773 + $0x118] sm:$0xff]
        %v6810 = vld [vmem:[%s6773 + $0x120] sm:$0xff]
        %v6811 = vld [vmem:[%s6773 + $0x128] sm:$0xff]
        %v6812 = vld [vmem:[%s6773 + $0x130] sm:$0xff]
        %v6813 = vld [vmem:[%s6773 + $0x138] sm:$0x3f]
        %v6814 = vlaneseq
        %v6815 = vshrl.u32 %v6814, 7
        %v6816 = vsub.s32 4, %v6815
        %v6817 = vrot.slane %v797, %v6816
        %v6818 = vmul.f32 %v6774, %v6817
        %v6819 = vmul.f32 %v6775, %v6817
        %v6820 = vmul.f32 %v6776, %v6817
        %v6821 = vmul.f32 %v6777, %v6817
        %v6822 = vmul.f32 %v6779, %v6817
        %v6823 = vmul.f32 %v6780, %v6817
        %v6824 = vmul.f32 %v6781, %v6817
        %v6825 = vmul.f32 %v6782, %v6817
        %v6826 = vmul.f32 %v6784, %v6817
        %v6827 = vmul.f32 %v6785, %v6817
        %v6828 = vmul.f32 %v6786, %v6817
        %v6829 = vmul.f32 %v6787, %v6817
        %v6830 = vmul.f32 %v6789, %v6817
        %v6831 = vmul.f32 %v6790, %v6817
        %v6832 = vmul.f32 %v6791, %v6817
        %v6833 = vmul.f32 %v6792, %v6817
        %v6834 = vmul.f32 %v6794, %v6817
        %v6835 = vmul.f32 %v6795, %v6817
        %v6836 = vmul.f32 %v6796, %v6817
        %v6837 = vmul.f32 %v6797, %v6817
        %v6838 = vmul.f32 %v6799, %v6817
        %v6839 = vmul.f32 %v6800, %v6817
        %v6840 = vmul.f32 %v6801, %v6817
        %v6841 = vmul.f32 %v6802, %v6817
        %v6842 = vmul.f32 %v6804, %v6817
        %v6843 = vmul.f32 %v6805, %v6817
        %v6844 = vmul.f32 %v6806, %v6817
        %v6845 = vmul.f32 %v6807, %v6817
        %v6846 = vmul.f32 %v6809, %v6817
        %v6847 = vmul.f32 %v6810, %v6817
        %v6848 = vmul.f32 %v6811, %v6817
        %v6849 = vmul.f32 %v6812, %v6817
        %v6850 = vadd.f32 %v6031, %v6818
        %v6851 = vadd.f32 %v6032, %v6819
        %v6852 = vadd.f32 %v6033, %v6820
        %v6853 = vadd.f32 %v6034, %v6821
        %v6854 = vadd.f32 %v6035, %v6822
        %v6855 = vadd.f32 %v6036, %v6823
        %v6856 = vadd.f32 %v6037, %v6824
        %v6857 = vadd.f32 %v6038, %v6825
        %v6858 = vadd.f32 %v6039, %v6826
        %v6859 = vadd.f32 %v6040, %v6827
        %v6860 = vadd.f32 %v6041, %v6828
        %v6861 = vadd.f32 %v6042, %v6829
        %v6862 = vadd.f32 %v6043, %v6830
        %v6863 = vadd.f32 %v6044, %v6831
        %v6864 = vadd.f32 %v6045, %v6832
        %v6865 = vadd.f32 %v6046, %v6833
        %v6866 = vadd.f32 %v6047, %v6834
        %v6867 = vadd.f32 %v6048, %v6835
        %v6868 = vadd.f32 %v6049, %v6836
        %v6869 = vadd.f32 %v6050, %v6837
        %v6870 = vadd.f32 %v6051, %v6838
        %v6871 = vadd.f32 %v6052, %v6839
        %v6872 = vadd.f32 %v6053, %v6840
        %v6873 = vadd.f32 %v6054, %v6841
        %v6874 = vadd.f32 %v6055, %v6842
        %v6875 = vadd.f32 %v6056, %v6843
        %v6876 = vadd.f32 %v6057, %v6844
        %v6877 = vadd.f32 %v6058, %v6845
        %v6878 = vadd.f32 %v6059, %v6846
        %v6879 = vadd.f32 %v6060, %v6847
        %v6880 = vadd.f32 %v6061, %v6848
        %v6881 = vadd.f32 %v6062, %v6849
        %v6882 = vlaneseq
        %v6883 = vshrl.u32 %v6882, 7
        %v6884 = vsub.s32 5, %v6883
        %v6885 = vrot.slane %v797, %v6884
        %v6886 = vmul.f32 %v6774, %v6885
        %v6887 = vmul.f32 %v6775, %v6885
        %v6888 = vmul.f32 %v6776, %v6885
        %v6889 = vmul.f32 %v6777, %v6885
        %v6890 = vmul.f32 %v6778, %v6885
        %v6891 = vmul.f32 %v6779, %v6885
        %v6892 = vmul.f32 %v6780, %v6885
        %v6893 = vmul.f32 %v6781, %v6885
        %v6894 = vmul.f32 %v6782, %v6885
        %v6895 = vmul.f32 %v6783, %v6885
        %v6896 = vmul.f32 %v6784, %v6885
        %v6897 = vmul.f32 %v6785, %v6885
        %v6898 = vmul.f32 %v6786, %v6885
        %v6899 = vmul.f32 %v6787, %v6885
        %v6900 = vmul.f32 %v6788, %v6885
        %v6901 = vmul.f32 %v6789, %v6885
        %v6902 = vmul.f32 %v6790, %v6885
        %v6903 = vmul.f32 %v6791, %v6885
        %v6904 = vmul.f32 %v6792, %v6885
        %v6905 = vmul.f32 %v6793, %v6885
        %v6906 = vmul.f32 %v6794, %v6885
        %v6907 = vmul.f32 %v6795, %v6885
        %v6908 = vmul.f32 %v6796, %v6885
        %v6909 = vmul.f32 %v6797, %v6885
        %v6910 = vmul.f32 %v6798, %v6885
        %v6911 = vmul.f32 %v6799, %v6885
        %v6912 = vmul.f32 %v6800, %v6885
        %v6913 = vmul.f32 %v6801, %v6885
        %v6914 = vmul.f32 %v6802, %v6885
        %v6915 = vmul.f32 %v6803, %v6885
        %v6916 = vmul.f32 %v6804, %v6885
        %v6917 = vmul.f32 %v6805, %v6885
        %v6918 = vmul.f32 %v6806, %v6885
        %v6919 = vmul.f32 %v6807, %v6885
        %v6920 = vmul.f32 %v6808, %v6885
        %v6921 = vmul.f32 %v6809, %v6885
        %v6922 = vmul.f32 %v6810, %v6885
        %v6923 = vmul.f32 %v6811, %v6885
        %v6924 = vmul.f32 %v6812, %v6885
        %v6925 = vmul.f32 %v6813, %v6885
        %v6926 = vadd.f32 %v6259, %v6886
        %v6927 = vadd.f32 %v6260, %v6887
        %v6928 = vadd.f32 %v6261, %v6888
        %v6929 = vadd.f32 %v6262, %v6889
        %v6930 = vadd.f32 %v6263, %v6890
        %v6931 = vadd.f32 %v6264, %v6891
        %v6932 = vadd.f32 %v6265, %v6892
        %v6933 = vadd.f32 %v6266, %v6893
        %v6934 = vadd.f32 %v6267, %v6894
        %v6935 = vadd.f32 %v6268, %v6895
        %v6936 = vadd.f32 %v6269, %v6896
        %v6937 = vadd.f32 %v6270, %v6897
        %v6938 = vadd.f32 %v6271, %v6898
        %v6939 = vadd.f32 %v6272, %v6899
        %v6940 = vadd.f32 %v6273, %v6900
        %v6941 = vadd.f32 %v6274, %v6901
        %v6942 = vadd.f32 %v6275, %v6902
        %v6943 = vadd.f32 %v6276, %v6903
        %v6944 = vadd.f32 %v6277, %v6904
        %v6945 = vadd.f32 %v6278, %v6905
        %v6946 = vadd.f32 %v6279, %v6906
        %v6947 = vadd.f32 %v6280, %v6907
        %v6948 = vadd.f32 %v6281, %v6908
        %v6949 = vadd.f32 %v6282, %v6909
        %v6950 = vadd.f32 %v6283, %v6910
        %v6951 = vadd.f32 %v6284, %v6911
        %v6952 = vadd.f32 %v6285, %v6912
        %v6953 = vadd.f32 %v6286, %v6913
        %v6954 = vadd.f32 %v6287, %v6914
        %v6955 = vadd.f32 %v6288, %v6915
        %v6956 = vadd.f32 %v6289, %v6916
        %v6957 = vadd.f32 %v6290, %v6917
        %v6958 = vadd.f32 %v6291, %v6918
        %v6959 = vadd.f32 %v6292, %v6919
        %v6960 = vadd.f32 %v6293, %v6920
        %v6961 = vadd.f32 %v6294, %v6921
        %v6962 = vadd.f32 %v6295, %v6922
        %v6963 = vadd.f32 %v6296, %v6923
        %v6964 = vadd.f32 %v6297, %v6924
        %v6965 = vadd.f32 %v6298, %v6925
        %v6966 = vlaneseq
        %v6967 = vshrl.u32 %v6966, 7
        %v6968 = vsub.s32 6, %v6967
        %v6969 = vrot.slane %v797, %v6968
        %v6970 = vmul.f32 %v6774, %v6969
        %v6971 = vmul.f32 %v6775, %v6969
        %v6972 = vmul.f32 %v6776, %v6969
        %v6973 = vmul.f32 %v6777, %v6969
        %v6974 = vmul.f32 %v6778, %v6969
        %v6975 = vmul.f32 %v6779, %v6969
        %v6976 = vmul.f32 %v6780, %v6969
        %v6977 = vmul.f32 %v6781, %v6969
        %v6978 = vmul.f32 %v6782, %v6969
        %v6979 = vmul.f32 %v6783, %v6969
        %v6980 = vmul.f32 %v6784, %v6969
        %v6981 = vmul.f32 %v6785, %v6969
        %v6982 = vmul.f32 %v6786, %v6969
        %v6983 = vmul.f32 %v6787, %v6969
        %v6984 = vmul.f32 %v6788, %v6969
        %v6985 = vmul.f32 %v6789, %v6969
        %v6986 = vmul.f32 %v6790, %v6969
        %v6987 = vmul.f32 %v6791, %v6969
        %v6988 = vmul.f32 %v6792, %v6969
        %v6989 = vmul.f32 %v6793, %v6969
        %v6990 = vmul.f32 %v6794, %v6969
        %v6991 = vmul.f32 %v6795, %v6969
        %v6992 = vmul.f32 %v6796, %v6969
        %v6993 = vmul.f32 %v6797, %v6969
        %v6994 = vmul.f32 %v6798, %v6969
        %v6995 = vmul.f32 %v6799, %v6969
        %v6996 = vmul.f32 %v6800, %v6969
        %v6997 = vmul.f32 %v6801, %v6969
        %v6998 = vmul.f32 %v6802, %v6969
        %v6999 = vmul.f32 %v6803, %v6969
        %v7000 = vmul.f32 %v6804, %v6969
        %v7001 = vmul.f32 %v6805, %v6969
        %v7002 = vmul.f32 %v6806, %v6969
        %v7003 = vmul.f32 %v6807, %v6969
        %v7004 = vmul.f32 %v6808, %v6969
        %v7005 = vmul.f32 %v6809, %v6969
        %v7006 = vmul.f32 %v6810, %v6969
        %v7007 = vmul.f32 %v6811, %v6969
        %v7008 = vmul.f32 %v6812, %v6969
        %v7009 = vmul.f32 %v6813, %v6969
        %v7010 = vadd.f32 %v6495, %v6970
        %v7011 = vadd.f32 %v6496, %v6971
        %v7012 = vadd.f32 %v6497, %v6972
        %v7013 = vadd.f32 %v6498, %v6973
        %v7014 = vadd.f32 %v6499, %v6974
        %v7015 = vadd.f32 %v6500, %v6975
        %v7016 = vadd.f32 %v6501, %v6976
        %v7017 = vadd.f32 %v6502, %v6977
        %v7018 = vadd.f32 %v6503, %v6978
        %v7019 = vadd.f32 %v6504, %v6979
        %v7020 = vadd.f32 %v6505, %v6980
        %v7021 = vadd.f32 %v6506, %v6981
        %v7022 = vadd.f32 %v6507, %v6982
        %v7023 = vadd.f32 %v6508, %v6983
        %v7024 = vadd.f32 %v6509, %v6984
        %v7025 = vadd.f32 %v6510, %v6985
        %v7026 = vadd.f32 %v6511, %v6986
        %v7027 = vadd.f32 %v6512, %v6987
        %v7028 = vadd.f32 %v6513, %v6988
        %v7029 = vadd.f32 %v6514, %v6989
        %v7030 = vadd.f32 %v6515, %v6990
        %v7031 = vadd.f32 %v6516, %v6991
        %v7032 = vadd.f32 %v6517, %v6992
        %v7033 = vadd.f32 %v6518, %v6993
        %v7034 = vadd.f32 %v6519, %v6994
        %v7035 = vadd.f32 %v6520, %v6995
        %v7036 = vadd.f32 %v6521, %v6996
        %v7037 = vadd.f32 %v6522, %v6997
        %v7038 = vadd.f32 %v6523, %v6998
        %v7039 = vadd.f32 %v6524, %v6999
        %v7040 = vadd.f32 %v6525, %v7000
        %v7041 = vadd.f32 %v6526, %v7001
        %v7042 = vadd.f32 %v6527, %v7002
        %v7043 = vadd.f32 %v6528, %v7003
        %v7044 = vadd.f32 %v6529, %v7004
        %v7045 = vadd.f32 %v6530, %v7005
        %v7046 = vadd.f32 %v6531, %v7006
        %v7047 = vadd.f32 %v6532, %v7007
        %v7048 = vadd.f32 %v6533, %v7008
        %v7049 = vadd.f32 %v6534, %v7009
        %v7050 = vlaneseq
        %v7051 = vshrl.u32 %v7050, 7
        %v7052 = vsub.s32 7, %v7051
        %v7053 = vrot.slane %v797, %v7052
        %v7054 = vmul.f32 %v6774, %v7053
        %v7055 = vmul.f32 %v6775, %v7053
        %v7056 = vmul.f32 %v6776, %v7053
        %v7057 = vmul.f32 %v6777, %v7053
        %v7058 = vmul.f32 %v6778, %v7053
        %v7059 = vmul.f32 %v6779, %v7053
        %v7060 = vmul.f32 %v6780, %v7053
        %v7061 = vmul.f32 %v6781, %v7053
        %v7062 = vmul.f32 %v6782, %v7053
        %v7063 = vmul.f32 %v6783, %v7053
        %v7064 = vmul.f32 %v6784, %v7053
        %v7065 = vmul.f32 %v6785, %v7053
        %v7066 = vmul.f32 %v6786, %v7053
        %v7067 = vmul.f32 %v6787, %v7053
        %v7068 = vmul.f32 %v6788, %v7053
        %v7069 = vmul.f32 %v6789, %v7053
        %v7070 = vmul.f32 %v6790, %v7053
        %v7071 = vmul.f32 %v6791, %v7053
        %v7072 = vmul.f32 %v6792, %v7053
        %v7073 = vmul.f32 %v6793, %v7053
        %v7074 = vmul.f32 %v6794, %v7053
        %v7075 = vmul.f32 %v6795, %v7053
        %v7076 = vmul.f32 %v6796, %v7053
        %v7077 = vmul.f32 %v6797, %v7053
        %v7078 = vmul.f32 %v6798, %v7053
        %v7079 = vmul.f32 %v6799, %v7053
        %v7080 = vmul.f32 %v6800, %v7053
        %v7081 = vmul.f32 %v6801, %v7053
        %v7082 = vmul.f32 %v6802, %v7053
        %v7083 = vmul.f32 %v6803, %v7053
        %v7084 = vmul.f32 %v6804, %v7053
        %v7085 = vmul.f32 %v6805, %v7053
        %v7086 = vmul.f32 %v6806, %v7053
        %v7087 = vmul.f32 %v6807, %v7053
        %v7088 = vmul.f32 %v6808, %v7053
        %v7089 = vmul.f32 %v6809, %v7053
        %v7090 = vmul.f32 %v6810, %v7053
        %v7091 = vmul.f32 %v6811, %v7053
        %v7092 = vmul.f32 %v6812, %v7053
        %v7093 = vmul.f32 %v6813, %v7053
        %v7094 = vadd.f32 %v6731, %v7054
        %v7095 = vadd.f32 %v6732, %v7055
        %v7096 = vadd.f32 %v6733, %v7056
        %v7097 = vadd.f32 %v6734, %v7057
        %v7098 = vadd.f32 %v6735, %v7058
        %v7099 = vadd.f32 %v6736, %v7059
        %v7100 = vadd.f32 %v6737, %v7060
        %v7101 = vadd.f32 %v6738, %v7061
        %v7102 = vadd.f32 %v6739, %v7062
        %v7103 = vadd.f32 %v6740, %v7063
        %v7104 = vadd.f32 %v6741, %v7064
        %v7105 = vadd.f32 %v6742, %v7065
        %v7106 = vadd.f32 %v6743, %v7066
        %v7107 = vadd.f32 %v6744, %v7067
        %v7108 = vadd.f32 %v6745, %v7068
        %v7109 = vadd.f32 %v6746, %v7069
        %v7110 = vadd.f32 %v6747, %v7070
        %v7111 = vadd.f32 %v6748, %v7071
        %v7112 = vadd.f32 %v6749, %v7072
        %v7113 = vadd.f32 %v6750, %v7073
        %v7114 = vadd.f32 %v6751, %v7074
        %v7115 = vadd.f32 %v6752, %v7075
        %v7116 = vadd.f32 %v6753, %v7076
        %v7117 = vadd.f32 %v6754, %v7077
        %v7118 = vadd.f32 %v6755, %v7078
        %v7119 = vadd.f32 %v6756, %v7079
        %v7120 = vadd.f32 %v6757, %v7080
        %v7121 = vadd.f32 %v6758, %v7081
        %v7122 = vadd.f32 %v6759, %v7082
        %v7123 = vadd.f32 %v6760, %v7083
        %v7124 = vadd.f32 %v6761, %v7084
        %v7125 = vadd.f32 %v6762, %v7085
        %v7126 = vadd.f32 %v6763, %v7086
        %v7127 = vadd.f32 %v6764, %v7087
        %v7128 = vadd.f32 %v6765, %v7088
        %v7129 = vadd.f32 %v6766, %v7089
        %v7130 = vadd.f32 %v6767, %v7090
        %v7131 = vadd.f32 %v6768, %v7091
        %v7132 = vadd.f32 %v6769, %v7092
        %v7133 = vadd.f32 %v6770, %v7093
        %v7134 = vlaneseq
        %v7135 = vshrl.u32 %v7134, 7
        %v7136 = vsub.s32 0, %v7135
        %v7137 = vrot.slane %v798, %v7136
        %v7138 = vmul.f32 %v6774, %v7137
        %v7139 = vmul.f32 %v6775, %v7137
        %v7140 = vmul.f32 %v6776, %v7137
        %v7141 = vmul.f32 %v6777, %v7137
        %v7142 = vmul.f32 %v6778, %v7137
        %v7143 = vmul.f32 %v6779, %v7137
        %v7144 = vmul.f32 %v6780, %v7137
        %v7145 = vmul.f32 %v6781, %v7137
        %v7146 = vmul.f32 %v6782, %v7137
        %v7147 = vmul.f32 %v6783, %v7137
        %v7148 = vmul.f32 %v6784, %v7137
        %v7149 = vmul.f32 %v6785, %v7137
        %v7150 = vmul.f32 %v6786, %v7137
        %v7151 = vmul.f32 %v6787, %v7137
        %v7152 = vmul.f32 %v6788, %v7137
        %v7153 = vmul.f32 %v6789, %v7137
        %v7154 = vmul.f32 %v6790, %v7137
        %v7155 = vmul.f32 %v6791, %v7137
        %v7156 = vmul.f32 %v6792, %v7137
        %v7157 = vmul.f32 %v6793, %v7137
        %v7158 = vmul.f32 %v6794, %v7137
        %v7159 = vmul.f32 %v6795, %v7137
        %v7160 = vmul.f32 %v6796, %v7137
        %v7161 = vmul.f32 %v6797, %v7137
        %v7162 = vmul.f32 %v6798, %v7137
        %v7163 = vmul.f32 %v6799, %v7137
        %v7164 = vmul.f32 %v6800, %v7137
        %v7165 = vmul.f32 %v6801, %v7137
        %v7166 = vmul.f32 %v6802, %v7137
        %v7167 = vmul.f32 %v6803, %v7137
        %v7168 = vmul.f32 %v6804, %v7137
        %v7169 = vmul.f32 %v6805, %v7137
        %v7170 = vmul.f32 %v6806, %v7137
        %v7171 = vmul.f32 %v6807, %v7137
        %v7172 = vmul.f32 %v6808, %v7137
        %v7173 = vmul.f32 %v6809, %v7137
        %v7174 = vmul.f32 %v6810, %v7137
        %v7175 = vmul.f32 %v6811, %v7137
        %v7176 = vmul.f32 %v6812, %v7137
        %v7177 = vmul.f32 %v6813, %v7137
        %v7218 = vrot.slane %v7138, 4
        %v7219 = vrot.slane %v7139, 4
        %v7220 = vsel %vm1247, %v7218, %v7219
        %v7221 = vrot.slane %v7140, 4
        %v7222 = vsel %vm1247, %v7219, %v7221
        %v7223 = vrot.slane %v7141, 4
        %v7224 = vsel %vm1247, %v7221, %v7223
        %v7225 = vrot.slane %v7142, 4
        %v7226 = vsel %vm1247, %v7223, %v7225
        %v7227 = vrot.slane %v7143, 4
        %v7228 = vrot.slane %v7144, 4
        %v7229 = vsel %vm1247, %v7227, %v7228
        %v7230 = vrot.slane %v7145, 4
        %v7231 = vsel %vm1247, %v7228, %v7230
        %v7232 = vrot.slane %v7146, 4
        %v7233 = vsel %vm1247, %v7230, %v7232
        %v7234 = vrot.slane %v7147, 4
        %v7235 = vsel %vm1247, %v7232, %v7234
        %v7236 = vrot.slane %v7148, 4
        %v7237 = vrot.slane %v7149, 4
        %v7238 = vsel %vm1247, %v7236, %v7237
        %v7239 = vrot.slane %v7150, 4
        %v7240 = vsel %vm1247, %v7237, %v7239
        %v7241 = vrot.slane %v7151, 4
        %v7242 = vsel %vm1247, %v7239, %v7241
        %v7243 = vrot.slane %v7152, 4
        %v7244 = vsel %vm1247, %v7241, %v7243
        %v7245 = vrot.slane %v7153, 4
        %v7246 = vrot.slane %v7154, 4
        %v7247 = vsel %vm1247, %v7245, %v7246
        %v7248 = vrot.slane %v7155, 4
        %v7249 = vsel %vm1247, %v7246, %v7248
        %v7250 = vrot.slane %v7156, 4
        %v7251 = vsel %vm1247, %v7248, %v7250
        %v7252 = vrot.slane %v7157, 4
        %v7253 = vsel %vm1247, %v7250, %v7252
        %v7254 = vrot.slane %v7158, 4
        %v7255 = vrot.slane %v7159, 4
        %v7256 = vsel %vm1247, %v7254, %v7255
        %v7257 = vrot.slane %v7160, 4
        %v7258 = vsel %vm1247, %v7255, %v7257
        %v7259 = vrot.slane %v7161, 4
        %v7260 = vsel %vm1247, %v7257, %v7259
        %v7261 = vrot.slane %v7162, 4
        %v7262 = vsel %vm1247, %v7259, %v7261
        %v7263 = vrot.slane %v7163, 4
        %v7264 = vrot.slane %v7164, 4
        %v7265 = vsel %vm1247, %v7263, %v7264
        %v7266 = vrot.slane %v7165, 4
        %v7267 = vsel %vm1247, %v7264, %v7266
        %v7268 = vrot.slane %v7166, 4
        %v7269 = vsel %vm1247, %v7266, %v7268
        %v7270 = vrot.slane %v7167, 4
        %v7271 = vsel %vm1247, %v7268, %v7270
        %v7272 = vrot.slane %v7168, 4
        %v7273 = vrot.slane %v7169, 4
        %v7274 = vsel %vm1247, %v7272, %v7273
        %v7275 = vrot.slane %v7170, 4
        %v7276 = vsel %vm1247, %v7273, %v7275
        %v7277 = vrot.slane %v7171, 4
        %v7278 = vsel %vm1247, %v7275, %v7277
        %v7279 = vrot.slane %v7172, 4
        %v7280 = vsel %vm1247, %v7277, %v7279
        %v7281 = vrot.slane %v7173, 4
        %v7282 = vrot.slane %v7174, 4
        %v7283 = vsel %vm1247, %v7281, %v7282
        %v7284 = vrot.slane %v7175, 4
        %v7285 = vsel %vm1247, %v7282, %v7284
        %v7286 = vrot.slane %v7176, 4
        %v7287 = vsel %vm1247, %v7284, %v7286
        %v7288 = vrot.slane %v7177, 4
        %v7289 = vsel %vm1247, %v7286, %v7288
        %v7322 = vadd.f32 %v6850, %v7220
        %v7323 = vadd.f32 %v6851, %v7222
        %v7324 = vadd.f32 %v6852, %v7224
        %v7325 = vadd.f32 %v6853, %v7226
        %v7326 = vadd.f32 %v6854, %v7229
        %v7327 = vadd.f32 %v6855, %v7231
        %v7328 = vadd.f32 %v6856, %v7233
        %v7329 = vadd.f32 %v6857, %v7235
        %v7330 = vadd.f32 %v6858, %v7238
        %v7331 = vadd.f32 %v6859, %v7240
        %v7332 = vadd.f32 %v6860, %v7242
        %v7333 = vadd.f32 %v6861, %v7244
        %v7334 = vadd.f32 %v6862, %v7247
        %v7335 = vadd.f32 %v6863, %v7249
        %v7336 = vadd.f32 %v6864, %v7251
        %v7337 = vadd.f32 %v6865, %v7253
        %v7338 = vadd.f32 %v6866, %v7256
        %v7339 = vadd.f32 %v6867, %v7258
        %v7340 = vadd.f32 %v6868, %v7260
        %v7341 = vadd.f32 %v6869, %v7262
        %v7342 = vadd.f32 %v6870, %v7265
        %v7343 = vadd.f32 %v6871, %v7267
        %v7344 = vadd.f32 %v6872, %v7269
        %v7345 = vadd.f32 %v6873, %v7271
        %v7346 = vadd.f32 %v6874, %v7274
        %v7347 = vadd.f32 %v6875, %v7276
        %v7348 = vadd.f32 %v6876, %v7278
        %v7349 = vadd.f32 %v6877, %v7280
        %v7350 = vadd.f32 %v6878, %v7283
        %v7351 = vadd.f32 %v6879, %v7285
        %v7352 = vadd.f32 %v6880, %v7287
        %v7353 = vadd.f32 %v6881, %v7289
        %v7354 = vlaneseq
        %v7355 = vshrl.u32 %v7354, 7
        %v7356 = vsub.s32 1, %v7355
        %v7357 = vrot.slane %v798, %v7356
        %v7358 = vmul.f32 %v6774, %v7357
        %v7359 = vmul.f32 %v6775, %v7357
        %v7360 = vmul.f32 %v6776, %v7357
        %v7361 = vmul.f32 %v6777, %v7357
        %v7362 = vmul.f32 %v6778, %v7357
        %v7363 = vmul.f32 %v6779, %v7357
        %v7364 = vmul.f32 %v6780, %v7357
        %v7365 = vmul.f32 %v6781, %v7357
        %v7366 = vmul.f32 %v6782, %v7357
        %v7367 = vmul.f32 %v6783, %v7357
        %v7368 = vmul.f32 %v6784, %v7357
        %v7369 = vmul.f32 %v6785, %v7357
        %v7370 = vmul.f32 %v6786, %v7357
        %v7371 = vmul.f32 %v6787, %v7357
        %v7372 = vmul.f32 %v6788, %v7357
        %v7373 = vmul.f32 %v6789, %v7357
        %v7374 = vmul.f32 %v6790, %v7357
        %v7375 = vmul.f32 %v6791, %v7357
        %v7376 = vmul.f32 %v6792, %v7357
        %v7377 = vmul.f32 %v6793, %v7357
        %v7378 = vmul.f32 %v6794, %v7357
        %v7379 = vmul.f32 %v6795, %v7357
        %v7380 = vmul.f32 %v6796, %v7357
        %v7381 = vmul.f32 %v6797, %v7357
        %v7382 = vmul.f32 %v6798, %v7357
        %v7383 = vmul.f32 %v6799, %v7357
        %v7384 = vmul.f32 %v6800, %v7357
        %v7385 = vmul.f32 %v6801, %v7357
        %v7386 = vmul.f32 %v6802, %v7357
        %v7387 = vmul.f32 %v6803, %v7357
        %v7388 = vmul.f32 %v6804, %v7357
        %v7389 = vmul.f32 %v6805, %v7357
        %v7390 = vmul.f32 %v6806, %v7357
        %v7391 = vmul.f32 %v6807, %v7357
        %v7392 = vmul.f32 %v6808, %v7357
        %v7393 = vmul.f32 %v6809, %v7357
        %v7394 = vmul.f32 %v6810, %v7357
        %v7395 = vmul.f32 %v6811, %v7357
        %v7396 = vmul.f32 %v6812, %v7357
        %v7397 = vmul.f32 %v6813, %v7357
        %v7438 = vrot.slane %v7358, 4
        %v7439 = vrot.slane %v7359, 4
        %v7440 = vsel %vm1247, %v7438, %v7439
        %v7441 = vrot.slane %v7360, 4
        %v7442 = vsel %vm1247, %v7439, %v7441
        %v7443 = vrot.slane %v7361, 4
        %v7444 = vsel %vm1247, %v7441, %v7443
        %v7445 = vrot.slane %v7362, 4
        %v7446 = vsel %vm1247, %v7443, %v7445
        %v7447 = vrot.slane %v7363, 4
        %v7448 = vrot.slane %v7364, 4
        %v7449 = vsel %vm1247, %v7447, %v7448
        %v7450 = vrot.slane %v7365, 4
        %v7451 = vsel %vm1247, %v7448, %v7450
        %v7452 = vrot.slane %v7366, 4
        %v7453 = vsel %vm1247, %v7450, %v7452
        %v7454 = vrot.slane %v7367, 4
        %v7455 = vsel %vm1247, %v7452, %v7454
        %v7456 = vrot.slane %v7368, 4
        %v7457 = vrot.slane %v7369, 4
        %v7458 = vsel %vm1247, %v7456, %v7457
        %v7459 = vrot.slane %v7370, 4
        %v7460 = vsel %vm1247, %v7457, %v7459
        %v7461 = vrot.slane %v7371, 4
        %v7462 = vsel %vm1247, %v7459, %v7461
        %v7463 = vrot.slane %v7372, 4
        %v7464 = vsel %vm1247, %v7461, %v7463
        %v7465 = vrot.slane %v7373, 4
        %v7466 = vrot.slane %v7374, 4
        %v7467 = vsel %vm1247, %v7465, %v7466
        %v7468 = vrot.slane %v7375, 4
        %v7469 = vsel %vm1247, %v7466, %v7468
        %v7470 = vrot.slane %v7376, 4
        %v7471 = vsel %vm1247, %v7468, %v7470
        %v7472 = vrot.slane %v7377, 4
        %v7473 = vsel %vm1247, %v7470, %v7472
        %v7474 = vrot.slane %v7378, 4
        %v7475 = vrot.slane %v7379, 4
        %v7476 = vsel %vm1247, %v7474, %v7475
        %v7477 = vrot.slane %v7380, 4
        %v7478 = vsel %vm1247, %v7475, %v7477
        %v7479 = vrot.slane %v7381, 4
        %v7480 = vsel %vm1247, %v7477, %v7479
        %v7481 = vrot.slane %v7382, 4
        %v7482 = vsel %vm1247, %v7479, %v7481
        %v7483 = vrot.slane %v7383, 4
        %v7484 = vrot.slane %v7384, 4
        %v7485 = vsel %vm1247, %v7483, %v7484
        %v7486 = vrot.slane %v7385, 4
        %v7487 = vsel %vm1247, %v7484, %v7486
        %v7488 = vrot.slane %v7386, 4
        %v7489 = vsel %vm1247, %v7486, %v7488
        %v7490 = vrot.slane %v7387, 4
        %v7491 = vsel %vm1247, %v7488, %v7490
        %v7492 = vrot.slane %v7388, 4
        %v7493 = vrot.slane %v7389, 4
        %v7494 = vsel %vm1247, %v7492, %v7493
        %v7495 = vrot.slane %v7390, 4
        %v7496 = vsel %vm1247, %v7493, %v7495
        %v7497 = vrot.slane %v7391, 4
        %v7498 = vsel %vm1247, %v7495, %v7497
        %v7499 = vrot.slane %v7392, 4
        %v7500 = vsel %vm1247, %v7497, %v7499
        %v7501 = vrot.slane %v7393, 4
        %v7502 = vrot.slane %v7394, 4
        %v7503 = vsel %vm1247, %v7501, %v7502
        %v7504 = vrot.slane %v7395, 4
        %v7505 = vsel %vm1247, %v7502, %v7504
        %v7506 = vrot.slane %v7396, 4
        %v7507 = vsel %vm1247, %v7504, %v7506
        %v7508 = vrot.slane %v7397, 4
        %v7509 = vsel %vm1247, %v7506, %v7508
        %v7550 = vadd.f32 %v6926, %v7440
        %v7551 = vadd.f32 %v6927, %v7442
        %v7552 = vadd.f32 %v6928, %v7444
        %v7553 = vadd.f32 %v6929, %v7446
        %v7554 = vadd.f32 %v6930, %v7445
        %v7555 = vadd.f32 %v6931, %v7449
        %v7556 = vadd.f32 %v6932, %v7451
        %v7557 = vadd.f32 %v6933, %v7453
        %v7558 = vadd.f32 %v6934, %v7455
        %v7559 = vadd.f32 %v6935, %v7454
        %v7560 = vadd.f32 %v6936, %v7458
        %v7561 = vadd.f32 %v6937, %v7460
        %v7562 = vadd.f32 %v6938, %v7462
        %v7563 = vadd.f32 %v6939, %v7464
        %v7564 = vadd.f32 %v6940, %v7463
        %v7565 = vadd.f32 %v6941, %v7467
        %v7566 = vadd.f32 %v6942, %v7469
        %v7567 = vadd.f32 %v6943, %v7471
        %v7568 = vadd.f32 %v6944, %v7473
        %v7569 = vadd.f32 %v6945, %v7472
        %v7570 = vadd.f32 %v6946, %v7476
        %v7571 = vadd.f32 %v6947, %v7478
        %v7572 = vadd.f32 %v6948, %v7480
        %v7573 = vadd.f32 %v6949, %v7482
        %v7574 = vadd.f32 %v6950, %v7481
        %v7575 = vadd.f32 %v6951, %v7485
        %v7576 = vadd.f32 %v6952, %v7487
        %v7577 = vadd.f32 %v6953, %v7489
        %v7578 = vadd.f32 %v6954, %v7491
        %v7579 = vadd.f32 %v6955, %v7490
        %v7580 = vadd.f32 %v6956, %v7494
        %v7581 = vadd.f32 %v6957, %v7496
        %v7582 = vadd.f32 %v6958, %v7498
        %v7583 = vadd.f32 %v6959, %v7500
        %v7584 = vadd.f32 %v6960, %v7499
        %v7585 = vadd.f32 %v6961, %v7503
        %v7586 = vadd.f32 %v6962, %v7505
        %v7587 = vadd.f32 %v6963, %v7507
        %v7588 = vadd.f32 %v6964, %v7509
        %v7589 = vadd.f32 %v6965, %v7508
        %v7590 = vlaneseq
        %v7591 = vshrl.u32 %v7590, 7
        %v7592 = vsub.s32 2, %v7591
        %v7593 = vrot.slane %v798, %v7592
        %v7594 = vmul.f32 %v6774, %v7593
        %v7595 = vmul.f32 %v6775, %v7593
        %v7596 = vmul.f32 %v6776, %v7593
        %v7597 = vmul.f32 %v6777, %v7593
        %v7598 = vmul.f32 %v6778, %v7593
        %v7599 = vmul.f32 %v6779, %v7593
        %v7600 = vmul.f32 %v6780, %v7593
        %v7601 = vmul.f32 %v6781, %v7593
        %v7602 = vmul.f32 %v6782, %v7593
        %v7603 = vmul.f32 %v6783, %v7593
        %v7604 = vmul.f32 %v6784, %v7593
        %v7605 = vmul.f32 %v6785, %v7593
        %v7606 = vmul.f32 %v6786, %v7593
        %v7607 = vmul.f32 %v6787, %v7593
        %v7608 = vmul.f32 %v6788, %v7593
        %v7609 = vmul.f32 %v6789, %v7593
        %v7610 = vmul.f32 %v6790, %v7593
        %v7611 = vmul.f32 %v6791, %v7593
        %v7612 = vmul.f32 %v6792, %v7593
        %v7613 = vmul.f32 %v6793, %v7593
        %v7614 = vmul.f32 %v6794, %v7593
        %v7615 = vmul.f32 %v6795, %v7593
        %v7616 = vmul.f32 %v6796, %v7593
        %v7617 = vmul.f32 %v6797, %v7593
        %v7618 = vmul.f32 %v6798, %v7593
        %v7619 = vmul.f32 %v6799, %v7593
        %v7620 = vmul.f32 %v6800, %v7593
        %v7621 = vmul.f32 %v6801, %v7593
        %v7622 = vmul.f32 %v6802, %v7593
        %v7623 = vmul.f32 %v6803, %v7593
        %v7624 = vmul.f32 %v6804, %v7593
        %v7625 = vmul.f32 %v6805, %v7593
        %v7626 = vmul.f32 %v6806, %v7593
        %v7627 = vmul.f32 %v6807, %v7593
        %v7628 = vmul.f32 %v6808, %v7593
        %v7629 = vmul.f32 %v6809, %v7593
        %v7630 = vmul.f32 %v6810, %v7593
        %v7631 = vmul.f32 %v6811, %v7593
        %v7632 = vmul.f32 %v6812, %v7593
        %v7633 = vmul.f32 %v6813, %v7593
        %v7674 = vrot.slane %v7594, 4
        %v7675 = vrot.slane %v7595, 4
        %v7676 = vsel %vm1247, %v7674, %v7675
        %v7677 = vrot.slane %v7596, 4
        %v7678 = vsel %vm1247, %v7675, %v7677
        %v7679 = vrot.slane %v7597, 4
        %v7680 = vsel %vm1247, %v7677, %v7679
        %v7681 = vrot.slane %v7598, 4
        %v7682 = vsel %vm1247, %v7679, %v7681
        %v7683 = vrot.slane %v7599, 4
        %v7684 = vrot.slane %v7600, 4
        %v7685 = vsel %vm1247, %v7683, %v7684
        %v7686 = vrot.slane %v7601, 4
        %v7687 = vsel %vm1247, %v7684, %v7686
        %v7688 = vrot.slane %v7602, 4
        %v7689 = vsel %vm1247, %v7686, %v7688
        %v7690 = vrot.slane %v7603, 4
        %v7691 = vsel %vm1247, %v7688, %v7690
        %v7692 = vrot.slane %v7604, 4
        %v7693 = vrot.slane %v7605, 4
        %v7694 = vsel %vm1247, %v7692, %v7693
        %v7695 = vrot.slane %v7606, 4
        %v7696 = vsel %vm1247, %v7693, %v7695
        %v7697 = vrot.slane %v7607, 4
        %v7698 = vsel %vm1247, %v7695, %v7697
        %v7699 = vrot.slane %v7608, 4
        %v7700 = vsel %vm1247, %v7697, %v7699
        %v7701 = vrot.slane %v7609, 4
        %v7702 = vrot.slane %v7610, 4
        %v7703 = vsel %vm1247, %v7701, %v7702
        %v7704 = vrot.slane %v7611, 4
        %v7705 = vsel %vm1247, %v7702, %v7704
        %v7706 = vrot.slane %v7612, 4
        %v7707 = vsel %vm1247, %v7704, %v7706
        %v7708 = vrot.slane %v7613, 4
        %v7709 = vsel %vm1247, %v7706, %v7708
        %v7710 = vrot.slane %v7614, 4
        %v7711 = vrot.slane %v7615, 4
        %v7712 = vsel %vm1247, %v7710, %v7711
        %v7713 = vrot.slane %v7616, 4
        %v7714 = vsel %vm1247, %v7711, %v7713
        %v7715 = vrot.slane %v7617, 4
        %v7716 = vsel %vm1247, %v7713, %v7715
        %v7717 = vrot.slane %v7618, 4
        %v7718 = vsel %vm1247, %v7715, %v7717
        %v7719 = vrot.slane %v7619, 4
        %v7720 = vrot.slane %v7620, 4
        %v7721 = vsel %vm1247, %v7719, %v7720
        %v7722 = vrot.slane %v7621, 4
        %v7723 = vsel %vm1247, %v7720, %v7722
        %v7724 = vrot.slane %v7622, 4
        %v7725 = vsel %vm1247, %v7722, %v7724
        %v7726 = vrot.slane %v7623, 4
        %v7727 = vsel %vm1247, %v7724, %v7726
        %v7728 = vrot.slane %v7624, 4
        %v7729 = vrot.slane %v7625, 4
        %v7730 = vsel %vm1247, %v7728, %v7729
        %v7731 = vrot.slane %v7626, 4
        %v7732 = vsel %vm1247, %v7729, %v7731
        %v7733 = vrot.slane %v7627, 4
        %v7734 = vsel %vm1247, %v7731, %v7733
        %v7735 = vrot.slane %v7628, 4
        %v7736 = vsel %vm1247, %v7733, %v7735
        %v7737 = vrot.slane %v7629, 4
        %v7738 = vrot.slane %v7630, 4
        %v7739 = vsel %vm1247, %v7737, %v7738
        %v7740 = vrot.slane %v7631, 4
        %v7741 = vsel %vm1247, %v7738, %v7740
        %v7742 = vrot.slane %v7632, 4
        %v7743 = vsel %vm1247, %v7740, %v7742
        %v7744 = vrot.slane %v7633, 4
        %v7745 = vsel %vm1247, %v7742, %v7744
        %v7786 = vadd.f32 %v7010, %v7676
        %v7787 = vadd.f32 %v7011, %v7678
        %v7788 = vadd.f32 %v7012, %v7680
        %v7789 = vadd.f32 %v7013, %v7682
        %v7790 = vadd.f32 %v7014, %v7681
        %v7791 = vadd.f32 %v7015, %v7685
        %v7792 = vadd.f32 %v7016, %v7687
        %v7793 = vadd.f32 %v7017, %v7689
        %v7794 = vadd.f32 %v7018, %v7691
        %v7795 = vadd.f32 %v7019, %v7690
        %v7796 = vadd.f32 %v7020, %v7694
        %v7797 = vadd.f32 %v7021, %v7696
        %v7798 = vadd.f32 %v7022, %v7698
        %v7799 = vadd.f32 %v7023, %v7700
        %v7800 = vadd.f32 %v7024, %v7699
        %v7801 = vadd.f32 %v7025, %v7703
        %v7802 = vadd.f32 %v7026, %v7705
        %v7803 = vadd.f32 %v7027, %v7707
        %v7804 = vadd.f32 %v7028, %v7709
        %v7805 = vadd.f32 %v7029, %v7708
        %v7806 = vadd.f32 %v7030, %v7712
        %v7807 = vadd.f32 %v7031, %v7714
        %v7808 = vadd.f32 %v7032, %v7716
        %v7809 = vadd.f32 %v7033, %v7718
        %v7810 = vadd.f32 %v7034, %v7717
        %v7811 = vadd.f32 %v7035, %v7721
        %v7812 = vadd.f32 %v7036, %v7723
        %v7813 = vadd.f32 %v7037, %v7725
        %v7814 = vadd.f32 %v7038, %v7727
        %v7815 = vadd.f32 %v7039, %v7726
        %v7816 = vadd.f32 %v7040, %v7730
        %v7817 = vadd.f32 %v7041, %v7732
        %v7818 = vadd.f32 %v7042, %v7734
        %v7819 = vadd.f32 %v7043, %v7736
        %v7820 = vadd.f32 %v7044, %v7735
        %v7821 = vadd.f32 %v7045, %v7739
        %v7822 = vadd.f32 %v7046, %v7741
        %v7823 = vadd.f32 %v7047, %v7743
        %v7824 = vadd.f32 %v7048, %v7745
        %v7825 = vadd.f32 %v7049, %v7744
        %s7826 = sadd.s32 %s793, 5
        %s7827 = smul.u32 %s7826, 40
        %s7828 = scalar_lea.vmem [#allocation2], %s7827
        %v7829 = vld [vmem:[%s7828] sm:$0xff]
        %v7830 = vld [vmem:[%s7828 + $0x8] sm:$0xff]
        %v7831 = vld [vmem:[%s7828 + $0x10] sm:$0xff]
        %v7832 = vld [vmem:[%s7828 + $0x18] sm:$0xff]
        %v7833 = vld [vmem:[%s7828 + $0x20] sm:$0x3f]
        %v7834 = vld [vmem:[%s7828 + $0x28] sm:$0xff]
        %v7835 = vld [vmem:[%s7828 + $0x30] sm:$0xff]
        %v7836 = vld [vmem:[%s7828 + $0x38] sm:$0xff]
        %v7837 = vld [vmem:[%s7828 + $0x40] sm:$0xff]
        %v7838 = vld [vmem:[%s7828 + $0x48] sm:$0x3f]
        %v7839 = vld [vmem:[%s7828 + $0x50] sm:$0xff]
        %v7840 = vld [vmem:[%s7828 + $0x58] sm:$0xff]
        %v7841 = vld [vmem:[%s7828 + $0x60] sm:$0xff]
        %v7842 = vld [vmem:[%s7828 + $0x68] sm:$0xff]
        %v7843 = vld [vmem:[%s7828 + $0x70] sm:$0x3f]
        %v7844 = vld [vmem:[%s7828 + $0x78] sm:$0xff]
        %v7845 = vld [vmem:[%s7828 + $0x80] sm:$0xff]
        %v7846 = vld [vmem:[%s7828 + $0x88] sm:$0xff]
        %v7847 = vld [vmem:[%s7828 + $0x90] sm:$0xff]
        %v7848 = vld [vmem:[%s7828 + $0x98] sm:$0x3f]
        %v7849 = vld [vmem:[%s7828 + $0xa0] sm:$0xff]
        %v7850 = vld [vmem:[%s7828 + $0xa8] sm:$0xff]
        %v7851 = vld [vmem:[%s7828 + $0xb0] sm:$0xff]
        %v7852 = vld [vmem:[%s7828 + $0xb8] sm:$0xff]
        %v7853 = vld [vmem:[%s7828 + $0xc0] sm:$0x3f]
        %v7854 = vld [vmem:[%s7828 + $0xc8] sm:$0xff]
        %v7855 = vld [vmem:[%s7828 + $0xd0] sm:$0xff]
        %v7856 = vld [vmem:[%s7828 + $0xd8] sm:$0xff]
        %v7857 = vld [vmem:[%s7828 + $0xe0] sm:$0xff]
        %v7858 = vld [vmem:[%s7828 + $0xe8] sm:$0x3f]
        %v7859 = vld [vmem:[%s7828 + $0xf0] sm:$0xff]
        %v7860 = vld [vmem:[%s7828 + $0xf8] sm:$0xff]
        %v7861 = vld [vmem:[%s7828 + $0x100] sm:$0xff]
        %v7862 = vld [vmem:[%s7828 + $0x108] sm:$0xff]
        %v7863 = vld [vmem:[%s7828 + $0x110] sm:$0x3f]
        %v7864 = vld [vmem:[%s7828 + $0x118] sm:$0xff]
        %v7865 = vld [vmem:[%s7828 + $0x120] sm:$0xff]
        %v7866 = vld [vmem:[%s7828 + $0x128] sm:$0xff]
        %v7867 = vld [vmem:[%s7828 + $0x130] sm:$0xff]
        %v7868 = vld [vmem:[%s7828 + $0x138] sm:$0x3f]
        %v7869 = vlaneseq
        %v7870 = vshrl.u32 %v7869, 7
        %v7871 = vsub.s32 3, %v7870
        %v7872 = vrot.slane %v798, %v7871
        %v7873 = vmul.f32 %v7829, %v7872
        %v7874 = vmul.f32 %v7830, %v7872
        %v7875 = vmul.f32 %v7831, %v7872
        %v7876 = vmul.f32 %v7832, %v7872
        %v7877 = vmul.f32 %v7834, %v7872
        %v7878 = vmul.f32 %v7835, %v7872
        %v7879 = vmul.f32 %v7836, %v7872
        %v7880 = vmul.f32 %v7837, %v7872
        %v7881 = vmul.f32 %v7839, %v7872
        %v7882 = vmul.f32 %v7840, %v7872
        %v7883 = vmul.f32 %v7841, %v7872
        %v7884 = vmul.f32 %v7842, %v7872
        %v7885 = vmul.f32 %v7844, %v7872
        %v7886 = vmul.f32 %v7845, %v7872
        %v7887 = vmul.f32 %v7846, %v7872
        %v7888 = vmul.f32 %v7847, %v7872
        %v7889 = vmul.f32 %v7849, %v7872
        %v7890 = vmul.f32 %v7850, %v7872
        %v7891 = vmul.f32 %v7851, %v7872
        %v7892 = vmul.f32 %v7852, %v7872
        %v7893 = vmul.f32 %v7854, %v7872
        %v7894 = vmul.f32 %v7855, %v7872
        %v7895 = vmul.f32 %v7856, %v7872
        %v7896 = vmul.f32 %v7857, %v7872
        %v7897 = vmul.f32 %v7859, %v7872
        %v7898 = vmul.f32 %v7860, %v7872
        %v7899 = vmul.f32 %v7861, %v7872
        %v7900 = vmul.f32 %v7862, %v7872
        %v7901 = vmul.f32 %v7864, %v7872
        %v7902 = vmul.f32 %v7865, %v7872
        %v7903 = vmul.f32 %v7866, %v7872
        %v7904 = vmul.f32 %v7867, %v7872
        %v7937 = vrot.slane %v7873, 5
        %v7938 = vrot.slane %v7874, 5
        %v7939 = vsel %vm1967, %v7937, %v7938
        %v7940 = vrot.slane %v7875, 5
        %v7941 = vsel %vm1967, %v7938, %v7940
        %v7942 = vrot.slane %v7876, 5
        %v7943 = vsel %vm1967, %v7940, %v7942
        %v7944 = vrot.slane %v7877, 5
        %v7945 = vrot.slane %v7878, 5
        %v7946 = vsel %vm1967, %v7944, %v7945
        %v7947 = vrot.slane %v7879, 5
        %v7948 = vsel %vm1967, %v7945, %v7947
        %v7949 = vrot.slane %v7880, 5
        %v7950 = vsel %vm1967, %v7947, %v7949
        %v7951 = vrot.slane %v7881, 5
        %v7952 = vrot.slane %v7882, 5
        %v7953 = vsel %vm1967, %v7951, %v7952
        %v7954 = vrot.slane %v7883, 5
        %v7955 = vsel %vm1967, %v7952, %v7954
        %v7956 = vrot.slane %v7884, 5
        %v7957 = vsel %vm1967, %v7954, %v7956
        %v7958 = vrot.slane %v7885, 5
        %v7959 = vrot.slane %v7886, 5
        %v7960 = vsel %vm1967, %v7958, %v7959
        %v7961 = vrot.slane %v7887, 5
        %v7962 = vsel %vm1967, %v7959, %v7961
        %v7963 = vrot.slane %v7888, 5
        %v7964 = vsel %vm1967, %v7961, %v7963
        %v7965 = vrot.slane %v7889, 5
        %v7966 = vrot.slane %v7890, 5
        %v7967 = vsel %vm1967, %v7965, %v7966
        %v7968 = vrot.slane %v7891, 5
        %v7969 = vsel %vm1967, %v7966, %v7968
        %v7970 = vrot.slane %v7892, 5
        %v7971 = vsel %vm1967, %v7968, %v7970
        %v7972 = vrot.slane %v7893, 5
        %v7973 = vrot.slane %v7894, 5
        %v7974 = vsel %vm1967, %v7972, %v7973
        %v7975 = vrot.slane %v7895, 5
        %v7976 = vsel %vm1967, %v7973, %v7975
        %v7977 = vrot.slane %v7896, 5
        %v7978 = vsel %vm1967, %v7975, %v7977
        %v7979 = vrot.slane %v7897, 5
        %v7980 = vrot.slane %v7898, 5
        %v7981 = vsel %vm1967, %v7979, %v7980
        %v7982 = vrot.slane %v7899, 5
        %v7983 = vsel %vm1967, %v7980, %v7982
        %v7984 = vrot.slane %v7900, 5
        %v7985 = vsel %vm1967, %v7982, %v7984
        %v7986 = vrot.slane %v7901, 5
        %v7987 = vrot.slane %v7902, 5
        %v7988 = vsel %vm1967, %v7986, %v7987
        %v7989 = vrot.slane %v7903, 5
        %v7990 = vsel %vm1967, %v7987, %v7989
        %v7991 = vrot.slane %v7904, 5
        %v7992 = vsel %vm1967, %v7989, %v7991
        %v8033 = vadd.f32 %v7094, %v7937
        %v8034 = vadd.f32 %v7095, %v7939
        %v8035 = vadd.f32 %v7096, %v7941
        %v8036 = vadd.f32 %v7097, %v7943
        %v8037 = vadd.f32 %v7098, %v7942
        %v8038 = vadd.f32 %v7099, %v7944
        %v8039 = vadd.f32 %v7100, %v7946
        %v8040 = vadd.f32 %v7101, %v7948
        %v8041 = vadd.f32 %v7102, %v7950
        %v8042 = vadd.f32 %v7103, %v7949
        %v8043 = vadd.f32 %v7104, %v7951
        %v8044 = vadd.f32 %v7105, %v7953
        %v8045 = vadd.f32 %v7106, %v7955
        %v8046 = vadd.f32 %v7107, %v7957
        %v8047 = vadd.f32 %v7108, %v7956
        %v8048 = vadd.f32 %v7109, %v7958
        %v8049 = vadd.f32 %v7110, %v7960
        %v8050 = vadd.f32 %v7111, %v7962
        %v8051 = vadd.f32 %v7112, %v7964
        %v8052 = vadd.f32 %v7113, %v7963
        %v8053 = vadd.f32 %v7114, %v7965
        %v8054 = vadd.f32 %v7115, %v7967
        %v8055 = vadd.f32 %v7116, %v7969
        %v8056 = vadd.f32 %v7117, %v7971
        %v8057 = vadd.f32 %v7118, %v7970
        %v8058 = vadd.f32 %v7119, %v7972
        %v8059 = vadd.f32 %v7120, %v7974
        %v8060 = vadd.f32 %v7121, %v7976
        %v8061 = vadd.f32 %v7122, %v7978
        %v8062 = vadd.f32 %v7123, %v7977
        %v8063 = vadd.f32 %v7124, %v7979
        %v8064 = vadd.f32 %v7125, %v7981
        %v8065 = vadd.f32 %v7126, %v7983
        %v8066 = vadd.f32 %v7127, %v7985
        %v8067 = vadd.f32 %v7128, %v7984
        %v8068 = vadd.f32 %v7129, %v7986
        %v8069 = vadd.f32 %v7130, %v7988
        %v8070 = vadd.f32 %v7131, %v7990
        %v8071 = vadd.f32 %v7132, %v7992
        %v8072 = vadd.f32 %v7133, %v7991
        %v8073 = vlaneseq
        %v8074 = vshrl.u32 %v8073, 7
        %v8075 = vsub.s32 4, %v8074
        %v8076 = vrot.slane %v798, %v8075
        %v8077 = vmul.f32 %v7829, %v8076
        %v8078 = vmul.f32 %v7830, %v8076
        %v8079 = vmul.f32 %v7831, %v8076
        %v8080 = vmul.f32 %v7832, %v8076
        %v8081 = vmul.f32 %v7833, %v8076
        %v8082 = vmul.f32 %v7834, %v8076
        %v8083 = vmul.f32 %v7835, %v8076
        %v8084 = vmul.f32 %v7836, %v8076
        %v8085 = vmul.f32 %v7837, %v8076
        %v8086 = vmul.f32 %v7838, %v8076
        %v8087 = vmul.f32 %v7839, %v8076
        %v8088 = vmul.f32 %v7840, %v8076
        %v8089 = vmul.f32 %v7841, %v8076
        %v8090 = vmul.f32 %v7842, %v8076
        %v8091 = vmul.f32 %v7843, %v8076
        %v8092 = vmul.f32 %v7844, %v8076
        %v8093 = vmul.f32 %v7845, %v8076
        %v8094 = vmul.f32 %v7846, %v8076
        %v8095 = vmul.f32 %v7847, %v8076
        %v8096 = vmul.f32 %v7848, %v8076
        %v8097 = vmul.f32 %v7849, %v8076
        %v8098 = vmul.f32 %v7850, %v8076
        %v8099 = vmul.f32 %v7851, %v8076
        %v8100 = vmul.f32 %v7852, %v8076
        %v8101 = vmul.f32 %v7853, %v8076
        %v8102 = vmul.f32 %v7854, %v8076
        %v8103 = vmul.f32 %v7855, %v8076
        %v8104 = vmul.f32 %v7856, %v8076
        %v8105 = vmul.f32 %v7857, %v8076
        %v8106 = vmul.f32 %v7858, %v8076
        %v8107 = vmul.f32 %v7859, %v8076
        %v8108 = vmul.f32 %v7860, %v8076
        %v8109 = vmul.f32 %v7861, %v8076
        %v8110 = vmul.f32 %v7862, %v8076
        %v8111 = vmul.f32 %v7863, %v8076
        %v8112 = vmul.f32 %v7864, %v8076
        %v8113 = vmul.f32 %v7865, %v8076
        %v8114 = vmul.f32 %v7866, %v8076
        %v8115 = vmul.f32 %v7867, %v8076
        %v8116 = vmul.f32 %v7868, %v8076
        %v8157 = vrot.slane %v8077, 1
        %v8158 = vrot.slane %v8078, 1
        %v8159 = vsel %vm2188, %v8157, %v8158
        %v8160 = vrot.slane %v8079, 1
        %v8161 = vsel %vm2188, %v8158, %v8160
        %v8162 = vrot.slane %v8080, 1
        %v8163 = vsel %vm2188, %v8160, %v8162
        %v8164 = vrot.slane %v8081, 1
        %v8165 = vsel %vm2188, %v8162, %v8164
        %v8166 = vrot.slane %v8082, 1
        %v8167 = vrot.slane %v8083, 1
        %v8168 = vsel %vm2188, %v8166, %v8167
        %v8169 = vrot.slane %v8084, 1
        %v8170 = vsel %vm2188, %v8167, %v8169
        %v8171 = vrot.slane %v8085, 1
        %v8172 = vsel %vm2188, %v8169, %v8171
        %v8173 = vrot.slane %v8086, 1
        %v8174 = vsel %vm2188, %v8171, %v8173
        %v8175 = vrot.slane %v8087, 1
        %v8176 = vrot.slane %v8088, 1
        %v8177 = vsel %vm2188, %v8175, %v8176
        %v8178 = vrot.slane %v8089, 1
        %v8179 = vsel %vm2188, %v8176, %v8178
        %v8180 = vrot.slane %v8090, 1
        %v8181 = vsel %vm2188, %v8178, %v8180
        %v8182 = vrot.slane %v8091, 1
        %v8183 = vsel %vm2188, %v8180, %v8182
        %v8184 = vrot.slane %v8092, 1
        %v8185 = vrot.slane %v8093, 1
        %v8186 = vsel %vm2188, %v8184, %v8185
        %v8187 = vrot.slane %v8094, 1
        %v8188 = vsel %vm2188, %v8185, %v8187
        %v8189 = vrot.slane %v8095, 1
        %v8190 = vsel %vm2188, %v8187, %v8189
        %v8191 = vrot.slane %v8096, 1
        %v8192 = vsel %vm2188, %v8189, %v8191
        %v8193 = vrot.slane %v8097, 1
        %v8194 = vrot.slane %v8098, 1
        %v8195 = vsel %vm2188, %v8193, %v8194
        %v8196 = vrot.slane %v8099, 1
        %v8197 = vsel %vm2188, %v8194, %v8196
        %v8198 = vrot.slane %v8100, 1
        %v8199 = vsel %vm2188, %v8196, %v8198
        %v8200 = vrot.slane %v8101, 1
        %v8201 = vsel %vm2188, %v8198, %v8200
        %v8202 = vrot.slane %v8102, 1
        %v8203 = vrot.slane %v8103, 1
        %v8204 = vsel %vm2188, %v8202, %v8203
        %v8205 = vrot.slane %v8104, 1
        %v8206 = vsel %vm2188, %v8203, %v8205
        %v8207 = vrot.slane %v8105, 1
        %v8208 = vsel %vm2188, %v8205, %v8207
        %v8209 = vrot.slane %v8106, 1
        %v8210 = vsel %vm2188, %v8207, %v8209
        %v8211 = vrot.slane %v8107, 1
        %v8212 = vrot.slane %v8108, 1
        %v8213 = vsel %vm2188, %v8211, %v8212
        %v8214 = vrot.slane %v8109, 1
        %v8215 = vsel %vm2188, %v8212, %v8214
        %v8216 = vrot.slane %v8110, 1
        %v8217 = vsel %vm2188, %v8214, %v8216
        %v8218 = vrot.slane %v8111, 1
        %v8219 = vsel %vm2188, %v8216, %v8218
        %v8220 = vrot.slane %v8112, 1
        %v8221 = vrot.slane %v8113, 1
        %v8222 = vsel %vm2188, %v8220, %v8221
        %v8223 = vrot.slane %v8114, 1
        %v8224 = vsel %vm2188, %v8221, %v8223
        %v8225 = vrot.slane %v8115, 1
        %v8226 = vsel %vm2188, %v8223, %v8225
        %v8227 = vrot.slane %v8116, 1
        %v8228 = vsel %vm2188, %v8225, %v8227
        %v8261 = vadd.f32 %v7322, %v8159
        %v8262 = vadd.f32 %v7323, %v8161
        %v8263 = vadd.f32 %v7324, %v8163
        %v8264 = vadd.f32 %v7325, %v8165
        %v8265 = vadd.f32 %v7326, %v8168
        %v8266 = vadd.f32 %v7327, %v8170
        %v8267 = vadd.f32 %v7328, %v8172
        %v8268 = vadd.f32 %v7329, %v8174
        %v8269 = vadd.f32 %v7330, %v8177
        %v8270 = vadd.f32 %v7331, %v8179
        %v8271 = vadd.f32 %v7332, %v8181
        %v8272 = vadd.f32 %v7333, %v8183
        %v8273 = vadd.f32 %v7334, %v8186
        %v8274 = vadd.f32 %v7335, %v8188
        %v8275 = vadd.f32 %v7336, %v8190
        %v8276 = vadd.f32 %v7337, %v8192
        %v8277 = vadd.f32 %v7338, %v8195
        %v8278 = vadd.f32 %v7339, %v8197
        %v8279 = vadd.f32 %v7340, %v8199
        %v8280 = vadd.f32 %v7341, %v8201
        %v8281 = vadd.f32 %v7342, %v8204
        %v8282 = vadd.f32 %v7343, %v8206
        %v8283 = vadd.f32 %v7344, %v8208
        %v8284 = vadd.f32 %v7345, %v8210
        %v8285 = vadd.f32 %v7346, %v8213
        %v8286 = vadd.f32 %v7347, %v8215
        %v8287 = vadd.f32 %v7348, %v8217
        %v8288 = vadd.f32 %v7349, %v8219
        %v8289 = vadd.f32 %v7350, %v8222
        %v8290 = vadd.f32 %v7351, %v8224
        %v8291 = vadd.f32 %v7352, %v8226
        %v8292 = vadd.f32 %v7353, %v8228
        %v8293 = vlaneseq
        %v8294 = vshrl.u32 %v8293, 7
        %v8295 = vsub.s32 5, %v8294
        %v8296 = vrot.slane %v798, %v8295
        %v8297 = vmul.f32 %v7829, %v8296
        %v8298 = vmul.f32 %v7830, %v8296
        %v8299 = vmul.f32 %v7831, %v8296
        %v8300 = vmul.f32 %v7832, %v8296
        %v8301 = vmul.f32 %v7833, %v8296
        %v8302 = vmul.f32 %v7834, %v8296
        %v8303 = vmul.f32 %v7835, %v8296
        %v8304 = vmul.f32 %v7836, %v8296
        %v8305 = vmul.f32 %v7837, %v8296
        %v8306 = vmul.f32 %v7838, %v8296
        %v8307 = vmul.f32 %v7839, %v8296
        %v8308 = vmul.f32 %v7840, %v8296
        %v8309 = vmul.f32 %v7841, %v8296
        %v8310 = vmul.f32 %v7842, %v8296
        %v8311 = vmul.f32 %v7843, %v8296
        %v8312 = vmul.f32 %v7844, %v8296
        %v8313 = vmul.f32 %v7845, %v8296
        %v8314 = vmul.f32 %v7846, %v8296
        %v8315 = vmul.f32 %v7847, %v8296
        %v8316 = vmul.f32 %v7848, %v8296
        %v8317 = vmul.f32 %v7849, %v8296
        %v8318 = vmul.f32 %v7850, %v8296
        %v8319 = vmul.f32 %v7851, %v8296
        %v8320 = vmul.f32 %v7852, %v8296
        %v8321 = vmul.f32 %v7853, %v8296
        %v8322 = vmul.f32 %v7854, %v8296
        %v8323 = vmul.f32 %v7855, %v8296
        %v8324 = vmul.f32 %v7856, %v8296
        %v8325 = vmul.f32 %v7857, %v8296
        %v8326 = vmul.f32 %v7858, %v8296
        %v8327 = vmul.f32 %v7859, %v8296
        %v8328 = vmul.f32 %v7860, %v8296
        %v8329 = vmul.f32 %v7861, %v8296
        %v8330 = vmul.f32 %v7862, %v8296
        %v8331 = vmul.f32 %v7863, %v8296
        %v8332 = vmul.f32 %v7864, %v8296
        %v8333 = vmul.f32 %v7865, %v8296
        %v8334 = vmul.f32 %v7866, %v8296
        %v8335 = vmul.f32 %v7867, %v8296
        %v8336 = vmul.f32 %v7868, %v8296
        %v8377 = vrot.slane %v8297, 1
        %v8378 = vrot.slane %v8298, 1
        %v8379 = vsel %vm2188, %v8377, %v8378
        %v8380 = vrot.slane %v8299, 1
        %v8381 = vsel %vm2188, %v8378, %v8380
        %v8382 = vrot.slane %v8300, 1
        %v8383 = vsel %vm2188, %v8380, %v8382
        %v8384 = vrot.slane %v8301, 1
        %v8385 = vsel %vm2188, %v8382, %v8384
        %v8386 = vrot.slane %v8302, 1
        %v8387 = vrot.slane %v8303, 1
        %v8388 = vsel %vm2188, %v8386, %v8387
        %v8389 = vrot.slane %v8304, 1
        %v8390 = vsel %vm2188, %v8387, %v8389
        %v8391 = vrot.slane %v8305, 1
        %v8392 = vsel %vm2188, %v8389, %v8391
        %v8393 = vrot.slane %v8306, 1
        %v8394 = vsel %vm2188, %v8391, %v8393
        %v8395 = vrot.slane %v8307, 1
        %v8396 = vrot.slane %v8308, 1
        %v8397 = vsel %vm2188, %v8395, %v8396
        %v8398 = vrot.slane %v8309, 1
        %v8399 = vsel %vm2188, %v8396, %v8398
        %v8400 = vrot.slane %v8310, 1
        %v8401 = vsel %vm2188, %v8398, %v8400
        %v8402 = vrot.slane %v8311, 1
        %v8403 = vsel %vm2188, %v8400, %v8402
        %v8404 = vrot.slane %v8312, 1
        %v8405 = vrot.slane %v8313, 1
        %v8406 = vsel %vm2188, %v8404, %v8405
        %v8407 = vrot.slane %v8314, 1
        %v8408 = vsel %vm2188, %v8405, %v8407
        %v8409 = vrot.slane %v8315, 1
        %v8410 = vsel %vm2188, %v8407, %v8409
        %v8411 = vrot.slane %v8316, 1
        %v8412 = vsel %vm2188, %v8409, %v8411
        %v8413 = vrot.slane %v8317, 1
        %v8414 = vrot.slane %v8318, 1
        %v8415 = vsel %vm2188, %v8413, %v8414
        %v8416 = vrot.slane %v8319, 1
        %v8417 = vsel %vm2188, %v8414, %v8416
        %v8418 = vrot.slane %v8320, 1
        %v8419 = vsel %vm2188, %v8416, %v8418
        %v8420 = vrot.slane %v8321, 1
        %v8421 = vsel %vm2188, %v8418, %v8420
        %v8422 = vrot.slane %v8322, 1
        %v8423 = vrot.slane %v8323, 1
        %v8424 = vsel %vm2188, %v8422, %v8423
        %v8425 = vrot.slane %v8324, 1
        %v8426 = vsel %vm2188, %v8423, %v8425
        %v8427 = vrot.slane %v8325, 1
        %v8428 = vsel %vm2188, %v8425, %v8427
        %v8429 = vrot.slane %v8326, 1
        %v8430 = vsel %vm2188, %v8427, %v8429
        %v8431 = vrot.slane %v8327, 1
        %v8432 = vrot.slane %v8328, 1
        %v8433 = vsel %vm2188, %v8431, %v8432
        %v8434 = vrot.slane %v8329, 1
        %v8435 = vsel %vm2188, %v8432, %v8434
        %v8436 = vrot.slane %v8330, 1
        %v8437 = vsel %vm2188, %v8434, %v8436
        %v8438 = vrot.slane %v8331, 1
        %v8439 = vsel %vm2188, %v8436, %v8438
        %v8440 = vrot.slane %v8332, 1
        %v8441 = vrot.slane %v8333, 1
        %v8442 = vsel %vm2188, %v8440, %v8441
        %v8443 = vrot.slane %v8334, 1
        %v8444 = vsel %vm2188, %v8441, %v8443
        %v8445 = vrot.slane %v8335, 1
        %v8446 = vsel %vm2188, %v8443, %v8445
        %v8447 = vrot.slane %v8336, 1
        %v8448 = vsel %vm2188, %v8445, %v8447
        %v8489 = vadd.f32 %v7550, %v8379
        %v8490 = vadd.f32 %v7551, %v8381
        %v8491 = vadd.f32 %v7552, %v8383
        %v8492 = vadd.f32 %v7553, %v8385
        %v8493 = vadd.f32 %v7554, %v8384
        %v8494 = vadd.f32 %v7555, %v8388
        %v8495 = vadd.f32 %v7556, %v8390
        %v8496 = vadd.f32 %v7557, %v8392
        %v8497 = vadd.f32 %v7558, %v8394
        %v8498 = vadd.f32 %v7559, %v8393
        %v8499 = vadd.f32 %v7560, %v8397
        %v8500 = vadd.f32 %v7561, %v8399
        %v8501 = vadd.f32 %v7562, %v8401
        %v8502 = vadd.f32 %v7563, %v8403
        %v8503 = vadd.f32 %v7564, %v8402
        %v8504 = vadd.f32 %v7565, %v8406
        %v8505 = vadd.f32 %v7566, %v8408
        %v8506 = vadd.f32 %v7567, %v8410
        %v8507 = vadd.f32 %v7568, %v8412
        %v8508 = vadd.f32 %v7569, %v8411
        %v8509 = vadd.f32 %v7570, %v8415
        %v8510 = vadd.f32 %v7571, %v8417
        %v8511 = vadd.f32 %v7572, %v8419
        %v8512 = vadd.f32 %v7573, %v8421
        %v8513 = vadd.f32 %v7574, %v8420
        %v8514 = vadd.f32 %v7575, %v8424
        %v8515 = vadd.f32 %v7576, %v8426
        %v8516 = vadd.f32 %v7577, %v8428
        %v8517 = vadd.f32 %v7578, %v8430
        %v8518 = vadd.f32 %v7579, %v8429
        %v8519 = vadd.f32 %v7580, %v8433
        %v8520 = vadd.f32 %v7581, %v8435
        %v8521 = vadd.f32 %v7582, %v8437
        %v8522 = vadd.f32 %v7583, %v8439
        %v8523 = vadd.f32 %v7584, %v8438
        %v8524 = vadd.f32 %v7585, %v8442
        %v8525 = vadd.f32 %v7586, %v8444
        %v8526 = vadd.f32 %v7587, %v8446
        %v8527 = vadd.f32 %v7588, %v8448
        %v8528 = vadd.f32 %v7589, %v8447
        %v8529 = vlaneseq
        %v8530 = vshrl.u32 %v8529, 7
        %v8531 = vsub.s32 6, %v8530
        %v8532 = vrot.slane %v798, %v8531
        %v8533 = vmul.f32 %v7829, %v8532
        %v8534 = vmul.f32 %v7830, %v8532
        %v8535 = vmul.f32 %v7831, %v8532
        %v8536 = vmul.f32 %v7832, %v8532
        %v8537 = vmul.f32 %v7833, %v8532
        %v8538 = vmul.f32 %v7834, %v8532
        %v8539 = vmul.f32 %v7835, %v8532
        %v8540 = vmul.f32 %v7836, %v8532
        %v8541 = vmul.f32 %v7837, %v8532
        %v8542 = vmul.f32 %v7838, %v8532
        %v8543 = vmul.f32 %v7839, %v8532
        %v8544 = vmul.f32 %v7840, %v8532
        %v8545 = vmul.f32 %v7841, %v8532
        %v8546 = vmul.f32 %v7842, %v8532
        %v8547 = vmul.f32 %v7843, %v8532
        %v8548 = vmul.f32 %v7844, %v8532
        %v8549 = vmul.f32 %v7845, %v8532
        %v8550 = vmul.f32 %v7846, %v8532
        %v8551 = vmul.f32 %v7847, %v8532
        %v8552 = vmul.f32 %v7848, %v8532
        %v8553 = vmul.f32 %v7849, %v8532
        %v8554 = vmul.f32 %v7850, %v8532
        %v8555 = vmul.f32 %v7851, %v8532
        %v8556 = vmul.f32 %v7852, %v8532
        %v8557 = vmul.f32 %v7853, %v8532
        %v8558 = vmul.f32 %v7854, %v8532
        %v8559 = vmul.f32 %v7855, %v8532
        %v8560 = vmul.f32 %v7856, %v8532
        %v8561 = vmul.f32 %v7857, %v8532
        %v8562 = vmul.f32 %v7858, %v8532
        %v8563 = vmul.f32 %v7859, %v8532
        %v8564 = vmul.f32 %v7860, %v8532
        %v8565 = vmul.f32 %v7861, %v8532
        %v8566 = vmul.f32 %v7862, %v8532
        %v8567 = vmul.f32 %v7863, %v8532
        %v8568 = vmul.f32 %v7864, %v8532
        %v8569 = vmul.f32 %v7865, %v8532
        %v8570 = vmul.f32 %v7866, %v8532
        %v8571 = vmul.f32 %v7867, %v8532
        %v8572 = vmul.f32 %v7868, %v8532
        %v8613 = vrot.slane %v8533, 1
        %v8614 = vrot.slane %v8534, 1
        %v8615 = vsel %vm2188, %v8613, %v8614
        %v8616 = vrot.slane %v8535, 1
        %v8617 = vsel %vm2188, %v8614, %v8616
        %v8618 = vrot.slane %v8536, 1
        %v8619 = vsel %vm2188, %v8616, %v8618
        %v8620 = vrot.slane %v8537, 1
        %v8621 = vsel %vm2188, %v8618, %v8620
        %v8622 = vrot.slane %v8538, 1
        %v8623 = vrot.slane %v8539, 1
        %v8624 = vsel %vm2188, %v8622, %v8623
        %v8625 = vrot.slane %v8540, 1
        %v8626 = vsel %vm2188, %v8623, %v8625
        %v8627 = vrot.slane %v8541, 1
        %v8628 = vsel %vm2188, %v8625, %v8627
        %v8629 = vrot.slane %v8542, 1
        %v8630 = vsel %vm2188, %v8627, %v8629
        %v8631 = vrot.slane %v8543, 1
        %v8632 = vrot.slane %v8544, 1
        %v8633 = vsel %vm2188, %v8631, %v8632
        %v8634 = vrot.slane %v8545, 1
        %v8635 = vsel %vm2188, %v8632, %v8634
        %v8636 = vrot.slane %v8546, 1
        %v8637 = vsel %vm2188, %v8634, %v8636
        %v8638 = vrot.slane %v8547, 1
        %v8639 = vsel %vm2188, %v8636, %v8638
        %v8640 = vrot.slane %v8548, 1
        %v8641 = vrot.slane %v8549, 1
        %v8642 = vsel %vm2188, %v8640, %v8641
        %v8643 = vrot.slane %v8550, 1
        %v8644 = vsel %vm2188, %v8641, %v8643
        %v8645 = vrot.slane %v8551, 1
        %v8646 = vsel %vm2188, %v8643, %v8645
        %v8647 = vrot.slane %v8552, 1
        %v8648 = vsel %vm2188, %v8645, %v8647
        %v8649 = vrot.slane %v8553, 1
        %v8650 = vrot.slane %v8554, 1
        %v8651 = vsel %vm2188, %v8649, %v8650
        %v8652 = vrot.slane %v8555, 1
        %v8653 = vsel %vm2188, %v8650, %v8652
        %v8654 = vrot.slane %v8556, 1
        %v8655 = vsel %vm2188, %v8652, %v8654
        %v8656 = vrot.slane %v8557, 1
        %v8657 = vsel %vm2188, %v8654, %v8656
        %v8658 = vrot.slane %v8558, 1
        %v8659 = vrot.slane %v8559, 1
        %v8660 = vsel %vm2188, %v8658, %v8659
        %v8661 = vrot.slane %v8560, 1
        %v8662 = vsel %vm2188, %v8659, %v8661
        %v8663 = vrot.slane %v8561, 1
        %v8664 = vsel %vm2188, %v8661, %v8663
        %v8665 = vrot.slane %v8562, 1
        %v8666 = vsel %vm2188, %v8663, %v8665
        %v8667 = vrot.slane %v8563, 1
        %v8668 = vrot.slane %v8564, 1
        %v8669 = vsel %vm2188, %v8667, %v8668
        %v8670 = vrot.slane %v8565, 1
        %v8671 = vsel %vm2188, %v8668, %v8670
        %v8672 = vrot.slane %v8566, 1
        %v8673 = vsel %vm2188, %v8670, %v8672
        %v8674 = vrot.slane %v8567, 1
        %v8675 = vsel %vm2188, %v8672, %v8674
        %v8676 = vrot.slane %v8568, 1
        %v8677 = vrot.slane %v8569, 1
        %v8678 = vsel %vm2188, %v8676, %v8677
        %v8679 = vrot.slane %v8570, 1
        %v8680 = vsel %vm2188, %v8677, %v8679
        %v8681 = vrot.slane %v8571, 1
        %v8682 = vsel %vm2188, %v8679, %v8681
        %v8683 = vrot.slane %v8572, 1
        %v8684 = vsel %vm2188, %v8681, %v8683
        %v8725 = vadd.f32 %v7786, %v8615
        %v8726 = vadd.f32 %v7787, %v8617
        %v8727 = vadd.f32 %v7788, %v8619
        %v8728 = vadd.f32 %v7789, %v8621
        %v8729 = vadd.f32 %v7790, %v8620
        %v8730 = vadd.f32 %v7791, %v8624
        %v8731 = vadd.f32 %v7792, %v8626
        %v8732 = vadd.f32 %v7793, %v8628
        %v8733 = vadd.f32 %v7794, %v8630
        %v8734 = vadd.f32 %v7795, %v8629
        %v8735 = vadd.f32 %v7796, %v8633
        %v8736 = vadd.f32 %v7797, %v8635
        %v8737 = vadd.f32 %v7798, %v8637
        %v8738 = vadd.f32 %v7799, %v8639
        %v8739 = vadd.f32 %v7800, %v8638
        %v8740 = vadd.f32 %v7801, %v8642
        %v8741 = vadd.f32 %v7802, %v8644
        %v8742 = vadd.f32 %v7803, %v8646
        %v8743 = vadd.f32 %v7804, %v8648
        %v8744 = vadd.f32 %v7805, %v8647
        %v8745 = vadd.f32 %v7806, %v8651
        %v8746 = vadd.f32 %v7807, %v8653
        %v8747 = vadd.f32 %v7808, %v8655
        %v8748 = vadd.f32 %v7809, %v8657
        %v8749 = vadd.f32 %v7810, %v8656
        %v8750 = vadd.f32 %v7811, %v8660
        %v8751 = vadd.f32 %v7812, %v8662
        %v8752 = vadd.f32 %v7813, %v8664
        %v8753 = vadd.f32 %v7814, %v8666
        %v8754 = vadd.f32 %v7815, %v8665
        %v8755 = vadd.f32 %v7816, %v8669
        %v8756 = vadd.f32 %v7817, %v8671
        %v8757 = vadd.f32 %v7818, %v8673
        %v8758 = vadd.f32 %v7819, %v8675
        %v8759 = vadd.f32 %v7820, %v8674
        %v8760 = vadd.f32 %v7821, %v8678
        %v8761 = vadd.f32 %v7822, %v8680
        %v8762 = vadd.f32 %v7823, %v8682
        %v8763 = vadd.f32 %v7824, %v8684
        %v8764 = vadd.f32 %v7825, %v8683
        %v8765 = vlaneseq
        %v8766 = vshrl.u32 %v8765, 7
        %v8767 = vsub.s32 7, %v8766
        %v8768 = vrot.slane %v798, %v8767
        %v8769 = vmul.f32 %v7829, %v8768
        %v8770 = vmul.f32 %v7830, %v8768
        %v8771 = vmul.f32 %v7831, %v8768
        %v8772 = vmul.f32 %v7832, %v8768
        %v8773 = vmul.f32 %v7833, %v8768
        %v8774 = vmul.f32 %v7834, %v8768
        %v8775 = vmul.f32 %v7835, %v8768
        %v8776 = vmul.f32 %v7836, %v8768
        %v8777 = vmul.f32 %v7837, %v8768
        %v8778 = vmul.f32 %v7838, %v8768
        %v8779 = vmul.f32 %v7839, %v8768
        %v8780 = vmul.f32 %v7840, %v8768
        %v8781 = vmul.f32 %v7841, %v8768
        %v8782 = vmul.f32 %v7842, %v8768
        %v8783 = vmul.f32 %v7843, %v8768
        %v8784 = vmul.f32 %v7844, %v8768
        %v8785 = vmul.f32 %v7845, %v8768
        %v8786 = vmul.f32 %v7846, %v8768
        %v8787 = vmul.f32 %v7847, %v8768
        %v8788 = vmul.f32 %v7848, %v8768
        %v8789 = vmul.f32 %v7849, %v8768
        %v8790 = vmul.f32 %v7850, %v8768
        %v8791 = vmul.f32 %v7851, %v8768
        %v8792 = vmul.f32 %v7852, %v8768
        %v8793 = vmul.f32 %v7853, %v8768
        %v8794 = vmul.f32 %v7854, %v8768
        %v8795 = vmul.f32 %v7855, %v8768
        %v8796 = vmul.f32 %v7856, %v8768
        %v8797 = vmul.f32 %v7857, %v8768
        %v8798 = vmul.f32 %v7858, %v8768
        %v8799 = vmul.f32 %v7859, %v8768
        %v8800 = vmul.f32 %v7860, %v8768
        %v8801 = vmul.f32 %v7861, %v8768
        %v8802 = vmul.f32 %v7862, %v8768
        %v8803 = vmul.f32 %v7863, %v8768
        %v8804 = vmul.f32 %v7864, %v8768
        %v8805 = vmul.f32 %v7865, %v8768
        %v8806 = vmul.f32 %v7866, %v8768
        %v8807 = vmul.f32 %v7867, %v8768
        %v8808 = vmul.f32 %v7868, %v8768
        %v8849 = vrot.slane %v8769, 1
        %v8850 = vrot.slane %v8770, 1
        %v8851 = vsel %vm2188, %v8849, %v8850
        %v8852 = vrot.slane %v8771, 1
        %v8853 = vsel %vm2188, %v8850, %v8852
        %v8854 = vrot.slane %v8772, 1
        %v8855 = vsel %vm2188, %v8852, %v8854
        %v8856 = vrot.slane %v8773, 1
        %v8857 = vsel %vm2188, %v8854, %v8856
        %v8858 = vrot.slane %v8774, 1
        %v8859 = vrot.slane %v8775, 1
        %v8860 = vsel %vm2188, %v8858, %v8859
        %v8861 = vrot.slane %v8776, 1
        %v8862 = vsel %vm2188, %v8859, %v8861
        %v8863 = vrot.slane %v8777, 1
        %v8864 = vsel %vm2188, %v8861, %v8863
        %v8865 = vrot.slane %v8778, 1
        %v8866 = vsel %vm2188, %v8863, %v8865
        %v8867 = vrot.slane %v8779, 1
        %v8868 = vrot.slane %v8780, 1
        %v8869 = vsel %vm2188, %v8867, %v8868
        %v8870 = vrot.slane %v8781, 1
        %v8871 = vsel %vm2188, %v8868, %v8870
        %v8872 = vrot.slane %v8782, 1
        %v8873 = vsel %vm2188, %v8870, %v8872
        %v8874 = vrot.slane %v8783, 1
        %v8875 = vsel %vm2188, %v8872, %v8874
        %v8876 = vrot.slane %v8784, 1
        %v8877 = vrot.slane %v8785, 1
        %v8878 = vsel %vm2188, %v8876, %v8877
        %v8879 = vrot.slane %v8786, 1
        %v8880 = vsel %vm2188, %v8877, %v8879
        %v8881 = vrot.slane %v8787, 1
        %v8882 = vsel %vm2188, %v8879, %v8881
        %v8883 = vrot.slane %v8788, 1
        %v8884 = vsel %vm2188, %v8881, %v8883
        %v8885 = vrot.slane %v8789, 1
        %v8886 = vrot.slane %v8790, 1
        %v8887 = vsel %vm2188, %v8885, %v8886
        %v8888 = vrot.slane %v8791, 1
        %v8889 = vsel %vm2188, %v8886, %v8888
        %v8890 = vrot.slane %v8792, 1
        %v8891 = vsel %vm2188, %v8888, %v8890
        %v8892 = vrot.slane %v8793, 1
        %v8893 = vsel %vm2188, %v8890, %v8892
        %v8894 = vrot.slane %v8794, 1
        %v8895 = vrot.slane %v8795, 1
        %v8896 = vsel %vm2188, %v8894, %v8895
        %v8897 = vrot.slane %v8796, 1
        %v8898 = vsel %vm2188, %v8895, %v8897
        %v8899 = vrot.slane %v8797, 1
        %v8900 = vsel %vm2188, %v8897, %v8899
        %v8901 = vrot.slane %v8798, 1
        %v8902 = vsel %vm2188, %v8899, %v8901
        %v8903 = vrot.slane %v8799, 1
        %v8904 = vrot.slane %v8800, 1
        %v8905 = vsel %vm2188, %v8903, %v8904
        %v8906 = vrot.slane %v8801, 1
        %v8907 = vsel %vm2188, %v8904, %v8906
        %v8908 = vrot.slane %v8802, 1
        %v8909 = vsel %vm2188, %v8906, %v8908
        %v8910 = vrot.slane %v8803, 1
        %v8911 = vsel %vm2188, %v8908, %v8910
        %v8912 = vrot.slane %v8804, 1
        %v8913 = vrot.slane %v8805, 1
        %v8914 = vsel %vm2188, %v8912, %v8913
        %v8915 = vrot.slane %v8806, 1
        %v8916 = vsel %vm2188, %v8913, %v8915
        %v8917 = vrot.slane %v8807, 1
        %v8918 = vsel %vm2188, %v8915, %v8917
        %v8919 = vrot.slane %v8808, 1
        %v8920 = vsel %vm2188, %v8917, %v8919
        %v8961 = vadd.f32 %v8033, %v8851
        %v8962 = vadd.f32 %v8034, %v8853
        %v8963 = vadd.f32 %v8035, %v8855
        %v8964 = vadd.f32 %v8036, %v8857
        %v8965 = vadd.f32 %v8037, %v8856
        %v8966 = vadd.f32 %v8038, %v8860
        %v8967 = vadd.f32 %v8039, %v8862
        %v8968 = vadd.f32 %v8040, %v8864
        %v8969 = vadd.f32 %v8041, %v8866
        %v8970 = vadd.f32 %v8042, %v8865
        %v8971 = vadd.f32 %v8043, %v8869
        %v8972 = vadd.f32 %v8044, %v8871
        %v8973 = vadd.f32 %v8045, %v8873
        %v8974 = vadd.f32 %v8046, %v8875
        %v8975 = vadd.f32 %v8047, %v8874
        %v8976 = vadd.f32 %v8048, %v8878
        %v8977 = vadd.f32 %v8049, %v8880
        %v8978 = vadd.f32 %v8050, %v8882
        %v8979 = vadd.f32 %v8051, %v8884
        %v8980 = vadd.f32 %v8052, %v8883
        %v8981 = vadd.f32 %v8053, %v8887
        %v8982 = vadd.f32 %v8054, %v8889
        %v8983 = vadd.f32 %v8055, %v8891
        %v8984 = vadd.f32 %v8056, %v8893
        %v8985 = vadd.f32 %v8057, %v8892
        %v8986 = vadd.f32 %v8058, %v8896
        %v8987 = vadd.f32 %v8059, %v8898
        %v8988 = vadd.f32 %v8060, %v8900
        %v8989 = vadd.f32 %v8061, %v8902
        %v8990 = vadd.f32 %v8062, %v8901
        %v8991 = vadd.f32 %v8063, %v8905
        %v8992 = vadd.f32 %v8064, %v8907
        %v8993 = vadd.f32 %v8065, %v8909
        %v8994 = vadd.f32 %v8066, %v8911
        %v8995 = vadd.f32 %v8067, %v8910
        %v8996 = vadd.f32 %v8068, %v8914
        %v8997 = vadd.f32 %v8069, %v8916
        %v8998 = vadd.f32 %v8070, %v8918
        %v8999 = vadd.f32 %v8071, %v8920
        %v9000 = vadd.f32 %v8072, %v8919
        %v9001 = vlaneseq
        %v9002 = vshrl.u32 %v9001, 7
        %v9003 = vsub.s32 0, %v9002
        %v9004 = vrot.slane %v799, %v9003
        %v9005 = vmul.f32 %v7829, %v9004
        %v9006 = vmul.f32 %v7830, %v9004
        %v9007 = vmul.f32 %v7831, %v9004
        %v9008 = vmul.f32 %v7832, %v9004
        %v9009 = vmul.f32 %v7833, %v9004
        %v9010 = vmul.f32 %v7834, %v9004
        %v9011 = vmul.f32 %v7835, %v9004
        %v9012 = vmul.f32 %v7836, %v9004
        %v9013 = vmul.f32 %v7837, %v9004
        %v9014 = vmul.f32 %v7838, %v9004
        %v9015 = vmul.f32 %v7839, %v9004
        %v9016 = vmul.f32 %v7840, %v9004
        %v9017 = vmul.f32 %v7841, %v9004
        %v9018 = vmul.f32 %v7842, %v9004
        %v9019 = vmul.f32 %v7843, %v9004
        %v9020 = vmul.f32 %v7844, %v9004
        %v9021 = vmul.f32 %v7845, %v9004
        %v9022 = vmul.f32 %v7846, %v9004
        %v9023 = vmul.f32 %v7847, %v9004
        %v9024 = vmul.f32 %v7848, %v9004
        %v9025 = vmul.f32 %v7849, %v9004
        %v9026 = vmul.f32 %v7850, %v9004
        %v9027 = vmul.f32 %v7851, %v9004
        %v9028 = vmul.f32 %v7852, %v9004
        %v9029 = vmul.f32 %v7853, %v9004
        %v9030 = vmul.f32 %v7854, %v9004
        %v9031 = vmul.f32 %v7855, %v9004
        %v9032 = vmul.f32 %v7856, %v9004
        %v9033 = vmul.f32 %v7857, %v9004
        %v9034 = vmul.f32 %v7858, %v9004
        %v9035 = vmul.f32 %v7859, %v9004
        %v9036 = vmul.f32 %v7860, %v9004
        %v9037 = vmul.f32 %v7861, %v9004
        %v9038 = vmul.f32 %v7862, %v9004
        %v9039 = vmul.f32 %v7863, %v9004
        %v9040 = vmul.f32 %v7864, %v9004
        %v9041 = vmul.f32 %v7865, %v9004
        %v9042 = vmul.f32 %v7866, %v9004
        %v9043 = vmul.f32 %v7867, %v9004
        %v9044 = vmul.f32 %v7868, %v9004
        %v9085 = vrot.slane %v9005, 5
        %v9086 = vrot.slane %v9006, 5
        %v9087 = vsel %vm1967, %v9085, %v9086
        %v9088 = vrot.slane %v9007, 5
        %v9089 = vsel %vm1967, %v9086, %v9088
        %v9090 = vrot.slane %v9008, 5
        %v9091 = vsel %vm1967, %v9088, %v9090
        %v9092 = vrot.slane %v9009, 5
        %v9093 = vsel %vm1967, %v9090, %v9092
        %v9094 = vrot.slane %v9010, 5
        %v9095 = vrot.slane %v9011, 5
        %v9096 = vsel %vm1967, %v9094, %v9095
        %v9097 = vrot.slane %v9012, 5
        %v9098 = vsel %vm1967, %v9095, %v9097
        %v9099 = vrot.slane %v9013, 5
        %v9100 = vsel %vm1967, %v9097, %v9099
        %v9101 = vrot.slane %v9014, 5
        %v9102 = vsel %vm1967, %v9099, %v9101
        %v9103 = vrot.slane %v9015, 5
        %v9104 = vrot.slane %v9016, 5
        %v9105 = vsel %vm1967, %v9103, %v9104
        %v9106 = vrot.slane %v9017, 5
        %v9107 = vsel %vm1967, %v9104, %v9106
        %v9108 = vrot.slane %v9018, 5
        %v9109 = vsel %vm1967, %v9106, %v9108
        %v9110 = vrot.slane %v9019, 5
        %v9111 = vsel %vm1967, %v9108, %v9110
        %v9112 = vrot.slane %v9020, 5
        %v9113 = vrot.slane %v9021, 5
        %v9114 = vsel %vm1967, %v9112, %v9113
        %v9115 = vrot.slane %v9022, 5
        %v9116 = vsel %vm1967, %v9113, %v9115
        %v9117 = vrot.slane %v9023, 5
        %v9118 = vsel %vm1967, %v9115, %v9117
        %v9119 = vrot.slane %v9024, 5
        %v9120 = vsel %vm1967, %v9117, %v9119
        %v9121 = vrot.slane %v9025, 5
        %v9122 = vrot.slane %v9026, 5
        %v9123 = vsel %vm1967, %v9121, %v9122
        %v9124 = vrot.slane %v9027, 5
        %v9125 = vsel %vm1967, %v9122, %v9124
        %v9126 = vrot.slane %v9028, 5
        %v9127 = vsel %vm1967, %v9124, %v9126
        %v9128 = vrot.slane %v9029, 5
        %v9129 = vsel %vm1967, %v9126, %v9128
        %v9130 = vrot.slane %v9030, 5
        %v9131 = vrot.slane %v9031, 5
        %v9132 = vsel %vm1967, %v9130, %v9131
        %v9133 = vrot.slane %v9032, 5
        %v9134 = vsel %vm1967, %v9131, %v9133
        %v9135 = vrot.slane %v9033, 5
        %v9136 = vsel %vm1967, %v9133, %v9135
        %v9137 = vrot.slane %v9034, 5
        %v9138 = vsel %vm1967, %v9135, %v9137
        %v9139 = vrot.slane %v9035, 5
        %v9140 = vrot.slane %v9036, 5
        %v9141 = vsel %vm1967, %v9139, %v9140
        %v9142 = vrot.slane %v9037, 5
        %v9143 = vsel %vm1967, %v9140, %v9142
        %v9144 = vrot.slane %v9038, 5
        %v9145 = vsel %vm1967, %v9142, %v9144
        %v9146 = vrot.slane %v9039, 5
        %v9147 = vsel %vm1967, %v9144, %v9146
        %v9148 = vrot.slane %v9040, 5
        %v9149 = vrot.slane %v9041, 5
        %v9150 = vsel %vm1967, %v9148, %v9149
        %v9151 = vrot.slane %v9042, 5
        %v9152 = vsel %vm1967, %v9149, %v9151
        %v9153 = vrot.slane %v9043, 5
        %v9154 = vsel %vm1967, %v9151, %v9153
        %v9155 = vrot.slane %v9044, 5
        %v9156 = vsel %vm1967, %v9153, %v9155
        %v9189 = vadd.f32 %v8261, %v9087
        %v9190 = vadd.f32 %v8262, %v9089
        %v9191 = vadd.f32 %v8263, %v9091
        %v9192 = vadd.f32 %v8264, %v9093
        %v9193 = vadd.f32 %v8265, %v9096
        %v9194 = vadd.f32 %v8266, %v9098
        %v9195 = vadd.f32 %v8267, %v9100
        %v9196 = vadd.f32 %v8268, %v9102
        %v9197 = vadd.f32 %v8269, %v9105
        %v9198 = vadd.f32 %v8270, %v9107
        %v9199 = vadd.f32 %v8271, %v9109
        %v9200 = vadd.f32 %v8272, %v9111
        %v9201 = vadd.f32 %v8273, %v9114
        %v9202 = vadd.f32 %v8274, %v9116
        %v9203 = vadd.f32 %v8275, %v9118
        %v9204 = vadd.f32 %v8276, %v9120
        %v9205 = vadd.f32 %v8277, %v9123
        %v9206 = vadd.f32 %v8278, %v9125
        %v9207 = vadd.f32 %v8279, %v9127
        %v9208 = vadd.f32 %v8280, %v9129
        %v9209 = vadd.f32 %v8281, %v9132
        %v9210 = vadd.f32 %v8282, %v9134
        %v9211 = vadd.f32 %v8283, %v9136
        %v9212 = vadd.f32 %v8284, %v9138
        %v9213 = vadd.f32 %v8285, %v9141
        %v9214 = vadd.f32 %v8286, %v9143
        %v9215 = vadd.f32 %v8287, %v9145
        %v9216 = vadd.f32 %v8288, %v9147
        %v9217 = vadd.f32 %v8289, %v9150
        %v9218 = vadd.f32 %v8290, %v9152
        %v9219 = vadd.f32 %v8291, %v9154
        %v9220 = vadd.f32 %v8292, %v9156
        %v9221 = vlaneseq
        %v9222 = vshrl.u32 %v9221, 7
        %v9223 = vsub.s32 1, %v9222
        %v9224 = vrot.slane %v799, %v9223
        %v9225 = vmul.f32 %v7829, %v9224
        %v9226 = vmul.f32 %v7830, %v9224
        %v9227 = vmul.f32 %v7831, %v9224
        %v9228 = vmul.f32 %v7832, %v9224
        %v9229 = vmul.f32 %v7833, %v9224
        %v9230 = vmul.f32 %v7834, %v9224
        %v9231 = vmul.f32 %v7835, %v9224
        %v9232 = vmul.f32 %v7836, %v9224
        %v9233 = vmul.f32 %v7837, %v9224
        %v9234 = vmul.f32 %v7838, %v9224
        %v9235 = vmul.f32 %v7839, %v9224
        %v9236 = vmul.f32 %v7840, %v9224
        %v9237 = vmul.f32 %v7841, %v9224
        %v9238 = vmul.f32 %v7842, %v9224
        %v9239 = vmul.f32 %v7843, %v9224
        %v9240 = vmul.f32 %v7844, %v9224
        %v9241 = vmul.f32 %v7845, %v9224
        %v9242 = vmul.f32 %v7846, %v9224
        %v9243 = vmul.f32 %v7847, %v9224
        %v9244 = vmul.f32 %v7848, %v9224
        %v9245 = vmul.f32 %v7849, %v9224
        %v9246 = vmul.f32 %v7850, %v9224
        %v9247 = vmul.f32 %v7851, %v9224
        %v9248 = vmul.f32 %v7852, %v9224
        %v9249 = vmul.f32 %v7853, %v9224
        %v9250 = vmul.f32 %v7854, %v9224
        %v9251 = vmul.f32 %v7855, %v9224
        %v9252 = vmul.f32 %v7856, %v9224
        %v9253 = vmul.f32 %v7857, %v9224
        %v9254 = vmul.f32 %v7858, %v9224
        %v9255 = vmul.f32 %v7859, %v9224
        %v9256 = vmul.f32 %v7860, %v9224
        %v9257 = vmul.f32 %v7861, %v9224
        %v9258 = vmul.f32 %v7862, %v9224
        %v9259 = vmul.f32 %v7863, %v9224
        %v9260 = vmul.f32 %v7864, %v9224
        %v9261 = vmul.f32 %v7865, %v9224
        %v9262 = vmul.f32 %v7866, %v9224
        %v9263 = vmul.f32 %v7867, %v9224
        %v9264 = vmul.f32 %v7868, %v9224
        %v9305 = vrot.slane %v9225, 5
        %v9306 = vrot.slane %v9226, 5
        %v9307 = vsel %vm1967, %v9305, %v9306
        %v9308 = vrot.slane %v9227, 5
        %v9309 = vsel %vm1967, %v9306, %v9308
        %v9310 = vrot.slane %v9228, 5
        %v9311 = vsel %vm1967, %v9308, %v9310
        %v9312 = vrot.slane %v9229, 5
        %v9313 = vsel %vm1967, %v9310, %v9312
        %v9314 = vrot.slane %v9230, 5
        %v9315 = vrot.slane %v9231, 5
        %v9316 = vsel %vm1967, %v9314, %v9315
        %v9317 = vrot.slane %v9232, 5
        %v9318 = vsel %vm1967, %v9315, %v9317
        %v9319 = vrot.slane %v9233, 5
        %v9320 = vsel %vm1967, %v9317, %v9319
        %v9321 = vrot.slane %v9234, 5
        %v9322 = vsel %vm1967, %v9319, %v9321
        %v9323 = vrot.slane %v9235, 5
        %v9324 = vrot.slane %v9236, 5
        %v9325 = vsel %vm1967, %v9323, %v9324
        %v9326 = vrot.slane %v9237, 5
        %v9327 = vsel %vm1967, %v9324, %v9326
        %v9328 = vrot.slane %v9238, 5
        %v9329 = vsel %vm1967, %v9326, %v9328
        %v9330 = vrot.slane %v9239, 5
        %v9331 = vsel %vm1967, %v9328, %v9330
        %v9332 = vrot.slane %v9240, 5
        %v9333 = vrot.slane %v9241, 5
        %v9334 = vsel %vm1967, %v9332, %v9333
        %v9335 = vrot.slane %v9242, 5
        %v9336 = vsel %vm1967, %v9333, %v9335
        %v9337 = vrot.slane %v9243, 5
        %v9338 = vsel %vm1967, %v9335, %v9337
        %v9339 = vrot.slane %v9244, 5
        %v9340 = vsel %vm1967, %v9337, %v9339
        %v9341 = vrot.slane %v9245, 5
        %v9342 = vrot.slane %v9246, 5
        %v9343 = vsel %vm1967, %v9341, %v9342
        %v9344 = vrot.slane %v9247, 5
        %v9345 = vsel %vm1967, %v9342, %v9344
        %v9346 = vrot.slane %v9248, 5
        %v9347 = vsel %vm1967, %v9344, %v9346
        %v9348 = vrot.slane %v9249, 5
        %v9349 = vsel %vm1967, %v9346, %v9348
        %v9350 = vrot.slane %v9250, 5
        %v9351 = vrot.slane %v9251, 5
        %v9352 = vsel %vm1967, %v9350, %v9351
        %v9353 = vrot.slane %v9252, 5
        %v9354 = vsel %vm1967, %v9351, %v9353
        %v9355 = vrot.slane %v9253, 5
        %v9356 = vsel %vm1967, %v9353, %v9355
        %v9357 = vrot.slane %v9254, 5
        %v9358 = vsel %vm1967, %v9355, %v9357
        %v9359 = vrot.slane %v9255, 5
        %v9360 = vrot.slane %v9256, 5
        %v9361 = vsel %vm1967, %v9359, %v9360
        %v9362 = vrot.slane %v9257, 5
        %v9363 = vsel %vm1967, %v9360, %v9362
        %v9364 = vrot.slane %v9258, 5
        %v9365 = vsel %vm1967, %v9362, %v9364
        %v9366 = vrot.slane %v9259, 5
        %v9367 = vsel %vm1967, %v9364, %v9366
        %v9368 = vrot.slane %v9260, 5
        %v9369 = vrot.slane %v9261, 5
        %v9370 = vsel %vm1967, %v9368, %v9369
        %v9371 = vrot.slane %v9262, 5
        %v9372 = vsel %vm1967, %v9369, %v9371
        %v9373 = vrot.slane %v9263, 5
        %v9374 = vsel %vm1967, %v9371, %v9373
        %v9375 = vrot.slane %v9264, 5
        %v9376 = vsel %vm1967, %v9373, %v9375
        %v9417 = vadd.f32 %v8489, %v9307
        %v9418 = vadd.f32 %v8490, %v9309
        %v9419 = vadd.f32 %v8491, %v9311
        %v9420 = vadd.f32 %v8492, %v9313
        %v9421 = vadd.f32 %v8493, %v9312
        %v9422 = vadd.f32 %v8494, %v9316
        %v9423 = vadd.f32 %v8495, %v9318
        %v9424 = vadd.f32 %v8496, %v9320
        %v9425 = vadd.f32 %v8497, %v9322
        %v9426 = vadd.f32 %v8498, %v9321
        %v9427 = vadd.f32 %v8499, %v9325
        %v9428 = vadd.f32 %v8500, %v9327
        %v9429 = vadd.f32 %v8501, %v9329
        %v9430 = vadd.f32 %v8502, %v9331
        %v9431 = vadd.f32 %v8503, %v9330
        %v9432 = vadd.f32 %v8504, %v9334
        %v9433 = vadd.f32 %v8505, %v9336
        %v9434 = vadd.f32 %v8506, %v9338
        %v9435 = vadd.f32 %v8507, %v9340
        %v9436 = vadd.f32 %v8508, %v9339
        %v9437 = vadd.f32 %v8509, %v9343
        %v9438 = vadd.f32 %v8510, %v9345
        %v9439 = vadd.f32 %v8511, %v9347
        %v9440 = vadd.f32 %v8512, %v9349
        %v9441 = vadd.f32 %v8513, %v9348
        %v9442 = vadd.f32 %v8514, %v9352
        %v9443 = vadd.f32 %v8515, %v9354
        %v9444 = vadd.f32 %v8516, %v9356
        %v9445 = vadd.f32 %v8517, %v9358
        %v9446 = vadd.f32 %v8518, %v9357
        %v9447 = vadd.f32 %v8519, %v9361
        %v9448 = vadd.f32 %v8520, %v9363
        %v9449 = vadd.f32 %v8521, %v9365
        %v9450 = vadd.f32 %v8522, %v9367
        %v9451 = vadd.f32 %v8523, %v9366
        %v9452 = vadd.f32 %v8524, %v9370
        %v9453 = vadd.f32 %v8525, %v9372
        %v9454 = vadd.f32 %v8526, %v9374
        %v9455 = vadd.f32 %v8527, %v9376
        %v9456 = vadd.f32 %v8528, %v9375
        %s9457 = sadd.s32 %s793, 6
        %s9458 = smul.u32 %s9457, 40
        %s9459 = scalar_lea.vmem [#allocation2], %s9458
        %v9460 = vld [vmem:[%s9459] sm:$0xff]
        %v9461 = vld [vmem:[%s9459 + $0x8] sm:$0xff]
        %v9462 = vld [vmem:[%s9459 + $0x10] sm:$0xff]
        %v9463 = vld [vmem:[%s9459 + $0x18] sm:$0xff]
        %v9464 = vld [vmem:[%s9459 + $0x20] sm:$0x3f]
        %v9465 = vld [vmem:[%s9459 + $0x28] sm:$0xff]
        %v9466 = vld [vmem:[%s9459 + $0x30] sm:$0xff]
        %v9467 = vld [vmem:[%s9459 + $0x38] sm:$0xff]
        %v9468 = vld [vmem:[%s9459 + $0x40] sm:$0xff]
        %v9469 = vld [vmem:[%s9459 + $0x48] sm:$0x3f]
        %v9470 = vld [vmem:[%s9459 + $0x50] sm:$0xff]
        %v9471 = vld [vmem:[%s9459 + $0x58] sm:$0xff]
        %v9472 = vld [vmem:[%s9459 + $0x60] sm:$0xff]
        %v9473 = vld [vmem:[%s9459 + $0x68] sm:$0xff]
        %v9474 = vld [vmem:[%s9459 + $0x70] sm:$0x3f]
        %v9475 = vld [vmem:[%s9459 + $0x78] sm:$0xff]
        %v9476 = vld [vmem:[%s9459 + $0x80] sm:$0xff]
        %v9477 = vld [vmem:[%s9459 + $0x88] sm:$0xff]
        %v9478 = vld [vmem:[%s9459 + $0x90] sm:$0xff]
        %v9479 = vld [vmem:[%s9459 + $0x98] sm:$0x3f]
        %v9480 = vld [vmem:[%s9459 + $0xa0] sm:$0xff]
        %v9481 = vld [vmem:[%s9459 + $0xa8] sm:$0xff]
        %v9482 = vld [vmem:[%s9459 + $0xb0] sm:$0xff]
        %v9483 = vld [vmem:[%s9459 + $0xb8] sm:$0xff]
        %v9484 = vld [vmem:[%s9459 + $0xc0] sm:$0x3f]
        %v9485 = vld [vmem:[%s9459 + $0xc8] sm:$0xff]
        %v9486 = vld [vmem:[%s9459 + $0xd0] sm:$0xff]
        %v9487 = vld [vmem:[%s9459 + $0xd8] sm:$0xff]
        %v9488 = vld [vmem:[%s9459 + $0xe0] sm:$0xff]
        %v9489 = vld [vmem:[%s9459 + $0xe8] sm:$0x3f]
        %v9490 = vld [vmem:[%s9459 + $0xf0] sm:$0xff]
        %v9491 = vld [vmem:[%s9459 + $0xf8] sm:$0xff]
        %v9492 = vld [vmem:[%s9459 + $0x100] sm:$0xff]
        %v9493 = vld [vmem:[%s9459 + $0x108] sm:$0xff]
        %v9494 = vld [vmem:[%s9459 + $0x110] sm:$0x3f]
        %v9495 = vld [vmem:[%s9459 + $0x118] sm:$0xff]
        %v9496 = vld [vmem:[%s9459 + $0x120] sm:$0xff]
        %v9497 = vld [vmem:[%s9459 + $0x128] sm:$0xff]
        %v9498 = vld [vmem:[%s9459 + $0x130] sm:$0xff]
        %v9499 = vld [vmem:[%s9459 + $0x138] sm:$0x3f]
        %v9500 = vlaneseq
        %v9501 = vshrl.u32 %v9500, 7
        %v9502 = vsub.s32 2, %v9501
        %v9503 = vrot.slane %v799, %v9502
        %v9504 = vmul.f32 %v9460, %v9503
        %v9505 = vmul.f32 %v9461, %v9503
        %v9506 = vmul.f32 %v9462, %v9503
        %v9507 = vmul.f32 %v9463, %v9503
        %v9508 = vmul.f32 %v9465, %v9503
        %v9509 = vmul.f32 %v9466, %v9503
        %v9510 = vmul.f32 %v9467, %v9503
        %v9511 = vmul.f32 %v9468, %v9503
        %v9512 = vmul.f32 %v9470, %v9503
        %v9513 = vmul.f32 %v9471, %v9503
        %v9514 = vmul.f32 %v9472, %v9503
        %v9515 = vmul.f32 %v9473, %v9503
        %v9516 = vmul.f32 %v9475, %v9503
        %v9517 = vmul.f32 %v9476, %v9503
        %v9518 = vmul.f32 %v9477, %v9503
        %v9519 = vmul.f32 %v9478, %v9503
        %v9520 = vmul.f32 %v9480, %v9503
        %v9521 = vmul.f32 %v9481, %v9503
        %v9522 = vmul.f32 %v9482, %v9503
        %v9523 = vmul.f32 %v9483, %v9503
        %v9524 = vmul.f32 %v9485, %v9503
        %v9525 = vmul.f32 %v9486, %v9503
        %v9526 = vmul.f32 %v9487, %v9503
        %v9527 = vmul.f32 %v9488, %v9503
        %v9528 = vmul.f32 %v9490, %v9503
        %v9529 = vmul.f32 %v9491, %v9503
        %v9530 = vmul.f32 %v9492, %v9503
        %v9531 = vmul.f32 %v9493, %v9503
        %v9532 = vmul.f32 %v9495, %v9503
        %v9533 = vmul.f32 %v9496, %v9503
        %v9534 = vmul.f32 %v9497, %v9503
        %v9535 = vmul.f32 %v9498, %v9503
        %v9568 = vrot.slane %v9504, 6
        %v9569 = vrot.slane %v9505, 6
        %v9570 = vsel %vm3600, %v9568, %v9569
        %v9571 = vrot.slane %v9506, 6
        %v9572 = vsel %vm3600, %v9569, %v9571
        %v9573 = vrot.slane %v9507, 6
        %v9574 = vsel %vm3600, %v9571, %v9573
        %v9575 = vrot.slane %v9508, 6
        %v9576 = vrot.slane %v9509, 6
        %v9577 = vsel %vm3600, %v9575, %v9576
        %v9578 = vrot.slane %v9510, 6
        %v9579 = vsel %vm3600, %v9576, %v9578
        %v9580 = vrot.slane %v9511, 6
        %v9581 = vsel %vm3600, %v9578, %v9580
        %v9582 = vrot.slane %v9512, 6
        %v9583 = vrot.slane %v9513, 6
        %v9584 = vsel %vm3600, %v9582, %v9583
        %v9585 = vrot.slane %v9514, 6
        %v9586 = vsel %vm3600, %v9583, %v9585
        %v9587 = vrot.slane %v9515, 6
        %v9588 = vsel %vm3600, %v9585, %v9587
        %v9589 = vrot.slane %v9516, 6
        %v9590 = vrot.slane %v9517, 6
        %v9591 = vsel %vm3600, %v9589, %v9590
        %v9592 = vrot.slane %v9518, 6
        %v9593 = vsel %vm3600, %v9590, %v9592
        %v9594 = vrot.slane %v9519, 6
        %v9595 = vsel %vm3600, %v9592, %v9594
        %v9596 = vrot.slane %v9520, 6
        %v9597 = vrot.slane %v9521, 6
        %v9598 = vsel %vm3600, %v9596, %v9597
        %v9599 = vrot.slane %v9522, 6
        %v9600 = vsel %vm3600, %v9597, %v9599
        %v9601 = vrot.slane %v9523, 6
        %v9602 = vsel %vm3600, %v9599, %v9601
        %v9603 = vrot.slane %v9524, 6
        %v9604 = vrot.slane %v9525, 6
        %v9605 = vsel %vm3600, %v9603, %v9604
        %v9606 = vrot.slane %v9526, 6
        %v9607 = vsel %vm3600, %v9604, %v9606
        %v9608 = vrot.slane %v9527, 6
        %v9609 = vsel %vm3600, %v9606, %v9608
        %v9610 = vrot.slane %v9528, 6
        %v9611 = vrot.slane %v9529, 6
        %v9612 = vsel %vm3600, %v9610, %v9611
        %v9613 = vrot.slane %v9530, 6
        %v9614 = vsel %vm3600, %v9611, %v9613
        %v9615 = vrot.slane %v9531, 6
        %v9616 = vsel %vm3600, %v9613, %v9615
        %v9617 = vrot.slane %v9532, 6
        %v9618 = vrot.slane %v9533, 6
        %v9619 = vsel %vm3600, %v9617, %v9618
        %v9620 = vrot.slane %v9534, 6
        %v9621 = vsel %vm3600, %v9618, %v9620
        %v9622 = vrot.slane %v9535, 6
        %v9623 = vsel %vm3600, %v9620, %v9622
        %v9664 = vadd.f32 %v8725, %v9568
        %v9665 = vadd.f32 %v8726, %v9570
        %v9666 = vadd.f32 %v8727, %v9572
        %v9667 = vadd.f32 %v8728, %v9574
        %v9668 = vadd.f32 %v8729, %v9573
        %v9669 = vadd.f32 %v8730, %v9575
        %v9670 = vadd.f32 %v8731, %v9577
        %v9671 = vadd.f32 %v8732, %v9579
        %v9672 = vadd.f32 %v8733, %v9581
        %v9673 = vadd.f32 %v8734, %v9580
        %v9674 = vadd.f32 %v8735, %v9582
        %v9675 = vadd.f32 %v8736, %v9584
        %v9676 = vadd.f32 %v8737, %v9586
        %v9677 = vadd.f32 %v8738, %v9588
        %v9678 = vadd.f32 %v8739, %v9587
        %v9679 = vadd.f32 %v8740, %v9589
        %v9680 = vadd.f32 %v8741, %v9591
        %v9681 = vadd.f32 %v8742, %v9593
        %v9682 = vadd.f32 %v8743, %v9595
        %v9683 = vadd.f32 %v8744, %v9594
        %v9684 = vadd.f32 %v8745, %v9596
        %v9685 = vadd.f32 %v8746, %v9598
        %v9686 = vadd.f32 %v8747, %v9600
        %v9687 = vadd.f32 %v8748, %v9602
        %v9688 = vadd.f32 %v8749, %v9601
        %v9689 = vadd.f32 %v8750, %v9603
        %v9690 = vadd.f32 %v8751, %v9605
        %v9691 = vadd.f32 %v8752, %v9607
        %v9692 = vadd.f32 %v8753, %v9609
        %v9693 = vadd.f32 %v8754, %v9608
        %v9694 = vadd.f32 %v8755, %v9610
        %v9695 = vadd.f32 %v8756, %v9612
        %v9696 = vadd.f32 %v8757, %v9614
        %v9697 = vadd.f32 %v8758, %v9616
        %v9698 = vadd.f32 %v8759, %v9615
        %v9699 = vadd.f32 %v8760, %v9617
        %v9700 = vadd.f32 %v8761, %v9619
        %v9701 = vadd.f32 %v8762, %v9621
        %v9702 = vadd.f32 %v8763, %v9623
        %v9703 = vadd.f32 %v8764, %v9622
        %v9704 = vlaneseq
        %v9705 = vshrl.u32 %v9704, 7
        %v9706 = vsub.s32 3, %v9705
        %v9707 = vrot.slane %v799, %v9706
        %v9708 = vmul.f32 %v9460, %v9707
        %v9709 = vmul.f32 %v9461, %v9707
        %v9710 = vmul.f32 %v9462, %v9707
        %v9711 = vmul.f32 %v9463, %v9707
        %v9712 = vmul.f32 %v9464, %v9707
        %v9713 = vmul.f32 %v9465, %v9707
        %v9714 = vmul.f32 %v9466, %v9707
        %v9715 = vmul.f32 %v9467, %v9707
        %v9716 = vmul.f32 %v9468, %v9707
        %v9717 = vmul.f32 %v9469, %v9707
        %v9718 = vmul.f32 %v9470, %v9707
        %v9719 = vmul.f32 %v9471, %v9707
        %v9720 = vmul.f32 %v9472, %v9707
        %v9721 = vmul.f32 %v9473, %v9707
        %v9722 = vmul.f32 %v9474, %v9707
        %v9723 = vmul.f32 %v9475, %v9707
        %v9724 = vmul.f32 %v9476, %v9707
        %v9725 = vmul.f32 %v9477, %v9707
        %v9726 = vmul.f32 %v9478, %v9707
        %v9727 = vmul.f32 %v9479, %v9707
        %v9728 = vmul.f32 %v9480, %v9707
        %v9729 = vmul.f32 %v9481, %v9707
        %v9730 = vmul.f32 %v9482, %v9707
        %v9731 = vmul.f32 %v9483, %v9707
        %v9732 = vmul.f32 %v9484, %v9707
        %v9733 = vmul.f32 %v9485, %v9707
        %v9734 = vmul.f32 %v9486, %v9707
        %v9735 = vmul.f32 %v9487, %v9707
        %v9736 = vmul.f32 %v9488, %v9707
        %v9737 = vmul.f32 %v9489, %v9707
        %v9738 = vmul.f32 %v9490, %v9707
        %v9739 = vmul.f32 %v9491, %v9707
        %v9740 = vmul.f32 %v9492, %v9707
        %v9741 = vmul.f32 %v9493, %v9707
        %v9742 = vmul.f32 %v9494, %v9707
        %v9743 = vmul.f32 %v9495, %v9707
        %v9744 = vmul.f32 %v9496, %v9707
        %v9745 = vmul.f32 %v9497, %v9707
        %v9746 = vmul.f32 %v9498, %v9707
        %v9747 = vmul.f32 %v9499, %v9707
        %v9788 = vrot.slane %v9708, 6
        %v9789 = vrot.slane %v9709, 6
        %v9790 = vsel %vm3600, %v9788, %v9789
        %v9791 = vrot.slane %v9710, 6
        %v9792 = vsel %vm3600, %v9789, %v9791
        %v9793 = vrot.slane %v9711, 6
        %v9794 = vsel %vm3600, %v9791, %v9793
        %v9795 = vrot.slane %v9712, 6
        %v9796 = vsel %vm3600, %v9793, %v9795
        %v9797 = vrot.slane %v9713, 6
        %v9798 = vrot.slane %v9714, 6
        %v9799 = vsel %vm3600, %v9797, %v9798
        %v9800 = vrot.slane %v9715, 6
        %v9801 = vsel %vm3600, %v9798, %v9800
        %v9802 = vrot.slane %v9716, 6
        %v9803 = vsel %vm3600, %v9800, %v9802
        %v9804 = vrot.slane %v9717, 6
        %v9805 = vsel %vm3600, %v9802, %v9804
        %v9806 = vrot.slane %v9718, 6
        %v9807 = vrot.slane %v9719, 6
        %v9808 = vsel %vm3600, %v9806, %v9807
        %v9809 = vrot.slane %v9720, 6
        %v9810 = vsel %vm3600, %v9807, %v9809
        %v9811 = vrot.slane %v9721, 6
        %v9812 = vsel %vm3600, %v9809, %v9811
        %v9813 = vrot.slane %v9722, 6
        %v9814 = vsel %vm3600, %v9811, %v9813
        %v9815 = vrot.slane %v9723, 6
        %v9816 = vrot.slane %v9724, 6
        %v9817 = vsel %vm3600, %v9815, %v9816
        %v9818 = vrot.slane %v9725, 6
        %v9819 = vsel %vm3600, %v9816, %v9818
        %v9820 = vrot.slane %v9726, 6
        %v9821 = vsel %vm3600, %v9818, %v9820
        %v9822 = vrot.slane %v9727, 6
        %v9823 = vsel %vm3600, %v9820, %v9822
        %v9824 = vrot.slane %v9728, 6
        %v9825 = vrot.slane %v9729, 6
        %v9826 = vsel %vm3600, %v9824, %v9825
        %v9827 = vrot.slane %v9730, 6
        %v9828 = vsel %vm3600, %v9825, %v9827
        %v9829 = vrot.slane %v9731, 6
        %v9830 = vsel %vm3600, %v9827, %v9829
        %v9831 = vrot.slane %v9732, 6
        %v9832 = vsel %vm3600, %v9829, %v9831
        %v9833 = vrot.slane %v9733, 6
        %v9834 = vrot.slane %v9734, 6
        %v9835 = vsel %vm3600, %v9833, %v9834
        %v9836 = vrot.slane %v9735, 6
        %v9837 = vsel %vm3600, %v9834, %v9836
        %v9838 = vrot.slane %v9736, 6
        %v9839 = vsel %vm3600, %v9836, %v9838
        %v9840 = vrot.slane %v9737, 6
        %v9841 = vsel %vm3600, %v9838, %v9840
        %v9842 = vrot.slane %v9738, 6
        %v9843 = vrot.slane %v9739, 6
        %v9844 = vsel %vm3600, %v9842, %v9843
        %v9845 = vrot.slane %v9740, 6
        %v9846 = vsel %vm3600, %v9843, %v9845
        %v9847 = vrot.slane %v9741, 6
        %v9848 = vsel %vm3600, %v9845, %v9847
        %v9849 = vrot.slane %v9742, 6
        %v9850 = vsel %vm3600, %v9847, %v9849
        %v9851 = vrot.slane %v9743, 6
        %v9852 = vrot.slane %v9744, 6
        %v9853 = vsel %vm3600, %v9851, %v9852
        %v9854 = vrot.slane %v9745, 6
        %v9855 = vsel %vm3600, %v9852, %v9854
        %v9856 = vrot.slane %v9746, 6
        %v9857 = vsel %vm3600, %v9854, %v9856
        %v9858 = vrot.slane %v9747, 6
        %v9859 = vsel %vm3600, %v9856, %v9858
        %v9900 = vadd.f32 %v8961, %v9788
        %v9901 = vadd.f32 %v8962, %v9790
        %v9902 = vadd.f32 %v8963, %v9792
        %v9903 = vadd.f32 %v8964, %v9794
        %v9904 = vadd.f32 %v8965, %v9796
        %v9905 = vadd.f32 %v8966, %v9797
        %v9906 = vadd.f32 %v8967, %v9799
        %v9907 = vadd.f32 %v8968, %v9801
        %v9908 = vadd.f32 %v8969, %v9803
        %v9909 = vadd.f32 %v8970, %v9805
        %v9910 = vadd.f32 %v8971, %v9806
        %v9911 = vadd.f32 %v8972, %v9808
        %v9912 = vadd.f32 %v8973, %v9810
        %v9913 = vadd.f32 %v8974, %v9812
        %v9914 = vadd.f32 %v8975, %v9814
        %v9915 = vadd.f32 %v8976, %v9815
        %v9916 = vadd.f32 %v8977, %v9817
        %v9917 = vadd.f32 %v8978, %v9819
        %v9918 = vadd.f32 %v8979, %v9821
        %v9919 = vadd.f32 %v8980, %v9823
        %v9920 = vadd.f32 %v8981, %v9824
        %v9921 = vadd.f32 %v8982, %v9826
        %v9922 = vadd.f32 %v8983, %v9828
        %v9923 = vadd.f32 %v8984, %v9830
        %v9924 = vadd.f32 %v8985, %v9832
        %v9925 = vadd.f32 %v8986, %v9833
        %v9926 = vadd.f32 %v8987, %v9835
        %v9927 = vadd.f32 %v8988, %v9837
        %v9928 = vadd.f32 %v8989, %v9839
        %v9929 = vadd.f32 %v8990, %v9841
        %v9930 = vadd.f32 %v8991, %v9842
        %v9931 = vadd.f32 %v8992, %v9844
        %v9932 = vadd.f32 %v8993, %v9846
        %v9933 = vadd.f32 %v8994, %v9848
        %v9934 = vadd.f32 %v8995, %v9850
        %v9935 = vadd.f32 %v8996, %v9851
        %v9936 = vadd.f32 %v8997, %v9853
        %v9937 = vadd.f32 %v8998, %v9855
        %v9938 = vadd.f32 %v8999, %v9857
        %v9939 = vadd.f32 %v9000, %v9859
        %v9940 = vlaneseq
        %v9941 = vshrl.u32 %v9940, 7
        %v9942 = vsub.s32 4, %v9941
        %v9943 = vrot.slane %v799, %v9942
        %v9944 = vmul.f32 %v9460, %v9943
        %v9945 = vmul.f32 %v9461, %v9943
        %v9946 = vmul.f32 %v9462, %v9943
        %v9947 = vmul.f32 %v9463, %v9943
        %v9948 = vmul.f32 %v9464, %v9943
        %v9949 = vmul.f32 %v9465, %v9943
        %v9950 = vmul.f32 %v9466, %v9943
        %v9951 = vmul.f32 %v9467, %v9943
        %v9952 = vmul.f32 %v9468, %v9943
        %v9953 = vmul.f32 %v9469, %v9943
        %v9954 = vmul.f32 %v9470, %v9943
        %v9955 = vmul.f32 %v9471, %v9943
        %v9956 = vmul.f32 %v9472, %v9943
        %v9957 = vmul.f32 %v9473, %v9943
        %v9958 = vmul.f32 %v9474, %v9943
        %v9959 = vmul.f32 %v9475, %v9943
        %v9960 = vmul.f32 %v9476, %v9943
        %v9961 = vmul.f32 %v9477, %v9943
        %v9962 = vmul.f32 %v9478, %v9943
        %v9963 = vmul.f32 %v9479, %v9943
        %v9964 = vmul.f32 %v9480, %v9943
        %v9965 = vmul.f32 %v9481, %v9943
        %v9966 = vmul.f32 %v9482, %v9943
        %v9967 = vmul.f32 %v9483, %v9943
        %v9968 = vmul.f32 %v9484, %v9943
        %v9969 = vmul.f32 %v9485, %v9943
        %v9970 = vmul.f32 %v9486, %v9943
        %v9971 = vmul.f32 %v9487, %v9943
        %v9972 = vmul.f32 %v9488, %v9943
        %v9973 = vmul.f32 %v9489, %v9943
        %v9974 = vmul.f32 %v9490, %v9943
        %v9975 = vmul.f32 %v9491, %v9943
        %v9976 = vmul.f32 %v9492, %v9943
        %v9977 = vmul.f32 %v9493, %v9943
        %v9978 = vmul.f32 %v9494, %v9943
        %v9979 = vmul.f32 %v9495, %v9943
        %v9980 = vmul.f32 %v9496, %v9943
        %v9981 = vmul.f32 %v9497, %v9943
        %v9982 = vmul.f32 %v9498, %v9943
        %v9983 = vmul.f32 %v9499, %v9943
        %v10024 = vrot.slane %v9944, 2
        %v10025 = vrot.slane %v9945, 2
        %v10026 = vsel %vm4057, %v10024, %v10025
        %v10027 = vrot.slane %v9946, 2
        %v10028 = vsel %vm4057, %v10025, %v10027
        %v10029 = vrot.slane %v9947, 2
        %v10030 = vsel %vm4057, %v10027, %v10029
        %v10031 = vrot.slane %v9948, 2
        %v10032 = vsel %vm4057, %v10029, %v10031
        %v10033 = vrot.slane %v9949, 2
        %v10034 = vrot.slane %v9950, 2
        %v10035 = vsel %vm4057, %v10033, %v10034
        %v10036 = vrot.slane %v9951, 2
        %v10037 = vsel %vm4057, %v10034, %v10036
        %v10038 = vrot.slane %v9952, 2
        %v10039 = vsel %vm4057, %v10036, %v10038
        %v10040 = vrot.slane %v9953, 2
        %v10041 = vsel %vm4057, %v10038, %v10040
        %v10042 = vrot.slane %v9954, 2
        %v10043 = vrot.slane %v9955, 2
        %v10044 = vsel %vm4057, %v10042, %v10043
        %v10045 = vrot.slane %v9956, 2
        %v10046 = vsel %vm4057, %v10043, %v10045
        %v10047 = vrot.slane %v9957, 2
        %v10048 = vsel %vm4057, %v10045, %v10047
        %v10049 = vrot.slane %v9958, 2
        %v10050 = vsel %vm4057, %v10047, %v10049
        %v10051 = vrot.slane %v9959, 2
        %v10052 = vrot.slane %v9960, 2
        %v10053 = vsel %vm4057, %v10051, %v10052
        %v10054 = vrot.slane %v9961, 2
        %v10055 = vsel %vm4057, %v10052, %v10054
        %v10056 = vrot.slane %v9962, 2
        %v10057 = vsel %vm4057, %v10054, %v10056
        %v10058 = vrot.slane %v9963, 2
        %v10059 = vsel %vm4057, %v10056, %v10058
        %v10060 = vrot.slane %v9964, 2
        %v10061 = vrot.slane %v9965, 2
        %v10062 = vsel %vm4057, %v10060, %v10061
        %v10063 = vrot.slane %v9966, 2
        %v10064 = vsel %vm4057, %v10061, %v10063
        %v10065 = vrot.slane %v9967, 2
        %v10066 = vsel %vm4057, %v10063, %v10065
        %v10067 = vrot.slane %v9968, 2
        %v10068 = vsel %vm4057, %v10065, %v10067
        %v10069 = vrot.slane %v9969, 2
        %v10070 = vrot.slane %v9970, 2
        %v10071 = vsel %vm4057, %v10069, %v10070
        %v10072 = vrot.slane %v9971, 2
        %v10073 = vsel %vm4057, %v10070, %v10072
        %v10074 = vrot.slane %v9972, 2
        %v10075 = vsel %vm4057, %v10072, %v10074
        %v10076 = vrot.slane %v9973, 2
        %v10077 = vsel %vm4057, %v10074, %v10076
        %v10078 = vrot.slane %v9974, 2
        %v10079 = vrot.slane %v9975, 2
        %v10080 = vsel %vm4057, %v10078, %v10079
        %v10081 = vrot.slane %v9976, 2
        %v10082 = vsel %vm4057, %v10079, %v10081
        %v10083 = vrot.slane %v9977, 2
        %v10084 = vsel %vm4057, %v10081, %v10083
        %v10085 = vrot.slane %v9978, 2
        %v10086 = vsel %vm4057, %v10083, %v10085
        %v10087 = vrot.slane %v9979, 2
        %v10088 = vrot.slane %v9980, 2
        %v10089 = vsel %vm4057, %v10087, %v10088
        %v10090 = vrot.slane %v9981, 2
        %v10091 = vsel %vm4057, %v10088, %v10090
        %v10092 = vrot.slane %v9982, 2
        %v10093 = vsel %vm4057, %v10090, %v10092
        %v10094 = vrot.slane %v9983, 2
        %v10095 = vsel %vm4057, %v10092, %v10094
        %v10128 = vadd.f32 %v9189, %v10026
        %v10129 = vadd.f32 %v9190, %v10028
        %v10130 = vadd.f32 %v9191, %v10030
        %v10131 = vadd.f32 %v9192, %v10032
        %v10132 = vadd.f32 %v9193, %v10035
        %v10133 = vadd.f32 %v9194, %v10037
        %v10134 = vadd.f32 %v9195, %v10039
        %v10135 = vadd.f32 %v9196, %v10041
        %v10136 = vadd.f32 %v9197, %v10044
        %v10137 = vadd.f32 %v9198, %v10046
        %v10138 = vadd.f32 %v9199, %v10048
        %v10139 = vadd.f32 %v9200, %v10050
        %v10140 = vadd.f32 %v9201, %v10053
        %v10141 = vadd.f32 %v9202, %v10055
        %v10142 = vadd.f32 %v9203, %v10057
        %v10143 = vadd.f32 %v9204, %v10059
        %v10144 = vadd.f32 %v9205, %v10062
        %v10145 = vadd.f32 %v9206, %v10064
        %v10146 = vadd.f32 %v9207, %v10066
        %v10147 = vadd.f32 %v9208, %v10068
        %v10148 = vadd.f32 %v9209, %v10071
        %v10149 = vadd.f32 %v9210, %v10073
        %v10150 = vadd.f32 %v9211, %v10075
        %v10151 = vadd.f32 %v9212, %v10077
        %v10152 = vadd.f32 %v9213, %v10080
        %v10153 = vadd.f32 %v9214, %v10082
        %v10154 = vadd.f32 %v9215, %v10084
        %v10155 = vadd.f32 %v9216, %v10086
        %v10156 = vadd.f32 %v9217, %v10089
        %v10157 = vadd.f32 %v9218, %v10091
        %v10158 = vadd.f32 %v9219, %v10093
        %v10159 = vadd.f32 %v9220, %v10095
        %v10160 = vlaneseq
        %v10161 = vshrl.u32 %v10160, 7
        %v10162 = vsub.s32 5, %v10161
        %v10163 = vrot.slane %v799, %v10162
        %v10164 = vmul.f32 %v9460, %v10163
        %v10165 = vmul.f32 %v9461, %v10163
        %v10166 = vmul.f32 %v9462, %v10163
        %v10167 = vmul.f32 %v9463, %v10163
        %v10168 = vmul.f32 %v9464, %v10163
        %v10169 = vmul.f32 %v9465, %v10163
        %v10170 = vmul.f32 %v9466, %v10163
        %v10171 = vmul.f32 %v9467, %v10163
        %v10172 = vmul.f32 %v9468, %v10163
        %v10173 = vmul.f32 %v9469, %v10163
        %v10174 = vmul.f32 %v9470, %v10163
        %v10175 = vmul.f32 %v9471, %v10163
        %v10176 = vmul.f32 %v9472, %v10163
        %v10177 = vmul.f32 %v9473, %v10163
        %v10178 = vmul.f32 %v9474, %v10163
        %v10179 = vmul.f32 %v9475, %v10163
        %v10180 = vmul.f32 %v9476, %v10163
        %v10181 = vmul.f32 %v9477, %v10163
        %v10182 = vmul.f32 %v9478, %v10163
        %v10183 = vmul.f32 %v9479, %v10163
        %v10184 = vmul.f32 %v9480, %v10163
        %v10185 = vmul.f32 %v9481, %v10163
        %v10186 = vmul.f32 %v9482, %v10163
        %v10187 = vmul.f32 %v9483, %v10163
        %v10188 = vmul.f32 %v9484, %v10163
        %v10189 = vmul.f32 %v9485, %v10163
        %v10190 = vmul.f32 %v9486, %v10163
        %v10191 = vmul.f32 %v9487, %v10163
        %v10192 = vmul.f32 %v9488, %v10163
        %v10193 = vmul.f32 %v9489, %v10163
        %v10194 = vmul.f32 %v9490, %v10163
        %v10195 = vmul.f32 %v9491, %v10163
        %v10196 = vmul.f32 %v9492, %v10163
        %v10197 = vmul.f32 %v9493, %v10163
        %v10198 = vmul.f32 %v9494, %v10163
        %v10199 = vmul.f32 %v9495, %v10163
        %v10200 = vmul.f32 %v9496, %v10163
        %v10201 = vmul.f32 %v9497, %v10163
        %v10202 = vmul.f32 %v9498, %v10163
        %v10203 = vmul.f32 %v9499, %v10163
        %v10244 = vrot.slane %v10164, 2
        %v10245 = vrot.slane %v10165, 2
        %v10246 = vsel %vm4057, %v10244, %v10245
        %v10247 = vrot.slane %v10166, 2
        %v10248 = vsel %vm4057, %v10245, %v10247
        %v10249 = vrot.slane %v10167, 2
        %v10250 = vsel %vm4057, %v10247, %v10249
        %v10251 = vrot.slane %v10168, 2
        %v10252 = vsel %vm4057, %v10249, %v10251
        %v10253 = vrot.slane %v10169, 2
        %v10254 = vrot.slane %v10170, 2
        %v10255 = vsel %vm4057, %v10253, %v10254
        %v10256 = vrot.slane %v10171, 2
        %v10257 = vsel %vm4057, %v10254, %v10256
        %v10258 = vrot.slane %v10172, 2
        %v10259 = vsel %vm4057, %v10256, %v10258
        %v10260 = vrot.slane %v10173, 2
        %v10261 = vsel %vm4057, %v10258, %v10260
        %v10262 = vrot.slane %v10174, 2
        %v10263 = vrot.slane %v10175, 2
        %v10264 = vsel %vm4057, %v10262, %v10263
        %v10265 = vrot.slane %v10176, 2
        %v10266 = vsel %vm4057, %v10263, %v10265
        %v10267 = vrot.slane %v10177, 2
        %v10268 = vsel %vm4057, %v10265, %v10267
        %v10269 = vrot.slane %v10178, 2
        %v10270 = vsel %vm4057, %v10267, %v10269
        %v10271 = vrot.slane %v10179, 2
        %v10272 = vrot.slane %v10180, 2
        %v10273 = vsel %vm4057, %v10271, %v10272
        %v10274 = vrot.slane %v10181, 2
        %v10275 = vsel %vm4057, %v10272, %v10274
        %v10276 = vrot.slane %v10182, 2
        %v10277 = vsel %vm4057, %v10274, %v10276
        %v10278 = vrot.slane %v10183, 2
        %v10279 = vsel %vm4057, %v10276, %v10278
        %v10280 = vrot.slane %v10184, 2
        %v10281 = vrot.slane %v10185, 2
        %v10282 = vsel %vm4057, %v10280, %v10281
        %v10283 = vrot.slane %v10186, 2
        %v10284 = vsel %vm4057, %v10281, %v10283
        %v10285 = vrot.slane %v10187, 2
        %v10286 = vsel %vm4057, %v10283, %v10285
        %v10287 = vrot.slane %v10188, 2
        %v10288 = vsel %vm4057, %v10285, %v10287
        %v10289 = vrot.slane %v10189, 2
        %v10290 = vrot.slane %v10190, 2
        %v10291 = vsel %vm4057, %v10289, %v10290
        %v10292 = vrot.slane %v10191, 2
        %v10293 = vsel %vm4057, %v10290, %v10292
        %v10294 = vrot.slane %v10192, 2
        %v10295 = vsel %vm4057, %v10292, %v10294
        %v10296 = vrot.slane %v10193, 2
        %v10297 = vsel %vm4057, %v10294, %v10296
        %v10298 = vrot.slane %v10194, 2
        %v10299 = vrot.slane %v10195, 2
        %v10300 = vsel %vm4057, %v10298, %v10299
        %v10301 = vrot.slane %v10196, 2
        %v10302 = vsel %vm4057, %v10299, %v10301
        %v10303 = vrot.slane %v10197, 2
        %v10304 = vsel %vm4057, %v10301, %v10303
        %v10305 = vrot.slane %v10198, 2
        %v10306 = vsel %vm4057, %v10303, %v10305
        %v10307 = vrot.slane %v10199, 2
        %v10308 = vrot.slane %v10200, 2
        %v10309 = vsel %vm4057, %v10307, %v10308
        %v10310 = vrot.slane %v10201, 2
        %v10311 = vsel %vm4057, %v10308, %v10310
        %v10312 = vrot.slane %v10202, 2
        %v10313 = vsel %vm4057, %v10310, %v10312
        %v10314 = vrot.slane %v10203, 2
        %v10315 = vsel %vm4057, %v10312, %v10314
        %v10356 = vadd.f32 %v9417, %v10246
        %v10357 = vadd.f32 %v9418, %v10248
        %v10358 = vadd.f32 %v9419, %v10250
        %v10359 = vadd.f32 %v9420, %v10252
        %v10360 = vadd.f32 %v9421, %v10251
        %v10361 = vadd.f32 %v9422, %v10255
        %v10362 = vadd.f32 %v9423, %v10257
        %v10363 = vadd.f32 %v9424, %v10259
        %v10364 = vadd.f32 %v9425, %v10261
        %v10365 = vadd.f32 %v9426, %v10260
        %v10366 = vadd.f32 %v9427, %v10264
        %v10367 = vadd.f32 %v9428, %v10266
        %v10368 = vadd.f32 %v9429, %v10268
        %v10369 = vadd.f32 %v9430, %v10270
        %v10370 = vadd.f32 %v9431, %v10269
        %v10371 = vadd.f32 %v9432, %v10273
        %v10372 = vadd.f32 %v9433, %v10275
        %v10373 = vadd.f32 %v9434, %v10277
        %v10374 = vadd.f32 %v9435, %v10279
        %v10375 = vadd.f32 %v9436, %v10278
        %v10376 = vadd.f32 %v9437, %v10282
        %v10377 = vadd.f32 %v9438, %v10284
        %v10378 = vadd.f32 %v9439, %v10286
        %v10379 = vadd.f32 %v9440, %v10288
        %v10380 = vadd.f32 %v9441, %v10287
        %v10381 = vadd.f32 %v9442, %v10291
        %v10382 = vadd.f32 %v9443, %v10293
        %v10383 = vadd.f32 %v9444, %v10295
        %v10384 = vadd.f32 %v9445, %v10297
        %v10385 = vadd.f32 %v9446, %v10296
        %v10386 = vadd.f32 %v9447, %v10300
        %v10387 = vadd.f32 %v9448, %v10302
        %v10388 = vadd.f32 %v9449, %v10304
        %v10389 = vadd.f32 %v9450, %v10306
        %v10390 = vadd.f32 %v9451, %v10305
        %v10391 = vadd.f32 %v9452, %v10309
        %v10392 = vadd.f32 %v9453, %v10311
        %v10393 = vadd.f32 %v9454, %v10313
        %v10394 = vadd.f32 %v9455, %v10315
        %v10395 = vadd.f32 %v9456, %v10314
        %v10396 = vlaneseq
        %v10397 = vshrl.u32 %v10396, 7
        %v10398 = vsub.s32 6, %v10397
        %v10399 = vrot.slane %v799, %v10398
        %v10400 = vmul.f32 %v9460, %v10399
        %v10401 = vmul.f32 %v9461, %v10399
        %v10402 = vmul.f32 %v9462, %v10399
        %v10403 = vmul.f32 %v9463, %v10399
        %v10404 = vmul.f32 %v9464, %v10399
        %v10405 = vmul.f32 %v9465, %v10399
        %v10406 = vmul.f32 %v9466, %v10399
        %v10407 = vmul.f32 %v9467, %v10399
        %v10408 = vmul.f32 %v9468, %v10399
        %v10409 = vmul.f32 %v9469, %v10399
        %v10410 = vmul.f32 %v9470, %v10399
        %v10411 = vmul.f32 %v9471, %v10399
        %v10412 = vmul.f32 %v9472, %v10399
        %v10413 = vmul.f32 %v9473, %v10399
        %v10414 = vmul.f32 %v9474, %v10399
        %v10415 = vmul.f32 %v9475, %v10399
        %v10416 = vmul.f32 %v9476, %v10399
        %v10417 = vmul.f32 %v9477, %v10399
        %v10418 = vmul.f32 %v9478, %v10399
        %v10419 = vmul.f32 %v9479, %v10399
        %v10420 = vmul.f32 %v9480, %v10399
        %v10421 = vmul.f32 %v9481, %v10399
        %v10422 = vmul.f32 %v9482, %v10399
        %v10423 = vmul.f32 %v9483, %v10399
        %v10424 = vmul.f32 %v9484, %v10399
        %v10425 = vmul.f32 %v9485, %v10399
        %v10426 = vmul.f32 %v9486, %v10399
        %v10427 = vmul.f32 %v9487, %v10399
        %v10428 = vmul.f32 %v9488, %v10399
        %v10429 = vmul.f32 %v9489, %v10399
        %v10430 = vmul.f32 %v9490, %v10399
        %v10431 = vmul.f32 %v9491, %v10399
        %v10432 = vmul.f32 %v9492, %v10399
        %v10433 = vmul.f32 %v9493, %v10399
        %v10434 = vmul.f32 %v9494, %v10399
        %v10435 = vmul.f32 %v9495, %v10399
        %v10436 = vmul.f32 %v9496, %v10399
        %v10437 = vmul.f32 %v9497, %v10399
        %v10438 = vmul.f32 %v9498, %v10399
        %v10439 = vmul.f32 %v9499, %v10399
        %v10480 = vrot.slane %v10400, 2
        %v10481 = vrot.slane %v10401, 2
        %v10482 = vsel %vm4057, %v10480, %v10481
        %v10483 = vrot.slane %v10402, 2
        %v10484 = vsel %vm4057, %v10481, %v10483
        %v10485 = vrot.slane %v10403, 2
        %v10486 = vsel %vm4057, %v10483, %v10485
        %v10487 = vrot.slane %v10404, 2
        %v10488 = vsel %vm4057, %v10485, %v10487
        %v10489 = vrot.slane %v10405, 2
        %v10490 = vrot.slane %v10406, 2
        %v10491 = vsel %vm4057, %v10489, %v10490
        %v10492 = vrot.slane %v10407, 2
        %v10493 = vsel %vm4057, %v10490, %v10492
        %v10494 = vrot.slane %v10408, 2
        %v10495 = vsel %vm4057, %v10492, %v10494
        %v10496 = vrot.slane %v10409, 2
        %v10497 = vsel %vm4057, %v10494, %v10496
        %v10498 = vrot.slane %v10410, 2
        %v10499 = vrot.slane %v10411, 2
        %v10500 = vsel %vm4057, %v10498, %v10499
        %v10501 = vrot.slane %v10412, 2
        %v10502 = vsel %vm4057, %v10499, %v10501
        %v10503 = vrot.slane %v10413, 2
        %v10504 = vsel %vm4057, %v10501, %v10503
        %v10505 = vrot.slane %v10414, 2
        %v10506 = vsel %vm4057, %v10503, %v10505
        %v10507 = vrot.slane %v10415, 2
        %v10508 = vrot.slane %v10416, 2
        %v10509 = vsel %vm4057, %v10507, %v10508
        %v10510 = vrot.slane %v10417, 2
        %v10511 = vsel %vm4057, %v10508, %v10510
        %v10512 = vrot.slane %v10418, 2
        %v10513 = vsel %vm4057, %v10510, %v10512
        %v10514 = vrot.slane %v10419, 2
        %v10515 = vsel %vm4057, %v10512, %v10514
        %v10516 = vrot.slane %v10420, 2
        %v10517 = vrot.slane %v10421, 2
        %v10518 = vsel %vm4057, %v10516, %v10517
        %v10519 = vrot.slane %v10422, 2
        %v10520 = vsel %vm4057, %v10517, %v10519
        %v10521 = vrot.slane %v10423, 2
        %v10522 = vsel %vm4057, %v10519, %v10521
        %v10523 = vrot.slane %v10424, 2
        %v10524 = vsel %vm4057, %v10521, %v10523
        %v10525 = vrot.slane %v10425, 2
        %v10526 = vrot.slane %v10426, 2
        %v10527 = vsel %vm4057, %v10525, %v10526
        %v10528 = vrot.slane %v10427, 2
        %v10529 = vsel %vm4057, %v10526, %v10528
        %v10530 = vrot.slane %v10428, 2
        %v10531 = vsel %vm4057, %v10528, %v10530
        %v10532 = vrot.slane %v10429, 2
        %v10533 = vsel %vm4057, %v10530, %v10532
        %v10534 = vrot.slane %v10430, 2
        %v10535 = vrot.slane %v10431, 2
        %v10536 = vsel %vm4057, %v10534, %v10535
        %v10537 = vrot.slane %v10432, 2
        %v10538 = vsel %vm4057, %v10535, %v10537
        %v10539 = vrot.slane %v10433, 2
        %v10540 = vsel %vm4057, %v10537, %v10539
        %v10541 = vrot.slane %v10434, 2
        %v10542 = vsel %vm4057, %v10539, %v10541
        %v10543 = vrot.slane %v10435, 2
        %v10544 = vrot.slane %v10436, 2
        %v10545 = vsel %vm4057, %v10543, %v10544
        %v10546 = vrot.slane %v10437, 2
        %v10547 = vsel %vm4057, %v10544, %v10546
        %v10548 = vrot.slane %v10438, 2
        %v10549 = vsel %vm4057, %v10546, %v10548
        %v10550 = vrot.slane %v10439, 2
        %v10551 = vsel %vm4057, %v10548, %v10550
        %v10592 = vadd.f32 %v9664, %v10482
        %v10593 = vadd.f32 %v9665, %v10484
        %v10594 = vadd.f32 %v9666, %v10486
        %v10595 = vadd.f32 %v9667, %v10488
        %v10596 = vadd.f32 %v9668, %v10487
        %v10597 = vadd.f32 %v9669, %v10491
        %v10598 = vadd.f32 %v9670, %v10493
        %v10599 = vadd.f32 %v9671, %v10495
        %v10600 = vadd.f32 %v9672, %v10497
        %v10601 = vadd.f32 %v9673, %v10496
        %v10602 = vadd.f32 %v9674, %v10500
        %v10603 = vadd.f32 %v9675, %v10502
        %v10604 = vadd.f32 %v9676, %v10504
        %v10605 = vadd.f32 %v9677, %v10506
        %v10606 = vadd.f32 %v9678, %v10505
        %v10607 = vadd.f32 %v9679, %v10509
        %v10608 = vadd.f32 %v9680, %v10511
        %v10609 = vadd.f32 %v9681, %v10513
        %v10610 = vadd.f32 %v9682, %v10515
        %v10611 = vadd.f32 %v9683, %v10514
        %v10612 = vadd.f32 %v9684, %v10518
        %v10613 = vadd.f32 %v9685, %v10520
        %v10614 = vadd.f32 %v9686, %v10522
        %v10615 = vadd.f32 %v9687, %v10524
        %v10616 = vadd.f32 %v9688, %v10523
        %v10617 = vadd.f32 %v9689, %v10527
        %v10618 = vadd.f32 %v9690, %v10529
        %v10619 = vadd.f32 %v9691, %v10531
        %v10620 = vadd.f32 %v9692, %v10533
        %v10621 = vadd.f32 %v9693, %v10532
        %v10622 = vadd.f32 %v9694, %v10536
        %v10623 = vadd.f32 %v9695, %v10538
        %v10624 = vadd.f32 %v9696, %v10540
        %v10625 = vadd.f32 %v9697, %v10542
        %v10626 = vadd.f32 %v9698, %v10541
        %v10627 = vadd.f32 %v9699, %v10545
        %v10628 = vadd.f32 %v9700, %v10547
        %v10629 = vadd.f32 %v9701, %v10549
        %v10630 = vadd.f32 %v9702, %v10551
        %v10631 = vadd.f32 %v9703, %v10550
        %v10632 = vlaneseq
        %v10633 = vshrl.u32 %v10632, 7
        %v10634 = vsub.s32 7, %v10633
        %v10635 = vrot.slane %v799, %v10634
        %v10636 = vmul.f32 %v9460, %v10635
        %v10637 = vmul.f32 %v9461, %v10635
        %v10638 = vmul.f32 %v9462, %v10635
        %v10639 = vmul.f32 %v9463, %v10635
        %v10640 = vmul.f32 %v9464, %v10635
        %v10641 = vmul.f32 %v9465, %v10635
        %v10642 = vmul.f32 %v9466, %v10635
        %v10643 = vmul.f32 %v9467, %v10635
        %v10644 = vmul.f32 %v9468, %v10635
        %v10645 = vmul.f32 %v9469, %v10635
        %v10646 = vmul.f32 %v9470, %v10635
        %v10647 = vmul.f32 %v9471, %v10635
        %v10648 = vmul.f32 %v9472, %v10635
        %v10649 = vmul.f32 %v9473, %v10635
        %v10650 = vmul.f32 %v9474, %v10635
        %v10651 = vmul.f32 %v9475, %v10635
        %v10652 = vmul.f32 %v9476, %v10635
        %v10653 = vmul.f32 %v9477, %v10635
        %v10654 = vmul.f32 %v9478, %v10635
        %v10655 = vmul.f32 %v9479, %v10635
        %v10656 = vmul.f32 %v9480, %v10635
        %v10657 = vmul.f32 %v9481, %v10635
        %v10658 = vmul.f32 %v9482, %v10635
        %v10659 = vmul.f32 %v9483, %v10635
        %v10660 = vmul.f32 %v9484, %v10635
        %v10661 = vmul.f32 %v9485, %v10635
        %v10662 = vmul.f32 %v9486, %v10635
        %v10663 = vmul.f32 %v9487, %v10635
        %v10664 = vmul.f32 %v9488, %v10635
        %v10665 = vmul.f32 %v9489, %v10635
        %v10666 = vmul.f32 %v9490, %v10635
        %v10667 = vmul.f32 %v9491, %v10635
        %v10668 = vmul.f32 %v9492, %v10635
        %v10669 = vmul.f32 %v9493, %v10635
        %v10670 = vmul.f32 %v9494, %v10635
        %v10671 = vmul.f32 %v9495, %v10635
        %v10672 = vmul.f32 %v9496, %v10635
        %v10673 = vmul.f32 %v9497, %v10635
        %v10674 = vmul.f32 %v9498, %v10635
        %v10675 = vmul.f32 %v9499, %v10635
        %v10716 = vrot.slane %v10636, 2
        %v10717 = vrot.slane %v10637, 2
        %v10718 = vsel %vm4057, %v10716, %v10717
        %v10719 = vrot.slane %v10638, 2
        %v10720 = vsel %vm4057, %v10717, %v10719
        %v10721 = vrot.slane %v10639, 2
        %v10722 = vsel %vm4057, %v10719, %v10721
        %v10723 = vrot.slane %v10640, 2
        %v10724 = vsel %vm4057, %v10721, %v10723
        %v10725 = vrot.slane %v10641, 2
        %v10726 = vrot.slane %v10642, 2
        %v10727 = vsel %vm4057, %v10725, %v10726
        %v10728 = vrot.slane %v10643, 2
        %v10729 = vsel %vm4057, %v10726, %v10728
        %v10730 = vrot.slane %v10644, 2
        %v10731 = vsel %vm4057, %v10728, %v10730
        %v10732 = vrot.slane %v10645, 2
        %v10733 = vsel %vm4057, %v10730, %v10732
        %v10734 = vrot.slane %v10646, 2
        %v10735 = vrot.slane %v10647, 2
        %v10736 = vsel %vm4057, %v10734, %v10735
        %v10737 = vrot.slane %v10648, 2
        %v10738 = vsel %vm4057, %v10735, %v10737
        %v10739 = vrot.slane %v10649, 2
        %v10740 = vsel %vm4057, %v10737, %v10739
        %v10741 = vrot.slane %v10650, 2
        %v10742 = vsel %vm4057, %v10739, %v10741
        %v10743 = vrot.slane %v10651, 2
        %v10744 = vrot.slane %v10652, 2
        %v10745 = vsel %vm4057, %v10743, %v10744
        %v10746 = vrot.slane %v10653, 2
        %v10747 = vsel %vm4057, %v10744, %v10746
        %v10748 = vrot.slane %v10654, 2
        %v10749 = vsel %vm4057, %v10746, %v10748
        %v10750 = vrot.slane %v10655, 2
        %v10751 = vsel %vm4057, %v10748, %v10750
        %v10752 = vrot.slane %v10656, 2
        %v10753 = vrot.slane %v10657, 2
        %v10754 = vsel %vm4057, %v10752, %v10753
        %v10755 = vrot.slane %v10658, 2
        %v10756 = vsel %vm4057, %v10753, %v10755
        %v10757 = vrot.slane %v10659, 2
        %v10758 = vsel %vm4057, %v10755, %v10757
        %v10759 = vrot.slane %v10660, 2
        %v10760 = vsel %vm4057, %v10757, %v10759
        %v10761 = vrot.slane %v10661, 2
        %v10762 = vrot.slane %v10662, 2
        %v10763 = vsel %vm4057, %v10761, %v10762
        %v10764 = vrot.slane %v10663, 2
        %v10765 = vsel %vm4057, %v10762, %v10764
        %v10766 = vrot.slane %v10664, 2
        %v10767 = vsel %vm4057, %v10764, %v10766
        %v10768 = vrot.slane %v10665, 2
        %v10769 = vsel %vm4057, %v10766, %v10768
        %v10770 = vrot.slane %v10666, 2
        %v10771 = vrot.slane %v10667, 2
        %v10772 = vsel %vm4057, %v10770, %v10771
        %v10773 = vrot.slane %v10668, 2
        %v10774 = vsel %vm4057, %v10771, %v10773
        %v10775 = vrot.slane %v10669, 2
        %v10776 = vsel %vm4057, %v10773, %v10775
        %v10777 = vrot.slane %v10670, 2
        %v10778 = vsel %vm4057, %v10775, %v10777
        %v10779 = vrot.slane %v10671, 2
        %v10780 = vrot.slane %v10672, 2
        %v10781 = vsel %vm4057, %v10779, %v10780
        %v10782 = vrot.slane %v10673, 2
        %v10783 = vsel %vm4057, %v10780, %v10782
        %v10784 = vrot.slane %v10674, 2
        %v10785 = vsel %vm4057, %v10782, %v10784
        %v10786 = vrot.slane %v10675, 2
        %v10787 = vsel %vm4057, %v10784, %v10786
        %v10828 = vadd.f32 %v9900, %v10718
        %v10829 = vadd.f32 %v9901, %v10720
        %v10830 = vadd.f32 %v9902, %v10722
        %v10831 = vadd.f32 %v9903, %v10724
        %v10832 = vadd.f32 %v9904, %v10723
        %v10833 = vadd.f32 %v9905, %v10727
        %v10834 = vadd.f32 %v9906, %v10729
        %v10835 = vadd.f32 %v9907, %v10731
        %v10836 = vadd.f32 %v9908, %v10733
        %v10837 = vadd.f32 %v9909, %v10732
        %v10838 = vadd.f32 %v9910, %v10736
        %v10839 = vadd.f32 %v9911, %v10738
        %v10840 = vadd.f32 %v9912, %v10740
        %v10841 = vadd.f32 %v9913, %v10742
        %v10842 = vadd.f32 %v9914, %v10741
        %v10843 = vadd.f32 %v9915, %v10745
        %v10844 = vadd.f32 %v9916, %v10747
        %v10845 = vadd.f32 %v9917, %v10749
        %v10846 = vadd.f32 %v9918, %v10751
        %v10847 = vadd.f32 %v9919, %v10750
        %v10848 = vadd.f32 %v9920, %v10754
        %v10849 = vadd.f32 %v9921, %v10756
        %v10850 = vadd.f32 %v9922, %v10758
        %v10851 = vadd.f32 %v9923, %v10760
        %v10852 = vadd.f32 %v9924, %v10759
        %v10853 = vadd.f32 %v9925, %v10763
        %v10854 = vadd.f32 %v9926, %v10765
        %v10855 = vadd.f32 %v9927, %v10767
        %v10856 = vadd.f32 %v9928, %v10769
        %v10857 = vadd.f32 %v9929, %v10768
        %v10858 = vadd.f32 %v9930, %v10772
        %v10859 = vadd.f32 %v9931, %v10774
        %v10860 = vadd.f32 %v9932, %v10776
        %v10861 = vadd.f32 %v9933, %v10778
        %v10862 = vadd.f32 %v9934, %v10777
        %v10863 = vadd.f32 %v9935, %v10781
        %v10864 = vadd.f32 %v9936, %v10783
        %v10865 = vadd.f32 %v9937, %v10785
        %v10866 = vadd.f32 %v9938, %v10787
        %v10867 = vadd.f32 %v9939, %v10786
        %v10868 = vlaneseq
        %v10869 = vshrl.u32 %v10868, 7
        %v10870 = vsub.s32 0, %v10869
        %v10871 = vrot.slane %v800, %v10870
        %v10872 = vmul.f32 %v9460, %v10871
        %v10873 = vmul.f32 %v9461, %v10871
        %v10874 = vmul.f32 %v9462, %v10871
        %v10875 = vmul.f32 %v9463, %v10871
        %v10876 = vmul.f32 %v9464, %v10871
        %v10877 = vmul.f32 %v9465, %v10871
        %v10878 = vmul.f32 %v9466, %v10871
        %v10879 = vmul.f32 %v9467, %v10871
        %v10880 = vmul.f32 %v9468, %v10871
        %v10881 = vmul.f32 %v9469, %v10871
        %v10882 = vmul.f32 %v9470, %v10871
        %v10883 = vmul.f32 %v9471, %v10871
        %v10884 = vmul.f32 %v9472, %v10871
        %v10885 = vmul.f32 %v9473, %v10871
        %v10886 = vmul.f32 %v9474, %v10871
        %v10887 = vmul.f32 %v9475, %v10871
        %v10888 = vmul.f32 %v9476, %v10871
        %v10889 = vmul.f32 %v9477, %v10871
        %v10890 = vmul.f32 %v9478, %v10871
        %v10891 = vmul.f32 %v9479, %v10871
        %v10892 = vmul.f32 %v9480, %v10871
        %v10893 = vmul.f32 %v9481, %v10871
        %v10894 = vmul.f32 %v9482, %v10871
        %v10895 = vmul.f32 %v9483, %v10871
        %v10896 = vmul.f32 %v9484, %v10871
        %v10897 = vmul.f32 %v9485, %v10871
        %v10898 = vmul.f32 %v9486, %v10871
        %v10899 = vmul.f32 %v9487, %v10871
        %v10900 = vmul.f32 %v9488, %v10871
        %v10901 = vmul.f32 %v9489, %v10871
        %v10902 = vmul.f32 %v9490, %v10871
        %v10903 = vmul.f32 %v9491, %v10871
        %v10904 = vmul.f32 %v9492, %v10871
        %v10905 = vmul.f32 %v9493, %v10871
        %v10906 = vmul.f32 %v9494, %v10871
        %v10907 = vmul.f32 %v9495, %v10871
        %v10908 = vmul.f32 %v9496, %v10871
        %v10909 = vmul.f32 %v9497, %v10871
        %v10910 = vmul.f32 %v9498, %v10871
        %v10911 = vmul.f32 %v9499, %v10871
        %v10952 = vrot.slane %v10872, 6
        %v10953 = vrot.slane %v10873, 6
        %v10954 = vsel %vm3600, %v10952, %v10953
        %v10955 = vrot.slane %v10874, 6
        %v10956 = vsel %vm3600, %v10953, %v10955
        %v10957 = vrot.slane %v10875, 6
        %v10958 = vsel %vm3600, %v10955, %v10957
        %v10959 = vrot.slane %v10876, 6
        %v10960 = vsel %vm3600, %v10957, %v10959
        %v10961 = vrot.slane %v10877, 6
        %v10962 = vrot.slane %v10878, 6
        %v10963 = vsel %vm3600, %v10961, %v10962
        %v10964 = vrot.slane %v10879, 6
        %v10965 = vsel %vm3600, %v10962, %v10964
        %v10966 = vrot.slane %v10880, 6
        %v10967 = vsel %vm3600, %v10964, %v10966
        %v10968 = vrot.slane %v10881, 6
        %v10969 = vsel %vm3600, %v10966, %v10968
        %v10970 = vrot.slane %v10882, 6
        %v10971 = vrot.slane %v10883, 6
        %v10972 = vsel %vm3600, %v10970, %v10971
        %v10973 = vrot.slane %v10884, 6
        %v10974 = vsel %vm3600, %v10971, %v10973
        %v10975 = vrot.slane %v10885, 6
        %v10976 = vsel %vm3600, %v10973, %v10975
        %v10977 = vrot.slane %v10886, 6
        %v10978 = vsel %vm3600, %v10975, %v10977
        %v10979 = vrot.slane %v10887, 6
        %v10980 = vrot.slane %v10888, 6
        %v10981 = vsel %vm3600, %v10979, %v10980
        %v10982 = vrot.slane %v10889, 6
        %v10983 = vsel %vm3600, %v10980, %v10982
        %v10984 = vrot.slane %v10890, 6
        %v10985 = vsel %vm3600, %v10982, %v10984
        %v10986 = vrot.slane %v10891, 6
        %v10987 = vsel %vm3600, %v10984, %v10986
        %v10988 = vrot.slane %v10892, 6
        %v10989 = vrot.slane %v10893, 6
        %v10990 = vsel %vm3600, %v10988, %v10989
        %v10991 = vrot.slane %v10894, 6
        %v10992 = vsel %vm3600, %v10989, %v10991
        %v10993 = vrot.slane %v10895, 6
        %v10994 = vsel %vm3600, %v10991, %v10993
        %v10995 = vrot.slane %v10896, 6
        %v10996 = vsel %vm3600, %v10993, %v10995
        %v10997 = vrot.slane %v10897, 6
        %v10998 = vrot.slane %v10898, 6
        %v10999 = vsel %vm3600, %v10997, %v10998
        %v11000 = vrot.slane %v10899, 6
        %v11001 = vsel %vm3600, %v10998, %v11000
        %v11002 = vrot.slane %v10900, 6
        %v11003 = vsel %vm3600, %v11000, %v11002
        %v11004 = vrot.slane %v10901, 6
        %v11005 = vsel %vm3600, %v11002, %v11004
        %v11006 = vrot.slane %v10902, 6
        %v11007 = vrot.slane %v10903, 6
        %v11008 = vsel %vm3600, %v11006, %v11007
        %v11009 = vrot.slane %v10904, 6
        %v11010 = vsel %vm3600, %v11007, %v11009
        %v11011 = vrot.slane %v10905, 6
        %v11012 = vsel %vm3600, %v11009, %v11011
        %v11013 = vrot.slane %v10906, 6
        %v11014 = vsel %vm3600, %v11011, %v11013
        %v11015 = vrot.slane %v10907, 6
        %v11016 = vrot.slane %v10908, 6
        %v11017 = vsel %vm3600, %v11015, %v11016
        %v11018 = vrot.slane %v10909, 6
        %v11019 = vsel %vm3600, %v11016, %v11018
        %v11020 = vrot.slane %v10910, 6
        %v11021 = vsel %vm3600, %v11018, %v11020
        %v11022 = vrot.slane %v10911, 6
        %v11023 = vsel %vm3600, %v11020, %v11022
        %v11056 = vadd.f32 %v10128, %v10954
        %v11057 = vadd.f32 %v10129, %v10956
        %v11058 = vadd.f32 %v10130, %v10958
        %v11059 = vadd.f32 %v10131, %v10960
        %v11060 = vadd.f32 %v10132, %v10963
        %v11061 = vadd.f32 %v10133, %v10965
        %v11062 = vadd.f32 %v10134, %v10967
        %v11063 = vadd.f32 %v10135, %v10969
        %v11064 = vadd.f32 %v10136, %v10972
        %v11065 = vadd.f32 %v10137, %v10974
        %v11066 = vadd.f32 %v10138, %v10976
        %v11067 = vadd.f32 %v10139, %v10978
        %v11068 = vadd.f32 %v10140, %v10981
        %v11069 = vadd.f32 %v10141, %v10983
        %v11070 = vadd.f32 %v10142, %v10985
        %v11071 = vadd.f32 %v10143, %v10987
        %v11072 = vadd.f32 %v10144, %v10990
        %v11073 = vadd.f32 %v10145, %v10992
        %v11074 = vadd.f32 %v10146, %v10994
        %v11075 = vadd.f32 %v10147, %v10996
        %v11076 = vadd.f32 %v10148, %v10999
        %v11077 = vadd.f32 %v10149, %v11001
        %v11078 = vadd.f32 %v10150, %v11003
        %v11079 = vadd.f32 %v10151, %v11005
        %v11080 = vadd.f32 %v10152, %v11008
        %v11081 = vadd.f32 %v10153, %v11010
        %v11082 = vadd.f32 %v10154, %v11012
        %v11083 = vadd.f32 %v10155, %v11014
        %v11084 = vadd.f32 %v10156, %v11017
        %v11085 = vadd.f32 %v10157, %v11019
        %v11086 = vadd.f32 %v10158, %v11021
        %v11087 = vadd.f32 %v10159, %v11023
        %v11128 = vrot.slane %v10356, 1
        %v11129 = vrot.slane %v10357, 1
        %v11130 = vsel %vm2188, %v11128, %v11129
        %v11131 = vrot.slane %v10358, 1
        %v11132 = vsel %vm2188, %v11129, %v11131
        %v11133 = vrot.slane %v10359, 1
        %v11134 = vsel %vm2188, %v11131, %v11133
        %v11135 = vrot.slane %v10360, 1
        %v11136 = vsel %vm2188, %v11133, %v11135
        %v11137 = vrot.slane %v10361, 1
        %v11138 = vrot.slane %v10362, 1
        %v11139 = vsel %vm2188, %v11137, %v11138
        %v11140 = vrot.slane %v10363, 1
        %v11141 = vsel %vm2188, %v11138, %v11140
        %v11142 = vrot.slane %v10364, 1
        %v11143 = vsel %vm2188, %v11140, %v11142
        %v11144 = vrot.slane %v10365, 1
        %v11145 = vsel %vm2188, %v11142, %v11144
        %v11146 = vrot.slane %v10366, 1
        %v11147 = vrot.slane %v10367, 1
        %v11148 = vsel %vm2188, %v11146, %v11147
        %v11149 = vrot.slane %v10368, 1
        %v11150 = vsel %vm2188, %v11147, %v11149
        %v11151 = vrot.slane %v10369, 1
        %v11152 = vsel %vm2188, %v11149, %v11151
        %v11153 = vrot.slane %v10370, 1
        %v11154 = vsel %vm2188, %v11151, %v11153
        %v11155 = vrot.slane %v10371, 1
        %v11156 = vrot.slane %v10372, 1
        %v11157 = vsel %vm2188, %v11155, %v11156
        %v11158 = vrot.slane %v10373, 1
        %v11159 = vsel %vm2188, %v11156, %v11158
        %v11160 = vrot.slane %v10374, 1
        %v11161 = vsel %vm2188, %v11158, %v11160
        %v11162 = vrot.slane %v10375, 1
        %v11163 = vsel %vm2188, %v11160, %v11162
        %v11164 = vrot.slane %v10376, 1
        %v11165 = vrot.slane %v10377, 1
        %v11166 = vsel %vm2188, %v11164, %v11165
        %v11167 = vrot.slane %v10378, 1
        %v11168 = vsel %vm2188, %v11165, %v11167
        %v11169 = vrot.slane %v10379, 1
        %v11170 = vsel %vm2188, %v11167, %v11169
        %v11171 = vrot.slane %v10380, 1
        %v11172 = vsel %vm2188, %v11169, %v11171
        %v11173 = vrot.slane %v10381, 1
        %v11174 = vrot.slane %v10382, 1
        %v11175 = vsel %vm2188, %v11173, %v11174
        %v11176 = vrot.slane %v10383, 1
        %v11177 = vsel %vm2188, %v11174, %v11176
        %v11178 = vrot.slane %v10384, 1
        %v11179 = vsel %vm2188, %v11176, %v11178
        %v11180 = vrot.slane %v10385, 1
        %v11181 = vsel %vm2188, %v11178, %v11180
        %v11182 = vrot.slane %v10386, 1
        %v11183 = vrot.slane %v10387, 1
        %v11184 = vsel %vm2188, %v11182, %v11183
        %v11185 = vrot.slane %v10388, 1
        %v11186 = vsel %vm2188, %v11183, %v11185
        %v11187 = vrot.slane %v10389, 1
        %v11188 = vsel %vm2188, %v11185, %v11187
        %v11189 = vrot.slane %v10390, 1
        %v11190 = vsel %vm2188, %v11187, %v11189
        %v11191 = vrot.slane %v10391, 1
        %v11192 = vrot.slane %v10392, 1
        %v11193 = vsel %vm2188, %v11191, %v11192
        %v11194 = vrot.slane %v10393, 1
        %v11195 = vsel %vm2188, %v11192, %v11194
        %v11196 = vrot.slane %v10394, 1
        %v11197 = vsel %vm2188, %v11194, %v11196
        %v11198 = vrot.slane %v10395, 1
        %v11199 = vsel %vm2188, %v11196, %v11198
        %v11232 = vadd.f32 %v11056, %v11130
        %v11233 = vadd.f32 %v11057, %v11132
        %v11234 = vadd.f32 %v11058, %v11134
        %v11235 = vadd.f32 %v11059, %v11136
        %v11236 = vadd.f32 %v11060, %v11139
        %v11237 = vadd.f32 %v11061, %v11141
        %v11238 = vadd.f32 %v11062, %v11143
        %v11239 = vadd.f32 %v11063, %v11145
        %v11240 = vadd.f32 %v11064, %v11148
        %v11241 = vadd.f32 %v11065, %v11150
        %v11242 = vadd.f32 %v11066, %v11152
        %v11243 = vadd.f32 %v11067, %v11154
        %v11244 = vadd.f32 %v11068, %v11157
        %v11245 = vadd.f32 %v11069, %v11159
        %v11246 = vadd.f32 %v11070, %v11161
        %v11247 = vadd.f32 %v11071, %v11163
        %v11248 = vadd.f32 %v11072, %v11166
        %v11249 = vadd.f32 %v11073, %v11168
        %v11250 = vadd.f32 %v11074, %v11170
        %v11251 = vadd.f32 %v11075, %v11172
        %v11252 = vadd.f32 %v11076, %v11175
        %v11253 = vadd.f32 %v11077, %v11177
        %v11254 = vadd.f32 %v11078, %v11179
        %v11255 = vadd.f32 %v11079, %v11181
        %v11256 = vadd.f32 %v11080, %v11184
        %v11257 = vadd.f32 %v11081, %v11186
        %v11258 = vadd.f32 %v11082, %v11188
        %v11259 = vadd.f32 %v11083, %v11190
        %v11260 = vadd.f32 %v11084, %v11193
        %v11261 = vadd.f32 %v11085, %v11195
        %v11262 = vadd.f32 %v11086, %v11197
        %v11263 = vadd.f32 %v11087, %v11199
        %v11304 = vrot.slane %v10828, 1
        %v11305 = vrot.slane %v10829, 1
        %v11306 = vsel %vm2188, %v11304, %v11305
        %v11307 = vrot.slane %v10830, 1
        %v11308 = vsel %vm2188, %v11305, %v11307
        %v11309 = vrot.slane %v10831, 1
        %v11310 = vsel %vm2188, %v11307, %v11309
        %v11311 = vrot.slane %v10832, 1
        %v11312 = vsel %vm2188, %v11309, %v11311
        %v11313 = vrot.slane %v10833, 1
        %v11314 = vrot.slane %v10834, 1
        %v11315 = vsel %vm2188, %v11313, %v11314
        %v11316 = vrot.slane %v10835, 1
        %v11317 = vsel %vm2188, %v11314, %v11316
        %v11318 = vrot.slane %v10836, 1
        %v11319 = vsel %vm2188, %v11316, %v11318
        %v11320 = vrot.slane %v10837, 1
        %v11321 = vsel %vm2188, %v11318, %v11320
        %v11322 = vrot.slane %v10838, 1
        %v11323 = vrot.slane %v10839, 1
        %v11324 = vsel %vm2188, %v11322, %v11323
        %v11325 = vrot.slane %v10840, 1
        %v11326 = vsel %vm2188, %v11323, %v11325
        %v11327 = vrot.slane %v10841, 1
        %v11328 = vsel %vm2188, %v11325, %v11327
        %v11329 = vrot.slane %v10842, 1
        %v11330 = vsel %vm2188, %v11327, %v11329
        %v11331 = vrot.slane %v10843, 1
        %v11332 = vrot.slane %v10844, 1
        %v11333 = vsel %vm2188, %v11331, %v11332
        %v11334 = vrot.slane %v10845, 1
        %v11335 = vsel %vm2188, %v11332, %v11334
        %v11336 = vrot.slane %v10846, 1
        %v11337 = vsel %vm2188, %v11334, %v11336
        %v11338 = vrot.slane %v10847, 1
        %v11339 = vsel %vm2188, %v11336, %v11338
        %v11340 = vrot.slane %v10848, 1
        %v11341 = vrot.slane %v10849, 1
        %v11342 = vsel %vm2188, %v11340, %v11341
        %v11343 = vrot.slane %v10850, 1
        %v11344 = vsel %vm2188, %v11341, %v11343
        %v11345 = vrot.slane %v10851, 1
        %v11346 = vsel %vm2188, %v11343, %v11345
        %v11347 = vrot.slane %v10852, 1
        %v11348 = vsel %vm2188, %v11345, %v11347
        %v11349 = vrot.slane %v10853, 1
        %v11350 = vrot.slane %v10854, 1
        %v11351 = vsel %vm2188, %v11349, %v11350
        %v11352 = vrot.slane %v10855, 1
        %v11353 = vsel %vm2188, %v11350, %v11352
        %v11354 = vrot.slane %v10856, 1
        %v11355 = vsel %vm2188, %v11352, %v11354
        %v11356 = vrot.slane %v10857, 1
        %v11357 = vsel %vm2188, %v11354, %v11356
        %v11358 = vrot.slane %v10858, 1
        %v11359 = vrot.slane %v10859, 1
        %v11360 = vsel %vm2188, %v11358, %v11359
        %v11361 = vrot.slane %v10860, 1
        %v11362 = vsel %vm2188, %v11359, %v11361
        %v11363 = vrot.slane %v10861, 1
        %v11364 = vsel %vm2188, %v11361, %v11363
        %v11365 = vrot.slane %v10862, 1
        %v11366 = vsel %vm2188, %v11363, %v11365
        %v11367 = vrot.slane %v10863, 1
        %v11368 = vrot.slane %v10864, 1
        %v11369 = vsel %vm2188, %v11367, %v11368
        %v11370 = vrot.slane %v10865, 1
        %v11371 = vsel %vm2188, %v11368, %v11370
        %v11372 = vrot.slane %v10866, 1
        %v11373 = vsel %vm2188, %v11370, %v11372
        %v11374 = vrot.slane %v10867, 1
        %v11375 = vsel %vm2188, %v11372, %v11374
        %v11416 = vadd.f32 %v10592, %v11306
        %v11417 = vadd.f32 %v10593, %v11308
        %v11418 = vadd.f32 %v10594, %v11310
        %v11419 = vadd.f32 %v10595, %v11312
        %v11420 = vadd.f32 %v10596, %v11311
        %v11421 = vadd.f32 %v10597, %v11315
        %v11422 = vadd.f32 %v10598, %v11317
        %v11423 = vadd.f32 %v10599, %v11319
        %v11424 = vadd.f32 %v10600, %v11321
        %v11425 = vadd.f32 %v10601, %v11320
        %v11426 = vadd.f32 %v10602, %v11324
        %v11427 = vadd.f32 %v10603, %v11326
        %v11428 = vadd.f32 %v10604, %v11328
        %v11429 = vadd.f32 %v10605, %v11330
        %v11430 = vadd.f32 %v10606, %v11329
        %v11431 = vadd.f32 %v10607, %v11333
        %v11432 = vadd.f32 %v10608, %v11335
        %v11433 = vadd.f32 %v10609, %v11337
        %v11434 = vadd.f32 %v10610, %v11339
        %v11435 = vadd.f32 %v10611, %v11338
        %v11436 = vadd.f32 %v10612, %v11342
        %v11437 = vadd.f32 %v10613, %v11344
        %v11438 = vadd.f32 %v10614, %v11346
        %v11439 = vadd.f32 %v10615, %v11348
        %v11440 = vadd.f32 %v10616, %v11347
        %v11441 = vadd.f32 %v10617, %v11351
        %v11442 = vadd.f32 %v10618, %v11353
        %v11443 = vadd.f32 %v10619, %v11355
        %v11444 = vadd.f32 %v10620, %v11357
        %v11445 = vadd.f32 %v10621, %v11356
        %v11446 = vadd.f32 %v10622, %v11360
        %v11447 = vadd.f32 %v10623, %v11362
        %v11448 = vadd.f32 %v10624, %v11364
        %v11449 = vadd.f32 %v10625, %v11366
        %v11450 = vadd.f32 %v10626, %v11365
        %v11451 = vadd.f32 %v10627, %v11369
        %v11452 = vadd.f32 %v10628, %v11371
        %v11453 = vadd.f32 %v10629, %v11373
        %v11454 = vadd.f32 %v10630, %v11375
        %v11455 = vadd.f32 %v10631, %v11374
        %v11496 = vrot.slane %v11416, 2
        %v11497 = vrot.slane %v11417, 2
        %v11498 = vsel %vm4057, %v11496, %v11497
        %v11499 = vrot.slane %v11418, 2
        %v11500 = vsel %vm4057, %v11497, %v11499
        %v11501 = vrot.slane %v11419, 2
        %v11502 = vsel %vm4057, %v11499, %v11501
        %v11503 = vrot.slane %v11420, 2
        %v11504 = vsel %vm4057, %v11501, %v11503
        %v11505 = vrot.slane %v11421, 2
        %v11506 = vrot.slane %v11422, 2
        %v11507 = vsel %vm4057, %v11505, %v11506
        %v11508 = vrot.slane %v11423, 2
        %v11509 = vsel %vm4057, %v11506, %v11508
        %v11510 = vrot.slane %v11424, 2
        %v11511 = vsel %vm4057, %v11508, %v11510
        %v11512 = vrot.slane %v11425, 2
        %v11513 = vsel %vm4057, %v11510, %v11512
        %v11514 = vrot.slane %v11426, 2
        %v11515 = vrot.slane %v11427, 2
        %v11516 = vsel %vm4057, %v11514, %v11515
        %v11517 = vrot.slane %v11428, 2
        %v11518 = vsel %vm4057, %v11515, %v11517
        %v11519 = vrot.slane %v11429, 2
        %v11520 = vsel %vm4057, %v11517, %v11519
        %v11521 = vrot.slane %v11430, 2
        %v11522 = vsel %vm4057, %v11519, %v11521
        %v11523 = vrot.slane %v11431, 2
        %v11524 = vrot.slane %v11432, 2
        %v11525 = vsel %vm4057, %v11523, %v11524
        %v11526 = vrot.slane %v11433, 2
        %v11527 = vsel %vm4057, %v11524, %v11526
        %v11528 = vrot.slane %v11434, 2
        %v11529 = vsel %vm4057, %v11526, %v11528
        %v11530 = vrot.slane %v11435, 2
        %v11531 = vsel %vm4057, %v11528, %v11530
        %v11532 = vrot.slane %v11436, 2
        %v11533 = vrot.slane %v11437, 2
        %v11534 = vsel %vm4057, %v11532, %v11533
        %v11535 = vrot.slane %v11438, 2
        %v11536 = vsel %vm4057, %v11533, %v11535
        %v11537 = vrot.slane %v11439, 2
        %v11538 = vsel %vm4057, %v11535, %v11537
        %v11539 = vrot.slane %v11440, 2
        %v11540 = vsel %vm4057, %v11537, %v11539
        %v11541 = vrot.slane %v11441, 2
        %v11542 = vrot.slane %v11442, 2
        %v11543 = vsel %vm4057, %v11541, %v11542
        %v11544 = vrot.slane %v11443, 2
        %v11545 = vsel %vm4057, %v11542, %v11544
        %v11546 = vrot.slane %v11444, 2
        %v11547 = vsel %vm4057, %v11544, %v11546
        %v11548 = vrot.slane %v11445, 2
        %v11549 = vsel %vm4057, %v11546, %v11548
        %v11550 = vrot.slane %v11446, 2
        %v11551 = vrot.slane %v11447, 2
        %v11552 = vsel %vm4057, %v11550, %v11551
        %v11553 = vrot.slane %v11448, 2
        %v11554 = vsel %vm4057, %v11551, %v11553
        %v11555 = vrot.slane %v11449, 2
        %v11556 = vsel %vm4057, %v11553, %v11555
        %v11557 = vrot.slane %v11450, 2
        %v11558 = vsel %vm4057, %v11555, %v11557
        %v11559 = vrot.slane %v11451, 2
        %v11560 = vrot.slane %v11452, 2
        %v11561 = vsel %vm4057, %v11559, %v11560
        %v11562 = vrot.slane %v11453, 2
        %v11563 = vsel %vm4057, %v11560, %v11562
        %v11564 = vrot.slane %v11454, 2
        %v11565 = vsel %vm4057, %v11562, %v11564
        %v11566 = vrot.slane %v11455, 2
        %v11567 = vsel %vm4057, %v11564, %v11566
        %v11600 = vadd.f32 %v11232, %v11498
        %v11601 = vadd.f32 %v11233, %v11500
        %v11602 = vadd.f32 %v11234, %v11502
        %v11603 = vadd.f32 %v11235, %v11504
        %v11604 = vadd.f32 %v11236, %v11507
        %v11605 = vadd.f32 %v11237, %v11509
        %v11606 = vadd.f32 %v11238, %v11511
        %v11607 = vadd.f32 %v11239, %v11513
        %v11608 = vadd.f32 %v11240, %v11516
        %v11609 = vadd.f32 %v11241, %v11518
        %v11610 = vadd.f32 %v11242, %v11520
        %v11611 = vadd.f32 %v11243, %v11522
        %v11612 = vadd.f32 %v11244, %v11525
        %v11613 = vadd.f32 %v11245, %v11527
        %v11614 = vadd.f32 %v11246, %v11529
        %v11615 = vadd.f32 %v11247, %v11531
        %v11616 = vadd.f32 %v11248, %v11534
        %v11617 = vadd.f32 %v11249, %v11536
        %v11618 = vadd.f32 %v11250, %v11538
        %v11619 = vadd.f32 %v11251, %v11540
        %v11620 = vadd.f32 %v11252, %v11543
        %v11621 = vadd.f32 %v11253, %v11545
        %v11622 = vadd.f32 %v11254, %v11547
        %v11623 = vadd.f32 %v11255, %v11549
        %v11624 = vadd.f32 %v11256, %v11552
        %v11625 = vadd.f32 %v11257, %v11554
        %v11626 = vadd.f32 %v11258, %v11556
        %v11627 = vadd.f32 %v11259, %v11558
        %v11628 = vadd.f32 %v11260, %v11561
        %v11629 = vadd.f32 %v11261, %v11563
        %v11630 = vadd.f32 %v11262, %v11565
        %v11631 = vadd.f32 %v11263, %v11567
        %v11632 = vld [vmem:[%s2] sm:$0x1]
        %v11634 = vlaneseq
        %v11635 = vshrl.u32 %v11634, 7
        %v11636 = vsub.s32 0, %v11635
        %v11637 = vrot.slane %v11632, %v11636
        %v11639 = vadd.f32 %v11600, %v11637
        %v11640 = vadd.f32 %v11601, %v11637
        %v11641 = vadd.f32 %v11602, %v11637
        %v11642 = vadd.f32 %v11603, %v11637
        %v11643 = vadd.f32 %v11604, %v11637
        %v11644 = vadd.f32 %v11605, %v11637
        %v11645 = vadd.f32 %v11606, %v11637
        %v11646 = vadd.f32 %v11607, %v11637
        %v11647 = vadd.f32 %v11608, %v11637
        %v11648 = vadd.f32 %v11609, %v11637
        %v11649 = vadd.f32 %v11610, %v11637
        %v11650 = vadd.f32 %v11611, %v11637
        %v11651 = vadd.f32 %v11612, %v11637
        %v11652 = vadd.f32 %v11613, %v11637
        %v11653 = vadd.f32 %v11614, %v11637
        %v11654 = vadd.f32 %v11615, %v11637
        %v11655 = vadd.f32 %v11616, %v11637
        %v11656 = vadd.f32 %v11617, %v11637
        %v11657 = vadd.f32 %v11618, %v11637
        %v11658 = vadd.f32 %v11619, %v11637
        %v11659 = vadd.f32 %v11620, %v11637
        %v11660 = vadd.f32 %v11621, %v11637
        %v11661 = vadd.f32 %v11622, %v11637
        %v11662 = vadd.f32 %v11623, %v11637
        %v11663 = vadd.f32 %v11624, %v11637
        %v11664 = vadd.f32 %v11625, %v11637
        %v11665 = vadd.f32 %v11626, %v11637
        %v11666 = vadd.f32 %v11627, %v11637
        %v11667 = vadd.f32 %v11628, %v11637
        %v11668 = vadd.f32 %v11629, %v11637
        %v11669 = vadd.f32 %v11630, %v11637
        %v11670 = vadd.f32 %v11631, %v11637
        %v11671 = vmul.f32 %v11639, %v11639
        %v11672 = vmul.f32 %v11640, %v11640
        %v11673 = vmul.f32 %v11641, %v11641
        %v11674 = vmul.f32 %v11642, %v11642
        %v11675 = vmul.f32 %v11643, %v11643
        %v11676 = vmul.f32 %v11644, %v11644
        %v11677 = vmul.f32 %v11645, %v11645
        %v11678 = vmul.f32 %v11646, %v11646
        %v11679 = vmul.f32 %v11647, %v11647
        %v11680 = vmul.f32 %v11648, %v11648
        %v11681 = vmul.f32 %v11649, %v11649
        %v11682 = vmul.f32 %v11650, %v11650
        %v11683 = vmul.f32 %v11651, %v11651
        %v11684 = vmul.f32 %v11652, %v11652
        %v11685 = vmul.f32 %v11653, %v11653
        %v11686 = vmul.f32 %v11654, %v11654
        %v11687 = vmul.f32 %v11655, %v11655
        %v11688 = vmul.f32 %v11656, %v11656
        %v11689 = vmul.f32 %v11657, %v11657
        %v11690 = vmul.f32 %v11658, %v11658
        %v11691 = vmul.f32 %v11659, %v11659
        %v11692 = vmul.f32 %v11660, %v11660
        %v11693 = vmul.f32 %v11661, %v11661
        %v11694 = vmul.f32 %v11662, %v11662
        %v11695 = vmul.f32 %v11663, %v11663
        %v11696 = vmul.f32 %v11664, %v11664
        %v11697 = vmul.f32 %v11665, %v11665
        %v11698 = vmul.f32 %v11666, %v11666
        %v11699 = vmul.f32 %v11667, %v11667
        %v11700 = vmul.f32 %v11668, %v11668
        %v11701 = vmul.f32 %v11669, %v11669
        %v11702 = vmul.f32 %v11670, %v11670
        %vm11703 = vcmask 261120
        %v11704 = vsel %vm11703, %v11671, 0.0
        %11705 = vadd.xlane.f32.xlu0 %v11704
        %v11706 = vpop.xlane.xlu0 %11705
        %v11707 = vsel %vm11703, %v11672, 0.0
        %11708 = vadd.xlane.f32.xlu0 %v11707
        %v11709 = vpop.xlane.xlu0 %11708
        %v11710 = vsel %vm11703, %v11673, 0.0
        %11711 = vadd.xlane.f32.xlu0 %v11710
        %v11712 = vpop.xlane.xlu0 %11711
        %v11713 = vsel %vm11703, %v11674, 0.0
        %11714 = vadd.xlane.f32.xlu0 %v11713
        %v11715 = vpop.xlane.xlu0 %11714
        %v11716 = vsel %vm11703, %v11675, 0.0
        %11717 = vadd.xlane.f32.xlu0 %v11716
        %v11718 = vpop.xlane.xlu0 %11717
        %v11719 = vsel %vm11703, %v11676, 0.0
        %11720 = vadd.xlane.f32.xlu0 %v11719
        %v11721 = vpop.xlane.xlu0 %11720
        %v11722 = vsel %vm11703, %v11677, 0.0
        %11723 = vadd.xlane.f32.xlu0 %v11722
        %v11724 = vpop.xlane.xlu0 %11723
        %v11725 = vsel %vm11703, %v11678, 0.0
        %11726 = vadd.xlane.f32.xlu0 %v11725
        %v11727 = vpop.xlane.xlu0 %11726
        %v11728 = vsel %vm11703, %v11679, 0.0
        %11729 = vadd.xlane.f32.xlu0 %v11728
        %v11730 = vpop.xlane.xlu0 %11729
        %v11731 = vsel %vm11703, %v11680, 0.0
        %11732 = vadd.xlane.f32.xlu0 %v11731
        %v11733 = vpop.xlane.xlu0 %11732
        %v11734 = vsel %vm11703, %v11681, 0.0
        %11735 = vadd.xlane.f32.xlu0 %v11734
        %v11736 = vpop.xlane.xlu0 %11735
        %v11737 = vsel %vm11703, %v11682, 0.0
        %11738 = vadd.xlane.f32.xlu0 %v11737
        %v11739 = vpop.xlane.xlu0 %11738
        %v11740 = vsel %vm11703, %v11683, 0.0
        %11741 = vadd.xlane.f32.xlu0 %v11740
        %v11742 = vpop.xlane.xlu0 %11741
        %v11743 = vsel %vm11703, %v11684, 0.0
        %11744 = vadd.xlane.f32.xlu0 %v11743
        %v11745 = vpop.xlane.xlu0 %11744
        %v11746 = vsel %vm11703, %v11685, 0.0
        %11747 = vadd.xlane.f32.xlu0 %v11746
        %v11748 = vpop.xlane.xlu0 %11747
        %v11749 = vsel %vm11703, %v11686, 0.0
        %11750 = vadd.xlane.f32.xlu0 %v11749
        %v11751 = vpop.xlane.xlu0 %11750
        %v11752 = vsel %vm11703, %v11687, 0.0
        %11753 = vadd.xlane.f32.xlu0 %v11752
        %v11754 = vpop.xlane.xlu0 %11753
        %v11755 = vsel %vm11703, %v11688, 0.0
        %11756 = vadd.xlane.f32.xlu0 %v11755
        %v11757 = vpop.xlane.xlu0 %11756
        %v11758 = vsel %vm11703, %v11689, 0.0
        %11759 = vadd.xlane.f32.xlu0 %v11758
        %v11760 = vpop.xlane.xlu0 %11759
        %v11761 = vsel %vm11703, %v11690, 0.0
        %11762 = vadd.xlane.f32.xlu0 %v11761
        %v11763 = vpop.xlane.xlu0 %11762
        %v11764 = vsel %vm11703, %v11691, 0.0
        %11765 = vadd.xlane.f32.xlu0 %v11764
        %v11766 = vpop.xlane.xlu0 %11765
        %v11767 = vsel %vm11703, %v11692, 0.0
        %11768 = vadd.xlane.f32.xlu0 %v11767
        %v11769 = vpop.xlane.xlu0 %11768
        %v11770 = vsel %vm11703, %v11693, 0.0
        %11771 = vadd.xlane.f32.xlu0 %v11770
        %v11772 = vpop.xlane.xlu0 %11771
        %v11773 = vsel %vm11703, %v11694, 0.0
        %11774 = vadd.xlane.f32.xlu0 %v11773
        %v11775 = vpop.xlane.xlu0 %11774
        %v11776 = vsel %vm11703, %v11695, 0.0
        %11777 = vadd.xlane.f32.xlu0 %v11776
        %v11778 = vpop.xlane.xlu0 %11777
        %v11779 = vsel %vm11703, %v11696, 0.0
        %11780 = vadd.xlane.f32.xlu0 %v11779
        %v11781 = vpop.xlane.xlu0 %11780
        %v11782 = vsel %vm11703, %v11697, 0.0
        %11783 = vadd.xlane.f32.xlu0 %v11782
        %v11784 = vpop.xlane.xlu0 %11783
        %v11785 = vsel %vm11703, %v11698, 0.0
        %11786 = vadd.xlane.f32.xlu0 %v11785
        %v11787 = vpop.xlane.xlu0 %11786
        %v11788 = vsel %vm11703, %v11699, 0.0
        %11789 = vadd.xlane.f32.xlu0 %v11788
        %v11790 = vpop.xlane.xlu0 %11789
        %v11791 = vsel %vm11703, %v11700, 0.0
        %11792 = vadd.xlane.f32.xlu0 %v11791
        %v11793 = vpop.xlane.xlu0 %11792
        %v11794 = vsel %vm11703, %v11701, 0.0
        %11795 = vadd.xlane.f32.xlu0 %v11794
        %v11796 = vpop.xlane.xlu0 %11795
        %v11797 = vsel %vm11703, %v11702, 0.0
        %11798 = vadd.xlane.f32.xlu0 %v11797
        %v11799 = vpop.xlane.xlu0 %11798
        %v11800 = vrcp.pop 32.0
        %v11801 = vmul.f32 %v11706, %v11800
        %v11802 = vmul.f32 %v11709, %v11800
        %v11803 = vmul.f32 %v11712, %v11800
        %v11804 = vmul.f32 %v11715, %v11800
        %v11805 = vmul.f32 %v11718, %v11800
        %v11806 = vmul.f32 %v11721, %v11800
        %v11807 = vmul.f32 %v11724, %v11800
        %v11808 = vmul.f32 %v11727, %v11800
        %v11809 = vmul.f32 %v11730, %v11800
        %v11810 = vmul.f32 %v11733, %v11800
        %v11811 = vmul.f32 %v11736, %v11800
        %v11812 = vmul.f32 %v11739, %v11800
        %v11813 = vmul.f32 %v11742, %v11800
        %v11814 = vmul.f32 %v11745, %v11800
        %v11815 = vmul.f32 %v11748, %v11800
        %v11816 = vmul.f32 %v11751, %v11800
        %v11817 = vmul.f32 %v11754, %v11800
        %v11818 = vmul.f32 %v11757, %v11800
        %v11819 = vmul.f32 %v11760, %v11800
        %v11820 = vmul.f32 %v11763, %v11800
        %v11821 = vmul.f32 %v11766, %v11800
        %v11822 = vmul.f32 %v11769, %v11800
        %v11823 = vmul.f32 %v11772, %v11800
        %v11824 = vmul.f32 %v11775, %v11800
        %v11825 = vmul.f32 %v11778, %v11800
        %v11826 = vmul.f32 %v11781, %v11800
        %v11827 = vmul.f32 %v11784, %v11800
        %v11828 = vmul.f32 %v11787, %v11800
        %v11829 = vmul.f32 %v11790, %v11800
        %v11830 = vmul.f32 %v11793, %v11800
        %v11831 = vmul.f32 %v11796, %v11800
        %v11832 = vmul.f32 %v11799, %v11800
        %v11833 = vadd.f32 %v11801, 1e-06
        %v11834 = vadd.f32 %v11802, 1e-06
        %v11835 = vadd.f32 %v11803, 1e-06
        %v11836 = vadd.f32 %v11804, 1e-06
        %v11837 = vadd.f32 %v11805, 1e-06
        %v11838 = vadd.f32 %v11806, 1e-06
        %v11839 = vadd.f32 %v11807, 1e-06
        %v11840 = vadd.f32 %v11808, 1e-06
        %v11841 = vadd.f32 %v11809, 1e-06
        %v11842 = vadd.f32 %v11810, 1e-06
        %v11843 = vadd.f32 %v11811, 1e-06
        %v11844 = vadd.f32 %v11812, 1e-06
        %v11845 = vadd.f32 %v11813, 1e-06
        %v11846 = vadd.f32 %v11814, 1e-06
        %v11847 = vadd.f32 %v11815, 1e-06
        %v11848 = vadd.f32 %v11816, 1e-06
        %v11849 = vadd.f32 %v11817, 1e-06
        %v11850 = vadd.f32 %v11818, 1e-06
        %v11851 = vadd.f32 %v11819, 1e-06
        %v11852 = vadd.f32 %v11820, 1e-06
        %v11853 = vadd.f32 %v11821, 1e-06
        %v11854 = vadd.f32 %v11822, 1e-06
        %v11855 = vadd.f32 %v11823, 1e-06
        %v11856 = vadd.f32 %v11824, 1e-06
        %v11857 = vadd.f32 %v11825, 1e-06
        %v11858 = vadd.f32 %v11826, 1e-06
        %v11859 = vadd.f32 %v11827, 1e-06
        %v11860 = vadd.f32 %v11828, 1e-06
        %v11861 = vadd.f32 %v11829, 1e-06
        %v11862 = vadd.f32 %v11830, 1e-06
        %v11863 = vadd.f32 %v11831, 1e-06
        %v11864 = vadd.f32 %v11832, 1e-06
        %v11865 = vrsqrt.pop %v11833
        %v11866 = vrsqrt.pop %v11834
        %v11867 = vrsqrt.pop %v11835
        %v11868 = vrsqrt.pop %v11836
        %v11869 = vrsqrt.pop %v11837
        %v11870 = vrsqrt.pop %v11838
        %v11871 = vrsqrt.pop %v11839
        %v11872 = vrsqrt.pop %v11840
        %v11873 = vrsqrt.pop %v11841
        %v11874 = vrsqrt.pop %v11842
        %v11875 = vrsqrt.pop %v11843
        %v11876 = vrsqrt.pop %v11844
        %v11877 = vrsqrt.pop %v11845
        %v11878 = vrsqrt.pop %v11846
        %v11879 = vrsqrt.pop %v11847
        %v11880 = vrsqrt.pop %v11848
        %v11881 = vrsqrt.pop %v11849
        %v11882 = vrsqrt.pop %v11850
        %v11883 = vrsqrt.pop %v11851
        %v11884 = vrsqrt.pop %v11852
        %v11885 = vrsqrt.pop %v11853
        %v11886 = vrsqrt.pop %v11854
        %v11887 = vrsqrt.pop %v11855
        %v11888 = vrsqrt.pop %v11856
        %v11889 = vrsqrt.pop %v11857
        %v11890 = vrsqrt.pop %v11858
        %v11891 = vrsqrt.pop %v11859
        %v11892 = vrsqrt.pop %v11860
        %v11893 = vrsqrt.pop %v11861
        %v11894 = vrsqrt.pop %v11862
        %v11895 = vrsqrt.pop %v11863
        %v11896 = vrsqrt.pop %v11864
        %v11897 = vmul.f32 %v11639, %v11865
        %v11898 = vmul.f32 %v11640, %v11866
        %v11899 = vmul.f32 %v11641, %v11867
        %v11900 = vmul.f32 %v11642, %v11868
        %v11901 = vmul.f32 %v11643, %v11869
        %v11902 = vmul.f32 %v11644, %v11870
        %v11903 = vmul.f32 %v11645, %v11871
        %v11904 = vmul.f32 %v11646, %v11872
        %v11905 = vmul.f32 %v11647, %v11873
        %v11906 = vmul.f32 %v11648, %v11874
        %v11907 = vmul.f32 %v11649, %v11875
        %v11908 = vmul.f32 %v11650, %v11876
        %v11909 = vmul.f32 %v11651, %v11877
        %v11910 = vmul.f32 %v11652, %v11878
        %v11911 = vmul.f32 %v11653, %v11879
        %v11912 = vmul.f32 %v11654, %v11880
        %v11913 = vmul.f32 %v11655, %v11881
        %v11914 = vmul.f32 %v11656, %v11882
        %v11915 = vmul.f32 %v11657, %v11883
        %v11916 = vmul.f32 %v11658, %v11884
        %v11917 = vmul.f32 %v11659, %v11885
        %v11918 = vmul.f32 %v11660, %v11886
        %v11919 = vmul.f32 %v11661, %v11887
        %v11920 = vmul.f32 %v11662, %v11888
        %v11921 = vmul.f32 %v11663, %v11889
        %v11922 = vmul.f32 %v11664, %v11890
        %v11923 = vmul.f32 %v11665, %v11891
        %v11924 = vmul.f32 %v11666, %v11892
        %v11925 = vmul.f32 %v11667, %v11893
        %v11926 = vmul.f32 %v11668, %v11894
        %v11927 = vmul.f32 %v11669, %v11895
        %v11928 = vmul.f32 %v11670, %v11896
        %v11929 = vld [vmem:[%s3] sm:$0x1]
        %v11931 = vlaneseq
        %v11932 = vshrl.u32 %v11931, 7
        %v11933 = vsub.s32 0, %v11932
        %v11934 = vrot.slane %v11929, %v11933
        %v11936 = vmul.f32 %v11897, %v11934
        %v11937 = vmul.f32 %v11898, %v11934
        %v11938 = vmul.f32 %v11899, %v11934
        %v11939 = vmul.f32 %v11900, %v11934
        %v11940 = vmul.f32 %v11901, %v11934
        %v11941 = vmul.f32 %v11902, %v11934
        %v11942 = vmul.f32 %v11903, %v11934
        %v11943 = vmul.f32 %v11904, %v11934
        %v11944 = vmul.f32 %v11905, %v11934
        %v11945 = vmul.f32 %v11906, %v11934
        %v11946 = vmul.f32 %v11907, %v11934
        %v11947 = vmul.f32 %v11908, %v11934
        %v11948 = vmul.f32 %v11909, %v11934
        %v11949 = vmul.f32 %v11910, %v11934
        %v11950 = vmul.f32 %v11911, %v11934
        %v11951 = vmul.f32 %v11912, %v11934
        %v11952 = vmul.f32 %v11913, %v11934
        %v11953 = vmul.f32 %v11914, %v11934
        %v11954 = vmul.f32 %v11915, %v11934
        %v11955 = vmul.f32 %v11916, %v11934
        %v11956 = vmul.f32 %v11917, %v11934
        %v11957 = vmul.f32 %v11918, %v11934
        %v11958 = vmul.f32 %v11919, %v11934
        %v11959 = vmul.f32 %v11920, %v11934
        %v11960 = vmul.f32 %v11921, %v11934
        %v11961 = vmul.f32 %v11922, %v11934
        %v11962 = vmul.f32 %v11923, %v11934
        %v11963 = vmul.f32 %v11924, %v11934
        %v11964 = vmul.f32 %v11925, %v11934
        %v11965 = vmul.f32 %v11926, %v11934
        %v11966 = vmul.f32 %v11927, %v11934
        %v11967 = vmul.f32 %v11928, %v11934
        %v11968 = vpack.c.bf16 %v11937, %v11936
        %v11969 = vpack.c.bf16 %v11939, %v11938
        %v11970 = vpack.c.bf16 %v11941, %v11940
        %v11971 = vpack.c.bf16 %v11943, %v11942
        %v11972 = vpack.c.bf16 %v11945, %v11944
        %v11973 = vpack.c.bf16 %v11947, %v11946
        %v11974 = vpack.c.bf16 %v11949, %v11948
        %v11975 = vpack.c.bf16 %v11951, %v11950
        %v11976 = vpack.c.bf16 %v11953, %v11952
        %v11977 = vpack.c.bf16 %v11955, %v11954
        %v11978 = vpack.c.bf16 %v11957, %v11956
        %v11979 = vpack.c.bf16 %v11959, %v11958
        %v11980 = vpack.c.bf16 %v11961, %v11960
        %v11981 = vpack.c.bf16 %v11963, %v11962
        %v11982 = vpack.c.bf16 %v11965, %v11964
        %v11983 = vpack.c.bf16 %v11967, %v11966
        %v11984 = vld [vmem:[%s4] sm:$0xf]
        %v11985 = vld [vmem:[%s4 + $0x4] sm:$0xf]
        %v11986 = vld [vmem:[%s4 + $0x8] sm:$0xf]
        %v11987 = vld [vmem:[%s4 + $0xc] sm:$0xf]
        %v11988 = vld [vmem:[%s5] sm:$0x1]
        %v11990 = vlaneseq
        %v11991 = vshrl.u32 %v11990, 7
        %v11992 = vsub.s32 0, %v11991
        %v11993 = vrot.slane %v11988, %v11992
        %v11999 = vunpack.c.l.b16 %v11984
        %v12000 = vunpack.c.l.b16 %v11985
        %v12001 = vunpack.c.l.b16 %v11986
        %v12002 = vunpack.c.l.b16 %v11987
        %v12003 = vpack.c.b16 %v12000, %v11999
        %v12004 = vpack.c.b16 %v12002, %v12001
        %v12008 = vsel %vm11703, %v11968, 0
        %v12011 = vsel %vm11703, %v11969, 0
        %v12014 = vsel %vm11703, %v11970, 0
        %v12017 = vsel %vm11703, %v11971, 0
        %v12020 = vsel %vm11703, %v11972, 0
        %v12023 = vsel %vm11703, %v11973, 0
        %v12026 = vsel %vm11703, %v11974, 0
        %v12029 = vsel %vm11703, %v11975, 0
        %v12032 = vsel %vm11703, %v11976, 0
        %v12035 = vsel %vm11703, %v11977, 0
        %v12038 = vsel %vm11703, %v11978, 0
        %v12041 = vsel %vm11703, %v11979, 0
        %v12044 = vsel %vm11703, %v11980, 0
        %v12047 = vsel %vm11703, %v11981, 0
        %v12050 = vsel %vm11703, %v11982, 0
        %v12053 = vsel %vm11703, %v11983, 0
        %12055 = vmatprep.subr.bf16.mxu0 0
        %12056 = vmatpush1.bf16.msra.mxu0 %v12003
        %12057 = vmatprep.subr.bf16.mxu0 0
        %12058 = vmatpush1.bf16.msra.mxu0 %v12004
        %12059 = vmatprep.subr.bf16.mxu0 0
        %12060 = vmatpush1.bf16.msra.mxu0 0
        %12061 = vmatprep.subr.bf16.mxu0 0
        %12062 = vmatpush1.bf16.msra.mxu0 0
        %12063 = vmatprep.subr.bf16.mxu0 0
        %12064 = vmatpush1.bf16.msra.mxu0 0
        %12065 = vmatprep.subr.bf16.mxu0 0
        %12066 = vmatpush1.bf16.msra.mxu0 0
        %12067 = vmatprep.subr.bf16.mxu0 0
        %12068 = vmatpush1.bf16.msra.mxu0 0
        %12069 = vmatprep.subr.bf16.mxu0 0
        %12070 = vmatpush1.bf16.msra.mxu0 0
        %12071 = vmatprep.subr.bf16.mxu0 0
        %12072 = vmatpush1.bf16.msra.mxu0 0
        %12073 = vmatprep.subr.bf16.mxu0 0
        %12074 = vmatpush1.bf16.msra.mxu0 0
        %12075 = vmatprep.subr.bf16.mxu0 0
        %12076 = vmatpush1.bf16.msra.mxu0 0
        %12077 = vmatprep.subr.bf16.mxu0 0
        %12078 = vmatpush1.bf16.msra.mxu0 0
        %12079 = vmatprep.subr.bf16.mxu0 0
        %12080 = vmatpush1.bf16.msra.mxu0 0
        %12081 = vmatprep.subr.bf16.mxu0 0
        %12082 = vmatpush1.bf16.msra.mxu0 0
        %12083 = vmatprep.subr.bf16.mxu0 0
        %12084 = vmatpush1.bf16.msra.mxu0 0
        %12085 = vmatprep.subr.bf16.mxu0 0
        %12086 = vmatpush1.bf16.msra.mxu0 0
        %12087 = vmatprep.mubr.bf16.mxu0 0
        %12088 = vmatmul.mubr.bf16.gmra.mrb[0].mxu0 %v12008
        %v12089 = vpop.f32.mrb[0].mxu0
        %v12090 = vadd.f32 %v11993, %v12089
        %v12091 = vpop.f32.mrb[0].mxu0
        %v12092 = vpop.f32.mrb[0].mxu0
        %v12093 = vadd.f32 %v11993, %v12092
        %v12094 = vpop.f32.mrb[0].mxu0
        %12095 = vmatprep.mubr.bf16.mxu0 0
        %12096 = vmatmul.mubr.bf16.gmra.mrb[0].mxu0 %v12011
        %v12097 = vpop.f32.mrb[0].mxu0
        %v12098 = vadd.f32 %v11993, %v12097
        %v12099 = vpop.f32.mrb[0].mxu0
        %v12100 = vpop.f32.mrb[0].mxu0
        %v12101 = vadd.f32 %v11993, %v12100
        %v12102 = vpop.f32.mrb[0].mxu0
        %12103 = vmatprep.mubr.bf16.mxu0 0
        %12104 = vmatmul.mubr.bf16.gmra.mrb[0].mxu0 %v12014
        %v12105 = vpop.f32.mrb[0].mxu0
        %v12106 = vadd.f32 %v11993, %v12105
        %v12107 = vpop.f32.mrb[0].mxu0
        %v12108 = vpop.f32.mrb[0].mxu0
        %v12109 = vadd.f32 %v11993, %v12108
        %v12110 = vpop.f32.mrb[0].mxu0
        %12111 = vmatprep.mubr.bf16.mxu0 0
        %12112 = vmatmul.mubr.bf16.gmra.mrb[0].mxu0 %v12017
        %v12113 = vpop.f32.mrb[0].mxu0
        %v12114 = vadd.f32 %v11993, %v12113
        %v12115 = vpop.f32.mrb[0].mxu0
        %v12116 = vpop.f32.mrb[0].mxu0
        %v12117 = vadd.f32 %v11993, %v12116
        %v12118 = vpop.f32.mrb[0].mxu0
        %12119 = vmatprep.mubr.bf16.mxu0 0
        %12120 = vmatmul.mubr.bf16.gmra.mrb[0].mxu0 %v12020
        %v12121 = vpop.f32.mrb[0].mxu0
        %v12122 = vadd.f32 %v11993, %v12121
        %v12123 = vpop.f32.mrb[0].mxu0
        %v12124 = vpop.f32.mrb[0].mxu0
        %v12125 = vadd.f32 %v11993, %v12124
        %v12126 = vpop.f32.mrb[0].mxu0
        %12127 = vmatprep.mubr.bf16.mxu0 0
        %12128 = vmatmul.mubr.bf16.gmra.mrb[0].mxu0 %v12023
        %v12129 = vpop.f32.mrb[0].mxu0
        %v12130 = vadd.f32 %v11993, %v12129
        %v12131 = vpop.f32.mrb[0].mxu0
        %v12132 = vpop.f32.mrb[0].mxu0
        %v12133 = vadd.f32 %v11993, %v12132
        %v12134 = vpop.f32.mrb[0].mxu0
        %12135 = vmatprep.mubr.bf16.mxu0 0
        %12136 = vmatmul.mubr.bf16.gmra.mrb[0].mxu0 %v12026
        %v12137 = vpop.f32.mrb[0].mxu0
        %v12138 = vadd.f32 %v11993, %v12137
        %v12139 = vpop.f32.mrb[0].mxu0
        %v12140 = vpop.f32.mrb[0].mxu0
        %v12141 = vadd.f32 %v11993, %v12140
        %v12142 = vpop.f32.mrb[0].mxu0
        %12143 = vmatprep.mubr.bf16.mxu0 0
        %12144 = vmatmul.mubr.bf16.gmra.mrb[0].mxu0 %v12029
        %v12145 = vpop.f32.mrb[0].mxu0
        %v12146 = vadd.f32 %v11993, %v12145
        %v12147 = vpop.f32.mrb[0].mxu0
        %v12148 = vpop.f32.mrb[0].mxu0
        %v12149 = vadd.f32 %v11993, %v12148
        %v12150 = vpop.f32.mrb[0].mxu0
        %12151 = vmatprep.mubr.bf16.mxu0 0
        %12152 = vmatmul.mubr.bf16.gmra.mrb[0].mxu0 %v12032
        %v12153 = vpop.f32.mrb[0].mxu0
        %v12154 = vadd.f32 %v11993, %v12153
        %v12155 = vpop.f32.mrb[0].mxu0
        %v12156 = vpop.f32.mrb[0].mxu0
        %v12157 = vadd.f32 %v11993, %v12156
        %v12158 = vpop.f32.mrb[0].mxu0
        %12159 = vmatprep.mubr.bf16.mxu0 0
        %12160 = vmatmul.mubr.bf16.gmra.mrb[0].mxu0 %v12035
        %v12161 = vpop.f32.mrb[0].mxu0
        %v12162 = vadd.f32 %v11993, %v12161
        %v12163 = vpop.f32.mrb[0].mxu0
        %v12164 = vpop.f32.mrb[0].mxu0
        %v12165 = vadd.f32 %v11993, %v12164
        %v12166 = vpop.f32.mrb[0].mxu0
        %12167 = vmatprep.mubr.bf16.mxu0 0
        %12168 = vmatmul.mubr.bf16.gmra.mrb[0].mxu0 %v12038
        %v12169 = vpop.f32.mrb[0].mxu0
        %v12170 = vadd.f32 %v11993, %v12169
        %v12171 = vpop.f32.mrb[0].mxu0
        %v12172 = vpop.f32.mrb[0].mxu0
        %v12173 = vadd.f32 %v11993, %v12172
        %v12174 = vpop.f32.mrb[0].mxu0
        %12175 = vmatprep.mubr.bf16.mxu0 0
        %12176 = vmatmul.mubr.bf16.gmra.mrb[0].mxu0 %v12041
        %v12177 = vpop.f32.mrb[0].mxu0
        %v12178 = vadd.f32 %v11993, %v12177
        %v12179 = vpop.f32.mrb[0].mxu0
        %v12180 = vpop.f32.mrb[0].mxu0
        %v12181 = vadd.f32 %v11993, %v12180
        %v12182 = vpop.f32.mrb[0].mxu0
        %12183 = vmatprep.mubr.bf16.mxu0 0
        %12184 = vmatmul.mubr.bf16.gmra.mrb[0].mxu0 %v12044
        %v12185 = vpop.f32.mrb[0].mxu0
        %v12186 = vadd.f32 %v11993, %v12185
        %v12187 = vpop.f32.mrb[0].mxu0
        %v12188 = vpop.f32.mrb[0].mxu0
        %v12189 = vadd.f32 %v11993, %v12188
        %v12190 = vpop.f32.mrb[0].mxu0
        %12191 = vmatprep.mubr.bf16.mxu0 0
        %12192 = vmatmul.mubr.bf16.gmra.mrb[0].mxu0 %v12047
        %v12193 = vpop.f32.mrb[0].mxu0
        %v12194 = vadd.f32 %v11993, %v12193
        %v12195 = vpop.f32.mrb[0].mxu0
        %v12196 = vpop.f32.mrb[0].mxu0
        %v12197 = vadd.f32 %v11993, %v12196
        %v12198 = vpop.f32.mrb[0].mxu0
        %12199 = vmatprep.mubr.bf16.mxu0 0
        %12200 = vmatmul.mubr.bf16.gmra.mrb[0].mxu0 %v12050
        %v12201 = vpop.f32.mrb[0].mxu0
        %v12202 = vadd.f32 %v11993, %v12201
        %v12203 = vpop.f32.mrb[0].mxu0
        %v12204 = vpop.f32.mrb[0].mxu0
        %v12205 = vadd.f32 %v11993, %v12204
        %v12206 = vpop.f32.mrb[0].mxu0
        %12207 = vmatprep.mubr.bf16.mxu0 0
        %12208 = vmatmul.mubr.bf16.gmra.mrb[0].mxu0 %v12053
        %v12209 = vpop.f32.mrb[0].mxu0
        %v12210 = vadd.f32 %v11993, %v12209
        %v12211 = vpop.f32.mrb[0].mxu0
        %v12212 = vpop.f32.mrb[0].mxu0
        %v12213 = vadd.f32 %v11993, %v12212
        %v12214 = vpop.f32.mrb[0].mxu0
        %12215 = vdwg.mxu0
        %v12216 = vmul.f32 %v12090, 0.5
        %v12217 = vmul.f32 %v12093, 0.5
        %v12218 = vmul.f32 %v12098, 0.5
        %v12219 = vmul.f32 %v12101, 0.5
        %v12220 = vmul.f32 %v12106, 0.5
        %v12221 = vmul.f32 %v12109, 0.5
        %v12222 = vmul.f32 %v12114, 0.5
        %v12223 = vmul.f32 %v12117, 0.5
        %v12224 = vmul.f32 %v12122, 0.5
        %v12225 = vmul.f32 %v12125, 0.5
        %v12226 = vmul.f32 %v12130, 0.5
        %v12227 = vmul.f32 %v12133, 0.5
        %v12228 = vmul.f32 %v12138, 0.5
        %v12229 = vmul.f32 %v12141, 0.5
        %v12230 = vmul.f32 %v12146, 0.5
        %v12231 = vmul.f32 %v12149, 0.5
        %v12232 = vmul.f32 %v12154, 0.5
        %v12233 = vmul.f32 %v12157, 0.5
        %v12234 = vmul.f32 %v12162, 0.5
        %v12235 = vmul.f32 %v12165, 0.5
        %v12236 = vmul.f32 %v12170, 0.5
        %v12237 = vmul.f32 %v12173, 0.5
        %v12238 = vmul.f32 %v12178, 0.5
        %v12239 = vmul.f32 %v12181, 0.5
        %v12240 = vmul.f32 %v12186, 0.5
        %v12241 = vmul.f32 %v12189, 0.5
        %v12242 = vmul.f32 %v12194, 0.5
        %v12243 = vmul.f32 %v12197, 0.5
        %v12244 = vmul.f32 %v12202, 0.5
        %v12245 = vmul.f32 %v12205, 0.5
        %v12246 = vmul.f32 %v12210, 0.5
        %v12247 = vmul.f32 %v12213, 0.5
        %v12248 = vmul.f32 %v12090, 0.70710677
        %v12249 = vmul.f32 %v12093, 0.70710677
        %v12250 = vmul.f32 %v12098, 0.70710677
        %v12251 = vmul.f32 %v12101, 0.70710677
        %v12252 = vmul.f32 %v12106, 0.70710677
        %v12253 = vmul.f32 %v12109, 0.70710677
        %v12254 = vmul.f32 %v12114, 0.70710677
        %v12255 = vmul.f32 %v12117, 0.70710677
        %v12256 = vmul.f32 %v12122, 0.70710677
        %v12257 = vmul.f32 %v12125, 0.70710677
        %v12258 = vmul.f32 %v12130, 0.70710677
        %v12259 = vmul.f32 %v12133, 0.70710677
        %v12260 = vmul.f32 %v12138, 0.70710677
        %v12261 = vmul.f32 %v12141, 0.70710677
        %v12262 = vmul.f32 %v12146, 0.70710677
        %v12263 = vmul.f32 %v12149, 0.70710677
        %v12264 = vmul.f32 %v12154, 0.70710677
        %v12265 = vmul.f32 %v12157, 0.70710677
        %v12266 = vmul.f32 %v12162, 0.70710677
        %v12267 = vmul.f32 %v12165, 0.70710677
        %v12268 = vmul.f32 %v12170, 0.70710677
        %v12269 = vmul.f32 %v12173, 0.70710677
        %v12270 = vmul.f32 %v12178, 0.70710677
        %v12271 = vmul.f32 %v12181, 0.70710677
        %v12272 = vmul.f32 %v12186, 0.70710677
        %v12273 = vmul.f32 %v12189, 0.70710677
        %v12274 = vmul.f32 %v12194, 0.70710677
        %v12275 = vmul.f32 %v12197, 0.70710677
        %v12276 = vmul.f32 %v12202, 0.70710677
        %v12277 = vmul.f32 %v12205, 0.70710677
        %v12278 = vmul.f32 %v12210, 0.70710677
        %v12279 = vmul.f32 %v12213, 0.70710677
        %v12280 = verf.f32.pop %v12248
        %v12281 = verf.f32.pop %v12249
        %v12282 = verf.f32.pop %v12250
        %v12283 = verf.f32.pop %v12251
        %v12284 = verf.f32.pop %v12252
        %v12285 = verf.f32.pop %v12253
        %v12286 = verf.f32.pop %v12254
        %v12287 = verf.f32.pop %v12255
        %v12288 = verf.f32.pop %v12256
        %v12289 = verf.f32.pop %v12257
        %v12290 = verf.f32.pop %v12258
        %v12291 = verf.f32.pop %v12259
        %v12292 = verf.f32.pop %v12260
        %v12293 = verf.f32.pop %v12261
        %v12294 = verf.f32.pop %v12262
        %v12295 = verf.f32.pop %v12263
        %v12296 = verf.f32.pop %v12264
        %v12297 = verf.f32.pop %v12265
        %v12298 = verf.f32.pop %v12266
        %v12299 = verf.f32.pop %v12267
        %v12300 = verf.f32.pop %v12268
        %v12301 = verf.f32.pop %v12269
        %v12302 = verf.f32.pop %v12270
        %v12303 = verf.f32.pop %v12271
        %v12304 = verf.f32.pop %v12272
        %v12305 = verf.f32.pop %v12273
        %v12306 = verf.f32.pop %v12274
        %v12307 = verf.f32.pop %v12275
        %v12308 = verf.f32.pop %v12276
        %v12309 = verf.f32.pop %v12277
        %v12310 = verf.f32.pop %v12278
        %v12311 = verf.f32.pop %v12279
        %v12312 = vadd.f32 %v12280, 1.0
        %v12313 = vadd.f32 %v12281, 1.0
        %v12314 = vadd.f32 %v12282, 1.0
        %v12315 = vadd.f32 %v12283, 1.0
        %v12316 = vadd.f32 %v12284, 1.0
        %v12317 = vadd.f32 %v12285, 1.0
        %v12318 = vadd.f32 %v12286, 1.0
        %v12319 = vadd.f32 %v12287, 1.0
        %v12320 = vadd.f32 %v12288, 1.0
        %v12321 = vadd.f32 %v12289, 1.0
        %v12322 = vadd.f32 %v12290, 1.0
        %v12323 = vadd.f32 %v12291, 1.0
        %v12324 = vadd.f32 %v12292, 1.0
        %v12325 = vadd.f32 %v12293, 1.0
        %v12326 = vadd.f32 %v12294, 1.0
        %v12327 = vadd.f32 %v12295, 1.0
        %v12328 = vadd.f32 %v12296, 1.0
        %v12329 = vadd.f32 %v12297, 1.0
        %v12330 = vadd.f32 %v12298, 1.0
        %v12331 = vadd.f32 %v12299, 1.0
        %v12332 = vadd.f32 %v12300, 1.0
        %v12333 = vadd.f32 %v12301, 1.0
        %v12334 = vadd.f32 %v12302, 1.0
        %v12335 = vadd.f32 %v12303, 1.0
        %v12336 = vadd.f32 %v12304, 1.0
        %v12337 = vadd.f32 %v12305, 1.0
        %v12338 = vadd.f32 %v12306, 1.0
        %v12339 = vadd.f32 %v12307, 1.0
        %v12340 = vadd.f32 %v12308, 1.0
        %v12341 = vadd.f32 %v12309, 1.0
        %v12342 = vadd.f32 %v12310, 1.0
        %v12343 = vadd.f32 %v12311, 1.0
        %v12344 = vmul.f32 %v12216, %v12312
        %v12345 = vmul.f32 %v12217, %v12313
        %v12346 = vmul.f32 %v12218, %v12314
        %v12347 = vmul.f32 %v12219, %v12315
        %v12348 = vmul.f32 %v12220, %v12316
        %v12349 = vmul.f32 %v12221, %v12317
        %v12350 = vmul.f32 %v12222, %v12318
        %v12351 = vmul.f32 %v12223, %v12319
        %v12352 = vmul.f32 %v12224, %v12320
        %v12353 = vmul.f32 %v12225, %v12321
        %v12354 = vmul.f32 %v12226, %v12322
        %v12355 = vmul.f32 %v12227, %v12323
        %v12356 = vmul.f32 %v12228, %v12324
        %v12357 = vmul.f32 %v12229, %v12325
        %v12358 = vmul.f32 %v12230, %v12326
        %v12359 = vmul.f32 %v12231, %v12327
        %v12360 = vmul.f32 %v12232, %v12328
        %v12361 = vmul.f32 %v12233, %v12329
        %v12362 = vmul.f32 %v12234, %v12330
        %v12363 = vmul.f32 %v12235, %v12331
        %v12364 = vmul.f32 %v12236, %v12332
        %v12365 = vmul.f32 %v12237, %v12333
        %v12366 = vmul.f32 %v12238, %v12334
        %v12367 = vmul.f32 %v12239, %v12335
        %v12368 = vmul.f32 %v12240, %v12336
        %v12369 = vmul.f32 %v12241, %v12337
        %v12370 = vmul.f32 %v12242, %v12338
        %v12371 = vmul.f32 %v12243, %v12339
        %v12372 = vmul.f32 %v12244, %v12340
        %v12373 = vmul.f32 %v12245, %v12341
        %v12374 = vmul.f32 %v12246, %v12342
        %v12375 = vmul.f32 %v12247, %v12343
        %v12376 = vpack.c.bf16 %v12345, %v12344
        %v12377 = vpack.c.bf16 %v12347, %v12346
        %v12378 = vpack.c.bf16 %v12349, %v12348
        %v12379 = vpack.c.bf16 %v12351, %v12350
        %v12380 = vpack.c.bf16 %v12353, %v12352
        %v12381 = vpack.c.bf16 %v12355, %v12354
        %v12382 = vpack.c.bf16 %v12357, %v12356
        %v12383 = vpack.c.bf16 %v12359, %v12358
        %v12384 = vpack.c.bf16 %v12361, %v12360
        %v12385 = vpack.c.bf16 %v12363, %v12362
        %v12386 = vpack.c.bf16 %v12365, %v12364
        %v12387 = vpack.c.bf16 %v12367, %v12366
        %v12388 = vpack.c.bf16 %v12369, %v12368
        %v12389 = vpack.c.bf16 %v12371, %v12370
        %v12390 = vpack.c.bf16 %v12373, %v12372
        %v12391 = vpack.c.bf16 %v12375, %v12374
        %v12392 = vld [vmem:[%s6] sm:$0xf]
        %v12393 = vld [vmem:[%s6 + $0x4] sm:$0xf]
        %v12394 = vld [vmem:[%s6 + $0x8] sm:$0xf]
        %v12395 = vld [vmem:[%s6 + $0xc] sm:$0xf]
        %v12396 = vld [vmem:[%s6 + $0x10] sm:$0xf]
        %v12397 = vld [vmem:[%s6 + $0x14] sm:$0xf]
        %v12398 = vld [vmem:[%s6 + $0x18] sm:$0xf]
        %v12399 = vld [vmem:[%s6 + $0x1c] sm:$0xf]
        %v12400 = vld [vmem:[%s6 + $0x20] sm:$0xf]
        %v12401 = vld [vmem:[%s6 + $0x24] sm:$0xf]
        %v12402 = vld [vmem:[%s6 + $0x28] sm:$0xf]
        %v12403 = vld [vmem:[%s6 + $0x2c] sm:$0xf]
        %v12404 = vld [vmem:[%s6 + $0x30] sm:$0xf]
        %v12405 = vld [vmem:[%s6 + $0x34] sm:$0xf]
        %v12406 = vld [vmem:[%s6 + $0x38] sm:$0xf]
        %v12407 = vld [vmem:[%s6 + $0x3c] sm:$0xf]
        %v12408 = vld [vmem:[%s7] sm:$0x1]
        %v12410 = vlaneseq
        %v12411 = vshrl.u32 %v12410, 7
        %v12412 = vsub.s32 0, %v12411
        %v12413 = vrot.slane %v12408, %v12412
        %v12431 = vunpack.c.l.b16 %v12392
        %v12432 = vunpack.c.l.b16 %v12393
        %v12433 = vunpack.c.l.b16 %v12394
        %v12434 = vunpack.c.l.b16 %v12395
        %v12435 = vunpack.c.l.b16 %v12396
        %v12436 = vunpack.c.l.b16 %v12397
        %v12437 = vunpack.c.l.b16 %v12398
        %v12438 = vunpack.c.l.b16 %v12399
        %v12439 = vunpack.c.l.b16 %v12400
        %v12440 = vunpack.c.l.b16 %v12401
        %v12441 = vunpack.c.l.b16 %v12402
        %v12442 = vunpack.c.l.b16 %v12403
        %v12443 = vunpack.c.l.b16 %v12404
        %v12444 = vunpack.c.l.b16 %v12405
        %v12445 = vunpack.c.l.b16 %v12406
        %v12446 = vunpack.c.l.b16 %v12407
        %v12447 = vpack.c.b16 %v12432, %v12431
        %v12448 = vpack.c.b16 %v12434, %v12433
        %v12449 = vpack.c.b16 %v12436, %v12435
        %v12450 = vpack.c.b16 %v12438, %v12437
        %v12451 = vpack.c.b16 %v12440, %v12439
        %v12452 = vpack.c.b16 %v12442, %v12441
        %v12453 = vpack.c.b16 %v12444, %v12443
        %v12454 = vpack.c.b16 %v12446, %v12445
        %12463 = vmatprep.subr.bf16.mxu0 0
        %12464 = vmatpush1.bf16.msra.mxu0 %v12447
        %12465 = vmatprep.subr.bf16.mxu0 0
        %12466 = vmatpush1.bf16.msra.mxu0 %v12448
        %12467 = vmatprep.subr.bf16.mxu0 0
        %12468 = vmatpush1.bf16.msra.mxu0 %v12449
        %12469 = vmatprep.subr.bf16.mxu0 0
        %12470 = vmatpush1.bf16.msra.mxu0 %v12450
        %12471 = vmatprep.subr.bf16.mxu0 0
        %12472 = vmatpush1.bf16.msra.mxu0 %v12451
        %12473 = vmatprep.subr.bf16.mxu0 0
        %12474 = vmatpush1.bf16.msra.mxu0 %v12452
        %12475 = vmatprep.subr.bf16.mxu0 0
        %12476 = vmatpush1.bf16.msra.mxu0 %v12453
        %12477 = vmatprep.subr.bf16.mxu0 0
        %12478 = vmatpush1.bf16.msra.mxu0 %v12454
        %12479 = vmatprep.subr.bf16.mxu0 0
        %12480 = vmatpush1.bf16.msra.mxu0 0
        %12481 = vmatprep.subr.bf16.mxu0 0
        %12482 = vmatpush1.bf16.msra.mxu0 0
        %12483 = vmatprep.subr.bf16.mxu0 0
        %12484 = vmatpush1.bf16.msra.mxu0 0
        %12485 = vmatprep.subr.bf16.mxu0 0
        %12486 = vmatpush1.bf16.msra.mxu0 0
        %12487 = vmatprep.subr.bf16.mxu0 0
        %12488 = vmatpush1.bf16.msra.mxu0 0
        %12489 = vmatprep.subr.bf16.mxu0 0
        %12490 = vmatpush1.bf16.msra.mxu0 0
        %12491 = vmatprep.subr.bf16.mxu0 0
        %12492 = vmatpush1.bf16.msra.mxu0 0
        %12493 = vmatprep.subr.bf16.mxu0 0
        %12494 = vmatpush1.bf16.msra.mxu0 0
        %12495 = vmatprep.mubr.bf16.mxu0 0
        %12496 = vmatmul.mubr.bf16.gmra.mrb[0].mxu0 %v12376
        %v12497 = vpop.f32.mrb[0].mxu0
        %v12498 = vadd.f32 %v12413, %v12497
        %v12499 = vpop.f32.mrb[0].mxu0
        %v12500 = vpop.f32.mrb[0].mxu0
        %v12501 = vadd.f32 %v12413, %v12500
        %v12502 = vpop.f32.mrb[0].mxu0
        %12503 = vmatprep.mubr.bf16.mxu0 0
        %12504 = vmatmul.mubr.bf16.gmra.mrb[0].mxu0 %v12377
        %v12505 = vpop.f32.mrb[0].mxu0
        %v12506 = vadd.f32 %v12413, %v12505
        %v12507 = vpop.f32.mrb[0].mxu0
        %v12508 = vpop.f32.mrb[0].mxu0
        %v12509 = vadd.f32 %v12413, %v12508
        %v12510 = vpop.f32.mrb[0].mxu0
        %12511 = vmatprep.mubr.bf16.mxu0 0
        %12512 = vmatmul.mubr.bf16.gmra.mrb[0].mxu0 %v12378
        %v12513 = vpop.f32.mrb[0].mxu0
        %v12514 = vadd.f32 %v12413, %v12513
        %v12515 = vpop.f32.mrb[0].mxu0
        %v12516 = vpop.f32.mrb[0].mxu0
        %v12517 = vadd.f32 %v12413, %v12516
        %v12518 = vpop.f32.mrb[0].mxu0
        %12519 = vmatprep.mubr.bf16.mxu0 0
        %12520 = vmatmul.mubr.bf16.gmra.mrb[0].mxu0 %v12379
        %v12521 = vpop.f32.mrb[0].mxu0
        %v12522 = vadd.f32 %v12413, %v12521
        %v12523 = vpop.f32.mrb[0].mxu0
        %v12524 = vpop.f32.mrb[0].mxu0
        %v12525 = vadd.f32 %v12413, %v12524
        %v12526 = vpop.f32.mrb[0].mxu0
        %12527 = vmatprep.mubr.bf16.mxu0 0
        %12528 = vmatmul.mubr.bf16.gmra.mrb[0].mxu0 %v12380
        %v12529 = vpop.f32.mrb[0].mxu0
        %v12530 = vadd.f32 %v12413, %v12529
        %v12531 = vpop.f32.mrb[0].mxu0
        %v12532 = vpop.f32.mrb[0].mxu0
        %v12533 = vadd.f32 %v12413, %v12532
        %v12534 = vpop.f32.mrb[0].mxu0
        %12535 = vmatprep.mubr.bf16.mxu0 0
        %12536 = vmatmul.mubr.bf16.gmra.mrb[0].mxu0 %v12381
        %v12537 = vpop.f32.mrb[0].mxu0
        %v12538 = vadd.f32 %v12413, %v12537
        %v12539 = vpop.f32.mrb[0].mxu0
        %v12540 = vpop.f32.mrb[0].mxu0
        %v12541 = vadd.f32 %v12413, %v12540
        %v12542 = vpop.f32.mrb[0].mxu0
        %12543 = vmatprep.mubr.bf16.mxu0 0
        %12544 = vmatmul.mubr.bf16.gmra.mrb[0].mxu0 %v12382
        %v12545 = vpop.f32.mrb[0].mxu0
        %v12546 = vadd.f32 %v12413, %v12545
        %v12547 = vpop.f32.mrb[0].mxu0
        %v12548 = vpop.f32.mrb[0].mxu0
        %v12549 = vadd.f32 %v12413, %v12548
        %v12550 = vpop.f32.mrb[0].mxu0
        %12551 = vmatprep.mubr.bf16.mxu0 0
        %12552 = vmatmul.mubr.bf16.gmra.mrb[0].mxu0 %v12383
        %v12553 = vpop.f32.mrb[0].mxu0
        %v12554 = vadd.f32 %v12413, %v12553
        %v12555 = vpop.f32.mrb[0].mxu0
        %v12556 = vpop.f32.mrb[0].mxu0
        %v12557 = vadd.f32 %v12413, %v12556
        %v12558 = vpop.f32.mrb[0].mxu0
        %12559 = vmatprep.mubr.bf16.mxu0 0
        %12560 = vmatmul.mubr.bf16.gmra.mrb[0].mxu0 %v12384
        %v12561 = vpop.f32.mrb[0].mxu0
        %v12562 = vadd.f32 %v12413, %v12561
        %v12563 = vpop.f32.mrb[0].mxu0
        %v12564 = vpop.f32.mrb[0].mxu0
        %v12565 = vadd.f32 %v12413, %v12564
        %v12566 = vpop.f32.mrb[0].mxu0
        %12567 = vmatprep.mubr.bf16.mxu0 0
        %12568 = vmatmul.mubr.bf16.gmra.mrb[0].mxu0 %v12385
        %v12569 = vpop.f32.mrb[0].mxu0
        %v12570 = vadd.f32 %v12413, %v12569
        %v12571 = vpop.f32.mrb[0].mxu0
        %v12572 = vpop.f32.mrb[0].mxu0
        %v12573 = vadd.f32 %v12413, %v12572
        %v12574 = vpop.f32.mrb[0].mxu0
        %12575 = vmatprep.mubr.bf16.mxu0 0
        %12576 = vmatmul.mubr.bf16.gmra.mrb[0].mxu0 %v12386
        %v12577 = vpop.f32.mrb[0].mxu0
        %v12578 = vadd.f32 %v12413, %v12577
        %v12579 = vpop.f32.mrb[0].mxu0
        %v12580 = vpop.f32.mrb[0].mxu0
        %v12581 = vadd.f32 %v12413, %v12580
        %v12582 = vpop.f32.mrb[0].mxu0
        %12583 = vmatprep.mubr.bf16.mxu0 0
        %12584 = vmatmul.mubr.bf16.gmra.mrb[0].mxu0 %v12387
        %v12585 = vpop.f32.mrb[0].mxu0
        %v12586 = vadd.f32 %v12413, %v12585
        %v12587 = vpop.f32.mrb[0].mxu0
        %v12588 = vpop.f32.mrb[0].mxu0
        %v12589 = vadd.f32 %v12413, %v12588
        %v12590 = vpop.f32.mrb[0].mxu0
        %12591 = vmatprep.mubr.bf16.mxu0 0
        %12592 = vmatmul.mubr.bf16.gmra.mrb[0].mxu0 %v12388
        %v12593 = vpop.f32.mrb[0].mxu0
        %v12594 = vadd.f32 %v12413, %v12593
        %v12595 = vpop.f32.mrb[0].mxu0
        %v12596 = vpop.f32.mrb[0].mxu0
        %v12597 = vadd.f32 %v12413, %v12596
        %v12598 = vpop.f32.mrb[0].mxu0
        %12599 = vmatprep.mubr.bf16.mxu0 0
        %12600 = vmatmul.mubr.bf16.gmra.mrb[0].mxu0 %v12389
        %v12601 = vpop.f32.mrb[0].mxu0
        %v12602 = vadd.f32 %v12413, %v12601
        %v12603 = vpop.f32.mrb[0].mxu0
        %v12604 = vpop.f32.mrb[0].mxu0
        %v12605 = vadd.f32 %v12413, %v12604
        %v12606 = vpop.f32.mrb[0].mxu0
        %12607 = vmatprep.mubr.bf16.mxu0 0
        %12608 = vmatmul.mubr.bf16.gmra.mrb[0].mxu0 %v12390
        %v12609 = vpop.f32.mrb[0].mxu0
        %v12610 = vadd.f32 %v12413, %v12609
        %v12611 = vpop.f32.mrb[0].mxu0
        %v12612 = vpop.f32.mrb[0].mxu0
        %v12613 = vadd.f32 %v12413, %v12612
        %v12614 = vpop.f32.mrb[0].mxu0
        %12615 = vmatprep.mubr.bf16.mxu0 0
        %12616 = vmatmul.mubr.bf16.gmra.mrb[0].mxu0 %v12391
        %v12617 = vpop.f32.mrb[0].mxu0
        %v12618 = vadd.f32 %v12413, %v12617
        %v12619 = vpop.f32.mrb[0].mxu0
        %v12620 = vpop.f32.mrb[0].mxu0
        %v12621 = vadd.f32 %v12413, %v12620
        %v12622 = vpop.f32.mrb[0].mxu0
        %12623 = vdwg.mxu0
        %v12624 = vld [vmem:[%s5124 + $0x3] sm:$0xff]
        %v12625 = vld [vmem:[%s5124 + $0xb] sm:$0xff]
        %v12626 = vld [vmem:[%s5124 + $0x13] sm:$0xff]
        %v12627 = vld [vmem:[%s5124 + $0x1b] sm:$0xff]
        %v12628 = vld [vmem:[%s5124 + $0x2b] sm:$0xff]
        %v12629 = vld [vmem:[%s5124 + $0x33] sm:$0xff]
        %v12630 = vld [vmem:[%s5124 + $0x3b] sm:$0xff]
        %v12631 = vld [vmem:[%s5124 + $0x43] sm:$0xff]
        %v12632 = vld [vmem:[%s5124 + $0x53] sm:$0xff]
        %v12633 = vld [vmem:[%s5124 + $0x5b] sm:$0xff]
        %v12634 = vld [vmem:[%s5124 + $0x63] sm:$0xff]
        %v12635 = vld [vmem:[%s5124 + $0x6b] sm:$0xff]
        %v12636 = vld [vmem:[%s5124 + $0x7b] sm:$0xff]
        %v12637 = vld [vmem:[%s5124 + $0x83] sm:$0xff]
        %v12638 = vld [vmem:[%s5124 + $0x8b] sm:$0xff]
        %v12639 = vld [vmem:[%s5124 + $0x93] sm:$0xff]
        %v12640 = vld [vmem:[%s5124 + $0xa3] sm:$0xff]
        %v12641 = vld [vmem:[%s5124 + $0xab] sm:$0xff]
        %v12642 = vld [vmem:[%s5124 + $0xb3] sm:$0xff]
        %v12643 = vld [vmem:[%s5124 + $0xbb] sm:$0xff]
        %v12644 = vld [vmem:[%s5124 + $0xcb] sm:$0xff]
        %v12645 = vld [vmem:[%s5124 + $0xd3] sm:$0xff]
        %v12646 = vld [vmem:[%s5124 + $0xdb] sm:$0xff]
        %v12647 = vld [vmem:[%s5124 + $0xe3] sm:$0xff]
        %v12648 = vld [vmem:[%s5124 + $0xf3] sm:$0xff]
        %v12649 = vld [vmem:[%s5124 + $0xfb] sm:$0xff]
        %v12650 = vld [vmem:[%s5124 + $0x103] sm:$0xff]
        %v12651 = vld [vmem:[%s5124 + $0x10b] sm:$0xff]
        %v12652 = vld [vmem:[%s5124 + $0x11b] sm:$0xff]
        %v12653 = vld [vmem:[%s5124 + $0x123] sm:$0xff]
        %v12654 = vld [vmem:[%s5124 + $0x12b] sm:$0xff]
        %v12655 = vld [vmem:[%s5124 + $0x133] sm:$0xff]
        %v12656 = vadd.f32 %v12624, %v12498
        %v12657 = vadd.f32 %v12625, %v12501
        %v12658 = vadd.f32 %v12626, %v12506
        %v12659 = vadd.f32 %v12627, %v12509
        %v12660 = vadd.f32 %v12628, %v12514
        %v12661 = vadd.f32 %v12629, %v12517
        %v12662 = vadd.f32 %v12630, %v12522
        %v12663 = vadd.f32 %v12631, %v12525
        %v12664 = vadd.f32 %v12632, %v12530
        %v12665 = vadd.f32 %v12633, %v12533
        %v12666 = vadd.f32 %v12634, %v12538
        %v12667 = vadd.f32 %v12635, %v12541
        %v12668 = vadd.f32 %v12636, %v12546
        %v12669 = vadd.f32 %v12637, %v12549
        %v12670 = vadd.f32 %v12638, %v12554
        %v12671 = vadd.f32 %v12639, %v12557
        %v12672 = vadd.f32 %v12640, %v12562
        %v12673 = vadd.f32 %v12641, %v12565
        %v12674 = vadd.f32 %v12642, %v12570
        %v12675 = vadd.f32 %v12643, %v12573
        %v12676 = vadd.f32 %v12644, %v12578
        %v12677 = vadd.f32 %v12645, %v12581
        %v12678 = vadd.f32 %v12646, %v12586
        %v12679 = vadd.f32 %v12647, %v12589
        %v12680 = vadd.f32 %v12648, %v12594
        %v12681 = vadd.f32 %v12649, %v12597
        %v12682 = vadd.f32 %v12650, %v12602
        %v12683 = vadd.f32 %v12651, %v12605
        %v12684 = vadd.f32 %v12652, %v12610
        %v12685 = vadd.f32 %v12653, %v12613
        %v12686 = vadd.f32 %v12654, %v12618
        %v12687 = vadd.f32 %v12655, %v12621
        %12688 = vst.msk [vmem:[%s337] sm:$0xff] %vm11703, %v12656
        %12689 = vst.msk [vmem:[%s337 + $0x8] sm:$0xff] %vm11703, %v12657
        %12690 = vst.msk [vmem:[%s337 + $0x10] sm:$0xff] %vm11703, %v12658
        %12691 = vst.msk [vmem:[%s337 + $0x18] sm:$0xff] %vm11703, %v12659
        %12692 = vst.msk [vmem:[%s337 + $0x20] sm:$0xff] %vm11703, %v12660
        %12693 = vst.msk [vmem:[%s337 + $0x28] sm:$0xff] %vm11703, %v12661
        %12694 = vst.msk [vmem:[%s337 + $0x30] sm:$0xff] %vm11703, %v12662
        %12695 = vst.msk [vmem:[%s337 + $0x38] sm:$0xff] %vm11703, %v12663
        %12696 = vst.msk [vmem:[%s337 + $0x40] sm:$0xff] %vm11703, %v12664
        %12697 = vst.msk [vmem:[%s337 + $0x48] sm:$0xff] %vm11703, %v12665
        %12698 = vst.msk [vmem:[%s337 + $0x50] sm:$0xff] %vm11703, %v12666
        %12699 = vst.msk [vmem:[%s337 + $0x58] sm:$0xff] %vm11703, %v12667
        %12700 = vst.msk [vmem:[%s337 + $0x60] sm:$0xff] %vm11703, %v12668
        %12701 = vst.msk [vmem:[%s337 + $0x68] sm:$0xff] %vm11703, %v12669
        %12702 = vst.msk [vmem:[%s337 + $0x70] sm:$0xff] %vm11703, %v12670
        %12703 = vst.msk [vmem:[%s337 + $0x78] sm:$0xff] %vm11703, %v12671
        %12704 = vst.msk [vmem:[%s337 + $0x80] sm:$0xff] %vm11703, %v12672
        %12705 = vst.msk [vmem:[%s337 + $0x88] sm:$0xff] %vm11703, %v12673
        %12706 = vst.msk [vmem:[%s337 + $0x90] sm:$0xff] %vm11703, %v12674
        %12707 = vst.msk [vmem:[%s337 + $0x98] sm:$0xff] %vm11703, %v12675
        %12708 = vst.msk [vmem:[%s337 + $0xa0] sm:$0xff] %vm11703, %v12676
        %12709 = vst.msk [vmem:[%s337 + $0xa8] sm:$0xff] %vm11703, %v12677
        %12710 = vst.msk [vmem:[%s337 + $0xb0] sm:$0xff] %vm11703, %v12678
        %12711 = vst.msk [vmem:[%s337 + $0xb8] sm:$0xff] %vm11703, %v12679
        %12712 = vst.msk [vmem:[%s337 + $0xc0] sm:$0xff] %vm11703, %v12680
        %12713 = vst.msk [vmem:[%s337 + $0xc8] sm:$0xff] %vm11703, %v12681
        %12714 = vst.msk [vmem:[%s337 + $0xd0] sm:$0xff] %vm11703, %v12682
        %12715 = vst.msk [vmem:[%s337 + $0xd8] sm:$0xff] %vm11703, %v12683
        %12716 = vst.msk [vmem:[%s337 + $0xe0] sm:$0xff] %vm11703, %v12684
        %12717 = vst.msk [vmem:[%s337 + $0xe8] sm:$0xff] %vm11703, %v12685
        %12718 = vst.msk [vmem:[%s337 + $0xf0] sm:$0xff] %vm11703, %v12686
        %12719 = vst.msk [vmem:[%s337 + $0xf8] sm:$0xff] %vm11703, %v12687
        %s12720 = sand.u32 %s220, 1
        %s12721 = scalar_lea.sflag [#allocation5], %s12720
        %s12722 = sand.u32 %s220, 1
        %s12723 = smul.addr %s12722, 256
        %s12724 = scalar_lea.vmem [#allocation6], %s12723
        // Predicated region
        $region61: #{tpu_custom_call.1} parent=51 // pred_check
          %p12725 = pneg %p230
        $region62: #{tpu_custom_call.1} parent=51 // pred_check_branch
          %12727 = sbr.rel (%p12725) target = $region64
        $region63: #{tpu_custom_call.1} parent=51 // pred_region
          %s12728 = smul.u32 8, %s30
          %s12730 = ssub.s32 4096, 4096
          %12731 = vsyncadd %s12721, %s12730
          %s12732 = smul.addr %s12728, 4
          %s12733 = smul.addr %s29, 128
          %s12734 = sadd.s32 %s12732, %s12733
          %s12735 = smul.addr %s12734, 128
          %s12736 = scalar_lea.hbm %s8, %s12735
          %s12737 = sshll.u32 %s12724, 4
          %s12738 = int_to_ptr.vmem [resolvable:$true] %s12737
          %12743 = dma.vmem_to_hbm [thread:$0]  %s12738, 4096, %s12736, %s12721, 128, 128, 8
        $region64: #{tpu_custom_call.1} parent=51 // pred_fallthru
          _
      $region52: #{tpu_custom_call.1} parent=5 // pred_fallthru
        _
      %p12744 = scmp.le.s32.totalorder 2, %s20
      // Predicated region
      $region65: #{tpu_custom_call.1} parent=5 // pred_check
        %p12745 = pneg %p12744
      $region66: #{tpu_custom_call.1} parent=5 // pred_check_branch
        %12747 = sbr.rel (%p12745) target = $region68
      $region67: #{tpu_custom_call.1} parent=5 // pred_region
        %s12748 = ssub.s32 %s20, 2
        // Predicated region
        $region69: #{tpu_custom_call.1} parent=67 // pred_check
          %p12749 = pneg %p236
        $region70: #{tpu_custom_call.1} parent=67 // pred_check_branch
          %12751 = sbr.rel (%p12749) target = $region72
        $region71: #{tpu_custom_call.1} parent=67 // pred_region
          %s12752 = sand.u32 %s221, 1
          %s12753 = scalar_lea.sflag [#allocation5], %s12752
          %s12754 = sand.u32 %s221, 1
          %s12755 = smul.addr %s12754, 256
          %s12756 = scalar_lea.vmem [#allocation6], %s12755
          %12757 = dma.done %s12753, 4096
        $region72: #{tpu_custom_call.1} parent=67 // pred_fallthru
          _
      $region68: #{tpu_custom_call.1} parent=5 // pred_fallthru
        _
    $region6: #{tpu_custom_call.1} parent=1 // loop_footer
      %s24 = sadd.s32 1, %s20
    $region7: #{tpu_custom_call.1} parent=1 // loop_footer_branch
      %19 = sbr.rel target = $region3
    $region8: #{tpu_custom_call.1} parent=1 // loop_exit
      _
    %12758 = vsyncpa [#allocation4], 1
    %s12759 = scalar_lea.sflag [#allocation4], 1
    %12760 = vsyncpa %s12759, 1
    %12761 = vsyncpa [#allocation5], 1
    %s12762 = scalar_lea.sflag [#allocation5], 1
    %12763 = vsyncpa %s12762, 1

</llo_original>
